<compile_context>
chip_gen: v7x
topology: tpu7x:2x2x1
jax: 0.10.0
libtpu: 0.0.40
codegen_flags: <defaults>
</compile_context>

<pallas_src>
import numpy as np
import jax
import jax.numpy as jnp
from jax.experimental import pallas as pl
from jax.experimental.pallas import tpu as pltpu

H = W = 16          # input spatial size used by the example
HO = WO = 65        # nn.Upsample target size (fixed by the module)
HO_PAD = 80         # sublane-aligned (mult of 16) padded output rows
WO_PAD = 128        # lane-dense padded output cols
C1, C2, C3 = 16, 32, 32


# ---------------------------------------------------------------------------
# Host-side helpers
# ---------------------------------------------------------------------------
def _bilinear_matrix(in_size, out_size):
    """(out,in) interpolation matrix; exact PyTorch bilinear align_corners=False."""
    scale = in_size / out_size
    dst = np.arange(out_size)
    src = np.clip((dst + 0.5) * scale - 0.5, 0.0, None)
    i0 = np.minimum(np.floor(src).astype(np.int64), in_size - 1)
    i1 = np.minimum(i0 + 1, in_size - 1)
    l1 = (src - i0).astype(np.float32)
    l0 = (1.0 - l1).astype(np.float32)
    A = np.zeros((out_size, in_size), np.float32)
    A[dst, i0] += l0
    A[dst, i1] += l1
    return A


def init_params(key):
    """Deterministic PyTorch-default-style init.
    Conv weights stored as (9, Cin, Cout) taps, k = ky*3+kx (== torch w[co,ci,ky,kx]);
    biases as (1, Cout)."""
    def conv_init(k, cin, cout):
        kw, kb = jax.random.split(k)
        bound = 1.0 / np.sqrt(cin * 9)
        wt = jax.random.uniform(kw, (9, cin, cout), jnp.float32, -bound, bound)
        bs = jax.random.uniform(kb, (1, cout), jnp.float32, -bound, bound)
        return wt, bs

    k1, k2, k3, kf = jax.random.split(key, 4)
    w1, b1 = conv_init(k1, 1, C1)
    w2, b2 = conv_init(k2, C1, C2)
    w3, b3 = conv_init(k3, C2, C3)
    wf, bf = conv_init(kf, C3, 1)
    return dict(w1=w1, b1=b1, w2=w2, b2=b2, w3=w3, b3=b3, wf=wf, bf=bf)


def _banded_weight(w9, w):
    """3x3 conv (padding=1) as 3 block-banded matrices over the x axis.
    M[ky][(x_in*cin + ci), (x_out*cout + co)] = w9[ky*3+kx, ci, co], kx = x_in-x_out+1."""
    w9 = np.asarray(w9)
    _, cin, cout = w9.shape
    wv = w9.reshape(3, 3, cin, cout)
    m = np.zeros((3, w * cin, w * cout), np.float32)
    for ky in range(3):
        for kx in range(3):
            for xo in range(w):
                xi = xo + kx - 1
                if 0 <= xi < w:
                    m[ky, xi * cin:(xi + 1) * cin, xo * cout:(xo + 1) * cout] = wv[ky, kx]
    return m


def prepare_params(params, h=H, w=W, ho=HO, wo=WO, hop=HO_PAD, wop=WO_PAD):
    """One-time host repack of the weights for the fused kernel."""
    def bias_vec(b, cout):
        return jnp.asarray(np.tile(np.asarray(b).reshape(1, cout), (1, w)), jnp.float32)

    m1 = _banded_weight(params["w1"], w)                  # (3,  w,     w*C1)
    m2 = _banded_weight(params["w2"], w)                  # (3,  w*C1,  w*C2)
    m3 = _banded_weight(params["w3"], w)                  # (3,  w*C2,  w*C3)

    # --- fused upsample + conv_final tail -----------------------------------
    a_h = _bilinear_matrix(h, ho)                         # (ho, h)
    a_w = _bilinear_matrix(w, wo)                         # (wo, w)
    ah_ext = np.zeros((ho + 2, h), np.float32)
    ah_ext[1:ho + 1] = a_h                                # zero rows 0 / ho+1 == conv padding
    aw_ext = np.zeros((wo + 2, w), np.float32)
    aw_ext[1:wo + 1] = a_w

    wf = np.asarray(params["wf"]).reshape(3, 3, C3, 1)
    bwcat = np.zeros((w * C3, 3 * wop), np.float32)       # stage-1: dy blocks concat along N
    for ky in range(3):
        for kx in range(3):
            wv = wf[ky, kx, :, 0]                         # (C3,)
            cdx = aw_ext[kx:kx + wo, :]                   # (wo, w) -> [x_out, x_in]
            blk = np.einsum("c,oj->jco", wv, cdx).reshape(w * C3, wo)
            bwcat[:, ky * wop:ky * wop + wo] += blk

    ahcat = np.zeros((hop, 3 * h), np.float32)            # stage-2: the 3 row-slices folded
    for ky in range(3):
        ahcat[:ho, ky * h:(ky + 1) * h] = ah_ext[ky:ky + ho, :]

    return dict(
        m1=jnp.asarray(m1, jnp.bfloat16), bv1=bias_vec(params["b1"], C1),
        m2=jnp.asarray(m2, jnp.bfloat16), bv2=bias_vec(params["b2"], C2),
        m3=jnp.asarray(m3, jnp.bfloat16), bv3=bias_vec(params["b3"], C3),
        bwcat=jnp.asarray(bwcat, jnp.bfloat16),           # (w*C3, 3*WO_PAD)
        ahcat=jnp.asarray(ahcat, jnp.bfloat16),           # (HO_PAD, 3*h)
        bf=jnp.asarray(np.asarray(params["bf"]).reshape(1, 1), jnp.float32),
    )


def _shift_matrices(block_b, h):
    """0/1 row-shift matrices with per-image zero boundary rows (exact in bf16)."""
    rows = block_b * h
    d = np.zeros((rows, rows), np.float32)
    u = np.zeros((rows, rows), np.float32)
    for r in range(rows):
        if r % h != 0:
            d[r, r - 1] = 1.0      # output row y pulls input row y-1
        if r % h != h - 1:
            u[r, r + 1] = 1.0      # output row y pulls input row y+1
    return jnp.asarray(d, jnp.bfloat16), jnp.asarray(u, jnp.bfloat16)


# ---------------------------------------------------------------------------
# Fused forward kernel (everything is matmuls; activations never leave VMEM)
# ---------------------------------------------------------------------------
def _make_fused_kernel(bb, h, w, hop, wop):
    rows = bb * h
    bf16 = jnp.bfloat16

    def kernel(x_ref, d_ref, u_ref, m1_ref, bv1_ref, m2_ref, bv2_ref,
               m3_ref, bv3_ref, bw_ref, ah_ref, bf_ref, o_ref):
        dmat = d_ref[...]                                  # (rows, rows) bf16
        umat = u_ref[...]

        def conv3x3(s_bf, m_ref, bv_ref):
            # banded 3x3 conv with padding=1 on a (rows, w*cin) slab -> (rows, w*cout)
            sd = jnp.dot(dmat, s_bf, preferred_element_type=jnp.float32).astype(bf16)
            su = jnp.dot(umat, s_bf, preferred_element_type=jnp.float32).astype(bf16)
            y = (jnp.dot(sd,   m_ref[0], preferred_element_type=jnp.float32)
                 + jnp.dot(s_bf, m_ref[1], preferred_element_type=jnp.float32)
                 + jnp.dot(su,   m_ref[2], preferred_element_type=jnp.float32)
                 + bv_ref[...])
            return jnp.maximum(y, 0.0).astype(bf16)

        # input slab: row = b*h + y, col = x   (cin = 1)
        s1 = x_ref[...].reshape(rows, w).astype(bf16)
        a1 = conv3x3(s1, m1_ref, bv1_ref)                  # (rows, w*C1)
        a2 = conv3x3(a1, m2_ref, bv2_ref)                  # (rows, w*C2)
        a3 = conv3x3(a2, m3_ref, bv3_ref)                  # (rows, w*C3)

        # --- fused bilinear upsample + conv_final: 2 matmuls -----------------
        # stage 1: horizontal upsample * (kx, ci) taps, all 3 ky blocks at once
        g = jnp.dot(a3, bw_ref[...], preferred_element_type=jnp.float32)  # (rows, 3*wop)

        # regroup (b, ky) blocks: Gcat[ky*h + y, b*wop + xo] = g[b*h + y, ky*wop + xo]
        cols = []
        for b in range(bb):
            cols.append(jnp.concatenate(
                [g[b * h:(b + 1) * h, ky * wop:(ky + 1) * wop] for ky in range(3)],
                axis=0))                                    # (3h, wop)
        gcat = jnp.concatenate(cols, axis=1).astype(bf16)   # (3h, bb*wop)

        # stage 2: vertical upsample * ky taps, shared across images
        out_all = (jnp.dot(ah_ref[...], gcat, preferred_element_type=jnp.float32)
                   + bf_ref[...])                            # (hop, bb*wop) f32

        for b in range(bb):
            o_ref[b, 0, :, :] = out_all[:, b * wop:(b + 1) * wop]

    return kernel


def cnn_model_forward(x_nchw, prep, block_b=None):
    """x: (N, 1, 16, 16) f32 NCHW  ->  (N, 1, 65, 65) f32 NCHW."""
    n, cin, h, w = x_nchw.shape
    assert cin == 1 and (h, w) == (H, W)
    if block_b is None:
        # a few images per grid step, but keep the grid length >= 2 (v7x megacore)
        block_b = max(1, min(8, n // 2))
    n_pad = -(-n // block_b) * block_b
    if n_pad != n:
        x_nchw = jnp.concatenate(
            [x_nchw, jnp.zeros((n_pad - n, 1, h, w), x_nchw.dtype)], axis=0)

    rows = block_b * h
    dmat, umat = _shift_matrices(block_b, h)
    kernel = _make_fused_kernel(block_b, h, w, HO_PAD, WO_PAD)

    out = pl.pallas_call(
        kernel,
        out_shape=jax.ShapeDtypeStruct((n_pad, 1, HO_PAD, WO_PAD), jnp.float32),
        grid=(n_pad // block_b,),
        in_specs=[
            pl.BlockSpec((block_b, 1, h, w), lambda i: (i, 0, 0, 0)),     # x (NCHW)
            pl.BlockSpec((rows, rows), lambda i: (0, 0)),                  # shift down
            pl.BlockSpec((rows, rows), lambda i: (0, 0)),                  # shift up
            pl.BlockSpec((3, w * 1, w * C1), lambda i: (0, 0, 0)),         # m1
            pl.BlockSpec((1, w * C1), lambda i: (0, 0)),                   # bv1
            pl.BlockSpec((3, w * C1, w * C2), lambda i: (0, 0, 0)),        # m2
            pl.BlockSpec((1, w * C2), lambda i: (0, 0)),                   # bv2
            pl.BlockSpec((3, w * C2, w * C3), lambda i: (0, 0, 0)),        # m3
            pl.BlockSpec((1, w * C3), lambda i: (0, 0)),                   # bv3
            pl.BlockSpec((w * C3, 3 * WO_PAD), lambda i: (0, 0)),          # bwcat
            pl.BlockSpec((HO_PAD, 3 * h), lambda i: (0, 0)),               # ahcat
            pl.BlockSpec((1, 1), lambda i: (0, 0)),                        # bf
        ],
        out_specs=pl.BlockSpec((block_b, 1, HO_PAD, WO_PAD), lambda i: (i, 0, 0, 0)),
        compiler_params=pltpu.CompilerParams(
            dimension_semantics=("parallel",),
            vmem_limit_bytes=32 * 1024 * 1024),
    )(x_nchw, dmat, umat,
      prep["m1"], prep["bv1"], prep["m2"], prep["bv2"], prep["m3"], prep["bv3"],
      prep["bwcat"], prep["ahcat"], prep["bf"])

    return out[:n, :, :HO, :WO]


# ---------------------------------------------------------------------------
# Pure-XLA reference of the same network (for numerical self-check)
# ---------------------------------------------------------------------------
def _reference_forward(x, params, a_h, a_w):
    hi = jax.lax.Precision.HIGHEST

    def conv(t, w9, b):
        cin, cout = w9.shape[1], w9.shape[2]
        wt = jnp.transpose(w9.reshape(3, 3, cin, cout), (3, 2, 0, 1))  # OIHW
        y = jax.lax.conv_general_dilated(
            t, wt, window_strides=(1, 1), padding=((1, 1), (1, 1)),
            dimension_numbers=("NCHW", "OIHW", "NCHW"), precision=hi)
        return y + b.reshape(1, cout, 1, 1)

    a = jax.nn.relu(conv(x, params["w1"], params["b1"]))
    a = jax.nn.relu(conv(a, params["w2"], params["b2"]))
    a = jax.nn.relu(conv(a, params["w3"], params["b3"]))
    u = jnp.einsum("oh,nchw,pw->ncop", a_h, a, a_w, precision=hi)
    return conv(u, params["wf"], params["bf"])


if __name__ == "__main__":
    key = jax.random.PRNGKey(0)
    kx, kp = jax.random.split(key)
    n = 8
    x = jax.random.normal(kx, (n, 1, H, W), dtype=jnp.float32)   # NCHW, 1 input channel
    params = init_params(kp)
    prep = prepare_params(params)

    fwd = jax.jit(cnn_model_forward)
    out = jax.block_until_ready(fwd(x, prep))

    assert out.shape == (n, 1, HO, WO), out.shape
    assert out.dtype == jnp.float32
    assert bool(jnp.all(jnp.isfinite(out)))

    # Numerical self-check (bf16 MXU operands, f32 accumulation -> loose tolerance).
    a_h = jnp.asarray(_bilinear_matrix(H, HO))
    a_w = jnp.asarray(_bilinear_matrix(W, WO))
    ref = jax.block_until_ready(jax.jit(_reference_forward)(x, params, a_h, a_w))
    max_err = float(jnp.max(jnp.abs(out - ref)))
    assert max_err < 5e-2, f"kernel/reference mismatch: {max_err}"

    print("KERNEL_OK")
</pallas_src>

<mosaic_0001>
module attributes {stable_mosaic.version = 11 : i64} {
  func.func @kernel(%arg0: i32, %arg1: memref<4x1x16x16xf32, #tpu.memory_space<vmem>>, %arg2: memref<64x64xbf16, #tpu.memory_space<vmem>>, %arg3: memref<64x64xbf16, #tpu.memory_space<vmem>>, %arg4: memref<3x16x256xbf16, #tpu.memory_space<vmem>>, %arg5: memref<1x256xf32, #tpu.memory_space<vmem>>, %arg6: memref<3x256x512xbf16, #tpu.memory_space<vmem>>, %arg7: memref<1x512xf32, #tpu.memory_space<vmem>>, %arg8: memref<3x512x512xbf16, #tpu.memory_space<vmem>>, %arg9: memref<1x512xf32, #tpu.memory_space<vmem>>, %arg10: memref<512x384xbf16, #tpu.memory_space<vmem>>, %arg11: memref<80x48xbf16, #tpu.memory_space<vmem>>, %arg12: memref<1x1xf32, #tpu.memory_space<vmem>>, %arg13: memref<4x1x80x128xf32, #tpu.memory_space<vmem>>) attributes {dimension_semantics = [#tpu.dimension_semantics<parallel>], iteration_bounds = array<i64: 2>, scalar_prefetch = 0 : i64, scratch_operands = 0 : i64, tpu.core_type = #tpu.core_type<tc>, window_params = [{transform_indices = @transform_0, window_bounds = array<i64: 4, 1, 16, 16>}, {pipeline_mode = #tpu.pipeline_mode<synchronous>, transform_indices = @transform_1, window_bounds = array<i64: 64, 64>}, {pipeline_mode = #tpu.pipeline_mode<synchronous>, transform_indices = @transform_2, window_bounds = array<i64: 64, 64>}, {pipeline_mode = #tpu.pipeline_mode<synchronous>, transform_indices = @transform_3, window_bounds = array<i64: 3, 16, 256>}, {pipeline_mode = #tpu.pipeline_mode<synchronous>, transform_indices = @transform_4, window_bounds = array<i64: 1, 256>}, {pipeline_mode = #tpu.pipeline_mode<synchronous>, transform_indices = @transform_5, window_bounds = array<i64: 3, 256, 512>}, {pipeline_mode = #tpu.pipeline_mode<synchronous>, transform_indices = @transform_6, window_bounds = array<i64: 1, 512>}, {pipeline_mode = #tpu.pipeline_mode<synchronous>, transform_indices = @transform_7, window_bounds = array<i64: 3, 512, 512>}, {pipeline_mode = #tpu.pipeline_mode<synchronous>, transform_indices = @transform_8, window_bounds = array<i64: 1, 512>}, {pipeline_mode = #tpu.pipeline_mode<synchronous>, transform_indices = @transform_9, window_bounds = array<i64: 512, 384>}, {pipeline_mode = #tpu.pipeline_mode<synchronous>, transform_indices = @transform_10, window_bounds = array<i64: 80, 48>}, {pipeline_mode = #tpu.pipeline_mode<synchronous>, transform_indices = @transform_11, window_bounds = array<i64: 1, 1>}, {transform_indices = @transform_12, window_bounds = array<i64: 4, 1, 80, 128>}]} {
    %c0 = arith.constant 0 : index
    %c0_0 = arith.constant 0 : index
    %0 = vector.load %arg2[%c0, %c0_0] : memref<64x64xbf16, #tpu.memory_space<vmem>>, vector<64x64xbf16>
    %c0_1 = arith.constant 0 : index
    %c0_2 = arith.constant 0 : index
    %1 = vector.load %arg3[%c0_1, %c0_2] : memref<64x64xbf16, #tpu.memory_space<vmem>>, vector<64x64xbf16>
    %c0_3 = arith.constant 0 : index
    %c0_4 = arith.constant 0 : index
    %c0_5 = arith.constant 0 : index
    %c0_6 = arith.constant 0 : index
    %2 = vector.load %arg1[%c0_3, %c0_4, %c0_5, %c0_6] : memref<4x1x16x16xf32, #tpu.memory_space<vmem>>, vector<4x1x16x16xf32>
    %3 = vector.shape_cast %2 : vector<4x1x16x16xf32> to vector<64x16xf32>
    %4 = arith.truncf %3 : vector<64x16xf32> to vector<64x16xbf16>
    %cst = arith.constant dense<0.000000e+00> : vector<64x16xf32>
    %5 = tpu.matmul %0, %4, %cst {dimension_numbers = #tpu.dot_dimension_numbers<[1], [0], [0], [1], [0, 0, 1, 1], [], []>} : vector<64x64xbf16>, vector<64x16xbf16>, vector<64x16xf32> -> vector<64x16xf32>
    %6 = arith.truncf %5 : vector<64x16xf32> to vector<64x16xbf16>
    %cst_7 = arith.constant dense<0.000000e+00> : vector<64x16xf32>
    %7 = tpu.matmul %1, %4, %cst_7 {dimension_numbers = #tpu.dot_dimension_numbers<[1], [0], [0], [1], [0, 0, 1, 1], [], []>} : vector<64x64xbf16>, vector<64x16xbf16>, vector<64x16xf32> -> vector<64x16xf32>
    %8 = arith.truncf %7 : vector<64x16xf32> to vector<64x16xbf16>
    %c0_8 = arith.constant 0 : index
    %c0_9 = arith.constant 0 : index
    %c0_10 = arith.constant 0 : index
    %9 = vector.load %arg4[%c0_8, %c0_9, %c0_10] : memref<3x16x256xbf16, #tpu.memory_space<vmem>>, vector<1x16x256xbf16>
    %10 = vector.shape_cast %9 : vector<1x16x256xbf16> to vector<16x256xbf16>
    %cst_11 = arith.constant dense<0.000000e+00> : vector<64x256xf32>
    %11 = tpu.matmul %6, %10, %cst_11 {dimension_numbers = #tpu.dot_dimension_numbers<[1], [0], [0], [1], [0, 0, 1, 1], [], []>} : vector<64x16xbf16>, vector<16x256xbf16>, vector<64x256xf32> -> vector<64x256xf32>
    %c1 = arith.constant 1 : index
    %c0_12 = arith.constant 0 : index
    %c0_13 = arith.constant 0 : index
    %12 = vector.load %arg4[%c1, %c0_12, %c0_13] : memref<3x16x256xbf16, #tpu.memory_space<vmem>>, vector<1x16x256xbf16>
    %13 = vector.shape_cast %12 : vector<1x16x256xbf16> to vector<16x256xbf16>
    %cst_14 = arith.constant dense<0.000000e+00> : vector<64x256xf32>
    %14 = tpu.matmul %4, %13, %cst_14 {dimension_numbers = #tpu.dot_dimension_numbers<[1], [0], [0], [1], [0, 0, 1, 1], [], []>} : vector<64x16xbf16>, vector<16x256xbf16>, vector<64x256xf32> -> vector<64x256xf32>
    %15 = arith.addf %11, %14 : vector<64x256xf32>
    %c2 = arith.constant 2 : index
    %c0_15 = arith.constant 0 : index
    %c0_16 = arith.constant 0 : index
    %16 = vector.load %arg4[%c2, %c0_15, %c0_16] : memref<3x16x256xbf16, #tpu.memory_space<vmem>>, vector<1x16x256xbf16>
    %17 = vector.shape_cast %16 : vector<1x16x256xbf16> to vector<16x256xbf16>
    %cst_17 = arith.constant dense<0.000000e+00> : vector<64x256xf32>
    %18 = tpu.matmul %8, %17, %cst_17 {dimension_numbers = #tpu.dot_dimension_numbers<[1], [0], [0], [1], [0, 0, 1, 1], [], []>} : vector<64x16xbf16>, vector<16x256xbf16>, vector<64x256xf32> -> vector<64x256xf32>
    %19 = arith.addf %15, %18 : vector<64x256xf32>
    %c0_18 = arith.constant 0 : index
    %c0_19 = arith.constant 0 : index
    %20 = vector.load %arg5[%c0_18, %c0_19] : memref<1x256xf32, #tpu.memory_space<vmem>>, vector<1x256xf32>
    %21 = vector.broadcast %20 : vector<1x256xf32> to vector<64x256xf32>
    %22 = arith.addf %19, %21 : vector<64x256xf32>
    %cst_20 = arith.constant 0.000000e+00 : f32
    %23 = vector.broadcast %cst_20 : f32 to vector<64x256xf32>
    %24 = arith.maximumf %22, %23 : vector<64x256xf32>
    %25 = arith.truncf %24 : vector<64x256xf32> to vector<64x256xbf16>
    %cst_21 = arith.constant dense<0.000000e+00> : vector<64x256xf32>
    %26 = tpu.matmul %0, %25, %cst_21 {dimension_numbers = #tpu.dot_dimension_numbers<[1], [0], [0], [1], [0, 0, 1, 1], [], []>} : vector<64x64xbf16>, vector<64x256xbf16>, vector<64x256xf32> -> vector<64x256xf32>
    %27 = arith.truncf %26 : vector<64x256xf32> to vector<64x256xbf16>
    %cst_22 = arith.constant dense<0.000000e+00> : vector<64x256xf32>
    %28 = tpu.matmul %1, %25, %cst_22 {dimension_numbers = #tpu.dot_dimension_numbers<[1], [0], [0], [1], [0, 0, 1, 1], [], []>} : vector<64x64xbf16>, vector<64x256xbf16>, vector<64x256xf32> -> vector<64x256xf32>
    %29 = arith.truncf %28 : vector<64x256xf32> to vector<64x256xbf16>
    %c0_23 = arith.constant 0 : index
    %c0_24 = arith.constant 0 : index
    %c0_25 = arith.constant 0 : index
    %30 = vector.load %arg6[%c0_23, %c0_24, %c0_25] : memref<3x256x512xbf16, #tpu.memory_space<vmem>>, vector<1x256x512xbf16>
    %31 = vector.shape_cast %30 : vector<1x256x512xbf16> to vector<256x512xbf16>
    %cst_26 = arith.constant dense<0.000000e+00> : vector<64x512xf32>
    %32 = tpu.matmul %27, %31, %cst_26 {dimension_numbers = #tpu.dot_dimension_numbers<[1], [0], [0], [1], [0, 0, 1, 1], [], []>} : vector<64x256xbf16>, vector<256x512xbf16>, vector<64x512xf32> -> vector<64x512xf32>
    %c1_27 = arith.constant 1 : index
    %c0_28 = arith.constant 0 : index
    %c0_29 = arith.constant 0 : index
    %33 = vector.load %arg6[%c1_27, %c0_28, %c0_29] : memref<3x256x512xbf16, #tpu.memory_space<vmem>>, vector<1x256x512xbf16>
    %34 = vector.shape_cast %33 : vector<1x256x512xbf16> to vector<256x512xbf16>
    %cst_30 = arith.constant dense<0.000000e+00> : vector<64x512xf32>
    %35 = tpu.matmul %25, %34, %cst_30 {dimension_numbers = #tpu.dot_dimension_numbers<[1], [0], [0], [1], [0, 0, 1, 1], [], []>} : vector<64x256xbf16>, vector<256x512xbf16>, vector<64x512xf32> -> vector<64x512xf32>
    %36 = arith.addf %32, %35 : vector<64x512xf32>
    %c2_31 = arith.constant 2 : index
    %c0_32 = arith.constant 0 : index
    %c0_33 = arith.constant 0 : index
    %37 = vector.load %arg6[%c2_31, %c0_32, %c0_33] : memref<3x256x512xbf16, #tpu.memory_space<vmem>>, vector<1x256x512xbf16>
    %38 = vector.shape_cast %37 : vector<1x256x512xbf16> to vector<256x512xbf16>
    %cst_34 = arith.constant dense<0.000000e+00> : vector<64x512xf32>
    %39 = tpu.matmul %29, %38, %cst_34 {dimension_numbers = #tpu.dot_dimension_numbers<[1], [0], [0], [1], [0, 0, 1, 1], [], []>} : vector<64x256xbf16>, vector<256x512xbf16>, vector<64x512xf32> -> vector<64x512xf32>
    %40 = arith.addf %36, %39 : vector<64x512xf32>
    %c0_35 = arith.constant 0 : index
    %c0_36 = arith.constant 0 : index
    %41 = vector.load %arg7[%c0_35, %c0_36] : memref<1x512xf32, #tpu.memory_space<vmem>>, vector<1x512xf32>
    %42 = vector.broadcast %41 : vector<1x512xf32> to vector<64x512xf32>
    %43 = arith.addf %40, %42 : vector<64x512xf32>
    %cst_37 = arith.constant 0.000000e+00 : f32
    %44 = vector.broadcast %cst_37 : f32 to vector<64x512xf32>
    %45 = arith.maximumf %43, %44 : vector<64x512xf32>
    %46 = arith.truncf %45 : vector<64x512xf32> to vector<64x512xbf16>
    %cst_38 = arith.constant dense<0.000000e+00> : vector<64x512xf32>
    %47 = tpu.matmul %0, %46, %cst_38 {dimension_numbers = #tpu.dot_dimension_numbers<[1], [0], [0], [1], [0, 0, 1, 1], [], []>} : vector<64x64xbf16>, vector<64x512xbf16>, vector<64x512xf32> -> vector<64x512xf32>
    %48 = arith.truncf %47 : vector<64x512xf32> to vector<64x512xbf16>
    %cst_39 = arith.constant dense<0.000000e+00> : vector<64x512xf32>
    %49 = tpu.matmul %1, %46, %cst_39 {dimension_numbers = #tpu.dot_dimension_numbers<[1], [0], [0], [1], [0, 0, 1, 1], [], []>} : vector<64x64xbf16>, vector<64x512xbf16>, vector<64x512xf32> -> vector<64x512xf32>
    %50 = arith.truncf %49 : vector<64x512xf32> to vector<64x512xbf16>
    %c0_40 = arith.constant 0 : index
    %c0_41 = arith.constant 0 : index
    %c0_42 = arith.constant 0 : index
    %51 = vector.load %arg8[%c0_40, %c0_41, %c0_42] : memref<3x512x512xbf16, #tpu.memory_space<vmem>>, vector<1x512x512xbf16>
    %52 = vector.shape_cast %51 : vector<1x512x512xbf16> to vector<512x512xbf16>
    %cst_43 = arith.constant dense<0.000000e+00> : vector<64x512xf32>
    %53 = tpu.matmul %48, %52, %cst_43 {dimension_numbers = #tpu.dot_dimension_numbers<[1], [0], [0], [1], [0, 0, 1, 1], [], []>} : vector<64x512xbf16>, vector<512x512xbf16>, vector<64x512xf32> -> vector<64x512xf32>
    %c1_44 = arith.constant 1 : index
    %c0_45 = arith.constant 0 : index
    %c0_46 = arith.constant 0 : index
    %54 = vector.load %arg8[%c1_44, %c0_45, %c0_46] : memref<3x512x512xbf16, #tpu.memory_space<vmem>>, vector<1x512x512xbf16>
    %55 = vector.shape_cast %54 : vector<1x512x512xbf16> to vector<512x512xbf16>
    %cst_47 = arith.constant dense<0.000000e+00> : vector<64x512xf32>
    %56 = tpu.matmul %46, %55, %cst_47 {dimension_numbers = #tpu.dot_dimension_numbers<[1], [0], [0], [1], [0, 0, 1, 1], [], []>} : vector<64x512xbf16>, vector<512x512xbf16>, vector<64x512xf32> -> vector<64x512xf32>
    %57 = arith.addf %53, %56 : vector<64x512xf32>
    %c2_48 = arith.constant 2 : index
    %c0_49 = arith.constant 0 : index
    %c0_50 = arith.constant 0 : index
    %58 = vector.load %arg8[%c2_48, %c0_49, %c0_50] : memref<3x512x512xbf16, #tpu.memory_space<vmem>>, vector<1x512x512xbf16>
    %59 = vector.shape_cast %58 : vector<1x512x512xbf16> to vector<512x512xbf16>
    %cst_51 = arith.constant dense<0.000000e+00> : vector<64x512xf32>
    %60 = tpu.matmul %50, %59, %cst_51 {dimension_numbers = #tpu.dot_dimension_numbers<[1], [0], [0], [1], [0, 0, 1, 1], [], []>} : vector<64x512xbf16>, vector<512x512xbf16>, vector<64x512xf32> -> vector<64x512xf32>
    %61 = arith.addf %57, %60 : vector<64x512xf32>
    %c0_52 = arith.constant 0 : index
    %c0_53 = arith.constant 0 : index
    %62 = vector.load %arg9[%c0_52, %c0_53] : memref<1x512xf32, #tpu.memory_space<vmem>>, vector<1x512xf32>
    %63 = vector.broadcast %62 : vector<1x512xf32> to vector<64x512xf32>
    %64 = arith.addf %61, %63 : vector<64x512xf32>
    %cst_54 = arith.constant 0.000000e+00 : f32
    %65 = vector.broadcast %cst_54 : f32 to vector<64x512xf32>
    %66 = arith.maximumf %64, %65 : vector<64x512xf32>
    %67 = arith.truncf %66 : vector<64x512xf32> to vector<64x512xbf16>
    %c0_55 = arith.constant 0 : index
    %c0_56 = arith.constant 0 : index
    %68 = vector.load %arg10[%c0_55, %c0_56] : memref<512x384xbf16, #tpu.memory_space<vmem>>, vector<512x384xbf16>
    %cst_57 = arith.constant dense<0.000000e+00> : vector<64x384xf32>
    %69 = tpu.matmul %67, %68, %cst_57 {dimension_numbers = #tpu.dot_dimension_numbers<[1], [0], [0], [1], [0, 0, 1, 1], [], []>} : vector<64x512xbf16>, vector<512x384xbf16>, vector<64x384xf32> -> vector<64x384xf32>
    %70 = vector.extract_strided_slice %69 {offsets = [0, 0], sizes = [16, 128], strides = [1, 1]} : vector<64x384xf32> to vector<16x128xf32>
    %71 = vector.extract_strided_slice %69 {offsets = [0, 128], sizes = [16, 128], strides = [1, 1]} : vector<64x384xf32> to vector<16x128xf32>
    %72 = vector.extract_strided_slice %69 {offsets = [0, 256], sizes = [16, 128], strides = [1, 1]} : vector<64x384xf32> to vector<16x128xf32>
    %73 = tpu.concatenate %70, %71, %72 in 0 : vector<16x128xf32>, vector<16x128xf32>, vector<16x128xf32> -> vector<48x128xf32>
    %74 = vector.extract_strided_slice %69 {offsets = [16, 0], sizes = [16, 128], strides = [1, 1]} : vector<64x384xf32> to vector<16x128xf32>
    %75 = vector.extract_strided_slice %69 {offsets = [16, 128], sizes = [16, 128], strides = [1, 1]} : vector<64x384xf32> to vector<16x128xf32>
    %76 = vector.extract_strided_slice %69 {offsets = [16, 256], sizes = [16, 128], strides = [1, 1]} : vector<64x384xf32> to vector<16x128xf32>
    %77 = tpu.concatenate %74, %75, %76 in 0 : vector<16x128xf32>, vector<16x128xf32>, vector<16x128xf32> -> vector<48x128xf32>
    %78 = vector.extract_strided_slice %69 {offsets = [32, 0], sizes = [16, 128], strides = [1, 1]} : vector<64x384xf32> to vector<16x128xf32>
    %79 = vector.extract_strided_slice %69 {offsets = [32, 128], sizes = [16, 128], strides = [1, 1]} : vector<64x384xf32> to vector<16x128xf32>
    %80 = vector.extract_strided_slice %69 {offsets = [32, 256], sizes = [16, 128], strides = [1, 1]} : vector<64x384xf32> to vector<16x128xf32>
    %81 = tpu.concatenate %78, %79, %80 in 0 : vector<16x128xf32>, vector<16x128xf32>, vector<16x128xf32> -> vector<48x128xf32>
    %82 = vector.extract_strided_slice %69 {offsets = [48, 0], sizes = [16, 128], strides = [1, 1]} : vector<64x384xf32> to vector<16x128xf32>
    %83 = vector.extract_strided_slice %69 {offsets = [48, 128], sizes = [16, 128], strides = [1, 1]} : vector<64x384xf32> to vector<16x128xf32>
    %84 = vector.extract_strided_slice %69 {offsets = [48, 256], sizes = [16, 128], strides = [1, 1]} : vector<64x384xf32> to vector<16x128xf32>
    %85 = tpu.concatenate %82, %83, %84 in 0 : vector<16x128xf32>, vector<16x128xf32>, vector<16x128xf32> -> vector<48x128xf32>
    %86 = tpu.concatenate %73, %77, %81, %85 in 1 : vector<48x128xf32>, vector<48x128xf32>, vector<48x128xf32>, vector<48x128xf32> -> vector<48x512xf32>
    %87 = arith.truncf %86 : vector<48x512xf32> to vector<48x512xbf16>
    %c0_58 = arith.constant 0 : index
    %c0_59 = arith.constant 0 : index
    %88 = vector.load %arg11[%c0_58, %c0_59] : memref<80x48xbf16, #tpu.memory_space<vmem>>, vector<80x48xbf16>
    %cst_60 = arith.constant dense<0.000000e+00> : vector<80x512xf32>
    %89 = tpu.matmul %88, %87, %cst_60 {dimension_numbers = #tpu.dot_dimension_numbers<[1], [0], [0], [1], [0, 0, 1, 1], [], []>} : vector<80x48xbf16>, vector<48x512xbf16>, vector<80x512xf32> -> vector<80x512xf32>
    %c0_61 = arith.constant 0 : index
    %c0_62 = arith.constant 0 : index
    %90 = vector.load %arg12[%c0_61, %c0_62] : memref<1x1xf32, #tpu.memory_space<vmem>>, vector<1x1xf32>
    %91 = vector.broadcast %90 : vector<1x1xf32> to vector<80x512xf32>
    %92 = arith.addf %89, %91 : vector<80x512xf32>
    %93 = vector.extract_strided_slice %92 {offsets = [0, 0], sizes = [80, 128], strides = [1, 1]} : vector<80x512xf32> to vector<80x128xf32>
    %c0_63 = arith.constant 0 : index
    %c0_64 = arith.constant 0 : index
    %c0_65 = arith.constant 0 : index
    %c0_66 = arith.constant 0 : index
    %94 = vector.load %arg13[%c0_63, %c0_64, %c0_65, %c0_66] : memref<4x1x80x128xf32, #tpu.memory_space<vmem>>, vector<1x1x80x128xf32>
    %95 = vector.shape_cast %94 : vector<1x1x80x128xf32> to vector<80x128xf32>
    %96 = vector.shape_cast %93 : vector<80x128xf32> to vector<1x1x80x128xf32>
    tpu.vector_store %arg13[%c0_63, %c0_64, %c0_65, %c0_66], %96 {strides = array<i32>} : memref<4x1x80x128xf32, #tpu.memory_space<vmem>>, vector<1x1x80x128xf32>,
    %97 = vector.extract_strided_slice %92 {offsets = [0, 128], sizes = [80, 128], strides = [1, 1]} : vector<80x512xf32> to vector<80x128xf32>
    %c1_67 = arith.constant 1 : index
    %c0_68 = arith.constant 0 : index
    %c0_69 = arith.constant 0 : index
    %c0_70 = arith.constant 0 : index
    %98 = vector.load %arg13[%c1_67, %c0_68, %c0_69, %c0_70] : memref<4x1x80x128xf32, #tpu.memory_space<vmem>>, vector<1x1x80x128xf32>
    %99 = vector.shape_cast %98 : vector<1x1x80x128xf32> to vector<80x128xf32>
    %100 = vector.shape_cast %97 : vector<80x128xf32> to vector<1x1x80x128xf32>
    tpu.vector_store %arg13[%c1_67, %c0_68, %c0_69, %c0_70], %100 {strides = array<i32>} : memref<4x1x80x128xf32, #tpu.memory_space<vmem>>, vector<1x1x80x128xf32>,
    %101 = vector.extract_strided_slice %92 {offsets = [0, 256], sizes = [80, 128], strides = [1, 1]} : vector<80x512xf32> to vector<80x128xf32>
    %c2_71 = arith.constant 2 : index
    %c0_72 = arith.constant 0 : index
    %c0_73 = arith.constant 0 : index
    %c0_74 = arith.constant 0 : index
    %102 = vector.load %arg13[%c2_71, %c0_72, %c0_73, %c0_74] : memref<4x1x80x128xf32, #tpu.memory_space<vmem>>, vector<1x1x80x128xf32>
    %103 = vector.shape_cast %102 : vector<1x1x80x128xf32> to vector<80x128xf32>
    %104 = vector.shape_cast %101 : vector<80x128xf32> to vector<1x1x80x128xf32>
    tpu.vector_store %arg13[%c2_71, %c0_72, %c0_73, %c0_74], %104 {strides = array<i32>} : memref<4x1x80x128xf32, #tpu.memory_space<vmem>>, vector<1x1x80x128xf32>,
    %105 = vector.extract_strided_slice %92 {offsets = [0, 384], sizes = [80, 128], strides = [1, 1]} : vector<80x512xf32> to vector<80x128xf32>
    %c3 = arith.constant 3 : index
    %c0_75 = arith.constant 0 : index
    %c0_76 = arith.constant 0 : index
    %c0_77 = arith.constant 0 : index
    %106 = vector.load %arg13[%c3, %c0_75, %c0_76, %c0_77] : memref<4x1x80x128xf32, #tpu.memory_space<vmem>>, vector<1x1x80x128xf32>
    %107 = vector.shape_cast %106 : vector<1x1x80x128xf32> to vector<80x128xf32>
    %108 = vector.shape_cast %105 : vector<80x128xf32> to vector<1x1x80x128xf32>
    tpu.vector_store %arg13[%c3, %c0_75, %c0_76, %c0_77], %108 {strides = array<i32>} : memref<4x1x80x128xf32, #tpu.memory_space<vmem>>, vector<1x1x80x128xf32>,
    return
  }
  func.func @transform_0(%arg0: i32) -> (i32, i32, i32, i32) {
    %c0_i32 = arith.constant 0 : i32
    %c0_i32_0 = arith.constant 0 : i32
    %c0_i32_1 = arith.constant 0 : i32
    %c0_i32_2 = arith.constant 0 : i32
    return %arg0, %c0_i32, %c0_i32_0, %c0_i32_1 : i32, i32, i32, i32
  }
  func.func @transform_1(%arg0: i32) -> (i32, i32) {
    %c0_i32 = arith.constant 0 : i32
    %c0_i32_0 = arith.constant 0 : i32
    %c0_i32_1 = arith.constant 0 : i32
    return %c0_i32, %c0_i32_0 : i32, i32
  }
  func.func @transform_2(%arg0: i32) -> (i32, i32) {
    %c0_i32 = arith.constant 0 : i32
    %c0_i32_0 = arith.constant 0 : i32
    %c0_i32_1 = arith.constant 0 : i32
    return %c0_i32, %c0_i32_0 : i32, i32
  }
  func.func @transform_3(%arg0: i32) -> (i32, i32, i32) {
    %c0_i32 = arith.constant 0 : i32
    %c0_i32_0 = arith.constant 0 : i32
    %c0_i32_1 = arith.constant 0 : i32
    %c0_i32_2 = arith.constant 0 : i32
    return %c0_i32, %c0_i32_0, %c0_i32_1 : i32, i32, i32
  }
  func.func @transform_4(%arg0: i32) -> (i32, i32) {
    %c0_i32 = arith.constant 0 : i32
    %c0_i32_0 = arith.constant 0 : i32
    %c0_i32_1 = arith.constant 0 : i32
    return %c0_i32, %c0_i32_0 : i32, i32
  }
  func.func @transform_5(%arg0: i32) -> (i32, i32, i32) {
    %c0_i32 = arith.constant 0 : i32
    %c0_i32_0 = arith.constant 0 : i32
    %c0_i32_1 = arith.constant 0 : i32
    %c0_i32_2 = arith.constant 0 : i32
    return %c0_i32, %c0_i32_0, %c0_i32_1 : i32, i32, i32
  }
  func.func @transform_6(%arg0: i32) -> (i32, i32) {
    %c0_i32 = arith.constant 0 : i32
    %c0_i32_0 = arith.constant 0 : i32
    %c0_i32_1 = arith.constant 0 : i32
    return %c0_i32, %c0_i32_0 : i32, i32
  }
  func.func @transform_7(%arg0: i32) -> (i32, i32, i32) {
    %c0_i32 = arith.constant 0 : i32
    %c0_i32_0 = arith.constant 0 : i32
    %c0_i32_1 = arith.constant 0 : i32
    %c0_i32_2 = arith.constant 0 : i32
    return %c0_i32, %c0_i32_0, %c0_i32_1 : i32, i32, i32
  }
  func.func @transform_8(%arg0: i32) -> (i32, i32) {
    %c0_i32 = arith.constant 0 : i32
    %c0_i32_0 = arith.constant 0 : i32
    %c0_i32_1 = arith.constant 0 : i32
    return %c0_i32, %c0_i32_0 : i32, i32
  }
  func.func @transform_9(%arg0: i32) -> (i32, i32) {
    %c0_i32 = arith.constant 0 : i32
    %c0_i32_0 = arith.constant 0 : i32
    %c0_i32_1 = arith.constant 0 : i32
    return %c0_i32, %c0_i32_0 : i32, i32
  }
  func.func @transform_10(%arg0: i32) -> (i32, i32) {
    %c0_i32 = arith.constant 0 : i32
    %c0_i32_0 = arith.constant 0 : i32
    %c0_i32_1 = arith.constant 0 : i32
    return %c0_i32, %c0_i32_0 : i32, i32
  }
  func.func @transform_11(%arg0: i32) -> (i32, i32) {
    %c0_i32 = arith.constant 0 : i32
    %c0_i32_0 = arith.constant 0 : i32
    %c0_i32_1 = arith.constant 0 : i32
    return %c0_i32, %c0_i32_0 : i32, i32
  }
  func.func @transform_12(%arg0: i32) -> (i32, i32, i32, i32) {
    %c0_i32 = arith.constant 0 : i32
    %c0_i32_0 = arith.constant 0 : i32
    %c0_i32_1 = arith.constant 0 : i32
    %c0_i32_2 = arith.constant 0 : i32
    return %arg0, %c0_i32, %c0_i32_0, %c0_i32_1 : i32, i32, i32, i32
  }
}

</mosaic_0001>

<llo_original>
// kernel: cnn_model_forward.1
$region0: #{cnn_model_forward.1}
  #allocation0 [shape = 'u32[]', space=smem, size = 0x4, offset = 0x4, fixed_abs, tag = 'smem constant byte address 0x4 - core index']
  #allocation1 [shape = 'u32[144,128]{1,0:T(1,128)}', space=vmem, size = 0x12000, scoped, tag = 'internal scratch']
  #allocation2 [shape = 'f32[1,1]{1,0:T(1,128)S(1)}', space=vmem, size = 0x200, scoped, tag = 'scoped memory for cnn_model_forward.1']
  %s0 = inlined_call_operand.hbm [shape: f32[8,1,16,16], index: 0, kind: input, shape index: {}]
  %s1 = inlined_call_operand.hbm [shape: bf16[64,64], index: 1, kind: input, shape index: {}]
  %s2 = inlined_call_operand.hbm [shape: bf16[64,64], index: 2, kind: input, shape index: {}]
  %s3 = inlined_call_operand.hbm [shape: bf16[3,16,256], index: 3, kind: input, shape index: {}]
  %s4 = inlined_call_operand.hbm [shape: f32[1,256], index: 4, kind: input, shape index: {}]
  %s5 = inlined_call_operand.hbm [shape: bf16[3,256,512], index: 5, kind: input, shape index: {}]
  %s6 = inlined_call_operand.hbm [shape: f32[1,512], index: 6, kind: input, shape index: {}]
  %s7 = inlined_call_operand.hbm [shape: bf16[3,512,512], index: 7, kind: input, shape index: {}]
  %s8 = inlined_call_operand.hbm [shape: f32[1,512], index: 8, kind: input, shape index: {}]
  %s9 = inlined_call_operand.hbm [shape: bf16[512,384], index: 9, kind: input, shape index: {}]
  %s10 = inlined_call_operand.vmem [shape: bf16[80,48], index: 10, kind: input, shape index: {}]
  %s11 = inlined_call_operand.<no memory space> [shape: f32[1,1], index: 11, kind: input, shape index: {}]
  %s12 = inlined_call_operand.vmem [shape: f32[8,1,80,128], index: 12, kind: output, shape index: {}]
  %s13 = sld [smem:[#allocation0]]
  $region121: #{cnn_model_forward.1} parent=0
    _
  %s15 = ssub.s32 1, %s13
  %s16 = scalar_select 0, %s15, %s13
  %v17 = vstv %s11
  %18 = vst [vmem:[#allocation2] sm:$0x1] %v17
  $region1: #{cnn_model_forward.1} parent=0
    #allocation3 [shape = 'u8[65536]{0}', space=vmem, size = 0x10000, scoped, tag = 'input window, operand 0']
    #allocation4 [shape = 's32[2]{0}', space=sflag, size = 0x8, scoped, tag = 'scoped memory for cnn_model_forward.1']
    #allocation5 [shape = 'u8[16384]{0}', space=vmem, size = 0x4000, scoped, tag = 'input window, operand 1, single buffered']
    #allocation6 [shape = 's32[1]{0}', space=sflag, size = 0x4, scoped, tag = 'scoped memory for cnn_model_forward.1']
    #allocation7 [shape = 'u8[16384]{0}', space=vmem, size = 0x4000, scoped, tag = 'input window, operand 2, single buffered']
    #allocation8 [shape = 'u8[24576]{0}', space=vmem, size = 0x6000, scoped, tag = 'input window, operand 3, single buffered']
    #allocation9 [shape = 's32[1]{0}', space=sflag, size = 0x4, scoped, tag = 'scoped memory for cnn_model_forward.1']
    #allocation10 [shape = 'u8[1024]{0}', space=vmem, size = 0x400, scoped, tag = 'input window, operand 4, single buffered']
    #allocation11 [shape = 'u8[786432]{0}', space=vmem, size = 0xc0000, scoped, tag = 'input window, operand 5, single buffered']
    #allocation12 [shape = 's32[1]{0}', space=sflag, size = 0x4, scoped, tag = 'scoped memory for cnn_model_forward.1']
    #allocation13 [shape = 'u8[2048]{0}', space=vmem, size = 0x800, scoped, tag = 'input window, operand 6, single buffered']
    #allocation14 [shape = 'u8[1572864]{0}', space=vmem, size = 0x180000, scoped, tag = 'input window, operand 7, single buffered']
    #allocation15 [shape = 's32[1]{0}', space=sflag, size = 0x4, scoped, tag = 'scoped memory for cnn_model_forward.1']
    #allocation16 [shape = 'u8[2048]{0}', space=vmem, size = 0x800, scoped, tag = 'input window, operand 8, single buffered']
    #allocation17 [shape = 'u8[393216]{0}', space=vmem, size = 0x60000, scoped, tag = 'input window, operand 9, single buffered']
    #allocation18 [shape = 's32[1]{0}', space=sflag, size = 0x4, scoped, tag = 'scoped memory for cnn_model_forward.1']
    %19 = vsyncpa [#allocation4], 0
    %s20 = scalar_lea.sflag [#allocation4], 1
    %21 = vsyncpa %s20, 0
    %22 = vsyncpa [#allocation6], 0
    %23 = vsyncpa [#allocation9], 0
    %24 = vsyncpa [#allocation12], 0
    %25 = vsyncpa [#allocation15], 0
    %26 = vsyncpa [#allocation18], 0
    loop: start=0, step=1, limit=4
    $region2: #{cnn_model_forward.1} parent=1 // loop_pre_header
      _
    $region3: #{cnn_model_forward.1} parent=1 // loop_header
      %s28 = sphi 0, %s32
      %p29 = scmp.ge.s32.totalorder %s28, 4
      %s38 = sphi 0, %s40
      %s41 = sphi 0, %s38
      %s42 = sphi 0, %s41
      %s58 = sphi 0, %s42
      %s62 = sphi 0, %s62
      %s64 = sphi 0, %s62
      %s65 = sphi 0, %s64
      %s79 = sphi 0, %s65
      %s83 = sphi 0, %s83
      %s85 = sphi 0, %s83
      %s86 = sphi 0, %s85
      %s100 = sphi 0, %s86
      %s104 = sphi 0, %s104
      %s106 = sphi 0, %s104
      %s107 = sphi 0, %s106
      %s121 = sphi 0, %s107
      %s125 = sphi 0, %s125
      %s127 = sphi 0, %s125
      %s128 = sphi 0, %s127
      %s142 = sphi 0, %s128
      %s146 = sphi 0, %s146
      %s148 = sphi 0, %s146
      %s149 = sphi 0, %s148
      %s163 = sphi 0, %s149
      %s167 = sphi 0, %s167
      %s169 = sphi 0, %s167
      %s170 = sphi 0, %s169
      %s184 = sphi 0, %s170
      %s188 = sphi 0, %s188
      %s190 = sphi 0, %s188
      %s191 = sphi 0, %s190
      %s205 = sphi 0, %s191
      %s209 = sphi 0, %s209
      %s211 = sphi 0, %s209
      %s212 = sphi 0, %s211
      %s226 = sphi 0, %s212
      %s230 = sphi 0, %s230
      %s232 = sphi 0, %s230
      %s233 = sphi 0, %s232
      %s247 = sphi 0, %s233
      %s251 = sphi 0, %s251
      %s253 = sphi 0, %s251
      %s254 = sphi 0, %s253
      %s268 = sphi 0, %s254
      %s272 = sphi 0, %s272
      %s274 = sphi 0, %s272
      %s275 = sphi 0, %s274
      %s289 = sphi 0, %s275
      %s295 = sphi 0, %s297
      %s298 = sphi 0, %s295
      %s299 = sphi 0, %s298
      %s315 = sphi 0, %s299
    $region4: #{cnn_model_forward.1} parent=1 // loop_header_branch
      %31 = sbr.rel (%p29) target = $region8
    $region5: #{cnn_model_forward.1} parent=1 // loop_body
      %s33 = ssub.s32 %s28, 1
      %s34 = ssub.s32 %s28, 2
      %s35 = sadd.s32 %s28, 1
      %s36 = ssub.s32 %s28, %s35
      %p37 = scmp.eq.s32.totalorder %s36, 0
      %s39 = sadd.s32 %s38, 1
      %s40 = scalar_select %p37, %s38, %s39
      %p43 = pneg %p37
      %p44 = scmp.eq.s32.totalorder %s28, 1
      %p45 = por %p43, %p44
      %p46 = scmp.ne.s32.totalorder %s38, %s41
      %p47 = scmp.eq.s32.totalorder %s28, 0
      %p48 = por %p46, %p47
      %p49 = scmp.ne.s32.totalorder %s38, %s41
      %p50 = scmp.eq.s32.totalorder %s33, 1
      %p51 = por %p49, %p50
      %p52 = scmp.ne.s32.totalorder %s41, %s42
      %p53 = scmp.eq.s32.totalorder %s33, 0
      %p54 = por %p52, %p53
      %p55 = scmp.ne.s32.totalorder %s41, %s42
      %p56 = scmp.eq.s32.totalorder %s34, 1
      %p57 = por %p55, %p56
      %p59 = scmp.ne.s32.totalorder %s42, %s58
      %p60 = scmp.eq.s32.totalorder %s34, 0
      %p61 = por %p59, %p60
      %s63 = sadd.s32 %s62, 1
      %p66 = scmp.eq.s32.totalorder %s28, 1
      %p67 = scmp.ne.s32.totalorder %s62, %s64
      %p68 = scmp.eq.s32.totalorder %s28, 0
      %p69 = por %p67, %p68
      %p70 = scmp.ne.s32.totalorder %s62, %s64
      %p71 = scmp.eq.s32.totalorder %s33, 1
      %p72 = por %p70, %p71
      %p73 = scmp.ne.s32.totalorder %s64, %s65
      %p74 = scmp.eq.s32.totalorder %s33, 0
      %p75 = por %p73, %p74
      %p76 = scmp.ne.s32.totalorder %s64, %s65
      %p77 = scmp.eq.s32.totalorder %s34, 1
      %p78 = por %p76, %p77
      %p80 = scmp.ne.s32.totalorder %s65, %s79
      %p81 = scmp.eq.s32.totalorder %s34, 0
      %p82 = por %p80, %p81
      %s84 = sadd.s32 %s83, 1
      %p87 = scmp.eq.s32.totalorder %s28, 1
      %p88 = scmp.ne.s32.totalorder %s83, %s85
      %p89 = scmp.eq.s32.totalorder %s28, 0
      %p90 = por %p88, %p89
      %p91 = scmp.ne.s32.totalorder %s83, %s85
      %p92 = scmp.eq.s32.totalorder %s33, 1
      %p93 = por %p91, %p92
      %p94 = scmp.ne.s32.totalorder %s85, %s86
      %p95 = scmp.eq.s32.totalorder %s33, 0
      %p96 = por %p94, %p95
      %p97 = scmp.ne.s32.totalorder %s85, %s86
      %p98 = scmp.eq.s32.totalorder %s34, 1
      %p99 = por %p97, %p98
      %p101 = scmp.ne.s32.totalorder %s86, %s100
      %p102 = scmp.eq.s32.totalorder %s34, 0
      %p103 = por %p101, %p102
      %s105 = sadd.s32 %s104, 1
      %p108 = scmp.eq.s32.totalorder %s28, 1
      %p109 = scmp.ne.s32.totalorder %s104, %s106
      %p110 = scmp.eq.s32.totalorder %s28, 0
      %p111 = por %p109, %p110
      %p112 = scmp.ne.s32.totalorder %s104, %s106
      %p113 = scmp.eq.s32.totalorder %s33, 1
      %p114 = por %p112, %p113
      %p115 = scmp.ne.s32.totalorder %s106, %s107
      %p116 = scmp.eq.s32.totalorder %s33, 0
      %p117 = por %p115, %p116
      %p118 = scmp.ne.s32.totalorder %s106, %s107
      %p119 = scmp.eq.s32.totalorder %s34, 1
      %p120 = por %p118, %p119
      %p122 = scmp.ne.s32.totalorder %s107, %s121
      %p123 = scmp.eq.s32.totalorder %s34, 0
      %p124 = por %p122, %p123
      %s126 = sadd.s32 %s125, 1
      %p129 = scmp.eq.s32.totalorder %s28, 1
      %p130 = scmp.ne.s32.totalorder %s125, %s127
      %p131 = scmp.eq.s32.totalorder %s28, 0
      %p132 = por %p130, %p131
      %p133 = scmp.ne.s32.totalorder %s125, %s127
      %p134 = scmp.eq.s32.totalorder %s33, 1
      %p135 = por %p133, %p134
      %p136 = scmp.ne.s32.totalorder %s127, %s128
      %p137 = scmp.eq.s32.totalorder %s33, 0
      %p138 = por %p136, %p137
      %p139 = scmp.ne.s32.totalorder %s127, %s128
      %p140 = scmp.eq.s32.totalorder %s34, 1
      %p141 = por %p139, %p140
      %p143 = scmp.ne.s32.totalorder %s128, %s142
      %p144 = scmp.eq.s32.totalorder %s34, 0
      %p145 = por %p143, %p144
      %s147 = sadd.s32 %s146, 1
      %p150 = scmp.eq.s32.totalorder %s28, 1
      %p151 = scmp.ne.s32.totalorder %s146, %s148
      %p152 = scmp.eq.s32.totalorder %s28, 0
      %p153 = por %p151, %p152
      %p154 = scmp.ne.s32.totalorder %s146, %s148
      %p155 = scmp.eq.s32.totalorder %s33, 1
      %p156 = por %p154, %p155
      %p157 = scmp.ne.s32.totalorder %s148, %s149
      %p158 = scmp.eq.s32.totalorder %s33, 0
      %p159 = por %p157, %p158
      %p160 = scmp.ne.s32.totalorder %s148, %s149
      %p161 = scmp.eq.s32.totalorder %s34, 1
      %p162 = por %p160, %p161
      %p164 = scmp.ne.s32.totalorder %s149, %s163
      %p165 = scmp.eq.s32.totalorder %s34, 0
      %p166 = por %p164, %p165
      %s168 = sadd.s32 %s167, 1
      %p171 = scmp.eq.s32.totalorder %s28, 1
      %p172 = scmp.ne.s32.totalorder %s167, %s169
      %p173 = scmp.eq.s32.totalorder %s28, 0
      %p174 = por %p172, %p173
      %p175 = scmp.ne.s32.totalorder %s167, %s169
      %p176 = scmp.eq.s32.totalorder %s33, 1
      %p177 = por %p175, %p176
      %p178 = scmp.ne.s32.totalorder %s169, %s170
      %p179 = scmp.eq.s32.totalorder %s33, 0
      %p180 = por %p178, %p179
      %p181 = scmp.ne.s32.totalorder %s169, %s170
      %p182 = scmp.eq.s32.totalorder %s34, 1
      %p183 = por %p181, %p182
      %p185 = scmp.ne.s32.totalorder %s170, %s184
      %p186 = scmp.eq.s32.totalorder %s34, 0
      %p187 = por %p185, %p186
      %s189 = sadd.s32 %s188, 1
      %p192 = scmp.eq.s32.totalorder %s28, 1
      %p193 = scmp.ne.s32.totalorder %s188, %s190
      %p194 = scmp.eq.s32.totalorder %s28, 0
      %p195 = por %p193, %p194
      %p196 = scmp.ne.s32.totalorder %s188, %s190
      %p197 = scmp.eq.s32.totalorder %s33, 1
      %p198 = por %p196, %p197
      %p199 = scmp.ne.s32.totalorder %s190, %s191
      %p200 = scmp.eq.s32.totalorder %s33, 0
      %p201 = por %p199, %p200
      %p202 = scmp.ne.s32.totalorder %s190, %s191
      %p203 = scmp.eq.s32.totalorder %s34, 1
      %p204 = por %p202, %p203
      %p206 = scmp.ne.s32.totalorder %s191, %s205
      %p207 = scmp.eq.s32.totalorder %s34, 0
      %p208 = por %p206, %p207
      %s210 = sadd.s32 %s209, 1
      %p213 = scmp.eq.s32.totalorder %s28, 1
      %p214 = scmp.ne.s32.totalorder %s209, %s211
      %p215 = scmp.eq.s32.totalorder %s28, 0
      %p216 = por %p214, %p215
      %p217 = scmp.ne.s32.totalorder %s209, %s211
      %p218 = scmp.eq.s32.totalorder %s33, 1
      %p219 = por %p217, %p218
      %p220 = scmp.ne.s32.totalorder %s211, %s212
      %p221 = scmp.eq.s32.totalorder %s33, 0
      %p222 = por %p220, %p221
      %p223 = scmp.ne.s32.totalorder %s211, %s212
      %p224 = scmp.eq.s32.totalorder %s34, 1
      %p225 = por %p223, %p224
      %p227 = scmp.ne.s32.totalorder %s212, %s226
      %p228 = scmp.eq.s32.totalorder %s34, 0
      %p229 = por %p227, %p228
      %s231 = sadd.s32 %s230, 1
      %p234 = scmp.eq.s32.totalorder %s28, 1
      %p235 = scmp.ne.s32.totalorder %s230, %s232
      %p236 = scmp.eq.s32.totalorder %s28, 0
      %p237 = por %p235, %p236
      %p238 = scmp.ne.s32.totalorder %s230, %s232
      %p239 = scmp.eq.s32.totalorder %s33, 1
      %p240 = por %p238, %p239
      %p241 = scmp.ne.s32.totalorder %s232, %s233
      %p242 = scmp.eq.s32.totalorder %s33, 0
      %p243 = por %p241, %p242
      %p244 = scmp.ne.s32.totalorder %s232, %s233
      %p245 = scmp.eq.s32.totalorder %s34, 1
      %p246 = por %p244, %p245
      %p248 = scmp.ne.s32.totalorder %s233, %s247
      %p249 = scmp.eq.s32.totalorder %s34, 0
      %p250 = por %p248, %p249
      %s252 = sadd.s32 %s251, 1
      %p255 = scmp.eq.s32.totalorder %s28, 1
      %p256 = scmp.ne.s32.totalorder %s251, %s253
      %p257 = scmp.eq.s32.totalorder %s28, 0
      %p258 = por %p256, %p257
      %p259 = scmp.ne.s32.totalorder %s251, %s253
      %p260 = scmp.eq.s32.totalorder %s33, 1
      %p261 = por %p259, %p260
      %p262 = scmp.ne.s32.totalorder %s253, %s254
      %p263 = scmp.eq.s32.totalorder %s33, 0
      %p264 = por %p262, %p263
      %p265 = scmp.ne.s32.totalorder %s253, %s254
      %p266 = scmp.eq.s32.totalorder %s34, 1
      %p267 = por %p265, %p266
      %p269 = scmp.ne.s32.totalorder %s254, %s268
      %p270 = scmp.eq.s32.totalorder %s34, 0
      %p271 = por %p269, %p270
      %s273 = sadd.s32 %s272, 1
      %p276 = scmp.eq.s32.totalorder %s28, 1
      %p277 = scmp.ne.s32.totalorder %s272, %s274
      %p278 = scmp.eq.s32.totalorder %s28, 0
      %p279 = por %p277, %p278
      %p280 = scmp.ne.s32.totalorder %s272, %s274
      %p281 = scmp.eq.s32.totalorder %s33, 1
      %p282 = por %p280, %p281
      %p283 = scmp.ne.s32.totalorder %s274, %s275
      %p284 = scmp.eq.s32.totalorder %s33, 0
      %p285 = por %p283, %p284
      %p286 = scmp.ne.s32.totalorder %s274, %s275
      %p287 = scmp.eq.s32.totalorder %s34, 1
      %p288 = por %p286, %p287
      %p290 = scmp.ne.s32.totalorder %s275, %s289
      %p291 = scmp.eq.s32.totalorder %s34, 0
      %p292 = por %p290, %p291
      %s293 = ssub.s32 %s28, %s35
      %p294 = scmp.eq.s32.totalorder %s293, 0
      %s296 = sadd.s32 %s295, 1
      %s297 = scalar_select %p294, %s295, %s296
      %p300 = pneg %p294
      %p301 = scmp.eq.s32.totalorder %s28, 1
      %p302 = por %p300, %p301
      %p303 = scmp.ne.s32.totalorder %s295, %s298
      %p304 = scmp.eq.s32.totalorder %s28, 0
      %p305 = por %p303, %p304
      %p306 = scmp.ne.s32.totalorder %s295, %s298
      %p307 = scmp.eq.s32.totalorder %s33, 1
      %p308 = por %p306, %p307
      %p309 = scmp.ne.s32.totalorder %s298, %s299
      %p310 = scmp.eq.s32.totalorder %s33, 0
      %p311 = por %p309, %p310
      %p312 = scmp.ne.s32.totalorder %s298, %s299
      %p313 = scmp.eq.s32.totalorder %s34, 1
      %p314 = por %p312, %p313
      %p316 = scmp.ne.s32.totalorder %s299, %s315
      %p317 = scmp.eq.s32.totalorder %s34, 0
      %p318 = por %p316, %p317
      %p319 = scmp.le.s32.totalorder 1, %s28
      %p320 = scmp.lt.s32.totalorder %s28, 3
      %p321 = pnand %p319, %p320
      %p322 = pneg %p321
      // Predicated region
      $region9: #{cnn_model_forward.1} parent=5 // pred_check
        _
      $region10: #{cnn_model_forward.1} parent=5 // pred_check_branch
        %324 = sbr.rel (%p321) target = $region12
      $region11: #{cnn_model_forward.1} parent=5 // pred_region
        %s325 = ssub.s32 %s28, 1
        // Predicated region
        $region13: #{cnn_model_forward.1} parent=11 // pred_check
          %p326 = pneg %p75
        $region14: #{cnn_model_forward.1} parent=11 // pred_check_branch
          %328 = sbr.rel (%p326) target = $region16
        $region15: #{cnn_model_forward.1} parent=11 // pred_region
          %s330 = ssub.s32 512, 512
          %331 = vsyncadd [#allocation6], %s330
          %s332 = sshll.u32 [#allocation5], 4
          %s333 = int_to_ptr.vmem [resolvable:$true] %s332
          %338 = dma.hbm_to_vmem [thread:$0]  %s1, 512, %s333, [#allocation6], 64, 64, 4
        $region16: #{cnn_model_forward.1} parent=11 // pred_fallthru
          _
        // Predicated region
        $region17: #{cnn_model_forward.1} parent=11 // pred_check
          %p339 = pneg %p96
        $region18: #{cnn_model_forward.1} parent=11 // pred_check_branch
          %341 = sbr.rel (%p339) target = $region20
        $region19: #{cnn_model_forward.1} parent=11 // pred_region
          %s343 = ssub.s32 512, 512
          %344 = vsyncadd [#allocation6], %s343
          %s345 = sshll.u32 [#allocation7], 4
          %s346 = int_to_ptr.vmem [resolvable:$true] %s345
          %351 = dma.hbm_to_vmem [thread:$0]  %s2, 512, %s346, [#allocation6], 64, 64, 4
        $region20: #{cnn_model_forward.1} parent=11 // pred_fallthru
          _
        // Predicated region
        $region21: #{cnn_model_forward.1} parent=11 // pred_check
          %p352 = pneg %p117
        $region22: #{cnn_model_forward.1} parent=11 // pred_check_branch
          %354 = sbr.rel (%p352) target = $region24
        $region23: #{cnn_model_forward.1} parent=11 // pred_region
          %s356 = ssub.s32 768, 768
          %357 = vsyncadd [#allocation9], %s356
          %s358 = sshll.u32 [#allocation8], 4
          %s359 = int_to_ptr.vmem [resolvable:$true] %s358
          %364 = dma.hbm_to_vmem [thread:$0]  %s3, 768, %s359, [#allocation9], 128, 128, 8
        $region24: #{cnn_model_forward.1} parent=11 // pred_fallthru
          _
        // Predicated region
        $region25: #{cnn_model_forward.1} parent=11 // pred_check
          %p365 = pneg %p138
        $region26: #{cnn_model_forward.1} parent=11 // pred_check_branch
          %367 = sbr.rel (%p365) target = $region28
        $region27: #{cnn_model_forward.1} parent=11 // pred_region
          %s369 = ssub.s32 32, 32
          %370 = vsyncadd [#allocation9], %s369
          %s372 = sshll.u32 [#allocation10], 4
          %s373 = int_to_ptr.vmem [resolvable:$true] %s372
          %375 = dma.hbm_to_vmem [thread:$0]  %s4, 32, %s373, [#allocation9]
        $region28: #{cnn_model_forward.1} parent=11 // pred_fallthru
          _
        // Predicated region
        $region29: #{cnn_model_forward.1} parent=11 // pred_check
          %p376 = pneg %p159
        $region30: #{cnn_model_forward.1} parent=11 // pred_check_branch
          %378 = sbr.rel (%p376) target = $region32
        $region31: #{cnn_model_forward.1} parent=11 // pred_region
          %s380 = ssub.s32 24576, 24576
          %381 = vsyncadd [#allocation12], %s380
          %s382 = sshll.u32 [#allocation11], 4
          %s383 = int_to_ptr.vmem [resolvable:$true] %s382
          %388 = dma.hbm_to_vmem [thread:$0]  %s5, 24576, %s383, [#allocation12], 256, 256, 16
        $region32: #{cnn_model_forward.1} parent=11 // pred_fallthru
          _
        // Predicated region
        $region33: #{cnn_model_forward.1} parent=11 // pred_check
          %p389 = pneg %p180
        $region34: #{cnn_model_forward.1} parent=11 // pred_check_branch
          %391 = sbr.rel (%p389) target = $region36
        $region35: #{cnn_model_forward.1} parent=11 // pred_region
          %s393 = ssub.s32 64, 64
          %394 = vsyncadd [#allocation12], %s393
          %s396 = sshll.u32 [#allocation13], 4
          %s397 = int_to_ptr.vmem [resolvable:$true] %s396
          %399 = dma.hbm_to_vmem [thread:$0]  %s6, 64, %s397, [#allocation12]
        $region36: #{cnn_model_forward.1} parent=11 // pred_fallthru
          _
        // Predicated region
        $region37: #{cnn_model_forward.1} parent=11 // pred_check
          %p400 = pneg %p201
        $region38: #{cnn_model_forward.1} parent=11 // pred_check_branch
          %402 = sbr.rel (%p400) target = $region40
        $region39: #{cnn_model_forward.1} parent=11 // pred_region
          %s404 = ssub.s32 49152, 49152
          %405 = vsyncadd [#allocation15], %s404
          %s406 = sshll.u32 [#allocation14], 4
          %s407 = int_to_ptr.vmem [resolvable:$true] %s406
          %412 = dma.hbm_to_vmem [thread:$0]  %s7, 49152, %s407, [#allocation15], 256, 256, 16
        $region40: #{cnn_model_forward.1} parent=11 // pred_fallthru
          _
        // Predicated region
        $region41: #{cnn_model_forward.1} parent=11 // pred_check
          %p413 = pneg %p222
        $region42: #{cnn_model_forward.1} parent=11 // pred_check_branch
          %415 = sbr.rel (%p413) target = $region44
        $region43: #{cnn_model_forward.1} parent=11 // pred_region
          %s417 = ssub.s32 64, 64
          %418 = vsyncadd [#allocation15], %s417
          %s420 = sshll.u32 [#allocation16], 4
          %s421 = int_to_ptr.vmem [resolvable:$true] %s420
          %423 = dma.hbm_to_vmem [thread:$0]  %s8, 64, %s421, [#allocation15]
        $region44: #{cnn_model_forward.1} parent=11 // pred_fallthru
          _
        // Predicated region
        $region45: #{cnn_model_forward.1} parent=11 // pred_check
          %p424 = pneg %p243
        $region46: #{cnn_model_forward.1} parent=11 // pred_check_branch
          %426 = sbr.rel (%p424) target = $region48
        $region47: #{cnn_model_forward.1} parent=11 // pred_region
          %s428 = ssub.s32 12288, 12288
          %429 = vsyncadd [#allocation18], %s428
          %s430 = sshll.u32 [#allocation17], 4
          %s431 = int_to_ptr.vmem [resolvable:$true] %s430
          %436 = dma.hbm_to_vmem [thread:$0]  %s9, 12288, %s431, [#allocation18], 192, 192, 12
        $region48: #{cnn_model_forward.1} parent=11 // pred_fallthru
          _
        // Predicated region
        $region49: #{cnn_model_forward.1} parent=11 // pred_check
          %p437 = pneg %p264
        $region50: #{cnn_model_forward.1} parent=11 // pred_check_branch
          %439 = sbr.rel (%p437) target = $region52
        $region51: #{cnn_model_forward.1} parent=11 // pred_region
          _
        $region52: #{cnn_model_forward.1} parent=11 // pred_fallthru
          _
        // Predicated region
        $region53: #{cnn_model_forward.1} parent=11 // pred_check
          %p440 = pneg %p285
        $region54: #{cnn_model_forward.1} parent=11 // pred_check_branch
          %442 = sbr.rel (%p440) target = $region56
        $region55: #{cnn_model_forward.1} parent=11 // pred_region
          _
        $region56: #{cnn_model_forward.1} parent=11 // pred_fallthru
          _
      $region12: #{cnn_model_forward.1} parent=5 // pred_fallthru
        _
      %p443 = scmp.lt.s32.totalorder %s28, 2
      // Predicated region
      $region57: #{cnn_model_forward.1} parent=5 // pred_check
        %p444 = pneg %p443
      $region58: #{cnn_model_forward.1} parent=5 // pred_check_branch
        %446 = sbr.rel (%p444) target = $region60
      $region59: #{cnn_model_forward.1} parent=5 // pred_region
        // Predicated region
        $region61: #{cnn_model_forward.1} parent=59 // pred_check
          %p447 = pneg %p48
        $region62: #{cnn_model_forward.1} parent=59 // pred_check_branch
          %449 = sbr.rel (%p447) target = $region64
        $region63: #{cnn_model_forward.1} parent=59 // pred_region
          %s450 = sand.u32 %s38, 1
          %s451 = scalar_lea.sflag [#allocation4], %s450
          %s452 = sand.u32 %s38, 1
          %s453 = smul.addr %s452, 64
          %s454 = scalar_lea.vmem [#allocation3], %s453
          %s455 = smul.u32 4, %s28
          %s457 = ssub.s32 1024, 1024
          %458 = vsyncadd %s451, %s457
          %s459 = smul.addr %s455, 2
          %s460 = smul.addr %s459, 128
          %s461 = scalar_lea.hbm %s0, %s460
          %s462 = sshll.u32 %s454, 4
          %s463 = int_to_ptr.vmem [resolvable:$true] %s462
          %468 = dma.hbm_to_vmem [thread:$0]  %s461, 1024, %s463, %s451, 128, 128, 8
        $region64: #{cnn_model_forward.1} parent=59 // pred_fallthru
          _
      $region60: #{cnn_model_forward.1} parent=5 // pred_fallthru
        _
      %p469 = scmp.le.s32.totalorder 1, %s28
      %p470 = scmp.lt.s32.totalorder %s28, 3
      %p471 = pnand %p469, %p470
      %p472 = pneg %p471
      // Predicated region
      $region65: #{cnn_model_forward.1} parent=5 // pred_check
        _
      $region66: #{cnn_model_forward.1} parent=5 // pred_check_branch
        %474 = sbr.rel (%p471) target = $region68
      $region67: #{cnn_model_forward.1} parent=5 // pred_region
        %s475 = ssub.s32 %s28, 1
        %s476 = sand.u32 %s41, 1
        %s477 = scalar_lea.sflag [#allocation4], %s476
        %s478 = sand.u32 %s41, 1
        %s479 = smul.addr %s478, 64
        %s480 = scalar_lea.vmem [#allocation3], %s479
        // Predicated region
        $region69: #{cnn_model_forward.1} parent=67 // pred_check
          %p481 = pneg %p54
        $region70: #{cnn_model_forward.1} parent=67 // pred_check_branch
          %483 = sbr.rel (%p481) target = $region72
        $region71: #{cnn_model_forward.1} parent=67 // pred_region
          %484 = dma.done %s477, 1024
        $region72: #{cnn_model_forward.1} parent=67 // pred_fallthru
          _
        // Predicated region
        $region73: #{cnn_model_forward.1} parent=67 // pred_check
          %p485 = pneg %p75
        $region74: #{cnn_model_forward.1} parent=67 // pred_check_branch
          %487 = sbr.rel (%p485) target = $region76
        $region75: #{cnn_model_forward.1} parent=67 // pred_region
          %488 = dma.done [#allocation6], 512
        $region76: #{cnn_model_forward.1} parent=67 // pred_fallthru
          _
        // Predicated region
        $region77: #{cnn_model_forward.1} parent=67 // pred_check
          %p489 = pneg %p96
        $region78: #{cnn_model_forward.1} parent=67 // pred_check_branch
          %491 = sbr.rel (%p489) target = $region80
        $region79: #{cnn_model_forward.1} parent=67 // pred_region
          %492 = dma.done [#allocation6], 512
        $region80: #{cnn_model_forward.1} parent=67 // pred_fallthru
          _
        // Predicated region
        $region81: #{cnn_model_forward.1} parent=67 // pred_check
          %p493 = pneg %p117
        $region82: #{cnn_model_forward.1} parent=67 // pred_check_branch
          %495 = sbr.rel (%p493) target = $region84
        $region83: #{cnn_model_forward.1} parent=67 // pred_region
          %496 = dma.done [#allocation9], 768
        $region84: #{cnn_model_forward.1} parent=67 // pred_fallthru
          _
        // Predicated region
        $region85: #{cnn_model_forward.1} parent=67 // pred_check
          %p497 = pneg %p138
        $region86: #{cnn_model_forward.1} parent=67 // pred_check_branch
          %499 = sbr.rel (%p497) target = $region88
        $region87: #{cnn_model_forward.1} parent=67 // pred_region
          %500 = dma.done [#allocation9], 32
        $region88: #{cnn_model_forward.1} parent=67 // pred_fallthru
          _
        // Predicated region
        $region89: #{cnn_model_forward.1} parent=67 // pred_check
          %p501 = pneg %p159
        $region90: #{cnn_model_forward.1} parent=67 // pred_check_branch
          %503 = sbr.rel (%p501) target = $region92
        $region91: #{cnn_model_forward.1} parent=67 // pred_region
          %504 = dma.done [#allocation12], 24576
        $region92: #{cnn_model_forward.1} parent=67 // pred_fallthru
          _
        // Predicated region
        $region93: #{cnn_model_forward.1} parent=67 // pred_check
          %p505 = pneg %p180
        $region94: #{cnn_model_forward.1} parent=67 // pred_check_branch
          %507 = sbr.rel (%p505) target = $region96
        $region95: #{cnn_model_forward.1} parent=67 // pred_region
          %508 = dma.done [#allocation12], 64
        $region96: #{cnn_model_forward.1} parent=67 // pred_fallthru
          _
        // Predicated region
        $region97: #{cnn_model_forward.1} parent=67 // pred_check
          %p509 = pneg %p201
        $region98: #{cnn_model_forward.1} parent=67 // pred_check_branch
          %511 = sbr.rel (%p509) target = $region100
        $region99: #{cnn_model_forward.1} parent=67 // pred_region
          %512 = dma.done [#allocation15], 49152
        $region100: #{cnn_model_forward.1} parent=67 // pred_fallthru
          _
        // Predicated region
        $region101: #{cnn_model_forward.1} parent=67 // pred_check
          %p513 = pneg %p222
        $region102: #{cnn_model_forward.1} parent=67 // pred_check_branch
          %515 = sbr.rel (%p513) target = $region104
        $region103: #{cnn_model_forward.1} parent=67 // pred_region
          %516 = dma.done [#allocation15], 64
        $region104: #{cnn_model_forward.1} parent=67 // pred_fallthru
          _
        // Predicated region
        $region105: #{cnn_model_forward.1} parent=67 // pred_check
          %p517 = pneg %p243
        $region106: #{cnn_model_forward.1} parent=67 // pred_check_branch
          %519 = sbr.rel (%p517) target = $region108
        $region107: #{cnn_model_forward.1} parent=67 // pred_region
          %520 = dma.done [#allocation18], 12288
        $region108: #{cnn_model_forward.1} parent=67 // pred_fallthru
          _
        %s521 = sand.u32 %s41, 1
        %s522 = scalar_lea.sflag [#allocation4], %s521
        %s523 = sand.u32 %s41, 1
        %s524 = smul.addr %s523, 64
        %s525 = scalar_lea.vmem [#allocation3], %s524
        %p526 = pneg %p54
        %p527 = pneg %p51
        %p528 = pneg %p75
        %p529 = pneg %p72
        %p530 = pneg %p96
        %p531 = pneg %p93
        %p532 = pneg %p117
        %p533 = pneg %p114
        %p534 = pneg %p138
        %p535 = pneg %p135
        %p536 = pneg %p159
        %p537 = pneg %p156
        %p538 = pneg %p180
        %p539 = pneg %p177
        %p540 = pneg %p201
        %p541 = pneg %p198
        %p542 = pneg %p222
        %p543 = pneg %p219
        %p544 = pneg %p243
        %p545 = pneg %p240
        %p546 = pneg %p264
        %p547 = pneg %p261
        %p548 = pneg %p285
        %p549 = pneg %p282
        %p550 = pneg %p311
        %p551 = pneg %p308
        %s552 = smul.u32 4, %s33
        %p553 = scmp.lt.s32.totalorder %s552, 7
        %s554 = scalar_select %p553, %s552, 7
        %s555 = smul.addr %s554, 10
        %s556 = smul.addr %s555, 8
        %s557 = scalar_lea.vmem %s12, %s556
        %s558 = smul.u32 4, %s33
        %s559 = smul.u32 4, %s33
        %p560 = scmp.lt.s32.totalorder %s559, 7
        %s561 = scalar_select %p560, %s559, 7
        %s562 = smul.addr %s561, 10
        %s563 = smul.addr %s562, 8
        %s564 = scalar_lea.vmem %s12, %s563
        %s565 = smul.u32 4, %s33
        %v567 = vld [vmem:[#allocation5] sm:$0xf]
        %v568 = vld [vmem:[#allocation5 + $0x4] sm:$0xf]
        %v569 = vld [vmem:[#allocation5 + $0x8] sm:$0xf]
        %v570 = vld [vmem:[#allocation5 + $0xc] sm:$0xf]
        %v571 = vld [vmem:[#allocation5 + $0x10] sm:$0xf]
        %v572 = vld [vmem:[#allocation5 + $0x14] sm:$0xf]
        %v573 = vld [vmem:[#allocation5 + $0x18] sm:$0xf]
        %v574 = vld [vmem:[#allocation5 + $0x1c] sm:$0xf]
        %v575 = vld [vmem:[#allocation7] sm:$0xf]
        %v576 = vld [vmem:[#allocation7 + $0x4] sm:$0xf]
        %v577 = vld [vmem:[#allocation7 + $0x8] sm:$0xf]
        %v578 = vld [vmem:[#allocation7 + $0xc] sm:$0xf]
        %v579 = vld [vmem:[#allocation7 + $0x10] sm:$0xf]
        %v580 = vld [vmem:[#allocation7 + $0x14] sm:$0xf]
        %v581 = vld [vmem:[#allocation7 + $0x18] sm:$0xf]
        %v582 = vld [vmem:[#allocation7 + $0x1c] sm:$0xf]
        %v583 = vld [vmem:[%s480] sm:$0xff]
        %v584 = vld [vmem:[%s480 + $0x8] sm:$0xff]
        %v585 = vld [vmem:[%s480 + $0x10] sm:$0xff]
        %v586 = vld [vmem:[%s480 + $0x18] sm:$0xff]
        %v587 = vld [vmem:[%s480 + $0x20] sm:$0xff]
        %v588 = vld [vmem:[%s480 + $0x28] sm:$0xff]
        %v589 = vld [vmem:[%s480 + $0x30] sm:$0xff]
        %v590 = vld [vmem:[%s480 + $0x38] sm:$0xff]
        %v591 = vpack.c.bf16 %v584, %v583
        %v592 = vpack.c.bf16 %v586, %v585
        %v593 = vpack.c.bf16 %v588, %v587
        %v594 = vpack.c.bf16 %v590, %v589
        %v603 = vunpack.c.l.b16 %v567
        %v604 = vunpack.c.l.b16 %v568
        %v605 = vunpack.c.l.b16 %v569
        %v606 = vunpack.c.l.b16 %v570
        %v607 = vunpack.c.l.b16 %v571
        %v608 = vunpack.c.l.b16 %v572
        %v609 = vunpack.c.l.b16 %v573
        %v610 = vunpack.c.l.b16 %v574
        %v611 = vpack.c.b16 %v604, %v603
        %v612 = vpack.c.b16 %v606, %v605
        %v613 = vpack.c.b16 %v608, %v607
        %v614 = vpack.c.b16 %v610, %v609
        %vm615 = vcmask 523264
        %v617 = vsel %vm615, %v611, 0
        %v620 = vsel %vm615, %v612, 0
        %v623 = vsel %vm615, %v613, 0
        %v626 = vsel %vm615, %v614, 0
        %628 = vmatprep.subr.bf16.mxu0 0
        %629 = vmatpush1.bf16.msra.mxu0 %v591
        %630 = vmatprep.subr.bf16.mxu0 0
        %631 = vmatpush1.bf16.msra.mxu0 %v592
        %632 = vmatprep.subr.bf16.mxu0 0
        %633 = vmatpush1.bf16.msra.mxu0 %v593
        %634 = vmatprep.subr.bf16.mxu0 0
        %635 = vmatpush1.bf16.msra.mxu0 %v594
        %636 = vmatprep.subr.bf16.mxu0 0
        %637 = vmatpush1.bf16.msra.mxu0 0
        %638 = vmatprep.subr.bf16.mxu0 0
        %639 = vmatpush1.bf16.msra.mxu0 0
        %640 = vmatprep.subr.bf16.mxu0 0
        %641 = vmatpush1.bf16.msra.mxu0 0
        %642 = vmatprep.subr.bf16.mxu0 0
        %643 = vmatpush1.bf16.msra.mxu0 0
        %644 = vmatprep.subr.bf16.mxu0 0
        %645 = vmatpush1.bf16.msra.mxu0 0
        %646 = vmatprep.subr.bf16.mxu0 0
        %647 = vmatpush1.bf16.msra.mxu0 0
        %648 = vmatprep.subr.bf16.mxu0 0
        %649 = vmatpush1.bf16.msra.mxu0 0
        %650 = vmatprep.subr.bf16.mxu0 0
        %651 = vmatpush1.bf16.msra.mxu0 0
        %652 = vmatprep.subr.bf16.mxu0 0
        %653 = vmatpush1.bf16.msra.mxu0 0
        %654 = vmatprep.subr.bf16.mxu0 0
        %655 = vmatpush1.bf16.msra.mxu0 0
        %656 = vmatprep.subr.bf16.mxu0 0
        %657 = vmatpush1.bf16.msra.mxu0 0
        %658 = vmatprep.subr.bf16.mxu0 0
        %659 = vmatpush1.bf16.msra.mxu0 0
        %660 = vmatprep.mubr.bf16.mxu0 0
        %661 = vmatmul.mubr.bf16.gmra.mrb[0].mxu0 %v617
        %v662 = vpop.f32.mrb[0].mxu0
        %v663 = vadd.f32 0.0, %v662
        %v664 = vpop.f32.mrb[0].mxu0
        %v665 = vpop.f32.mrb[0].mxu0
        %v666 = vadd.f32 0.0, %v665
        %v667 = vpop.f32.mrb[0].mxu0
        %668 = vmatprep.mubr.bf16.mxu0 0
        %669 = vmatmul.mubr.bf16.gmra.mrb[0].mxu0 %v620
        %v670 = vpop.f32.mrb[0].mxu0
        %v671 = vadd.f32 0.0, %v670
        %v672 = vpop.f32.mrb[0].mxu0
        %v673 = vpop.f32.mrb[0].mxu0
        %v674 = vadd.f32 0.0, %v673
        %v675 = vpop.f32.mrb[0].mxu0
        %676 = vmatprep.mubr.bf16.mxu0 0
        %677 = vmatmul.mubr.bf16.gmra.mrb[0].mxu0 %v623
        %v678 = vpop.f32.mrb[0].mxu0
        %v679 = vadd.f32 0.0, %v678
        %v680 = vpop.f32.mrb[0].mxu0
        %v681 = vpop.f32.mrb[0].mxu0
        %v682 = vadd.f32 0.0, %v681
        %v683 = vpop.f32.mrb[0].mxu0
        %684 = vmatprep.mubr.bf16.mxu0 0
        %685 = vmatmul.mubr.bf16.gmra.mrb[0].mxu0 %v626
        %v686 = vpop.f32.mrb[0].mxu0
        %v687 = vadd.f32 0.0, %v686
        %v688 = vpop.f32.mrb[0].mxu0
        %v689 = vpop.f32.mrb[0].mxu0
        %v690 = vadd.f32 0.0, %v689
        %v691 = vpop.f32.mrb[0].mxu0
        %692 = vdwg.mxu0
        %v693 = vpack.c.bf16 %v666, %v663
        %v694 = vpack.c.bf16 %v674, %v671
        %v695 = vpack.c.bf16 %v682, %v679
        %v696 = vpack.c.bf16 %v690, %v687
        %v705 = vunpack.c.l.b16 %v575
        %v706 = vunpack.c.l.b16 %v576
        %v707 = vunpack.c.l.b16 %v577
        %v708 = vunpack.c.l.b16 %v578
        %v709 = vunpack.c.l.b16 %v579
        %v710 = vunpack.c.l.b16 %v580
        %v711 = vunpack.c.l.b16 %v581
        %v712 = vunpack.c.l.b16 %v582
        %v713 = vpack.c.b16 %v706, %v705
        %v714 = vpack.c.b16 %v708, %v707
        %v715 = vpack.c.b16 %v710, %v709
        %v716 = vpack.c.b16 %v712, %v711
        %v718 = vsel %vm615, %v713, 0
        %v721 = vsel %vm615, %v714, 0
        %v724 = vsel %vm615, %v715, 0
        %v727 = vsel %vm615, %v716, 0
        %729 = vmatprep.subr.bf16.mxu0 0
        %730 = vmatpush1.bf16.msra.mxu0 %v591
        %731 = vmatprep.subr.bf16.mxu0 0
        %732 = vmatpush1.bf16.msra.mxu0 %v592
        %733 = vmatprep.subr.bf16.mxu0 0
        %734 = vmatpush1.bf16.msra.mxu0 %v593
        %735 = vmatprep.subr.bf16.mxu0 0
        %736 = vmatpush1.bf16.msra.mxu0 %v594
        %737 = vmatprep.subr.bf16.mxu0 0
        %738 = vmatpush1.bf16.msra.mxu0 0
        %739 = vmatprep.subr.bf16.mxu0 0
        %740 = vmatpush1.bf16.msra.mxu0 0
        %741 = vmatprep.subr.bf16.mxu0 0
        %742 = vmatpush1.bf16.msra.mxu0 0
        %743 = vmatprep.subr.bf16.mxu0 0
        %744 = vmatpush1.bf16.msra.mxu0 0
        %745 = vmatprep.subr.bf16.mxu0 0
        %746 = vmatpush1.bf16.msra.mxu0 0
        %747 = vmatprep.subr.bf16.mxu0 0
        %748 = vmatpush1.bf16.msra.mxu0 0
        %749 = vmatprep.subr.bf16.mxu0 0
        %750 = vmatpush1.bf16.msra.mxu0 0
        %751 = vmatprep.subr.bf16.mxu0 0
        %752 = vmatpush1.bf16.msra.mxu0 0
        %753 = vmatprep.subr.bf16.mxu0 0
        %754 = vmatpush1.bf16.msra.mxu0 0
        %755 = vmatprep.subr.bf16.mxu0 0
        %756 = vmatpush1.bf16.msra.mxu0 0
        %757 = vmatprep.subr.bf16.mxu0 0
        %758 = vmatpush1.bf16.msra.mxu0 0
        %759 = vmatprep.subr.bf16.mxu0 0
        %760 = vmatpush1.bf16.msra.mxu0 0
        %761 = vmatprep.mubr.bf16.mxu0 0
        %762 = vmatmul.mubr.bf16.gmra.mrb[0].mxu0 %v718
        %v763 = vpop.f32.mrb[0].mxu0
        %v764 = vadd.f32 0.0, %v763
        %v765 = vpop.f32.mrb[0].mxu0
        %v766 = vpop.f32.mrb[0].mxu0
        %v767 = vadd.f32 0.0, %v766
        %v768 = vpop.f32.mrb[0].mxu0
        %769 = vmatprep.mubr.bf16.mxu0 0
        %770 = vmatmul.mubr.bf16.gmra.mrb[0].mxu0 %v721
        %v771 = vpop.f32.mrb[0].mxu0
        %v772 = vadd.f32 0.0, %v771
        %v773 = vpop.f32.mrb[0].mxu0
        %v774 = vpop.f32.mrb[0].mxu0
        %v775 = vadd.f32 0.0, %v774
        %v776 = vpop.f32.mrb[0].mxu0
        %777 = vmatprep.mubr.bf16.mxu0 0
        %778 = vmatmul.mubr.bf16.gmra.mrb[0].mxu0 %v724
        %v779 = vpop.f32.mrb[0].mxu0
        %v780 = vadd.f32 0.0, %v779
        %v781 = vpop.f32.mrb[0].mxu0
        %v782 = vpop.f32.mrb[0].mxu0
        %v783 = vadd.f32 0.0, %v782
        %v784 = vpop.f32.mrb[0].mxu0
        %785 = vmatprep.mubr.bf16.mxu0 0
        %786 = vmatmul.mubr.bf16.gmra.mrb[0].mxu0 %v727
        %v787 = vpop.f32.mrb[0].mxu0
        %v788 = vadd.f32 0.0, %v787
        %v789 = vpop.f32.mrb[0].mxu0
        %v790 = vpop.f32.mrb[0].mxu0
        %v791 = vadd.f32 0.0, %v790
        %v792 = vpop.f32.mrb[0].mxu0
        %793 = vdwg.mxu0
        %v794 = vpack.c.bf16 %v767, %v764
        %v795 = vpack.c.bf16 %v775, %v772
        %v796 = vpack.c.bf16 %v783, %v780
        %v797 = vpack.c.bf16 %v791, %v788
        %v798 = vld [vmem:[#allocation8] sm:$0xff]
        %v799 = vld [vmem:[#allocation8 + $0x8] sm:$0xff]
        %s800 = scalar_lea.vmem [#allocation8], 16
        %v801 = vld [vmem:[%s800] sm:$0xff]
        %v802 = vld [vmem:[%s800 + $0x8] sm:$0xff]
        %v805 = vunpack.c.l.b16 %v801
        %v806 = vunpack.c.h.b16 %v801
        %v807 = vunpack.c.l.b16 %v802
        %v808 = vunpack.c.h.b16 %v802
        %v809 = vpack.c.b16 %v807, %v805
        %v810 = vpack.c.b16 %v808, %v806
        %vm813 = vcmask 130048
        %v815 = vsel %vm813, %v591, 0
        %v818 = vsel %vm813, %v592, 0
        %v821 = vsel %vm813, %v593, 0
        %v824 = vsel %vm813, %v594, 0
        %826 = vmatprep.subr.bf16.mxu0 %v810
        %827 = vmatpush1.bf16.msra.mxu0 %v809
        %828 = vmatprep.subr.bf16.mxu0 0
        %829 = vmatpush1.bf16.msra.mxu0 0
        %830 = vmatprep.subr.bf16.mxu0 0
        %831 = vmatpush1.bf16.msra.mxu0 0
        %832 = vmatprep.subr.bf16.mxu0 0
        %833 = vmatpush1.bf16.msra.mxu0 0
        %834 = vmatprep.subr.bf16.mxu0 0
        %835 = vmatpush1.bf16.msra.mxu0 0
        %836 = vmatprep.subr.bf16.mxu0 0
        %837 = vmatpush1.bf16.msra.mxu0 0
        %838 = vmatprep.subr.bf16.mxu0 0
        %839 = vmatpush1.bf16.msra.mxu0 0
        %840 = vmatprep.subr.bf16.mxu0 0
        %841 = vmatpush1.bf16.msra.mxu0 0
        %842 = vmatprep.subr.bf16.mxu0 0
        %843 = vmatpush1.bf16.msra.mxu0 0
        %844 = vmatprep.subr.bf16.mxu0 0
        %845 = vmatpush1.bf16.msra.mxu0 0
        %846 = vmatprep.subr.bf16.mxu0 0
        %847 = vmatpush1.bf16.msra.mxu0 0
        %848 = vmatprep.subr.bf16.mxu0 0
        %849 = vmatpush1.bf16.msra.mxu0 0
        %850 = vmatprep.subr.bf16.mxu0 0
        %851 = vmatpush1.bf16.msra.mxu0 0
        %852 = vmatprep.subr.bf16.mxu0 0
        %853 = vmatpush1.bf16.msra.mxu0 0
        %854 = vmatprep.subr.bf16.mxu0 0
        %855 = vmatpush1.bf16.msra.mxu0 0
        %856 = vmatprep.subr.bf16.mxu0 0
        %857 = vmatpush1.bf16.msra.mxu0 0
        %858 = vmatprep.mubr.bf16.mxu0 0
        %859 = vmatmul.mubr.bf16.gmra.mrb[0].mxu0 %v815
        %v860 = vpop.f32.mrb[0].mxu0
        %v861 = vadd.f32 0.0, %v860
        %v862 = vpop.f32.mrb[0].mxu0
        %v863 = vadd.f32 0.0, %v862
        %v864 = vpop.f32.mrb[0].mxu0
        %v865 = vadd.f32 0.0, %v864
        %v866 = vpop.f32.mrb[0].mxu0
        %v867 = vadd.f32 0.0, %v866
        %868 = vmatprep.mubr.bf16.mxu0 0
        %869 = vmatmul.mubr.bf16.gmra.mrb[0].mxu0 %v818
        %v870 = vpop.f32.mrb[0].mxu0
        %v871 = vadd.f32 0.0, %v870
        %v872 = vpop.f32.mrb[0].mxu0
        %v873 = vadd.f32 0.0, %v872
        %v874 = vpop.f32.mrb[0].mxu0
        %v875 = vadd.f32 0.0, %v874
        %v876 = vpop.f32.mrb[0].mxu0
        %v877 = vadd.f32 0.0, %v876
        %878 = vmatprep.mubr.bf16.mxu0 0
        %879 = vmatmul.mubr.bf16.gmra.mrb[0].mxu0 %v821
        %v880 = vpop.f32.mrb[0].mxu0
        %v881 = vadd.f32 0.0, %v880
        %v882 = vpop.f32.mrb[0].mxu0
        %v883 = vadd.f32 0.0, %v882
        %v884 = vpop.f32.mrb[0].mxu0
        %v885 = vadd.f32 0.0, %v884
        %v886 = vpop.f32.mrb[0].mxu0
        %v887 = vadd.f32 0.0, %v886
        %888 = vmatprep.mubr.bf16.mxu0 0
        %889 = vmatmul.mubr.bf16.gmra.mrb[0].mxu0 %v824
        %v890 = vpop.f32.mrb[0].mxu0
        %v891 = vadd.f32 0.0, %v890
        %v892 = vpop.f32.mrb[0].mxu0
        %v893 = vadd.f32 0.0, %v892
        %v894 = vpop.f32.mrb[0].mxu0
        %v895 = vadd.f32 0.0, %v894
        %v896 = vpop.f32.mrb[0].mxu0
        %v897 = vadd.f32 0.0, %v896
        %898 = vdwg.mxu0
        %v901 = vunpack.c.l.b16 %v798
        %v902 = vunpack.c.h.b16 %v798
        %v903 = vunpack.c.l.b16 %v799
        %v904 = vunpack.c.h.b16 %v799
        %v905 = vpack.c.b16 %v903, %v901
        %v906 = vpack.c.b16 %v904, %v902
        %v910 = vsel %vm813, %v693, 0
        %v913 = vsel %vm813, %v694, 0
        %v916 = vsel %vm813, %v695, 0
        %v919 = vsel %vm813, %v696, 0
        %921 = vmatprep.subr.bf16.mxu0 %v906
        %922 = vmatpush1.bf16.msra.mxu0 %v905
        %923 = vmatprep.subr.bf16.mxu0 0
        %924 = vmatpush1.bf16.msra.mxu0 0
        %925 = vmatprep.subr.bf16.mxu0 0
        %926 = vmatpush1.bf16.msra.mxu0 0
        %927 = vmatprep.subr.bf16.mxu0 0
        %928 = vmatpush1.bf16.msra.mxu0 0
        %929 = vmatprep.subr.bf16.mxu0 0
        %930 = vmatpush1.bf16.msra.mxu0 0
        %931 = vmatprep.subr.bf16.mxu0 0
        %932 = vmatpush1.bf16.msra.mxu0 0
        %933 = vmatprep.subr.bf16.mxu0 0
        %934 = vmatpush1.bf16.msra.mxu0 0
        %935 = vmatprep.subr.bf16.mxu0 0
        %936 = vmatpush1.bf16.msra.mxu0 0
        %937 = vmatprep.subr.bf16.mxu0 0
        %938 = vmatpush1.bf16.msra.mxu0 0
        %939 = vmatprep.subr.bf16.mxu0 0
        %940 = vmatpush1.bf16.msra.mxu0 0
        %941 = vmatprep.subr.bf16.mxu0 0
        %942 = vmatpush1.bf16.msra.mxu0 0
        %943 = vmatprep.subr.bf16.mxu0 0
        %944 = vmatpush1.bf16.msra.mxu0 0
        %945 = vmatprep.subr.bf16.mxu0 0
        %946 = vmatpush1.bf16.msra.mxu0 0
        %947 = vmatprep.subr.bf16.mxu0 0
        %948 = vmatpush1.bf16.msra.mxu0 0
        %949 = vmatprep.subr.bf16.mxu0 0
        %950 = vmatpush1.bf16.msra.mxu0 0
        %951 = vmatprep.subr.bf16.mxu0 0
        %952 = vmatpush1.bf16.msra.mxu0 0
        %953 = vmatprep.mubr.bf16.mxu0 0
        %954 = vmatmul.mubr.bf16.gmra.mrb[0].mxu0 %v910
        %v955 = vpop.f32.mrb[0].mxu0
        %v956 = vadd.f32 %v861, %v955
        %v957 = vpop.f32.mrb[0].mxu0
        %v958 = vadd.f32 %v863, %v957
        %v959 = vpop.f32.mrb[0].mxu0
        %v960 = vadd.f32 %v865, %v959
        %v961 = vpop.f32.mrb[0].mxu0
        %v962 = vadd.f32 %v867, %v961
        %963 = vmatprep.mubr.bf16.mxu0 0
        %964 = vmatmul.mubr.bf16.gmra.mrb[0].mxu0 %v913
        %v965 = vpop.f32.mrb[0].mxu0
        %v966 = vadd.f32 %v871, %v965
        %v967 = vpop.f32.mrb[0].mxu0
        %v968 = vadd.f32 %v873, %v967
        %v969 = vpop.f32.mrb[0].mxu0
        %v970 = vadd.f32 %v875, %v969
        %v971 = vpop.f32.mrb[0].mxu0
        %v972 = vadd.f32 %v877, %v971
        %973 = vmatprep.mubr.bf16.mxu0 0
        %974 = vmatmul.mubr.bf16.gmra.mrb[0].mxu0 %v916
        %v975 = vpop.f32.mrb[0].mxu0
        %v976 = vadd.f32 %v881, %v975
        %v977 = vpop.f32.mrb[0].mxu0
        %v978 = vadd.f32 %v883, %v977
        %v979 = vpop.f32.mrb[0].mxu0
        %v980 = vadd.f32 %v885, %v979
        %v981 = vpop.f32.mrb[0].mxu0
        %v982 = vadd.f32 %v887, %v981
        %983 = vmatprep.mubr.bf16.mxu0 0
        %984 = vmatmul.mubr.bf16.gmra.mrb[0].mxu0 %v919
        %v985 = vpop.f32.mrb[0].mxu0
        %v986 = vadd.f32 %v891, %v985
        %v987 = vpop.f32.mrb[0].mxu0
        %v988 = vadd.f32 %v893, %v987
        %v989 = vpop.f32.mrb[0].mxu0
        %v990 = vadd.f32 %v895, %v989
        %v991 = vpop.f32.mrb[0].mxu0
        %v992 = vadd.f32 %v897, %v991
        %993 = vdwg.mxu0
        %s994 = scalar_lea.vmem [#allocation8], 32
        %v995 = vld [vmem:[%s994] sm:$0xff]
        %v996 = vld [vmem:[%s994 + $0x8] sm:$0xff]
        %v999 = vunpack.c.l.b16 %v995
        %v1000 = vunpack.c.h.b16 %v995
        %v1001 = vunpack.c.l.b16 %v996
        %v1002 = vunpack.c.h.b16 %v996
        %v1003 = vpack.c.b16 %v1001, %v999
        %v1004 = vpack.c.b16 %v1002, %v1000
        %v1008 = vsel %vm813, %v794, 0
        %v1011 = vsel %vm813, %v795, 0
        %v1014 = vsel %vm813, %v796, 0
        %v1017 = vsel %vm813, %v797, 0
        %1019 = vmatprep.subr.bf16.mxu0 %v1004
        %1020 = vmatpush1.bf16.msra.mxu0 %v1003
        %1021 = vmatprep.subr.bf16.mxu0 0
        %1022 = vmatpush1.bf16.msra.mxu0 0
        %1023 = vmatprep.subr.bf16.mxu0 0
        %1024 = vmatpush1.bf16.msra.mxu0 0
        %1025 = vmatprep.subr.bf16.mxu0 0
        %1026 = vmatpush1.bf16.msra.mxu0 0
        %1027 = vmatprep.subr.bf16.mxu0 0
        %1028 = vmatpush1.bf16.msra.mxu0 0
        %1029 = vmatprep.subr.bf16.mxu0 0
        %1030 = vmatpush1.bf16.msra.mxu0 0
        %1031 = vmatprep.subr.bf16.mxu0 0
        %1032 = vmatpush1.bf16.msra.mxu0 0
        %1033 = vmatprep.subr.bf16.mxu0 0
        %1034 = vmatpush1.bf16.msra.mxu0 0
        %1035 = vmatprep.subr.bf16.mxu0 0
        %1036 = vmatpush1.bf16.msra.mxu0 0
        %1037 = vmatprep.subr.bf16.mxu0 0
        %1038 = vmatpush1.bf16.msra.mxu0 0
        %1039 = vmatprep.subr.bf16.mxu0 0
        %1040 = vmatpush1.bf16.msra.mxu0 0
        %1041 = vmatprep.subr.bf16.mxu0 0
        %1042 = vmatpush1.bf16.msra.mxu0 0
        %1043 = vmatprep.subr.bf16.mxu0 0
        %1044 = vmatpush1.bf16.msra.mxu0 0
        %1045 = vmatprep.subr.bf16.mxu0 0
        %1046 = vmatpush1.bf16.msra.mxu0 0
        %1047 = vmatprep.subr.bf16.mxu0 0
        %1048 = vmatpush1.bf16.msra.mxu0 0
        %1049 = vmatprep.subr.bf16.mxu0 0
        %1050 = vmatpush1.bf16.msra.mxu0 0
        %1051 = vmatprep.mubr.bf16.mxu0 0
        %1052 = vmatmul.mubr.bf16.gmra.mrb[0].mxu0 %v1008
        %v1053 = vpop.f32.mrb[0].mxu0
        %v1054 = vadd.f32 0.0, %v1053
        %v1055 = vpop.f32.mrb[0].mxu0
        %v1056 = vadd.f32 0.0, %v1055
        %v1057 = vpop.f32.mrb[0].mxu0
        %v1058 = vadd.f32 0.0, %v1057
        %v1059 = vpop.f32.mrb[0].mxu0
        %v1060 = vadd.f32 0.0, %v1059
        %1061 = vmatprep.mubr.bf16.mxu0 0
        %1062 = vmatmul.mubr.bf16.gmra.mrb[0].mxu0 %v1011
        %v1063 = vpop.f32.mrb[0].mxu0
        %v1064 = vadd.f32 0.0, %v1063
        %v1065 = vpop.f32.mrb[0].mxu0
        %v1066 = vadd.f32 0.0, %v1065
        %v1067 = vpop.f32.mrb[0].mxu0
        %v1068 = vadd.f32 0.0, %v1067
        %v1069 = vpop.f32.mrb[0].mxu0
        %v1070 = vadd.f32 0.0, %v1069
        %1071 = vmatprep.mubr.bf16.mxu0 0
        %1072 = vmatmul.mubr.bf16.gmra.mrb[0].mxu0 %v1014
        %v1073 = vpop.f32.mrb[0].mxu0
        %v1074 = vadd.f32 0.0, %v1073
        %v1075 = vpop.f32.mrb[0].mxu0
        %v1076 = vadd.f32 0.0, %v1075
        %v1077 = vpop.f32.mrb[0].mxu0
        %v1078 = vadd.f32 0.0, %v1077
        %v1079 = vpop.f32.mrb[0].mxu0
        %v1080 = vadd.f32 0.0, %v1079
        %1081 = vmatprep.mubr.bf16.mxu0 0
        %1082 = vmatmul.mubr.bf16.gmra.mrb[0].mxu0 %v1017
        %v1083 = vpop.f32.mrb[0].mxu0
        %v1084 = vadd.f32 0.0, %v1083
        %v1085 = vpop.f32.mrb[0].mxu0
        %v1086 = vadd.f32 0.0, %v1085
        %v1087 = vpop.f32.mrb[0].mxu0
        %v1088 = vadd.f32 0.0, %v1087
        %v1089 = vpop.f32.mrb[0].mxu0
        %v1090 = vadd.f32 0.0, %v1089
        %1091 = vdwg.mxu0
        %v1092 = vadd.f32 %v956, %v1054
        %v1093 = vadd.f32 %v958, %v1056
        %v1094 = vadd.f32 %v960, %v1058
        %v1095 = vadd.f32 %v962, %v1060
        %v1096 = vadd.f32 %v966, %v1064
        %v1097 = vadd.f32 %v968, %v1066
        %v1098 = vadd.f32 %v970, %v1068
        %v1099 = vadd.f32 %v972, %v1070
        %v1100 = vadd.f32 %v976, %v1074
        %v1101 = vadd.f32 %v978, %v1076
        %v1102 = vadd.f32 %v980, %v1078
        %v1103 = vadd.f32 %v982, %v1080
        %v1104 = vadd.f32 %v986, %v1084
        %v1105 = vadd.f32 %v988, %v1086
        %v1106 = vadd.f32 %v990, %v1088
        %v1107 = vadd.f32 %v992, %v1090
        %v1108 = vld [vmem:[#allocation10] sm:$0x3]
        %v1110 = vlaneseq
        %v1111 = vshrl.u32 %v1110, 7
        %v1112 = vsub.s32 0, %v1111
        %v1113 = vrot.slane %v1108, %v1112
        %v1114 = vlaneseq
        %v1115 = vshrl.u32 %v1114, 7
        %v1116 = vsub.s32 1, %v1115
        %v1117 = vrot.slane %v1108, %v1116
        %v1120 = vadd.f32 %v1092, %v1113
        %v1121 = vadd.f32 %v1093, %v1117
        %v1122 = vadd.f32 %v1094, %v1113
        %v1123 = vadd.f32 %v1095, %v1117
        %v1124 = vadd.f32 %v1096, %v1113
        %v1125 = vadd.f32 %v1097, %v1117
        %v1126 = vadd.f32 %v1098, %v1113
        %v1127 = vadd.f32 %v1099, %v1117
        %v1128 = vadd.f32 %v1100, %v1113
        %v1129 = vadd.f32 %v1101, %v1117
        %v1130 = vadd.f32 %v1102, %v1113
        %v1131 = vadd.f32 %v1103, %v1117
        %v1132 = vadd.f32 %v1104, %v1113
        %v1133 = vadd.f32 %v1105, %v1117
        %v1134 = vadd.f32 %v1106, %v1113
        %v1135 = vadd.f32 %v1107, %v1117
        %v1136 = vmax.f32 %v1120, 0.0
        %v1137 = vmax.f32 %v1121, 0.0
        %v1138 = vmax.f32 %v1122, 0.0
        %v1139 = vmax.f32 %v1123, 0.0
        %v1140 = vmax.f32 %v1124, 0.0
        %v1141 = vmax.f32 %v1125, 0.0
        %v1142 = vmax.f32 %v1126, 0.0
        %v1143 = vmax.f32 %v1127, 0.0
        %v1144 = vmax.f32 %v1128, 0.0
        %v1145 = vmax.f32 %v1129, 0.0
        %v1146 = vmax.f32 %v1130, 0.0
        %v1147 = vmax.f32 %v1131, 0.0
        %v1148 = vmax.f32 %v1132, 0.0
        %v1149 = vmax.f32 %v1133, 0.0
        %v1150 = vmax.f32 %v1134, 0.0
        %v1151 = vmax.f32 %v1135, 0.0
        %v1152 = vpack.c.bf16 %v1138, %v1136
        %v1153 = vpack.c.bf16 %v1139, %v1137
        %v1154 = vpack.c.bf16 %v1142, %v1140
        %v1155 = vpack.c.bf16 %v1143, %v1141
        %v1156 = vpack.c.bf16 %v1146, %v1144
        %v1157 = vpack.c.bf16 %v1147, %v1145
        %v1158 = vpack.c.bf16 %v1150, %v1148
        %v1159 = vpack.c.bf16 %v1151, %v1149
        %1160 = vmatprep.subr.bf16.mxu0 %v1153
        %1161 = vmatpush1.bf16.msra.mxu0 %v1152
        %1162 = vmatprep.subr.bf16.mxu0 %v1155
        %1163 = vmatpush1.bf16.msra.mxu0 %v1154
        %1164 = vmatprep.subr.bf16.mxu0 %v1157
        %1165 = vmatpush1.bf16.msra.mxu0 %v1156
        %1166 = vmatprep.subr.bf16.mxu0 %v1159
        %1167 = vmatpush1.bf16.msra.mxu0 %v1158
        %1168 = vmatprep.subr.bf16.mxu0 0
        %1169 = vmatpush1.bf16.msra.mxu0 0
        %1170 = vmatprep.subr.bf16.mxu0 0
        %1171 = vmatpush1.bf16.msra.mxu0 0
        %1172 = vmatprep.subr.bf16.mxu0 0
        %1173 = vmatpush1.bf16.msra.mxu0 0
        %1174 = vmatprep.subr.bf16.mxu0 0
        %1175 = vmatpush1.bf16.msra.mxu0 0
        %1176 = vmatprep.subr.bf16.mxu0 0
        %1177 = vmatpush1.bf16.msra.mxu0 0
        %1178 = vmatprep.subr.bf16.mxu0 0
        %1179 = vmatpush1.bf16.msra.mxu0 0
        %1180 = vmatprep.subr.bf16.mxu0 0
        %1181 = vmatpush1.bf16.msra.mxu0 0
        %1182 = vmatprep.subr.bf16.mxu0 0
        %1183 = vmatpush1.bf16.msra.mxu0 0
        %1184 = vmatprep.subr.bf16.mxu0 0
        %1185 = vmatpush1.bf16.msra.mxu0 0
        %1186 = vmatprep.subr.bf16.mxu0 0
        %1187 = vmatpush1.bf16.msra.mxu0 0
        %1188 = vmatprep.subr.bf16.mxu0 0
        %1189 = vmatpush1.bf16.msra.mxu0 0
        %1190 = vmatprep.subr.bf16.mxu0 0
        %1191 = vmatpush1.bf16.msra.mxu0 0
        %1192 = vmatprep.mubr.bf16.mxu0 0
        %1193 = vmatmul.mubr.bf16.gmra.mrb[0].mxu0 %v617
        %v1194 = vpop.f32.mrb[0].mxu0
        %v1195 = vadd.f32 0.0, %v1194
        %v1196 = vpop.f32.mrb[0].mxu0
        %v1197 = vadd.f32 0.0, %v1196
        %v1198 = vpop.f32.mrb[0].mxu0
        %v1199 = vadd.f32 0.0, %v1198
        %v1200 = vpop.f32.mrb[0].mxu0
        %v1201 = vadd.f32 0.0, %v1200
        %1202 = vmatprep.mubr.bf16.mxu0 0
        %1203 = vmatmul.mubr.bf16.gmra.mrb[0].mxu0 %v620
        %v1204 = vpop.f32.mrb[0].mxu0
        %v1205 = vadd.f32 0.0, %v1204
        %v1206 = vpop.f32.mrb[0].mxu0
        %v1207 = vadd.f32 0.0, %v1206
        %v1208 = vpop.f32.mrb[0].mxu0
        %v1209 = vadd.f32 0.0, %v1208
        %v1210 = vpop.f32.mrb[0].mxu0
        %v1211 = vadd.f32 0.0, %v1210
        %1212 = vmatprep.mubr.bf16.mxu0 0
        %1213 = vmatmul.mubr.bf16.gmra.mrb[0].mxu0 %v623
        %v1214 = vpop.f32.mrb[0].mxu0
        %v1215 = vadd.f32 0.0, %v1214
        %v1216 = vpop.f32.mrb[0].mxu0
        %v1217 = vadd.f32 0.0, %v1216
        %v1218 = vpop.f32.mrb[0].mxu0
        %v1219 = vadd.f32 0.0, %v1218
        %v1220 = vpop.f32.mrb[0].mxu0
        %v1221 = vadd.f32 0.0, %v1220
        %1222 = vmatprep.mubr.bf16.mxu0 0
        %1223 = vmatmul.mubr.bf16.gmra.mrb[0].mxu0 %v626
        %v1224 = vpop.f32.mrb[0].mxu0
        %v1225 = vadd.f32 0.0, %v1224
        %v1226 = vpop.f32.mrb[0].mxu0
        %v1227 = vadd.f32 0.0, %v1226
        %v1228 = vpop.f32.mrb[0].mxu0
        %v1229 = vadd.f32 0.0, %v1228
        %v1230 = vpop.f32.mrb[0].mxu0
        %v1231 = vadd.f32 0.0, %v1230
        %1232 = vdwg.mxu0
        %v1233 = vpack.c.bf16 %v1199, %v1195
        %v1234 = vpack.c.bf16 %v1201, %v1197
        %v1235 = vpack.c.bf16 %v1209, %v1205
        %v1236 = vpack.c.bf16 %v1211, %v1207
        %v1237 = vpack.c.bf16 %v1219, %v1215
        %v1238 = vpack.c.bf16 %v1221, %v1217
        %v1239 = vpack.c.bf16 %v1229, %v1225
        %v1240 = vpack.c.bf16 %v1231, %v1227
        %1241 = vmatprep.subr.bf16.mxu0 %v1153
        %1242 = vmatpush1.bf16.msra.mxu0 %v1152
        %1243 = vmatprep.subr.bf16.mxu0 %v1155
        %1244 = vmatpush1.bf16.msra.mxu0 %v1154
        %1245 = vmatprep.subr.bf16.mxu0 %v1157
        %1246 = vmatpush1.bf16.msra.mxu0 %v1156
        %1247 = vmatprep.subr.bf16.mxu0 %v1159
        %1248 = vmatpush1.bf16.msra.mxu0 %v1158
        %1249 = vmatprep.subr.bf16.mxu0 0
        %1250 = vmatpush1.bf16.msra.mxu0 0
        %1251 = vmatprep.subr.bf16.mxu0 0
        %1252 = vmatpush1.bf16.msra.mxu0 0
        %1253 = vmatprep.subr.bf16.mxu0 0
        %1254 = vmatpush1.bf16.msra.mxu0 0
        %1255 = vmatprep.subr.bf16.mxu0 0
        %1256 = vmatpush1.bf16.msra.mxu0 0
        %1257 = vmatprep.subr.bf16.mxu0 0
        %1258 = vmatpush1.bf16.msra.mxu0 0
        %1259 = vmatprep.subr.bf16.mxu0 0
        %1260 = vmatpush1.bf16.msra.mxu0 0
        %1261 = vmatprep.subr.bf16.mxu0 0
        %1262 = vmatpush1.bf16.msra.mxu0 0
        %1263 = vmatprep.subr.bf16.mxu0 0
        %1264 = vmatpush1.bf16.msra.mxu0 0
        %1265 = vmatprep.subr.bf16.mxu0 0
        %1266 = vmatpush1.bf16.msra.mxu0 0
        %1267 = vmatprep.subr.bf16.mxu0 0
        %1268 = vmatpush1.bf16.msra.mxu0 0
        %1269 = vmatprep.subr.bf16.mxu0 0
        %1270 = vmatpush1.bf16.msra.mxu0 0
        %1271 = vmatprep.subr.bf16.mxu0 0
        %1272 = vmatpush1.bf16.msra.mxu0 0
        %1273 = vmatprep.mubr.bf16.mxu0 0
        %1274 = vmatmul.mubr.bf16.gmra.mrb[0].mxu0 %v718
        %v1275 = vpop.f32.mrb[0].mxu0
        %v1276 = vadd.f32 0.0, %v1275
        %v1277 = vpop.f32.mrb[0].mxu0
        %v1278 = vadd.f32 0.0, %v1277
        %v1279 = vpop.f32.mrb[0].mxu0
        %v1280 = vadd.f32 0.0, %v1279
        %v1281 = vpop.f32.mrb[0].mxu0
        %v1282 = vadd.f32 0.0, %v1281
        %1283 = vmatprep.mubr.bf16.mxu0 0
        %1284 = vmatmul.mubr.bf16.gmra.mrb[0].mxu0 %v721
        %v1285 = vpop.f32.mrb[0].mxu0
        %v1286 = vadd.f32 0.0, %v1285
        %v1287 = vpop.f32.mrb[0].mxu0
        %v1288 = vadd.f32 0.0, %v1287
        %v1289 = vpop.f32.mrb[0].mxu0
        %v1290 = vadd.f32 0.0, %v1289
        %v1291 = vpop.f32.mrb[0].mxu0
        %v1292 = vadd.f32 0.0, %v1291
        %1293 = vmatprep.mubr.bf16.mxu0 0
        %1294 = vmatmul.mubr.bf16.gmra.mrb[0].mxu0 %v724
        %v1295 = vpop.f32.mrb[0].mxu0
        %v1296 = vadd.f32 0.0, %v1295
        %v1297 = vpop.f32.mrb[0].mxu0
        %v1298 = vadd.f32 0.0, %v1297
        %v1299 = vpop.f32.mrb[0].mxu0
        %v1300 = vadd.f32 0.0, %v1299
        %v1301 = vpop.f32.mrb[0].mxu0
        %v1302 = vadd.f32 0.0, %v1301
        %1303 = vmatprep.mubr.bf16.mxu0 0
        %1304 = vmatmul.mubr.bf16.gmra.mrb[0].mxu0 %v727
        %v1305 = vpop.f32.mrb[0].mxu0
        %v1306 = vadd.f32 0.0, %v1305
        %v1307 = vpop.f32.mrb[0].mxu0
        %v1308 = vadd.f32 0.0, %v1307
        %v1309 = vpop.f32.mrb[0].mxu0
        %v1310 = vadd.f32 0.0, %v1309
        %v1311 = vpop.f32.mrb[0].mxu0
        %v1312 = vadd.f32 0.0, %v1311
        %1313 = vdwg.mxu0
        %v1314 = vpack.c.bf16 %v1280, %v1276
        %v1315 = vpack.c.bf16 %v1282, %v1278
        %v1316 = vpack.c.bf16 %v1290, %v1286
        %v1317 = vpack.c.bf16 %v1292, %v1288
        %v1318 = vpack.c.bf16 %v1300, %v1296
        %v1319 = vpack.c.bf16 %v1302, %v1298
        %v1320 = vpack.c.bf16 %v1310, %v1306
        %v1321 = vpack.c.bf16 %v1312, %v1308
        %v1322 = vld [vmem:[#allocation11] sm:$0xff]
        %v1323 = vld [vmem:[#allocation11 + $0x8] sm:$0xff]
        %v1324 = vld [vmem:[#allocation11 + $0x10] sm:$0xff]
        %v1325 = vld [vmem:[#allocation11 + $0x18] sm:$0xff]
        %v1326 = vld [vmem:[#allocation11 + $0x20] sm:$0xff]
        %v1327 = vld [vmem:[#allocation11 + $0x28] sm:$0xff]
        %v1328 = vld [vmem:[#allocation11 + $0x30] sm:$0xff]
        %v1329 = vld [vmem:[#allocation11 + $0x38] sm:$0xff]
        %v1330 = vld [vmem:[#allocation11 + $0x40] sm:$0xff]
        %v1331 = vld [vmem:[#allocation11 + $0x48] sm:$0xff]
        %v1332 = vld [vmem:[#allocation11 + $0x50] sm:$0xff]
        %v1333 = vld [vmem:[#allocation11 + $0x58] sm:$0xff]
        %v1334 = vld [vmem:[#allocation11 + $0x60] sm:$0xff]
        %v1335 = vld [vmem:[#allocation11 + $0x68] sm:$0xff]
        %v1336 = vld [vmem:[#allocation11 + $0x70] sm:$0xff]
        %v1337 = vld [vmem:[#allocation11 + $0x78] sm:$0xff]
        %v1338 = vld [vmem:[#allocation11 + $0x80] sm:$0xff]
        %v1339 = vld [vmem:[#allocation11 + $0x88] sm:$0xff]
        %v1340 = vld [vmem:[#allocation11 + $0x90] sm:$0xff]
        %v1341 = vld [vmem:[#allocation11 + $0x98] sm:$0xff]
        %v1342 = vld [vmem:[#allocation11 + $0xa0] sm:$0xff]
        %v1343 = vld [vmem:[#allocation11 + $0xa8] sm:$0xff]
        %v1344 = vld [vmem:[#allocation11 + $0xb0] sm:$0xff]
        %v1345 = vld [vmem:[#allocation11 + $0xb8] sm:$0xff]
        %v1346 = vld [vmem:[#allocation11 + $0xc0] sm:$0xff]
        %v1347 = vld [vmem:[#allocation11 + $0xc8] sm:$0xff]
        %v1348 = vld [vmem:[#allocation11 + $0xd0] sm:$0xff]
        %v1349 = vld [vmem:[#allocation11 + $0xd8] sm:$0xff]
        %v1350 = vld [vmem:[#allocation11 + $0xe0] sm:$0xff]
        %v1351 = vld [vmem:[#allocation11 + $0xe8] sm:$0xff]
        %v1352 = vld [vmem:[#allocation11 + $0xf0] sm:$0xff]
        %v1353 = vld [vmem:[#allocation11 + $0xf8] sm:$0xff]
        %v1354 = vld [vmem:[#allocation11 + $0x100] sm:$0xff]
        %v1355 = vld [vmem:[#allocation11 + $0x108] sm:$0xff]
        %v1356 = vld [vmem:[#allocation11 + $0x110] sm:$0xff]
        %v1357 = vld [vmem:[#allocation11 + $0x118] sm:$0xff]
        %v1358 = vld [vmem:[#allocation11 + $0x120] sm:$0xff]
        %v1359 = vld [vmem:[#allocation11 + $0x128] sm:$0xff]
        %v1360 = vld [vmem:[#allocation11 + $0x130] sm:$0xff]
        %v1361 = vld [vmem:[#allocation11 + $0x138] sm:$0xff]
        %v1362 = vld [vmem:[#allocation11 + $0x140] sm:$0xff]
        %v1363 = vld [vmem:[#allocation11 + $0x148] sm:$0xff]
        %v1364 = vld [vmem:[#allocation11 + $0x150] sm:$0xff]
        %v1365 = vld [vmem:[#allocation11 + $0x158] sm:$0xff]
        %v1366 = vld [vmem:[#allocation11 + $0x160] sm:$0xff]
        %v1367 = vld [vmem:[#allocation11 + $0x168] sm:$0xff]
        %v1368 = vld [vmem:[#allocation11 + $0x170] sm:$0xff]
        %v1369 = vld [vmem:[#allocation11 + $0x178] sm:$0xff]
        %v1370 = vld [vmem:[#allocation11 + $0x180] sm:$0xff]
        %v1371 = vld [vmem:[#allocation11 + $0x188] sm:$0xff]
        %v1372 = vld [vmem:[#allocation11 + $0x190] sm:$0xff]
        %v1373 = vld [vmem:[#allocation11 + $0x198] sm:$0xff]
        %v1374 = vld [vmem:[#allocation11 + $0x1a0] sm:$0xff]
        %v1375 = vld [vmem:[#allocation11 + $0x1a8] sm:$0xff]
        %v1376 = vld [vmem:[#allocation11 + $0x1b0] sm:$0xff]
        %v1377 = vld [vmem:[#allocation11 + $0x1b8] sm:$0xff]
        %v1378 = vld [vmem:[#allocation11 + $0x1c0] sm:$0xff]
        %v1379 = vld [vmem:[#allocation11 + $0x1c8] sm:$0xff]
        %v1380 = vld [vmem:[#allocation11 + $0x1d0] sm:$0xff]
        %v1381 = vld [vmem:[#allocation11 + $0x1d8] sm:$0xff]
        %v1382 = vld [vmem:[#allocation11 + $0x1e0] sm:$0xff]
        %v1383 = vld [vmem:[#allocation11 + $0x1e8] sm:$0xff]
        %v1384 = vld [vmem:[#allocation11 + $0x1f0] sm:$0xff]
        %v1385 = vld [vmem:[#allocation11 + $0x1f8] sm:$0xff]
        %s1386 = scalar_lea.vmem [#allocation11], 512
        %v1387 = vld [vmem:[%s1386] sm:$0xff]
        %v1388 = vld [vmem:[%s1386 + $0x8] sm:$0xff]
        %v1389 = vld [vmem:[%s1386 + $0x10] sm:$0xff]
        %v1390 = vld [vmem:[%s1386 + $0x18] sm:$0xff]
        %v1391 = vld [vmem:[%s1386 + $0x20] sm:$0xff]
        %v1392 = vld [vmem:[%s1386 + $0x28] sm:$0xff]
        %v1393 = vld [vmem:[%s1386 + $0x30] sm:$0xff]
        %v1394 = vld [vmem:[%s1386 + $0x38] sm:$0xff]
        %v1395 = vld [vmem:[%s1386 + $0x40] sm:$0xff]
        %v1396 = vld [vmem:[%s1386 + $0x48] sm:$0xff]
        %v1397 = vld [vmem:[%s1386 + $0x50] sm:$0xff]
        %v1398 = vld [vmem:[%s1386 + $0x58] sm:$0xff]
        %v1399 = vld [vmem:[%s1386 + $0x60] sm:$0xff]
        %v1400 = vld [vmem:[%s1386 + $0x68] sm:$0xff]
        %v1401 = vld [vmem:[%s1386 + $0x70] sm:$0xff]
        %v1402 = vld [vmem:[%s1386 + $0x78] sm:$0xff]
        %v1403 = vld [vmem:[%s1386 + $0x80] sm:$0xff]
        %v1404 = vld [vmem:[%s1386 + $0x88] sm:$0xff]
        %v1405 = vld [vmem:[%s1386 + $0x90] sm:$0xff]
        %v1406 = vld [vmem:[%s1386 + $0x98] sm:$0xff]
        %v1407 = vld [vmem:[%s1386 + $0xa0] sm:$0xff]
        %v1408 = vld [vmem:[%s1386 + $0xa8] sm:$0xff]
        %v1409 = vld [vmem:[%s1386 + $0xb0] sm:$0xff]
        %v1410 = vld [vmem:[%s1386 + $0xb8] sm:$0xff]
        %v1411 = vld [vmem:[%s1386 + $0xc0] sm:$0xff]
        %v1412 = vld [vmem:[%s1386 + $0xc8] sm:$0xff]
        %v1413 = vld [vmem:[%s1386 + $0xd0] sm:$0xff]
        %v1414 = vld [vmem:[%s1386 + $0xd8] sm:$0xff]
        %v1415 = vld [vmem:[%s1386 + $0xe0] sm:$0xff]
        %v1416 = vld [vmem:[%s1386 + $0xe8] sm:$0xff]
        %v1417 = vld [vmem:[%s1386 + $0xf0] sm:$0xff]
        %v1418 = vld [vmem:[%s1386 + $0xf8] sm:$0xff]
        %v1419 = vld [vmem:[%s1386 + $0x100] sm:$0xff]
        %v1420 = vld [vmem:[%s1386 + $0x108] sm:$0xff]
        %v1421 = vld [vmem:[%s1386 + $0x110] sm:$0xff]
        %v1422 = vld [vmem:[%s1386 + $0x118] sm:$0xff]
        %v1423 = vld [vmem:[%s1386 + $0x120] sm:$0xff]
        %v1424 = vld [vmem:[%s1386 + $0x128] sm:$0xff]
        %v1425 = vld [vmem:[%s1386 + $0x130] sm:$0xff]
        %v1426 = vld [vmem:[%s1386 + $0x138] sm:$0xff]
        %v1427 = vld [vmem:[%s1386 + $0x140] sm:$0xff]
        %v1428 = vld [vmem:[%s1386 + $0x148] sm:$0xff]
        %v1429 = vld [vmem:[%s1386 + $0x150] sm:$0xff]
        %v1430 = vld [vmem:[%s1386 + $0x158] sm:$0xff]
        %v1431 = vld [vmem:[%s1386 + $0x160] sm:$0xff]
        %v1432 = vld [vmem:[%s1386 + $0x168] sm:$0xff]
        %v1433 = vld [vmem:[%s1386 + $0x170] sm:$0xff]
        %v1434 = vld [vmem:[%s1386 + $0x178] sm:$0xff]
        %v1435 = vld [vmem:[%s1386 + $0x180] sm:$0xff]
        %v1436 = vld [vmem:[%s1386 + $0x188] sm:$0xff]
        %v1437 = vld [vmem:[%s1386 + $0x190] sm:$0xff]
        %v1438 = vld [vmem:[%s1386 + $0x198] sm:$0xff]
        %v1439 = vld [vmem:[%s1386 + $0x1a0] sm:$0xff]
        %v1440 = vld [vmem:[%s1386 + $0x1a8] sm:$0xff]
        %v1441 = vld [vmem:[%s1386 + $0x1b0] sm:$0xff]
        %v1442 = vld [vmem:[%s1386 + $0x1b8] sm:$0xff]
        %v1443 = vld [vmem:[%s1386 + $0x1c0] sm:$0xff]
        %v1444 = vld [vmem:[%s1386 + $0x1c8] sm:$0xff]
        %v1445 = vld [vmem:[%s1386 + $0x1d0] sm:$0xff]
        %v1446 = vld [vmem:[%s1386 + $0x1d8] sm:$0xff]
        %v1447 = vld [vmem:[%s1386 + $0x1e0] sm:$0xff]
        %v1448 = vld [vmem:[%s1386 + $0x1e8] sm:$0xff]
        %v1449 = vld [vmem:[%s1386 + $0x1f0] sm:$0xff]
        %v1450 = vld [vmem:[%s1386 + $0x1f8] sm:$0xff]
        %v1515 = vunpack.c.l.b16 %v1387
        %v1516 = vunpack.c.h.b16 %v1387
        %v1517 = vunpack.c.l.b16 %v1388
        %v1518 = vunpack.c.h.b16 %v1388
        %v1519 = vunpack.c.l.b16 %v1389
        %v1520 = vunpack.c.h.b16 %v1389
        %v1521 = vunpack.c.l.b16 %v1390
        %v1522 = vunpack.c.h.b16 %v1390
        %v1523 = vunpack.c.l.b16 %v1391
        %v1524 = vunpack.c.h.b16 %v1391
        %v1525 = vunpack.c.l.b16 %v1392
        %v1526 = vunpack.c.h.b16 %v1392
        %v1527 = vunpack.c.l.b16 %v1393
        %v1528 = vunpack.c.h.b16 %v1393
        %v1529 = vunpack.c.l.b16 %v1394
        %v1530 = vunpack.c.h.b16 %v1394
        %v1531 = vunpack.c.l.b16 %v1395
        %v1532 = vunpack.c.h.b16 %v1395
        %v1533 = vunpack.c.l.b16 %v1396
        %v1534 = vunpack.c.h.b16 %v1396
        %v1535 = vunpack.c.l.b16 %v1397
        %v1536 = vunpack.c.h.b16 %v1397
        %v1537 = vunpack.c.l.b16 %v1398
        %v1538 = vunpack.c.h.b16 %v1398
        %v1539 = vunpack.c.l.b16 %v1399
        %v1540 = vunpack.c.h.b16 %v1399
        %v1541 = vunpack.c.l.b16 %v1400
        %v1542 = vunpack.c.h.b16 %v1400
        %v1543 = vunpack.c.l.b16 %v1401
        %v1544 = vunpack.c.h.b16 %v1401
        %v1545 = vunpack.c.l.b16 %v1402
        %v1546 = vunpack.c.h.b16 %v1402
        %v1547 = vunpack.c.l.b16 %v1403
        %v1548 = vunpack.c.h.b16 %v1403
        %v1549 = vunpack.c.l.b16 %v1404
        %v1550 = vunpack.c.h.b16 %v1404
        %v1551 = vunpack.c.l.b16 %v1405
        %v1552 = vunpack.c.h.b16 %v1405
        %v1553 = vunpack.c.l.b16 %v1406
        %v1554 = vunpack.c.h.b16 %v1406
        %v1555 = vunpack.c.l.b16 %v1407
        %v1556 = vunpack.c.h.b16 %v1407
        %v1557 = vunpack.c.l.b16 %v1408
        %v1558 = vunpack.c.h.b16 %v1408
        %v1559 = vunpack.c.l.b16 %v1409
        %v1560 = vunpack.c.h.b16 %v1409
        %v1561 = vunpack.c.l.b16 %v1410
        %v1562 = vunpack.c.h.b16 %v1410
        %v1563 = vunpack.c.l.b16 %v1411
        %v1564 = vunpack.c.h.b16 %v1411
        %v1565 = vunpack.c.l.b16 %v1412
        %v1566 = vunpack.c.h.b16 %v1412
        %v1567 = vunpack.c.l.b16 %v1413
        %v1568 = vunpack.c.h.b16 %v1413
        %v1569 = vunpack.c.l.b16 %v1414
        %v1570 = vunpack.c.h.b16 %v1414
        %v1571 = vunpack.c.l.b16 %v1415
        %v1572 = vunpack.c.h.b16 %v1415
        %v1573 = vunpack.c.l.b16 %v1416
        %v1574 = vunpack.c.h.b16 %v1416
        %v1575 = vunpack.c.l.b16 %v1417
        %v1576 = vunpack.c.h.b16 %v1417
        %v1577 = vunpack.c.l.b16 %v1418
        %v1578 = vunpack.c.h.b16 %v1418
        %v1579 = vunpack.c.l.b16 %v1419
        %v1580 = vunpack.c.h.b16 %v1419
        %v1581 = vunpack.c.l.b16 %v1420
        %v1582 = vunpack.c.h.b16 %v1420
        %v1583 = vunpack.c.l.b16 %v1421
        %v1584 = vunpack.c.h.b16 %v1421
        %v1585 = vunpack.c.l.b16 %v1422
        %v1586 = vunpack.c.h.b16 %v1422
        %v1587 = vunpack.c.l.b16 %v1423
        %v1588 = vunpack.c.h.b16 %v1423
        %v1589 = vunpack.c.l.b16 %v1424
        %v1590 = vunpack.c.h.b16 %v1424
        %v1591 = vunpack.c.l.b16 %v1425
        %v1592 = vunpack.c.h.b16 %v1425
        %v1593 = vunpack.c.l.b16 %v1426
        %v1594 = vunpack.c.h.b16 %v1426
        %v1595 = vunpack.c.l.b16 %v1427
        %v1596 = vunpack.c.h.b16 %v1427
        %v1597 = vunpack.c.l.b16 %v1428
        %v1598 = vunpack.c.h.b16 %v1428
        %v1599 = vunpack.c.l.b16 %v1429
        %v1600 = vunpack.c.h.b16 %v1429
        %v1601 = vunpack.c.l.b16 %v1430
        %v1602 = vunpack.c.h.b16 %v1430
        %v1603 = vunpack.c.l.b16 %v1431
        %v1604 = vunpack.c.h.b16 %v1431
        %v1605 = vunpack.c.l.b16 %v1432
        %v1606 = vunpack.c.h.b16 %v1432
        %v1607 = vunpack.c.l.b16 %v1433
        %v1608 = vunpack.c.h.b16 %v1433
        %v1609 = vunpack.c.l.b16 %v1434
        %v1610 = vunpack.c.h.b16 %v1434
        %v1611 = vunpack.c.l.b16 %v1435
        %v1612 = vunpack.c.h.b16 %v1435
        %v1613 = vunpack.c.l.b16 %v1436
        %v1614 = vunpack.c.h.b16 %v1436
        %v1615 = vunpack.c.l.b16 %v1437
        %v1616 = vunpack.c.h.b16 %v1437
        %v1617 = vunpack.c.l.b16 %v1438
        %v1618 = vunpack.c.h.b16 %v1438
        %v1619 = vunpack.c.l.b16 %v1439
        %v1620 = vunpack.c.h.b16 %v1439
        %v1621 = vunpack.c.l.b16 %v1440
        %v1622 = vunpack.c.h.b16 %v1440
        %v1623 = vunpack.c.l.b16 %v1441
        %v1624 = vunpack.c.h.b16 %v1441
        %v1625 = vunpack.c.l.b16 %v1442
        %v1626 = vunpack.c.h.b16 %v1442
        %v1627 = vunpack.c.l.b16 %v1443
        %v1628 = vunpack.c.h.b16 %v1443
        %v1629 = vunpack.c.l.b16 %v1444
        %v1630 = vunpack.c.h.b16 %v1444
        %v1631 = vunpack.c.l.b16 %v1445
        %v1632 = vunpack.c.h.b16 %v1445
        %v1633 = vunpack.c.l.b16 %v1446
        %v1634 = vunpack.c.h.b16 %v1446
        %v1635 = vunpack.c.l.b16 %v1447
        %v1636 = vunpack.c.h.b16 %v1447
        %v1637 = vunpack.c.l.b16 %v1448
        %v1638 = vunpack.c.h.b16 %v1448
        %v1639 = vunpack.c.l.b16 %v1449
        %v1640 = vunpack.c.h.b16 %v1449
        %v1641 = vunpack.c.l.b16 %v1450
        %v1642 = vunpack.c.h.b16 %v1450
        %v1643 = vpack.c.b16 %v1519, %v1515
        %v1644 = vpack.c.b16 %v1520, %v1516
        %v1645 = vpack.c.b16 %v1521, %v1517
        %v1646 = vpack.c.b16 %v1522, %v1518
        %v1647 = vpack.c.b16 %v1527, %v1523
        %v1648 = vpack.c.b16 %v1528, %v1524
        %v1649 = vpack.c.b16 %v1529, %v1525
        %v1650 = vpack.c.b16 %v1530, %v1526
        %v1651 = vpack.c.b16 %v1535, %v1531
        %v1652 = vpack.c.b16 %v1536, %v1532
        %v1653 = vpack.c.b16 %v1537, %v1533
        %v1654 = vpack.c.b16 %v1538, %v1534
        %v1655 = vpack.c.b16 %v1543, %v1539
        %v1656 = vpack.c.b16 %v1544, %v1540
        %v1657 = vpack.c.b16 %v1545, %v1541
        %v1658 = vpack.c.b16 %v1546, %v1542
        %v1659 = vpack.c.b16 %v1551, %v1547
        %v1660 = vpack.c.b16 %v1552, %v1548
        %v1661 = vpack.c.b16 %v1553, %v1549
        %v1662 = vpack.c.b16 %v1554, %v1550
        %v1663 = vpack.c.b16 %v1559, %v1555
        %v1664 = vpack.c.b16 %v1560, %v1556
        %v1665 = vpack.c.b16 %v1561, %v1557
        %v1666 = vpack.c.b16 %v1562, %v1558
        %v1667 = vpack.c.b16 %v1567, %v1563
        %v1668 = vpack.c.b16 %v1568, %v1564
        %v1669 = vpack.c.b16 %v1569, %v1565
        %v1670 = vpack.c.b16 %v1570, %v1566
        %v1671 = vpack.c.b16 %v1575, %v1571
        %v1672 = vpack.c.b16 %v1576, %v1572
        %v1673 = vpack.c.b16 %v1577, %v1573
        %v1674 = vpack.c.b16 %v1578, %v1574
        %v1675 = vpack.c.b16 %v1583, %v1579
        %v1676 = vpack.c.b16 %v1584, %v1580
        %v1677 = vpack.c.b16 %v1585, %v1581
        %v1678 = vpack.c.b16 %v1586, %v1582
        %v1679 = vpack.c.b16 %v1591, %v1587
        %v1680 = vpack.c.b16 %v1592, %v1588
        %v1681 = vpack.c.b16 %v1593, %v1589
        %v1682 = vpack.c.b16 %v1594, %v1590
        %v1683 = vpack.c.b16 %v1599, %v1595
        %v1684 = vpack.c.b16 %v1600, %v1596
        %v1685 = vpack.c.b16 %v1601, %v1597
        %v1686 = vpack.c.b16 %v1602, %v1598
        %v1687 = vpack.c.b16 %v1607, %v1603
        %v1688 = vpack.c.b16 %v1608, %v1604
        %v1689 = vpack.c.b16 %v1609, %v1605
        %v1690 = vpack.c.b16 %v1610, %v1606
        %v1691 = vpack.c.b16 %v1615, %v1611
        %v1692 = vpack.c.b16 %v1616, %v1612
        %v1693 = vpack.c.b16 %v1617, %v1613
        %v1694 = vpack.c.b16 %v1618, %v1614
        %v1695 = vpack.c.b16 %v1623, %v1619
        %v1696 = vpack.c.b16 %v1624, %v1620
        %v1697 = vpack.c.b16 %v1625, %v1621
        %v1698 = vpack.c.b16 %v1626, %v1622
        %v1699 = vpack.c.b16 %v1631, %v1627
        %v1700 = vpack.c.b16 %v1632, %v1628
        %v1701 = vpack.c.b16 %v1633, %v1629
        %v1702 = vpack.c.b16 %v1634, %v1630
        %v1703 = vpack.c.b16 %v1639, %v1635
        %v1704 = vpack.c.b16 %v1640, %v1636
        %v1705 = vpack.c.b16 %v1641, %v1637
        %v1706 = vpack.c.b16 %v1642, %v1638
        %1771 = vmatprep.subr.bf16.mxu0 %v1644
        %1772 = vmatpush1.bf16.msra.mxu0 %v1643
        %1773 = vmatprep.subr.bf16.mxu0 %v1648
        %1774 = vmatpush1.bf16.msra.mxu0 %v1647
        %1775 = vmatprep.subr.bf16.mxu0 %v1652
        %1776 = vmatpush1.bf16.msra.mxu0 %v1651
        %1777 = vmatprep.subr.bf16.mxu0 %v1656
        %1778 = vmatpush1.bf16.msra.mxu0 %v1655
        %1779 = vmatprep.subr.bf16.mxu0 %v1660
        %1780 = vmatpush1.bf16.msra.mxu0 %v1659
        %1781 = vmatprep.subr.bf16.mxu0 %v1664
        %1782 = vmatpush1.bf16.msra.mxu0 %v1663
        %1783 = vmatprep.subr.bf16.mxu0 %v1668
        %1784 = vmatpush1.bf16.msra.mxu0 %v1667
        %1785 = vmatprep.subr.bf16.mxu0 %v1672
        %1786 = vmatpush1.bf16.msra.mxu0 %v1671
        %1787 = vmatprep.subr.bf16.mxu0 %v1676
        %1788 = vmatpush1.bf16.msra.mxu0 %v1675
        %1789 = vmatprep.subr.bf16.mxu0 %v1680
        %1790 = vmatpush1.bf16.msra.mxu0 %v1679
        %1791 = vmatprep.subr.bf16.mxu0 %v1684
        %1792 = vmatpush1.bf16.msra.mxu0 %v1683
        %1793 = vmatprep.subr.bf16.mxu0 %v1688
        %1794 = vmatpush1.bf16.msra.mxu0 %v1687
        %1795 = vmatprep.subr.bf16.mxu0 %v1692
        %1796 = vmatpush1.bf16.msra.mxu0 %v1691
        %1797 = vmatprep.subr.bf16.mxu0 %v1696
        %1798 = vmatpush1.bf16.msra.mxu0 %v1695
        %1799 = vmatprep.subr.bf16.mxu0 %v1700
        %1800 = vmatpush1.bf16.msra.mxu0 %v1699
        %1801 = vmatprep.subr.bf16.mxu0 %v1704
        %1802 = vmatpush1.bf16.msra.mxu0 %v1703
        %1803 = vmatprep.mubr.bf16.mxu0 %v1153
        %1804 = vmatmul.mubr.bf16.gmra.mrb[0].mxu0 %v1152
        %v1805 = vpop.f32.mrb[0].mxu0
        %v1806 = vadd.f32 0.0, %v1805
        %v1807 = vpop.f32.mrb[0].mxu0
        %v1808 = vadd.f32 0.0, %v1807
        %v1809 = vpop.f32.mrb[0].mxu0
        %v1810 = vadd.f32 0.0, %v1809
        %v1811 = vpop.f32.mrb[0].mxu0
        %v1812 = vadd.f32 0.0, %v1811
        %1813 = vmatprep.mubr.bf16.mxu0 %v1155
        %1814 = vmatmul.mubr.bf16.gmra.mrb[0].mxu0 %v1154
        %v1815 = vpop.f32.mrb[0].mxu0
        %v1816 = vadd.f32 0.0, %v1815
        %v1817 = vpop.f32.mrb[0].mxu0
        %v1818 = vadd.f32 0.0, %v1817
        %v1819 = vpop.f32.mrb[0].mxu0
        %v1820 = vadd.f32 0.0, %v1819
        %v1821 = vpop.f32.mrb[0].mxu0
        %v1822 = vadd.f32 0.0, %v1821
        %1823 = vmatprep.mubr.bf16.mxu0 %v1157
        %1824 = vmatmul.mubr.bf16.gmra.mrb[0].mxu0 %v1156
        %v1825 = vpop.f32.mrb[0].mxu0
        %v1826 = vadd.f32 0.0, %v1825
        %v1827 = vpop.f32.mrb[0].mxu0
        %v1828 = vadd.f32 0.0, %v1827
        %v1829 = vpop.f32.mrb[0].mxu0
        %v1830 = vadd.f32 0.0, %v1829
        %v1831 = vpop.f32.mrb[0].mxu0
        %v1832 = vadd.f32 0.0, %v1831
        %1833 = vmatprep.mubr.bf16.mxu0 %v1159
        %1834 = vmatmul.mubr.bf16.gmra.mrb[0].mxu0 %v1158
        %v1835 = vpop.f32.mrb[0].mxu0
        %v1836 = vadd.f32 0.0, %v1835
        %v1837 = vpop.f32.mrb[0].mxu0
        %v1838 = vadd.f32 0.0, %v1837
        %v1839 = vpop.f32.mrb[0].mxu0
        %v1840 = vadd.f32 0.0, %v1839
        %v1841 = vpop.f32.mrb[0].mxu0
        %v1842 = vadd.f32 0.0, %v1841
        %1843 = vdwg.mxu0
        %1844 = vmatprep.subr.bf16.mxu0 %v1646
        %1845 = vmatpush1.bf16.msra.mxu0 %v1645
        %1846 = vmatprep.subr.bf16.mxu0 %v1650
        %1847 = vmatpush1.bf16.msra.mxu0 %v1649
        %1848 = vmatprep.subr.bf16.mxu0 %v1654
        %1849 = vmatpush1.bf16.msra.mxu0 %v1653
        %1850 = vmatprep.subr.bf16.mxu0 %v1658
        %1851 = vmatpush1.bf16.msra.mxu0 %v1657
        %1852 = vmatprep.subr.bf16.mxu0 %v1662
        %1853 = vmatpush1.bf16.msra.mxu0 %v1661
        %1854 = vmatprep.subr.bf16.mxu0 %v1666
        %1855 = vmatpush1.bf16.msra.mxu0 %v1665
        %1856 = vmatprep.subr.bf16.mxu0 %v1670
        %1857 = vmatpush1.bf16.msra.mxu0 %v1669
        %1858 = vmatprep.subr.bf16.mxu0 %v1674
        %1859 = vmatpush1.bf16.msra.mxu0 %v1673
        %1860 = vmatprep.subr.bf16.mxu0 %v1678
        %1861 = vmatpush1.bf16.msra.mxu0 %v1677
        %1862 = vmatprep.subr.bf16.mxu0 %v1682
        %1863 = vmatpush1.bf16.msra.mxu0 %v1681
        %1864 = vmatprep.subr.bf16.mxu0 %v1686
        %1865 = vmatpush1.bf16.msra.mxu0 %v1685
        %1866 = vmatprep.subr.bf16.mxu0 %v1690
        %1867 = vmatpush1.bf16.msra.mxu0 %v1689
        %1868 = vmatprep.subr.bf16.mxu0 %v1694
        %1869 = vmatpush1.bf16.msra.mxu0 %v1693
        %1870 = vmatprep.subr.bf16.mxu0 %v1698
        %1871 = vmatpush1.bf16.msra.mxu0 %v1697
        %1872 = vmatprep.subr.bf16.mxu0 %v1702
        %1873 = vmatpush1.bf16.msra.mxu0 %v1701
        %1874 = vmatprep.subr.bf16.mxu0 %v1706
        %1875 = vmatpush1.bf16.msra.mxu0 %v1705
        %1876 = vmatprep.mubr.bf16.mxu0 %v1153
        %1877 = vmatmul.mubr.bf16.gmra.mrb[0].mxu0 %v1152
        %v1878 = vpop.f32.mrb[0].mxu0
        %v1879 = vadd.f32 0.0, %v1878
        %v1880 = vpop.f32.mrb[0].mxu0
        %v1881 = vadd.f32 0.0, %v1880
        %v1882 = vpop.f32.mrb[0].mxu0
        %v1883 = vadd.f32 0.0, %v1882
        %v1884 = vpop.f32.mrb[0].mxu0
        %v1885 = vadd.f32 0.0, %v1884
        %1886 = vmatprep.mubr.bf16.mxu0 %v1155
        %1887 = vmatmul.mubr.bf16.gmra.mrb[0].mxu0 %v1154
        %v1888 = vpop.f32.mrb[0].mxu0
        %v1889 = vadd.f32 0.0, %v1888
        %v1890 = vpop.f32.mrb[0].mxu0
        %v1891 = vadd.f32 0.0, %v1890
        %v1892 = vpop.f32.mrb[0].mxu0
        %v1893 = vadd.f32 0.0, %v1892
        %v1894 = vpop.f32.mrb[0].mxu0
        %v1895 = vadd.f32 0.0, %v1894
        %1896 = vmatprep.mubr.bf16.mxu0 %v1157
        %1897 = vmatmul.mubr.bf16.gmra.mrb[0].mxu0 %v1156
        %v1898 = vpop.f32.mrb[0].mxu0
        %v1899 = vadd.f32 0.0, %v1898
        %v1900 = vpop.f32.mrb[0].mxu0
        %v1901 = vadd.f32 0.0, %v1900
        %v1902 = vpop.f32.mrb[0].mxu0
        %v1903 = vadd.f32 0.0, %v1902
        %v1904 = vpop.f32.mrb[0].mxu0
        %v1905 = vadd.f32 0.0, %v1904
        %1906 = vmatprep.mubr.bf16.mxu0 %v1159
        %1907 = vmatmul.mubr.bf16.gmra.mrb[0].mxu0 %v1158
        %v1908 = vpop.f32.mrb[0].mxu0
        %v1909 = vadd.f32 0.0, %v1908
        %v1910 = vpop.f32.mrb[0].mxu0
        %v1911 = vadd.f32 0.0, %v1910
        %v1912 = vpop.f32.mrb[0].mxu0
        %v1913 = vadd.f32 0.0, %v1912
        %v1914 = vpop.f32.mrb[0].mxu0
        %v1915 = vadd.f32 0.0, %v1914
        %1916 = vdwg.mxu0
        %v1981 = vunpack.c.l.b16 %v1322
        %v1982 = vunpack.c.h.b16 %v1322
        %v1983 = vunpack.c.l.b16 %v1323
        %v1984 = vunpack.c.h.b16 %v1323
        %v1985 = vunpack.c.l.b16 %v1324
        %v1986 = vunpack.c.h.b16 %v1324
        %v1987 = vunpack.c.l.b16 %v1325
        %v1988 = vunpack.c.h.b16 %v1325
        %v1989 = vunpack.c.l.b16 %v1326
        %v1990 = vunpack.c.h.b16 %v1326
        %v1991 = vunpack.c.l.b16 %v1327
        %v1992 = vunpack.c.h.b16 %v1327
        %v1993 = vunpack.c.l.b16 %v1328
        %v1994 = vunpack.c.h.b16 %v1328
        %v1995 = vunpack.c.l.b16 %v1329
        %v1996 = vunpack.c.h.b16 %v1329
        %v1997 = vunpack.c.l.b16 %v1330
        %v1998 = vunpack.c.h.b16 %v1330
        %v1999 = vunpack.c.l.b16 %v1331
        %v2000 = vunpack.c.h.b16 %v1331
        %v2001 = vunpack.c.l.b16 %v1332
        %v2002 = vunpack.c.h.b16 %v1332
        %v2003 = vunpack.c.l.b16 %v1333
        %v2004 = vunpack.c.h.b16 %v1333
        %v2005 = vunpack.c.l.b16 %v1334
        %v2006 = vunpack.c.h.b16 %v1334
        %v2007 = vunpack.c.l.b16 %v1335
        %v2008 = vunpack.c.h.b16 %v1335
        %v2009 = vunpack.c.l.b16 %v1336
        %v2010 = vunpack.c.h.b16 %v1336
        %v2011 = vunpack.c.l.b16 %v1337
        %v2012 = vunpack.c.h.b16 %v1337
        %v2013 = vunpack.c.l.b16 %v1338
        %v2014 = vunpack.c.h.b16 %v1338
        %v2015 = vunpack.c.l.b16 %v1339
        %v2016 = vunpack.c.h.b16 %v1339
        %v2017 = vunpack.c.l.b16 %v1340
        %v2018 = vunpack.c.h.b16 %v1340
        %v2019 = vunpack.c.l.b16 %v1341
        %v2020 = vunpack.c.h.b16 %v1341
        %v2021 = vunpack.c.l.b16 %v1342
        %v2022 = vunpack.c.h.b16 %v1342
        %v2023 = vunpack.c.l.b16 %v1343
        %v2024 = vunpack.c.h.b16 %v1343
        %v2025 = vunpack.c.l.b16 %v1344
        %v2026 = vunpack.c.h.b16 %v1344
        %v2027 = vunpack.c.l.b16 %v1345
        %v2028 = vunpack.c.h.b16 %v1345
        %v2029 = vunpack.c.l.b16 %v1346
        %v2030 = vunpack.c.h.b16 %v1346
        %v2031 = vunpack.c.l.b16 %v1347
        %v2032 = vunpack.c.h.b16 %v1347
        %v2033 = vunpack.c.l.b16 %v1348
        %v2034 = vunpack.c.h.b16 %v1348
        %v2035 = vunpack.c.l.b16 %v1349
        %v2036 = vunpack.c.h.b16 %v1349
        %v2037 = vunpack.c.l.b16 %v1350
        %v2038 = vunpack.c.h.b16 %v1350
        %v2039 = vunpack.c.l.b16 %v1351
        %v2040 = vunpack.c.h.b16 %v1351
        %v2041 = vunpack.c.l.b16 %v1352
        %v2042 = vunpack.c.h.b16 %v1352
        %v2043 = vunpack.c.l.b16 %v1353
        %v2044 = vunpack.c.h.b16 %v1353
        %v2045 = vunpack.c.l.b16 %v1354
        %v2046 = vunpack.c.h.b16 %v1354
        %v2047 = vunpack.c.l.b16 %v1355
        %v2048 = vunpack.c.h.b16 %v1355
        %v2049 = vunpack.c.l.b16 %v1356
        %v2050 = vunpack.c.h.b16 %v1356
        %v2051 = vunpack.c.l.b16 %v1357
        %v2052 = vunpack.c.h.b16 %v1357
        %v2053 = vunpack.c.l.b16 %v1358
        %v2054 = vunpack.c.h.b16 %v1358
        %v2055 = vunpack.c.l.b16 %v1359
        %v2056 = vunpack.c.h.b16 %v1359
        %v2057 = vunpack.c.l.b16 %v1360
        %v2058 = vunpack.c.h.b16 %v1360
        %v2059 = vunpack.c.l.b16 %v1361
        %v2060 = vunpack.c.h.b16 %v1361
        %v2061 = vunpack.c.l.b16 %v1362
        %v2062 = vunpack.c.h.b16 %v1362
        %v2063 = vunpack.c.l.b16 %v1363
        %v2064 = vunpack.c.h.b16 %v1363
        %v2065 = vunpack.c.l.b16 %v1364
        %v2066 = vunpack.c.h.b16 %v1364
        %v2067 = vunpack.c.l.b16 %v1365
        %v2068 = vunpack.c.h.b16 %v1365
        %v2069 = vunpack.c.l.b16 %v1366
        %v2070 = vunpack.c.h.b16 %v1366
        %v2071 = vunpack.c.l.b16 %v1367
        %v2072 = vunpack.c.h.b16 %v1367
        %v2073 = vunpack.c.l.b16 %v1368
        %v2074 = vunpack.c.h.b16 %v1368
        %v2075 = vunpack.c.l.b16 %v1369
        %v2076 = vunpack.c.h.b16 %v1369
        %v2077 = vunpack.c.l.b16 %v1370
        %v2078 = vunpack.c.h.b16 %v1370
        %v2079 = vunpack.c.l.b16 %v1371
        %v2080 = vunpack.c.h.b16 %v1371
        %v2081 = vunpack.c.l.b16 %v1372
        %v2082 = vunpack.c.h.b16 %v1372
        %v2083 = vunpack.c.l.b16 %v1373
        %v2084 = vunpack.c.h.b16 %v1373
        %v2085 = vunpack.c.l.b16 %v1374
        %v2086 = vunpack.c.h.b16 %v1374
        %v2087 = vunpack.c.l.b16 %v1375
        %v2088 = vunpack.c.h.b16 %v1375
        %v2089 = vunpack.c.l.b16 %v1376
        %v2090 = vunpack.c.h.b16 %v1376
        %v2091 = vunpack.c.l.b16 %v1377
        %v2092 = vunpack.c.h.b16 %v1377
        %v2093 = vunpack.c.l.b16 %v1378
        %v2094 = vunpack.c.h.b16 %v1378
        %v2095 = vunpack.c.l.b16 %v1379
        %v2096 = vunpack.c.h.b16 %v1379
        %v2097 = vunpack.c.l.b16 %v1380
        %v2098 = vunpack.c.h.b16 %v1380
        %v2099 = vunpack.c.l.b16 %v1381
        %v2100 = vunpack.c.h.b16 %v1381
        %v2101 = vunpack.c.l.b16 %v1382
        %v2102 = vunpack.c.h.b16 %v1382
        %v2103 = vunpack.c.l.b16 %v1383
        %v2104 = vunpack.c.h.b16 %v1383
        %v2105 = vunpack.c.l.b16 %v1384
        %v2106 = vunpack.c.h.b16 %v1384
        %v2107 = vunpack.c.l.b16 %v1385
        %v2108 = vunpack.c.h.b16 %v1385
        %v2109 = vpack.c.b16 %v1985, %v1981
        %v2110 = vpack.c.b16 %v1986, %v1982
        %v2111 = vpack.c.b16 %v1987, %v1983
        %v2112 = vpack.c.b16 %v1988, %v1984
        %v2113 = vpack.c.b16 %v1993, %v1989
        %v2114 = vpack.c.b16 %v1994, %v1990
        %v2115 = vpack.c.b16 %v1995, %v1991
        %v2116 = vpack.c.b16 %v1996, %v1992
        %v2117 = vpack.c.b16 %v2001, %v1997
        %v2118 = vpack.c.b16 %v2002, %v1998
        %v2119 = vpack.c.b16 %v2003, %v1999
        %v2120 = vpack.c.b16 %v2004, %v2000
        %v2121 = vpack.c.b16 %v2009, %v2005
        %v2122 = vpack.c.b16 %v2010, %v2006
        %v2123 = vpack.c.b16 %v2011, %v2007
        %v2124 = vpack.c.b16 %v2012, %v2008
        %v2125 = vpack.c.b16 %v2017, %v2013
        %v2126 = vpack.c.b16 %v2018, %v2014
        %v2127 = vpack.c.b16 %v2019, %v2015
        %v2128 = vpack.c.b16 %v2020, %v2016
        %v2129 = vpack.c.b16 %v2025, %v2021
        %v2130 = vpack.c.b16 %v2026, %v2022
        %v2131 = vpack.c.b16 %v2027, %v2023
        %v2132 = vpack.c.b16 %v2028, %v2024
        %v2133 = vpack.c.b16 %v2033, %v2029
        %v2134 = vpack.c.b16 %v2034, %v2030
        %v2135 = vpack.c.b16 %v2035, %v2031
        %v2136 = vpack.c.b16 %v2036, %v2032
        %v2137 = vpack.c.b16 %v2041, %v2037
        %v2138 = vpack.c.b16 %v2042, %v2038
        %v2139 = vpack.c.b16 %v2043, %v2039
        %v2140 = vpack.c.b16 %v2044, %v2040
        %v2141 = vpack.c.b16 %v2049, %v2045
        %v2142 = vpack.c.b16 %v2050, %v2046
        %v2143 = vpack.c.b16 %v2051, %v2047
        %v2144 = vpack.c.b16 %v2052, %v2048
        %v2145 = vpack.c.b16 %v2057, %v2053
        %v2146 = vpack.c.b16 %v2058, %v2054
        %v2147 = vpack.c.b16 %v2059, %v2055
        %v2148 = vpack.c.b16 %v2060, %v2056
        %v2149 = vpack.c.b16 %v2065, %v2061
        %v2150 = vpack.c.b16 %v2066, %v2062
        %v2151 = vpack.c.b16 %v2067, %v2063
        %v2152 = vpack.c.b16 %v2068, %v2064
        %v2153 = vpack.c.b16 %v2073, %v2069
        %v2154 = vpack.c.b16 %v2074, %v2070
        %v2155 = vpack.c.b16 %v2075, %v2071
        %v2156 = vpack.c.b16 %v2076, %v2072
        %v2157 = vpack.c.b16 %v2081, %v2077
        %v2158 = vpack.c.b16 %v2082, %v2078
        %v2159 = vpack.c.b16 %v2083, %v2079
        %v2160 = vpack.c.b16 %v2084, %v2080
        %v2161 = vpack.c.b16 %v2089, %v2085
        %v2162 = vpack.c.b16 %v2090, %v2086
        %v2163 = vpack.c.b16 %v2091, %v2087
        %v2164 = vpack.c.b16 %v2092, %v2088
        %v2165 = vpack.c.b16 %v2097, %v2093
        %v2166 = vpack.c.b16 %v2098, %v2094
        %v2167 = vpack.c.b16 %v2099, %v2095
        %v2168 = vpack.c.b16 %v2100, %v2096
        %v2169 = vpack.c.b16 %v2105, %v2101
        %v2170 = vpack.c.b16 %v2106, %v2102
        %v2171 = vpack.c.b16 %v2107, %v2103
        %v2172 = vpack.c.b16 %v2108, %v2104
        %2237 = vmatprep.subr.bf16.mxu0 %v2110
        %2238 = vmatpush1.bf16.msra.mxu0 %v2109
        %2239 = vmatprep.subr.bf16.mxu0 %v2114
        %2240 = vmatpush1.bf16.msra.mxu0 %v2113
        %2241 = vmatprep.subr.bf16.mxu0 %v2118
        %2242 = vmatpush1.bf16.msra.mxu0 %v2117
        %2243 = vmatprep.subr.bf16.mxu0 %v2122
        %2244 = vmatpush1.bf16.msra.mxu0 %v2121
        %2245 = vmatprep.subr.bf16.mxu0 %v2126
        %2246 = vmatpush1.bf16.msra.mxu0 %v2125
        %2247 = vmatprep.subr.bf16.mxu0 %v2130
        %2248 = vmatpush1.bf16.msra.mxu0 %v2129
        %2249 = vmatprep.subr.bf16.mxu0 %v2134
        %2250 = vmatpush1.bf16.msra.mxu0 %v2133
        %2251 = vmatprep.subr.bf16.mxu0 %v2138
        %2252 = vmatpush1.bf16.msra.mxu0 %v2137
        %2253 = vmatprep.subr.bf16.mxu0 %v2142
        %2254 = vmatpush1.bf16.msra.mxu0 %v2141
        %2255 = vmatprep.subr.bf16.mxu0 %v2146
        %2256 = vmatpush1.bf16.msra.mxu0 %v2145
        %2257 = vmatprep.subr.bf16.mxu0 %v2150
        %2258 = vmatpush1.bf16.msra.mxu0 %v2149
        %2259 = vmatprep.subr.bf16.mxu0 %v2154
        %2260 = vmatpush1.bf16.msra.mxu0 %v2153
        %2261 = vmatprep.subr.bf16.mxu0 %v2158
        %2262 = vmatpush1.bf16.msra.mxu0 %v2157
        %2263 = vmatprep.subr.bf16.mxu0 %v2162
        %2264 = vmatpush1.bf16.msra.mxu0 %v2161
        %2265 = vmatprep.subr.bf16.mxu0 %v2166
        %2266 = vmatpush1.bf16.msra.mxu0 %v2165
        %2267 = vmatprep.subr.bf16.mxu0 %v2170
        %2268 = vmatpush1.bf16.msra.mxu0 %v2169
        %2269 = vmatprep.mubr.bf16.mxu0 %v1234
        %2270 = vmatmul.mubr.bf16.gmra.mrb[0].mxu0 %v1233
        %v2271 = vpop.f32.mrb[0].mxu0
        %v2272 = vadd.f32 %v1806, %v2271
        %v2273 = vpop.f32.mrb[0].mxu0
        %v2274 = vadd.f32 %v1808, %v2273
        %v2275 = vpop.f32.mrb[0].mxu0
        %v2276 = vadd.f32 %v1810, %v2275
        %v2277 = vpop.f32.mrb[0].mxu0
        %v2278 = vadd.f32 %v1812, %v2277
        %2279 = vmatprep.mubr.bf16.mxu0 %v1236
        %2280 = vmatmul.mubr.bf16.gmra.mrb[0].mxu0 %v1235
        %v2281 = vpop.f32.mrb[0].mxu0
        %v2282 = vadd.f32 %v1816, %v2281
        %v2283 = vpop.f32.mrb[0].mxu0
        %v2284 = vadd.f32 %v1818, %v2283
        %v2285 = vpop.f32.mrb[0].mxu0
        %v2286 = vadd.f32 %v1820, %v2285
        %v2287 = vpop.f32.mrb[0].mxu0
        %v2288 = vadd.f32 %v1822, %v2287
        %2289 = vmatprep.mubr.bf16.mxu0 %v1238
        %2290 = vmatmul.mubr.bf16.gmra.mrb[0].mxu0 %v1237
        %v2291 = vpop.f32.mrb[0].mxu0
        %v2292 = vadd.f32 %v1826, %v2291
        %v2293 = vpop.f32.mrb[0].mxu0
        %v2294 = vadd.f32 %v1828, %v2293
        %v2295 = vpop.f32.mrb[0].mxu0
        %v2296 = vadd.f32 %v1830, %v2295
        %v2297 = vpop.f32.mrb[0].mxu0
        %v2298 = vadd.f32 %v1832, %v2297
        %2299 = vmatprep.mubr.bf16.mxu0 %v1240
        %2300 = vmatmul.mubr.bf16.gmra.mrb[0].mxu0 %v1239
        %v2301 = vpop.f32.mrb[0].mxu0
        %v2302 = vadd.f32 %v1836, %v2301
        %v2303 = vpop.f32.mrb[0].mxu0
        %v2304 = vadd.f32 %v1838, %v2303
        %v2305 = vpop.f32.mrb[0].mxu0
        %v2306 = vadd.f32 %v1840, %v2305
        %v2307 = vpop.f32.mrb[0].mxu0
        %v2308 = vadd.f32 %v1842, %v2307
        %2309 = vdwg.mxu0
        %2310 = vmatprep.subr.bf16.mxu0 %v2112
        %2311 = vmatpush1.bf16.msra.mxu0 %v2111
        %2312 = vmatprep.subr.bf16.mxu0 %v2116
        %2313 = vmatpush1.bf16.msra.mxu0 %v2115
        %2314 = vmatprep.subr.bf16.mxu0 %v2120
        %2315 = vmatpush1.bf16.msra.mxu0 %v2119
        %2316 = vmatprep.subr.bf16.mxu0 %v2124
        %2317 = vmatpush1.bf16.msra.mxu0 %v2123
        %2318 = vmatprep.subr.bf16.mxu0 %v2128
        %2319 = vmatpush1.bf16.msra.mxu0 %v2127
        %2320 = vmatprep.subr.bf16.mxu0 %v2132
        %2321 = vmatpush1.bf16.msra.mxu0 %v2131
        %2322 = vmatprep.subr.bf16.mxu0 %v2136
        %2323 = vmatpush1.bf16.msra.mxu0 %v2135
        %2324 = vmatprep.subr.bf16.mxu0 %v2140
        %2325 = vmatpush1.bf16.msra.mxu0 %v2139
        %2326 = vmatprep.subr.bf16.mxu0 %v2144
        %2327 = vmatpush1.bf16.msra.mxu0 %v2143
        %2328 = vmatprep.subr.bf16.mxu0 %v2148
        %2329 = vmatpush1.bf16.msra.mxu0 %v2147
        %2330 = vmatprep.subr.bf16.mxu0 %v2152
        %2331 = vmatpush1.bf16.msra.mxu0 %v2151
        %2332 = vmatprep.subr.bf16.mxu0 %v2156
        %2333 = vmatpush1.bf16.msra.mxu0 %v2155
        %2334 = vmatprep.subr.bf16.mxu0 %v2160
        %2335 = vmatpush1.bf16.msra.mxu0 %v2159
        %2336 = vmatprep.subr.bf16.mxu0 %v2164
        %2337 = vmatpush1.bf16.msra.mxu0 %v2163
        %2338 = vmatprep.subr.bf16.mxu0 %v2168
        %2339 = vmatpush1.bf16.msra.mxu0 %v2167
        %2340 = vmatprep.subr.bf16.mxu0 %v2172
        %2341 = vmatpush1.bf16.msra.mxu0 %v2171
        %2342 = vmatprep.mubr.bf16.mxu0 %v1234
        %2343 = vmatmul.mubr.bf16.gmra.mrb[0].mxu0 %v1233
        %v2344 = vpop.f32.mrb[0].mxu0
        %v2345 = vadd.f32 %v1879, %v2344
        %v2346 = vpop.f32.mrb[0].mxu0
        %v2347 = vadd.f32 %v1881, %v2346
        %v2348 = vpop.f32.mrb[0].mxu0
        %v2349 = vadd.f32 %v1883, %v2348
        %v2350 = vpop.f32.mrb[0].mxu0
        %v2351 = vadd.f32 %v1885, %v2350
        %2352 = vmatprep.mubr.bf16.mxu0 %v1236
        %2353 = vmatmul.mubr.bf16.gmra.mrb[0].mxu0 %v1235
        %v2354 = vpop.f32.mrb[0].mxu0
        %v2355 = vadd.f32 %v1889, %v2354
        %v2356 = vpop.f32.mrb[0].mxu0
        %v2357 = vadd.f32 %v1891, %v2356
        %v2358 = vpop.f32.mrb[0].mxu0
        %v2359 = vadd.f32 %v1893, %v2358
        %v2360 = vpop.f32.mrb[0].mxu0
        %v2361 = vadd.f32 %v1895, %v2360
        %2362 = vmatprep.mubr.bf16.mxu0 %v1238
        %2363 = vmatmul.mubr.bf16.gmra.mrb[0].mxu0 %v1237
        %v2364 = vpop.f32.mrb[0].mxu0
        %v2365 = vadd.f32 %v1899, %v2364
        %v2366 = vpop.f32.mrb[0].mxu0
        %v2367 = vadd.f32 %v1901, %v2366
        %v2368 = vpop.f32.mrb[0].mxu0
        %v2369 = vadd.f32 %v1903, %v2368
        %v2370 = vpop.f32.mrb[0].mxu0
        %v2371 = vadd.f32 %v1905, %v2370
        %2372 = vmatprep.mubr.bf16.mxu0 %v1240
        %2373 = vmatmul.mubr.bf16.gmra.mrb[0].mxu0 %v1239
        %v2374 = vpop.f32.mrb[0].mxu0
        %v2375 = vadd.f32 %v1909, %v2374
        %v2376 = vpop.f32.mrb[0].mxu0
        %v2377 = vadd.f32 %v1911, %v2376
        %v2378 = vpop.f32.mrb[0].mxu0
        %v2379 = vadd.f32 %v1913, %v2378
        %v2380 = vpop.f32.mrb[0].mxu0
        %v2381 = vadd.f32 %v1915, %v2380
        %2382 = vdwg.mxu0
        %s2383 = scalar_lea.vmem [#allocation11], 1024
        %v2384 = vld [vmem:[%s2383] sm:$0xff]
        %v2385 = vld [vmem:[%s2383 + $0x8] sm:$0xff]
        %v2386 = vld [vmem:[%s2383 + $0x10] sm:$0xff]
        %v2387 = vld [vmem:[%s2383 + $0x18] sm:$0xff]
        %v2388 = vld [vmem:[%s2383 + $0x20] sm:$0xff]
        %v2389 = vld [vmem:[%s2383 + $0x28] sm:$0xff]
        %v2390 = vld [vmem:[%s2383 + $0x30] sm:$0xff]
        %v2391 = vld [vmem:[%s2383 + $0x38] sm:$0xff]
        %v2392 = vld [vmem:[%s2383 + $0x40] sm:$0xff]
        %v2393 = vld [vmem:[%s2383 + $0x48] sm:$0xff]
        %v2394 = vld [vmem:[%s2383 + $0x50] sm:$0xff]
        %v2395 = vld [vmem:[%s2383 + $0x58] sm:$0xff]
        %v2396 = vld [vmem:[%s2383 + $0x60] sm:$0xff]
        %v2397 = vld [vmem:[%s2383 + $0x68] sm:$0xff]
        %v2398 = vld [vmem:[%s2383 + $0x70] sm:$0xff]
        %v2399 = vld [vmem:[%s2383 + $0x78] sm:$0xff]
        %v2400 = vld [vmem:[%s2383 + $0x80] sm:$0xff]
        %v2401 = vld [vmem:[%s2383 + $0x88] sm:$0xff]
        %v2402 = vld [vmem:[%s2383 + $0x90] sm:$0xff]
        %v2403 = vld [vmem:[%s2383 + $0x98] sm:$0xff]
        %v2404 = vld [vmem:[%s2383 + $0xa0] sm:$0xff]
        %v2405 = vld [vmem:[%s2383 + $0xa8] sm:$0xff]
        %v2406 = vld [vmem:[%s2383 + $0xb0] sm:$0xff]
        %v2407 = vld [vmem:[%s2383 + $0xb8] sm:$0xff]
        %v2408 = vld [vmem:[%s2383 + $0xc0] sm:$0xff]
        %v2409 = vld [vmem:[%s2383 + $0xc8] sm:$0xff]
        %v2410 = vld [vmem:[%s2383 + $0xd0] sm:$0xff]
        %v2411 = vld [vmem:[%s2383 + $0xd8] sm:$0xff]
        %v2412 = vld [vmem:[%s2383 + $0xe0] sm:$0xff]
        %v2413 = vld [vmem:[%s2383 + $0xe8] sm:$0xff]
        %v2414 = vld [vmem:[%s2383 + $0xf0] sm:$0xff]
        %v2415 = vld [vmem:[%s2383 + $0xf8] sm:$0xff]
        %v2416 = vld [vmem:[%s2383 + $0x100] sm:$0xff]
        %v2417 = vld [vmem:[%s2383 + $0x108] sm:$0xff]
        %v2418 = vld [vmem:[%s2383 + $0x110] sm:$0xff]
        %v2419 = vld [vmem:[%s2383 + $0x118] sm:$0xff]
        %v2420 = vld [vmem:[%s2383 + $0x120] sm:$0xff]
        %v2421 = vld [vmem:[%s2383 + $0x128] sm:$0xff]
        %v2422 = vld [vmem:[%s2383 + $0x130] sm:$0xff]
        %v2423 = vld [vmem:[%s2383 + $0x138] sm:$0xff]
        %v2424 = vld [vmem:[%s2383 + $0x140] sm:$0xff]
        %v2425 = vld [vmem:[%s2383 + $0x148] sm:$0xff]
        %v2426 = vld [vmem:[%s2383 + $0x150] sm:$0xff]
        %v2427 = vld [vmem:[%s2383 + $0x158] sm:$0xff]
        %v2428 = vld [vmem:[%s2383 + $0x160] sm:$0xff]
        %v2429 = vld [vmem:[%s2383 + $0x168] sm:$0xff]
        %v2430 = vld [vmem:[%s2383 + $0x170] sm:$0xff]
        %v2431 = vld [vmem:[%s2383 + $0x178] sm:$0xff]
        %v2432 = vld [vmem:[%s2383 + $0x180] sm:$0xff]
        %v2433 = vld [vmem:[%s2383 + $0x188] sm:$0xff]
        %v2434 = vld [vmem:[%s2383 + $0x190] sm:$0xff]
        %v2435 = vld [vmem:[%s2383 + $0x198] sm:$0xff]
        %v2436 = vld [vmem:[%s2383 + $0x1a0] sm:$0xff]
        %v2437 = vld [vmem:[%s2383 + $0x1a8] sm:$0xff]
        %v2438 = vld [vmem:[%s2383 + $0x1b0] sm:$0xff]
        %v2439 = vld [vmem:[%s2383 + $0x1b8] sm:$0xff]
        %v2440 = vld [vmem:[%s2383 + $0x1c0] sm:$0xff]
        %v2441 = vld [vmem:[%s2383 + $0x1c8] sm:$0xff]
        %v2442 = vld [vmem:[%s2383 + $0x1d0] sm:$0xff]
        %v2443 = vld [vmem:[%s2383 + $0x1d8] sm:$0xff]
        %v2444 = vld [vmem:[%s2383 + $0x1e0] sm:$0xff]
        %v2445 = vld [vmem:[%s2383 + $0x1e8] sm:$0xff]
        %v2446 = vld [vmem:[%s2383 + $0x1f0] sm:$0xff]
        %v2447 = vld [vmem:[%s2383 + $0x1f8] sm:$0xff]
        %v2512 = vunpack.c.l.b16 %v2384
        %v2513 = vunpack.c.h.b16 %v2384
        %v2514 = vunpack.c.l.b16 %v2385
        %v2515 = vunpack.c.h.b16 %v2385
        %v2516 = vunpack.c.l.b16 %v2386
        %v2517 = vunpack.c.h.b16 %v2386
        %v2518 = vunpack.c.l.b16 %v2387
        %v2519 = vunpack.c.h.b16 %v2387
        %v2520 = vunpack.c.l.b16 %v2388
        %v2521 = vunpack.c.h.b16 %v2388
        %v2522 = vunpack.c.l.b16 %v2389
        %v2523 = vunpack.c.h.b16 %v2389
        %v2524 = vunpack.c.l.b16 %v2390
        %v2525 = vunpack.c.h.b16 %v2390
        %v2526 = vunpack.c.l.b16 %v2391
        %v2527 = vunpack.c.h.b16 %v2391
        %v2528 = vunpack.c.l.b16 %v2392
        %v2529 = vunpack.c.h.b16 %v2392
        %v2530 = vunpack.c.l.b16 %v2393
        %v2531 = vunpack.c.h.b16 %v2393
        %v2532 = vunpack.c.l.b16 %v2394
        %v2533 = vunpack.c.h.b16 %v2394
        %v2534 = vunpack.c.l.b16 %v2395
        %v2535 = vunpack.c.h.b16 %v2395
        %v2536 = vunpack.c.l.b16 %v2396
        %v2537 = vunpack.c.h.b16 %v2396
        %v2538 = vunpack.c.l.b16 %v2397
        %v2539 = vunpack.c.h.b16 %v2397
        %v2540 = vunpack.c.l.b16 %v2398
        %v2541 = vunpack.c.h.b16 %v2398
        %v2542 = vunpack.c.l.b16 %v2399
        %v2543 = vunpack.c.h.b16 %v2399
        %v2544 = vunpack.c.l.b16 %v2400
        %v2545 = vunpack.c.h.b16 %v2400
        %v2546 = vunpack.c.l.b16 %v2401
        %v2547 = vunpack.c.h.b16 %v2401
        %v2548 = vunpack.c.l.b16 %v2402
        %v2549 = vunpack.c.h.b16 %v2402
        %v2550 = vunpack.c.l.b16 %v2403
        %v2551 = vunpack.c.h.b16 %v2403
        %v2552 = vunpack.c.l.b16 %v2404
        %v2553 = vunpack.c.h.b16 %v2404
        %v2554 = vunpack.c.l.b16 %v2405
        %v2555 = vunpack.c.h.b16 %v2405
        %v2556 = vunpack.c.l.b16 %v2406
        %v2557 = vunpack.c.h.b16 %v2406
        %v2558 = vunpack.c.l.b16 %v2407
        %v2559 = vunpack.c.h.b16 %v2407
        %v2560 = vunpack.c.l.b16 %v2408
        %v2561 = vunpack.c.h.b16 %v2408
        %v2562 = vunpack.c.l.b16 %v2409
        %v2563 = vunpack.c.h.b16 %v2409
        %v2564 = vunpack.c.l.b16 %v2410
        %v2565 = vunpack.c.h.b16 %v2410
        %v2566 = vunpack.c.l.b16 %v2411
        %v2567 = vunpack.c.h.b16 %v2411
        %v2568 = vunpack.c.l.b16 %v2412
        %v2569 = vunpack.c.h.b16 %v2412
        %v2570 = vunpack.c.l.b16 %v2413
        %v2571 = vunpack.c.h.b16 %v2413
        %v2572 = vunpack.c.l.b16 %v2414
        %v2573 = vunpack.c.h.b16 %v2414
        %v2574 = vunpack.c.l.b16 %v2415
        %v2575 = vunpack.c.h.b16 %v2415
        %v2576 = vunpack.c.l.b16 %v2416
        %v2577 = vunpack.c.h.b16 %v2416
        %v2578 = vunpack.c.l.b16 %v2417
        %v2579 = vunpack.c.h.b16 %v2417
        %v2580 = vunpack.c.l.b16 %v2418
        %v2581 = vunpack.c.h.b16 %v2418
        %v2582 = vunpack.c.l.b16 %v2419
        %v2583 = vunpack.c.h.b16 %v2419
        %v2584 = vunpack.c.l.b16 %v2420
        %v2585 = vunpack.c.h.b16 %v2420
        %v2586 = vunpack.c.l.b16 %v2421
        %v2587 = vunpack.c.h.b16 %v2421
        %v2588 = vunpack.c.l.b16 %v2422
        %v2589 = vunpack.c.h.b16 %v2422
        %v2590 = vunpack.c.l.b16 %v2423
        %v2591 = vunpack.c.h.b16 %v2423
        %v2592 = vunpack.c.l.b16 %v2424
        %v2593 = vunpack.c.h.b16 %v2424
        %v2594 = vunpack.c.l.b16 %v2425
        %v2595 = vunpack.c.h.b16 %v2425
        %v2596 = vunpack.c.l.b16 %v2426
        %v2597 = vunpack.c.h.b16 %v2426
        %v2598 = vunpack.c.l.b16 %v2427
        %v2599 = vunpack.c.h.b16 %v2427
        %v2600 = vunpack.c.l.b16 %v2428
        %v2601 = vunpack.c.h.b16 %v2428
        %v2602 = vunpack.c.l.b16 %v2429
        %v2603 = vunpack.c.h.b16 %v2429
        %v2604 = vunpack.c.l.b16 %v2430
        %v2605 = vunpack.c.h.b16 %v2430
        %v2606 = vunpack.c.l.b16 %v2431
        %v2607 = vunpack.c.h.b16 %v2431
        %v2608 = vunpack.c.l.b16 %v2432
        %v2609 = vunpack.c.h.b16 %v2432
        %v2610 = vunpack.c.l.b16 %v2433
        %v2611 = vunpack.c.h.b16 %v2433
        %v2612 = vunpack.c.l.b16 %v2434
        %v2613 = vunpack.c.h.b16 %v2434
        %v2614 = vunpack.c.l.b16 %v2435
        %v2615 = vunpack.c.h.b16 %v2435
        %v2616 = vunpack.c.l.b16 %v2436
        %v2617 = vunpack.c.h.b16 %v2436
        %v2618 = vunpack.c.l.b16 %v2437
        %v2619 = vunpack.c.h.b16 %v2437
        %v2620 = vunpack.c.l.b16 %v2438
        %v2621 = vunpack.c.h.b16 %v2438
        %v2622 = vunpack.c.l.b16 %v2439
        %v2623 = vunpack.c.h.b16 %v2439
        %v2624 = vunpack.c.l.b16 %v2440
        %v2625 = vunpack.c.h.b16 %v2440
        %v2626 = vunpack.c.l.b16 %v2441
        %v2627 = vunpack.c.h.b16 %v2441
        %v2628 = vunpack.c.l.b16 %v2442
        %v2629 = vunpack.c.h.b16 %v2442
        %v2630 = vunpack.c.l.b16 %v2443
        %v2631 = vunpack.c.h.b16 %v2443
        %v2632 = vunpack.c.l.b16 %v2444
        %v2633 = vunpack.c.h.b16 %v2444
        %v2634 = vunpack.c.l.b16 %v2445
        %v2635 = vunpack.c.h.b16 %v2445
        %v2636 = vunpack.c.l.b16 %v2446
        %v2637 = vunpack.c.h.b16 %v2446
        %v2638 = vunpack.c.l.b16 %v2447
        %v2639 = vunpack.c.h.b16 %v2447
        %v2640 = vpack.c.b16 %v2516, %v2512
        %v2641 = vpack.c.b16 %v2517, %v2513
        %v2642 = vpack.c.b16 %v2518, %v2514
        %v2643 = vpack.c.b16 %v2519, %v2515
        %v2644 = vpack.c.b16 %v2524, %v2520
        %v2645 = vpack.c.b16 %v2525, %v2521
        %v2646 = vpack.c.b16 %v2526, %v2522
        %v2647 = vpack.c.b16 %v2527, %v2523
        %v2648 = vpack.c.b16 %v2532, %v2528
        %v2649 = vpack.c.b16 %v2533, %v2529
        %v2650 = vpack.c.b16 %v2534, %v2530
        %v2651 = vpack.c.b16 %v2535, %v2531
        %v2652 = vpack.c.b16 %v2540, %v2536
        %v2653 = vpack.c.b16 %v2541, %v2537
        %v2654 = vpack.c.b16 %v2542, %v2538
        %v2655 = vpack.c.b16 %v2543, %v2539
        %v2656 = vpack.c.b16 %v2548, %v2544
        %v2657 = vpack.c.b16 %v2549, %v2545
        %v2658 = vpack.c.b16 %v2550, %v2546
        %v2659 = vpack.c.b16 %v2551, %v2547
        %v2660 = vpack.c.b16 %v2556, %v2552
        %v2661 = vpack.c.b16 %v2557, %v2553
        %v2662 = vpack.c.b16 %v2558, %v2554
        %v2663 = vpack.c.b16 %v2559, %v2555
        %v2664 = vpack.c.b16 %v2564, %v2560
        %v2665 = vpack.c.b16 %v2565, %v2561
        %v2666 = vpack.c.b16 %v2566, %v2562
        %v2667 = vpack.c.b16 %v2567, %v2563
        %v2668 = vpack.c.b16 %v2572, %v2568
        %v2669 = vpack.c.b16 %v2573, %v2569
        %v2670 = vpack.c.b16 %v2574, %v2570
        %v2671 = vpack.c.b16 %v2575, %v2571
        %v2672 = vpack.c.b16 %v2580, %v2576
        %v2673 = vpack.c.b16 %v2581, %v2577
        %v2674 = vpack.c.b16 %v2582, %v2578
        %v2675 = vpack.c.b16 %v2583, %v2579
        %v2676 = vpack.c.b16 %v2588, %v2584
        %v2677 = vpack.c.b16 %v2589, %v2585
        %v2678 = vpack.c.b16 %v2590, %v2586
        %v2679 = vpack.c.b16 %v2591, %v2587
        %v2680 = vpack.c.b16 %v2596, %v2592
        %v2681 = vpack.c.b16 %v2597, %v2593
        %v2682 = vpack.c.b16 %v2598, %v2594
        %v2683 = vpack.c.b16 %v2599, %v2595
        %v2684 = vpack.c.b16 %v2604, %v2600
        %v2685 = vpack.c.b16 %v2605, %v2601
        %v2686 = vpack.c.b16 %v2606, %v2602
        %v2687 = vpack.c.b16 %v2607, %v2603
        %v2688 = vpack.c.b16 %v2612, %v2608
        %v2689 = vpack.c.b16 %v2613, %v2609
        %v2690 = vpack.c.b16 %v2614, %v2610
        %v2691 = vpack.c.b16 %v2615, %v2611
        %v2692 = vpack.c.b16 %v2620, %v2616
        %v2693 = vpack.c.b16 %v2621, %v2617
        %v2694 = vpack.c.b16 %v2622, %v2618
        %v2695 = vpack.c.b16 %v2623, %v2619
        %v2696 = vpack.c.b16 %v2628, %v2624
        %v2697 = vpack.c.b16 %v2629, %v2625
        %v2698 = vpack.c.b16 %v2630, %v2626
        %v2699 = vpack.c.b16 %v2631, %v2627
        %v2700 = vpack.c.b16 %v2636, %v2632
        %v2701 = vpack.c.b16 %v2637, %v2633
        %v2702 = vpack.c.b16 %v2638, %v2634
        %v2703 = vpack.c.b16 %v2639, %v2635
        %2768 = vmatprep.subr.bf16.mxu0 %v2641
        %2769 = vmatpush1.bf16.msra.mxu0 %v2640
        %2770 = vmatprep.subr.bf16.mxu0 %v2645
        %2771 = vmatpush1.bf16.msra.mxu0 %v2644
        %2772 = vmatprep.subr.bf16.mxu0 %v2649
        %2773 = vmatpush1.bf16.msra.mxu0 %v2648
        %2774 = vmatprep.subr.bf16.mxu0 %v2653
        %2775 = vmatpush1.bf16.msra.mxu0 %v2652
        %2776 = vmatprep.subr.bf16.mxu0 %v2657
        %2777 = vmatpush1.bf16.msra.mxu0 %v2656
        %2778 = vmatprep.subr.bf16.mxu0 %v2661
        %2779 = vmatpush1.bf16.msra.mxu0 %v2660
        %2780 = vmatprep.subr.bf16.mxu0 %v2665
        %2781 = vmatpush1.bf16.msra.mxu0 %v2664
        %2782 = vmatprep.subr.bf16.mxu0 %v2669
        %2783 = vmatpush1.bf16.msra.mxu0 %v2668
        %2784 = vmatprep.subr.bf16.mxu0 %v2673
        %2785 = vmatpush1.bf16.msra.mxu0 %v2672
        %2786 = vmatprep.subr.bf16.mxu0 %v2677
        %2787 = vmatpush1.bf16.msra.mxu0 %v2676
        %2788 = vmatprep.subr.bf16.mxu0 %v2681
        %2789 = vmatpush1.bf16.msra.mxu0 %v2680
        %2790 = vmatprep.subr.bf16.mxu0 %v2685
        %2791 = vmatpush1.bf16.msra.mxu0 %v2684
        %2792 = vmatprep.subr.bf16.mxu0 %v2689
        %2793 = vmatpush1.bf16.msra.mxu0 %v2688
        %2794 = vmatprep.subr.bf16.mxu0 %v2693
        %2795 = vmatpush1.bf16.msra.mxu0 %v2692
        %2796 = vmatprep.subr.bf16.mxu0 %v2697
        %2797 = vmatpush1.bf16.msra.mxu0 %v2696
        %2798 = vmatprep.subr.bf16.mxu0 %v2701
        %2799 = vmatpush1.bf16.msra.mxu0 %v2700
        %2800 = vmatprep.mubr.bf16.mxu0 %v1315
        %2801 = vmatmul.mubr.bf16.gmra.mrb[0].mxu0 %v1314
        %v2802 = vpop.f32.mrb[0].mxu0
        %v2803 = vadd.f32 0.0, %v2802
        %v2804 = vpop.f32.mrb[0].mxu0
        %v2805 = vadd.f32 0.0, %v2804
        %v2806 = vpop.f32.mrb[0].mxu0
        %v2807 = vadd.f32 0.0, %v2806
        %v2808 = vpop.f32.mrb[0].mxu0
        %v2809 = vadd.f32 0.0, %v2808
        %2810 = vmatprep.mubr.bf16.mxu0 %v1317
        %2811 = vmatmul.mubr.bf16.gmra.mrb[0].mxu0 %v1316
        %v2812 = vpop.f32.mrb[0].mxu0
        %v2813 = vadd.f32 0.0, %v2812
        %v2814 = vpop.f32.mrb[0].mxu0
        %v2815 = vadd.f32 0.0, %v2814
        %v2816 = vpop.f32.mrb[0].mxu0
        %v2817 = vadd.f32 0.0, %v2816
        %v2818 = vpop.f32.mrb[0].mxu0
        %v2819 = vadd.f32 0.0, %v2818
        %2820 = vmatprep.mubr.bf16.mxu0 %v1319
        %2821 = vmatmul.mubr.bf16.gmra.mrb[0].mxu0 %v1318
        %v2822 = vpop.f32.mrb[0].mxu0
        %v2823 = vadd.f32 0.0, %v2822
        %v2824 = vpop.f32.mrb[0].mxu0
        %v2825 = vadd.f32 0.0, %v2824
        %v2826 = vpop.f32.mrb[0].mxu0
        %v2827 = vadd.f32 0.0, %v2826
        %v2828 = vpop.f32.mrb[0].mxu0
        %v2829 = vadd.f32 0.0, %v2828
        %2830 = vmatprep.mubr.bf16.mxu0 %v1321
        %2831 = vmatmul.mubr.bf16.gmra.mrb[0].mxu0 %v1320
        %v2832 = vpop.f32.mrb[0].mxu0
        %v2833 = vadd.f32 0.0, %v2832
        %v2834 = vpop.f32.mrb[0].mxu0
        %v2835 = vadd.f32 0.0, %v2834
        %v2836 = vpop.f32.mrb[0].mxu0
        %v2837 = vadd.f32 0.0, %v2836
        %v2838 = vpop.f32.mrb[0].mxu0
        %v2839 = vadd.f32 0.0, %v2838
        %2840 = vdwg.mxu0
        %2841 = vmatprep.subr.bf16.mxu0 %v2643
        %2842 = vmatpush1.bf16.msra.mxu0 %v2642
        %2843 = vmatprep.subr.bf16.mxu0 %v2647
        %2844 = vmatpush1.bf16.msra.mxu0 %v2646
        %2845 = vmatprep.subr.bf16.mxu0 %v2651
        %2846 = vmatpush1.bf16.msra.mxu0 %v2650
        %2847 = vmatprep.subr.bf16.mxu0 %v2655
        %2848 = vmatpush1.bf16.msra.mxu0 %v2654
        %2849 = vmatprep.subr.bf16.mxu0 %v2659
        %2850 = vmatpush1.bf16.msra.mxu0 %v2658
        %2851 = vmatprep.subr.bf16.mxu0 %v2663
        %2852 = vmatpush1.bf16.msra.mxu0 %v2662
        %2853 = vmatprep.subr.bf16.mxu0 %v2667
        %2854 = vmatpush1.bf16.msra.mxu0 %v2666
        %2855 = vmatprep.subr.bf16.mxu0 %v2671
        %2856 = vmatpush1.bf16.msra.mxu0 %v2670
        %2857 = vmatprep.subr.bf16.mxu0 %v2675
        %2858 = vmatpush1.bf16.msra.mxu0 %v2674
        %2859 = vmatprep.subr.bf16.mxu0 %v2679
        %2860 = vmatpush1.bf16.msra.mxu0 %v2678
        %2861 = vmatprep.subr.bf16.mxu0 %v2683
        %2862 = vmatpush1.bf16.msra.mxu0 %v2682
        %2863 = vmatprep.subr.bf16.mxu0 %v2687
        %2864 = vmatpush1.bf16.msra.mxu0 %v2686
        %2865 = vmatprep.subr.bf16.mxu0 %v2691
        %2866 = vmatpush1.bf16.msra.mxu0 %v2690
        %2867 = vmatprep.subr.bf16.mxu0 %v2695
        %2868 = vmatpush1.bf16.msra.mxu0 %v2694
        %2869 = vmatprep.subr.bf16.mxu0 %v2699
        %2870 = vmatpush1.bf16.msra.mxu0 %v2698
        %2871 = vmatprep.subr.bf16.mxu0 %v2703
        %2872 = vmatpush1.bf16.msra.mxu0 %v2702
        %2873 = vmatprep.mubr.bf16.mxu0 %v1315
        %2874 = vmatmul.mubr.bf16.gmra.mrb[0].mxu0 %v1314
        %v2875 = vpop.f32.mrb[0].mxu0
        %v2876 = vadd.f32 0.0, %v2875
        %v2877 = vpop.f32.mrb[0].mxu0
        %v2878 = vadd.f32 0.0, %v2877
        %v2879 = vpop.f32.mrb[0].mxu0
        %v2880 = vadd.f32 0.0, %v2879
        %v2881 = vpop.f32.mrb[0].mxu0
        %v2882 = vadd.f32 0.0, %v2881
        %2883 = vmatprep.mubr.bf16.mxu0 %v1317
        %2884 = vmatmul.mubr.bf16.gmra.mrb[0].mxu0 %v1316
        %v2885 = vpop.f32.mrb[0].mxu0
        %v2886 = vadd.f32 0.0, %v2885
        %v2887 = vpop.f32.mrb[0].mxu0
        %v2888 = vadd.f32 0.0, %v2887
        %v2889 = vpop.f32.mrb[0].mxu0
        %v2890 = vadd.f32 0.0, %v2889
        %v2891 = vpop.f32.mrb[0].mxu0
        %v2892 = vadd.f32 0.0, %v2891
        %2893 = vmatprep.mubr.bf16.mxu0 %v1319
        %2894 = vmatmul.mubr.bf16.gmra.mrb[0].mxu0 %v1318
        %v2895 = vpop.f32.mrb[0].mxu0
        %v2896 = vadd.f32 0.0, %v2895
        %v2897 = vpop.f32.mrb[0].mxu0
        %v2898 = vadd.f32 0.0, %v2897
        %v2899 = vpop.f32.mrb[0].mxu0
        %v2900 = vadd.f32 0.0, %v2899
        %v2901 = vpop.f32.mrb[0].mxu0
        %v2902 = vadd.f32 0.0, %v2901
        %2903 = vmatprep.mubr.bf16.mxu0 %v1321
        %2904 = vmatmul.mubr.bf16.gmra.mrb[0].mxu0 %v1320
        %v2905 = vpop.f32.mrb[0].mxu0
        %v2906 = vadd.f32 0.0, %v2905
        %v2907 = vpop.f32.mrb[0].mxu0
        %v2908 = vadd.f32 0.0, %v2907
        %v2909 = vpop.f32.mrb[0].mxu0
        %v2910 = vadd.f32 0.0, %v2909
        %v2911 = vpop.f32.mrb[0].mxu0
        %v2912 = vadd.f32 0.0, %v2911
        %2913 = vdwg.mxu0
        %v2914 = vadd.f32 %v2272, %v2803
        %v2915 = vadd.f32 %v2274, %v2805
        %v2916 = vadd.f32 %v2345, %v2876
        %v2917 = vadd.f32 %v2347, %v2878
        %v2918 = vadd.f32 %v2276, %v2807
        %v2919 = vadd.f32 %v2278, %v2809
        %v2920 = vadd.f32 %v2349, %v2880
        %v2921 = vadd.f32 %v2351, %v2882
        %v2922 = vadd.f32 %v2282, %v2813
        %v2923 = vadd.f32 %v2284, %v2815
        %v2924 = vadd.f32 %v2355, %v2886
        %v2925 = vadd.f32 %v2357, %v2888
        %v2926 = vadd.f32 %v2286, %v2817
        %v2927 = vadd.f32 %v2288, %v2819
        %v2928 = vadd.f32 %v2359, %v2890
        %v2929 = vadd.f32 %v2361, %v2892
        %v2930 = vadd.f32 %v2292, %v2823
        %v2931 = vadd.f32 %v2294, %v2825
        %v2932 = vadd.f32 %v2365, %v2896
        %v2933 = vadd.f32 %v2367, %v2898
        %v2934 = vadd.f32 %v2296, %v2827
        %v2935 = vadd.f32 %v2298, %v2829
        %v2936 = vadd.f32 %v2369, %v2900
        %v2937 = vadd.f32 %v2371, %v2902
        %v2938 = vadd.f32 %v2302, %v2833
        %v2939 = vadd.f32 %v2304, %v2835
        %v2940 = vadd.f32 %v2375, %v2906
        %v2941 = vadd.f32 %v2377, %v2908
        %v2942 = vadd.f32 %v2306, %v2837
        %v2943 = vadd.f32 %v2308, %v2839
        %v2944 = vadd.f32 %v2379, %v2910
        %v2945 = vadd.f32 %v2381, %v2912
        %v2946 = vld [vmem:[#allocation13] sm:$0xf]
        %v2948 = vlaneseq
        %v2949 = vshrl.u32 %v2948, 7
        %v2950 = vsub.s32 0, %v2949
        %v2951 = vrot.slane %v2946, %v2950
        %v2952 = vlaneseq
        %v2953 = vshrl.u32 %v2952, 7
        %v2954 = vsub.s32 1, %v2953
        %v2955 = vrot.slane %v2946, %v2954
        %v2956 = vlaneseq
        %v2957 = vshrl.u32 %v2956, 7
        %v2958 = vsub.s32 2, %v2957
        %v2959 = vrot.slane %v2946, %v2958
        %v2960 = vlaneseq
        %v2961 = vshrl.u32 %v2960, 7
        %v2962 = vsub.s32 3, %v2961
        %v2963 = vrot.slane %v2946, %v2962
        %v2968 = vadd.f32 %v2914, %v2951
        %v2969 = vadd.f32 %v2915, %v2955
        %v2970 = vadd.f32 %v2916, %v2959
        %v2971 = vadd.f32 %v2917, %v2963
        %v2972 = vadd.f32 %v2918, %v2951
        %v2973 = vadd.f32 %v2919, %v2955
        %v2974 = vadd.f32 %v2920, %v2959
        %v2975 = vadd.f32 %v2921, %v2963
        %v2976 = vadd.f32 %v2922, %v2951
        %v2977 = vadd.f32 %v2923, %v2955
        %v2978 = vadd.f32 %v2924, %v2959
        %v2979 = vadd.f32 %v2925, %v2963
        %v2980 = vadd.f32 %v2926, %v2951
        %v2981 = vadd.f32 %v2927, %v2955
        %v2982 = vadd.f32 %v2928, %v2959
        %v2983 = vadd.f32 %v2929, %v2963
        %v2984 = vadd.f32 %v2930, %v2951
        %v2985 = vadd.f32 %v2931, %v2955
        %v2986 = vadd.f32 %v2932, %v2959
        %v2987 = vadd.f32 %v2933, %v2963
        %v2988 = vadd.f32 %v2934, %v2951
        %v2989 = vadd.f32 %v2935, %v2955
        %v2990 = vadd.f32 %v2936, %v2959
        %v2991 = vadd.f32 %v2937, %v2963
        %v2992 = vadd.f32 %v2938, %v2951
        %v2993 = vadd.f32 %v2939, %v2955
        %v2994 = vadd.f32 %v2940, %v2959
        %v2995 = vadd.f32 %v2941, %v2963
        %v2996 = vadd.f32 %v2942, %v2951
        %v2997 = vadd.f32 %v2943, %v2955
        %v2998 = vadd.f32 %v2944, %v2959
        %v2999 = vadd.f32 %v2945, %v2963
        %v3000 = vmax.f32 %v2968, 0.0
        %v3001 = vmax.f32 %v2969, 0.0
        %v3002 = vmax.f32 %v2970, 0.0
        %v3003 = vmax.f32 %v2971, 0.0
        %v3004 = vmax.f32 %v2972, 0.0
        %v3005 = vmax.f32 %v2973, 0.0
        %v3006 = vmax.f32 %v2974, 0.0
        %v3007 = vmax.f32 %v2975, 0.0
        %v3008 = vmax.f32 %v2976, 0.0
        %v3009 = vmax.f32 %v2977, 0.0
        %v3010 = vmax.f32 %v2978, 0.0
        %v3011 = vmax.f32 %v2979, 0.0
        %v3012 = vmax.f32 %v2980, 0.0
        %v3013 = vmax.f32 %v2981, 0.0
        %v3014 = vmax.f32 %v2982, 0.0
        %v3015 = vmax.f32 %v2983, 0.0
        %v3016 = vmax.f32 %v2984, 0.0
        %v3017 = vmax.f32 %v2985, 0.0
        %v3018 = vmax.f32 %v2986, 0.0
        %v3019 = vmax.f32 %v2987, 0.0
        %v3020 = vmax.f32 %v2988, 0.0
        %v3021 = vmax.f32 %v2989, 0.0
        %v3022 = vmax.f32 %v2990, 0.0
        %v3023 = vmax.f32 %v2991, 0.0
        %v3024 = vmax.f32 %v2992, 0.0
        %v3025 = vmax.f32 %v2993, 0.0
        %v3026 = vmax.f32 %v2994, 0.0
        %v3027 = vmax.f32 %v2995, 0.0
        %v3028 = vmax.f32 %v2996, 0.0
        %v3029 = vmax.f32 %v2997, 0.0
        %v3030 = vmax.f32 %v2998, 0.0
        %v3031 = vmax.f32 %v2999, 0.0
        %v3032 = vpack.c.bf16 %v3004, %v3000
        %v3033 = vpack.c.bf16 %v3005, %v3001
        %v3034 = vpack.c.bf16 %v3006, %v3002
        %v3035 = vpack.c.bf16 %v3007, %v3003
        %v3036 = vpack.c.bf16 %v3012, %v3008
        %v3037 = vpack.c.bf16 %v3013, %v3009
        %v3038 = vpack.c.bf16 %v3014, %v3010
        %v3039 = vpack.c.bf16 %v3015, %v3011
        %v3040 = vpack.c.bf16 %v3020, %v3016
        %v3041 = vpack.c.bf16 %v3021, %v3017
        %v3042 = vpack.c.bf16 %v3022, %v3018
        %v3043 = vpack.c.bf16 %v3023, %v3019
        %v3044 = vpack.c.bf16 %v3028, %v3024
        %v3045 = vpack.c.bf16 %v3029, %v3025
        %v3046 = vpack.c.bf16 %v3030, %v3026
        %v3047 = vpack.c.bf16 %v3031, %v3027
        %3048 = vmatprep.subr.bf16.mxu0 %v3033
        %3049 = vmatpush1.bf16.msra.mxu0 %v3032
        %3050 = vmatprep.subr.bf16.mxu0 %v3037
        %3051 = vmatpush1.bf16.msra.mxu0 %v3036
        %3052 = vmatprep.subr.bf16.mxu0 %v3041
        %3053 = vmatpush1.bf16.msra.mxu0 %v3040
        %3054 = vmatprep.subr.bf16.mxu0 %v3045
        %3055 = vmatpush1.bf16.msra.mxu0 %v3044
        %3056 = vmatprep.subr.bf16.mxu0 0
        %3057 = vmatpush1.bf16.msra.mxu0 0
        %3058 = vmatprep.subr.bf16.mxu0 0
        %3059 = vmatpush1.bf16.msra.mxu0 0
        %3060 = vmatprep.subr.bf16.mxu0 0
        %3061 = vmatpush1.bf16.msra.mxu0 0
        %3062 = vmatprep.subr.bf16.mxu0 0
        %3063 = vmatpush1.bf16.msra.mxu0 0
        %3064 = vmatprep.subr.bf16.mxu0 0
        %3065 = vmatpush1.bf16.msra.mxu0 0
        %3066 = vmatprep.subr.bf16.mxu0 0
        %3067 = vmatpush1.bf16.msra.mxu0 0
        %3068 = vmatprep.subr.bf16.mxu0 0
        %3069 = vmatpush1.bf16.msra.mxu0 0
        %3070 = vmatprep.subr.bf16.mxu0 0
        %3071 = vmatpush1.bf16.msra.mxu0 0
        %3072 = vmatprep.subr.bf16.mxu0 0
        %3073 = vmatpush1.bf16.msra.mxu0 0
        %3074 = vmatprep.subr.bf16.mxu0 0
        %3075 = vmatpush1.bf16.msra.mxu0 0
        %3076 = vmatprep.subr.bf16.mxu0 0
        %3077 = vmatpush1.bf16.msra.mxu0 0
        %3078 = vmatprep.subr.bf16.mxu0 0
        %3079 = vmatpush1.bf16.msra.mxu0 0
        %3080 = vmatprep.mubr.bf16.mxu0 0
        %3081 = vmatmul.mubr.bf16.gmra.mrb[0].mxu0 %v617
        %v3082 = vpop.f32.mrb[0].mxu0
        %v3083 = vadd.f32 0.0, %v3082
        %v3084 = vpop.f32.mrb[0].mxu0
        %v3085 = vadd.f32 0.0, %v3084
        %v3086 = vpop.f32.mrb[0].mxu0
        %v3087 = vadd.f32 0.0, %v3086
        %v3088 = vpop.f32.mrb[0].mxu0
        %v3089 = vadd.f32 0.0, %v3088
        %3090 = vmatprep.mubr.bf16.mxu0 0
        %3091 = vmatmul.mubr.bf16.gmra.mrb[0].mxu0 %v620
        %v3092 = vpop.f32.mrb[0].mxu0
        %v3093 = vadd.f32 0.0, %v3092
        %v3094 = vpop.f32.mrb[0].mxu0
        %v3095 = vadd.f32 0.0, %v3094
        %v3096 = vpop.f32.mrb[0].mxu0
        %v3097 = vadd.f32 0.0, %v3096
        %v3098 = vpop.f32.mrb[0].mxu0
        %v3099 = vadd.f32 0.0, %v3098
        %3100 = vmatprep.mubr.bf16.mxu0 0
        %3101 = vmatmul.mubr.bf16.gmra.mrb[0].mxu0 %v623
        %v3102 = vpop.f32.mrb[0].mxu0
        %v3103 = vadd.f32 0.0, %v3102
        %v3104 = vpop.f32.mrb[0].mxu0
        %v3105 = vadd.f32 0.0, %v3104
        %v3106 = vpop.f32.mrb[0].mxu0
        %v3107 = vadd.f32 0.0, %v3106
        %v3108 = vpop.f32.mrb[0].mxu0
        %v3109 = vadd.f32 0.0, %v3108
        %3110 = vmatprep.mubr.bf16.mxu0 0
        %3111 = vmatmul.mubr.bf16.gmra.mrb[0].mxu0 %v626
        %v3112 = vpop.f32.mrb[0].mxu0
        %v3113 = vadd.f32 0.0, %v3112
        %v3114 = vpop.f32.mrb[0].mxu0
        %v3115 = vadd.f32 0.0, %v3114
        %v3116 = vpop.f32.mrb[0].mxu0
        %v3117 = vadd.f32 0.0, %v3116
        %v3118 = vpop.f32.mrb[0].mxu0
        %v3119 = vadd.f32 0.0, %v3118
        %3120 = vdwg.mxu0
        %3121 = vmatprep.subr.bf16.mxu0 %v3035
        %3122 = vmatpush1.bf16.msra.mxu0 %v3034
        %3123 = vmatprep.subr.bf16.mxu0 %v3039
        %3124 = vmatpush1.bf16.msra.mxu0 %v3038
        %3125 = vmatprep.subr.bf16.mxu0 %v3043
        %3126 = vmatpush1.bf16.msra.mxu0 %v3042
        %3127 = vmatprep.subr.bf16.mxu0 %v3047
        %3128 = vmatpush1.bf16.msra.mxu0 %v3046
        %3129 = vmatprep.subr.bf16.mxu0 0
        %3130 = vmatpush1.bf16.msra.mxu0 0
        %3131 = vmatprep.subr.bf16.mxu0 0
        %3132 = vmatpush1.bf16.msra.mxu0 0
        %3133 = vmatprep.subr.bf16.mxu0 0
        %3134 = vmatpush1.bf16.msra.mxu0 0
        %3135 = vmatprep.subr.bf16.mxu0 0
        %3136 = vmatpush1.bf16.msra.mxu0 0
        %3137 = vmatprep.subr.bf16.mxu0 0
        %3138 = vmatpush1.bf16.msra.mxu0 0
        %3139 = vmatprep.subr.bf16.mxu0 0
        %3140 = vmatpush1.bf16.msra.mxu0 0
        %3141 = vmatprep.subr.bf16.mxu0 0
        %3142 = vmatpush1.bf16.msra.mxu0 0
        %3143 = vmatprep.subr.bf16.mxu0 0
        %3144 = vmatpush1.bf16.msra.mxu0 0
        %3145 = vmatprep.subr.bf16.mxu0 0
        %3146 = vmatpush1.bf16.msra.mxu0 0
        %3147 = vmatprep.subr.bf16.mxu0 0
        %3148 = vmatpush1.bf16.msra.mxu0 0
        %3149 = vmatprep.subr.bf16.mxu0 0
        %3150 = vmatpush1.bf16.msra.mxu0 0
        %3151 = vmatprep.subr.bf16.mxu0 0
        %3152 = vmatpush1.bf16.msra.mxu0 0
        %3153 = vmatprep.mubr.bf16.mxu0 0
        %3154 = vmatmul.mubr.bf16.gmra.mrb[0].mxu0 %v617
        %v3155 = vpop.f32.mrb[0].mxu0
        %v3156 = vadd.f32 0.0, %v3155
        %v3157 = vpop.f32.mrb[0].mxu0
        %v3158 = vadd.f32 0.0, %v3157
        %v3159 = vpop.f32.mrb[0].mxu0
        %v3160 = vadd.f32 0.0, %v3159
        %v3161 = vpop.f32.mrb[0].mxu0
        %v3162 = vadd.f32 0.0, %v3161
        %3163 = vmatprep.mubr.bf16.mxu0 0
        %3164 = vmatmul.mubr.bf16.gmra.mrb[0].mxu0 %v620
        %v3165 = vpop.f32.mrb[0].mxu0
        %v3166 = vadd.f32 0.0, %v3165
        %v3167 = vpop.f32.mrb[0].mxu0
        %v3168 = vadd.f32 0.0, %v3167
        %v3169 = vpop.f32.mrb[0].mxu0
        %v3170 = vadd.f32 0.0, %v3169
        %v3171 = vpop.f32.mrb[0].mxu0
        %v3172 = vadd.f32 0.0, %v3171
        %3173 = vmatprep.mubr.bf16.mxu0 0
        %3174 = vmatmul.mubr.bf16.gmra.mrb[0].mxu0 %v623
        %v3175 = vpop.f32.mrb[0].mxu0
        %v3176 = vadd.f32 0.0, %v3175
        %v3177 = vpop.f32.mrb[0].mxu0
        %v3178 = vadd.f32 0.0, %v3177
        %v3179 = vpop.f32.mrb[0].mxu0
        %v3180 = vadd.f32 0.0, %v3179
        %v3181 = vpop.f32.mrb[0].mxu0
        %v3182 = vadd.f32 0.0, %v3181
        %3183 = vmatprep.mubr.bf16.mxu0 0
        %3184 = vmatmul.mubr.bf16.gmra.mrb[0].mxu0 %v626
        %v3185 = vpop.f32.mrb[0].mxu0
        %v3186 = vadd.f32 0.0, %v3185
        %v3187 = vpop.f32.mrb[0].mxu0
        %v3188 = vadd.f32 0.0, %v3187
        %v3189 = vpop.f32.mrb[0].mxu0
        %v3190 = vadd.f32 0.0, %v3189
        %v3191 = vpop.f32.mrb[0].mxu0
        %v3192 = vadd.f32 0.0, %v3191
        %3193 = vdwg.mxu0
        %v3194 = vpack.c.bf16 %v3087, %v3083
        %v3195 = vpack.c.bf16 %v3089, %v3085
        %v3196 = vpack.c.bf16 %v3160, %v3156
        %v3197 = vpack.c.bf16 %v3162, %v3158
        %v3198 = vpack.c.bf16 %v3097, %v3093
        %v3199 = vpack.c.bf16 %v3099, %v3095
        %v3200 = vpack.c.bf16 %v3170, %v3166
        %v3201 = vpack.c.bf16 %v3172, %v3168
        %v3202 = vpack.c.bf16 %v3107, %v3103
        %v3203 = vpack.c.bf16 %v3109, %v3105
        %v3204 = vpack.c.bf16 %v3180, %v3176
        %v3205 = vpack.c.bf16 %v3182, %v3178
        %v3206 = vpack.c.bf16 %v3117, %v3113
        %v3207 = vpack.c.bf16 %v3119, %v3115
        %v3208 = vpack.c.bf16 %v3190, %v3186
        %v3209 = vpack.c.bf16 %v3192, %v3188
        %3210 = vmatprep.subr.bf16.mxu0 %v3033
        %3211 = vmatpush1.bf16.msra.mxu0 %v3032
        %3212 = vmatprep.subr.bf16.mxu0 %v3037
        %3213 = vmatpush1.bf16.msra.mxu0 %v3036
        %3214 = vmatprep.subr.bf16.mxu0 %v3041
        %3215 = vmatpush1.bf16.msra.mxu0 %v3040
        %3216 = vmatprep.subr.bf16.mxu0 %v3045
        %3217 = vmatpush1.bf16.msra.mxu0 %v3044
        %3218 = vmatprep.subr.bf16.mxu0 0
        %3219 = vmatpush1.bf16.msra.mxu0 0
        %3220 = vmatprep.subr.bf16.mxu0 0
        %3221 = vmatpush1.bf16.msra.mxu0 0
        %3222 = vmatprep.subr.bf16.mxu0 0
        %3223 = vmatpush1.bf16.msra.mxu0 0
        %3224 = vmatprep.subr.bf16.mxu0 0
        %3225 = vmatpush1.bf16.msra.mxu0 0
        %3226 = vmatprep.subr.bf16.mxu0 0
        %3227 = vmatpush1.bf16.msra.mxu0 0
        %3228 = vmatprep.subr.bf16.mxu0 0
        %3229 = vmatpush1.bf16.msra.mxu0 0
        %3230 = vmatprep.subr.bf16.mxu0 0
        %3231 = vmatpush1.bf16.msra.mxu0 0
        %3232 = vmatprep.subr.bf16.mxu0 0
        %3233 = vmatpush1.bf16.msra.mxu0 0
        %3234 = vmatprep.subr.bf16.mxu0 0
        %3235 = vmatpush1.bf16.msra.mxu0 0
        %3236 = vmatprep.subr.bf16.mxu0 0
        %3237 = vmatpush1.bf16.msra.mxu0 0
        %3238 = vmatprep.subr.bf16.mxu0 0
        %3239 = vmatpush1.bf16.msra.mxu0 0
        %3240 = vmatprep.subr.bf16.mxu0 0
        %3241 = vmatpush1.bf16.msra.mxu0 0
        %3242 = vmatprep.mubr.bf16.mxu0 0
        %3243 = vmatmul.mubr.bf16.gmra.mrb[0].mxu0 %v718
        %v3244 = vpop.f32.mrb[0].mxu0
        %v3245 = vadd.f32 0.0, %v3244
        %v3246 = vpop.f32.mrb[0].mxu0
        %v3247 = vadd.f32 0.0, %v3246
        %v3248 = vpop.f32.mrb[0].mxu0
        %v3249 = vadd.f32 0.0, %v3248
        %v3250 = vpop.f32.mrb[0].mxu0
        %v3251 = vadd.f32 0.0, %v3250
        %3252 = vmatprep.mubr.bf16.mxu0 0
        %3253 = vmatmul.mubr.bf16.gmra.mrb[0].mxu0 %v721
        %v3254 = vpop.f32.mrb[0].mxu0
        %v3255 = vadd.f32 0.0, %v3254
        %v3256 = vpop.f32.mrb[0].mxu0
        %v3257 = vadd.f32 0.0, %v3256
        %v3258 = vpop.f32.mrb[0].mxu0
        %v3259 = vadd.f32 0.0, %v3258
        %v3260 = vpop.f32.mrb[0].mxu0
        %v3261 = vadd.f32 0.0, %v3260
        %3262 = vmatprep.mubr.bf16.mxu0 0
        %3263 = vmatmul.mubr.bf16.gmra.mrb[0].mxu0 %v724
        %v3264 = vpop.f32.mrb[0].mxu0
        %v3265 = vadd.f32 0.0, %v3264
        %v3266 = vpop.f32.mrb[0].mxu0
        %v3267 = vadd.f32 0.0, %v3266
        %v3268 = vpop.f32.mrb[0].mxu0
        %v3269 = vadd.f32 0.0, %v3268
        %v3270 = vpop.f32.mrb[0].mxu0
        %v3271 = vadd.f32 0.0, %v3270
        %3272 = vmatprep.mubr.bf16.mxu0 0
        %3273 = vmatmul.mubr.bf16.gmra.mrb[0].mxu0 %v727
        %v3274 = vpop.f32.mrb[0].mxu0
        %v3275 = vadd.f32 0.0, %v3274
        %v3276 = vpop.f32.mrb[0].mxu0
        %v3277 = vadd.f32 0.0, %v3276
        %v3278 = vpop.f32.mrb[0].mxu0
        %v3279 = vadd.f32 0.0, %v3278
        %v3280 = vpop.f32.mrb[0].mxu0
        %v3281 = vadd.f32 0.0, %v3280
        %3282 = vdwg.mxu0
        %3283 = vmatprep.subr.bf16.mxu0 %v3035
        %3284 = vmatpush1.bf16.msra.mxu0 %v3034
        %3285 = vmatprep.subr.bf16.mxu0 %v3039
        %3286 = vmatpush1.bf16.msra.mxu0 %v3038
        %3287 = vmatprep.subr.bf16.mxu0 %v3043
        %3288 = vmatpush1.bf16.msra.mxu0 %v3042
        %3289 = vmatprep.subr.bf16.mxu0 %v3047
        %3290 = vmatpush1.bf16.msra.mxu0 %v3046
        %3291 = vmatprep.subr.bf16.mxu0 0
        %3292 = vmatpush1.bf16.msra.mxu0 0
        %3293 = vmatprep.subr.bf16.mxu0 0
        %3294 = vmatpush1.bf16.msra.mxu0 0
        %3295 = vmatprep.subr.bf16.mxu0 0
        %3296 = vmatpush1.bf16.msra.mxu0 0
        %3297 = vmatprep.subr.bf16.mxu0 0
        %3298 = vmatpush1.bf16.msra.mxu0 0
        %3299 = vmatprep.subr.bf16.mxu0 0
        %3300 = vmatpush1.bf16.msra.mxu0 0
        %3301 = vmatprep.subr.bf16.mxu0 0
        %3302 = vmatpush1.bf16.msra.mxu0 0
        %3303 = vmatprep.subr.bf16.mxu0 0
        %3304 = vmatpush1.bf16.msra.mxu0 0
        %3305 = vmatprep.subr.bf16.mxu0 0
        %3306 = vmatpush1.bf16.msra.mxu0 0
        %3307 = vmatprep.subr.bf16.mxu0 0
        %3308 = vmatpush1.bf16.msra.mxu0 0
        %3309 = vmatprep.subr.bf16.mxu0 0
        %3310 = vmatpush1.bf16.msra.mxu0 0
        %3311 = vmatprep.subr.bf16.mxu0 0
        %3312 = vmatpush1.bf16.msra.mxu0 0
        %3313 = vmatprep.subr.bf16.mxu0 0
        %3314 = vmatpush1.bf16.msra.mxu0 0
        %3315 = vmatprep.mubr.bf16.mxu0 0
        %3316 = vmatmul.mubr.bf16.gmra.mrb[0].mxu0 %v718
        %v3317 = vpop.f32.mrb[0].mxu0
        %v3318 = vadd.f32 0.0, %v3317
        %v3319 = vpop.f32.mrb[0].mxu0
        %v3320 = vadd.f32 0.0, %v3319
        %v3321 = vpop.f32.mrb[0].mxu0
        %v3322 = vadd.f32 0.0, %v3321
        %v3323 = vpop.f32.mrb[0].mxu0
        %v3324 = vadd.f32 0.0, %v3323
        %3325 = vmatprep.mubr.bf16.mxu0 0
        %3326 = vmatmul.mubr.bf16.gmra.mrb[0].mxu0 %v721
        %v3327 = vpop.f32.mrb[0].mxu0
        %v3328 = vadd.f32 0.0, %v3327
        %v3329 = vpop.f32.mrb[0].mxu0
        %v3330 = vadd.f32 0.0, %v3329
        %v3331 = vpop.f32.mrb[0].mxu0
        %v3332 = vadd.f32 0.0, %v3331
        %v3333 = vpop.f32.mrb[0].mxu0
        %v3334 = vadd.f32 0.0, %v3333
        %3335 = vmatprep.mubr.bf16.mxu0 0
        %3336 = vmatmul.mubr.bf16.gmra.mrb[0].mxu0 %v724
        %v3337 = vpop.f32.mrb[0].mxu0
        %v3338 = vadd.f32 0.0, %v3337
        %v3339 = vpop.f32.mrb[0].mxu0
        %v3340 = vadd.f32 0.0, %v3339
        %v3341 = vpop.f32.mrb[0].mxu0
        %v3342 = vadd.f32 0.0, %v3341
        %v3343 = vpop.f32.mrb[0].mxu0
        %v3344 = vadd.f32 0.0, %v3343
        %3345 = vmatprep.mubr.bf16.mxu0 0
        %3346 = vmatmul.mubr.bf16.gmra.mrb[0].mxu0 %v727
        %v3347 = vpop.f32.mrb[0].mxu0
        %v3348 = vadd.f32 0.0, %v3347
        %v3349 = vpop.f32.mrb[0].mxu0
        %v3350 = vadd.f32 0.0, %v3349
        %v3351 = vpop.f32.mrb[0].mxu0
        %v3352 = vadd.f32 0.0, %v3351
        %v3353 = vpop.f32.mrb[0].mxu0
        %v3354 = vadd.f32 0.0, %v3353
        %3355 = vdwg.mxu0
        %v3356 = vpack.c.bf16 %v3249, %v3245
        %v3357 = vpack.c.bf16 %v3251, %v3247
        %v3358 = vpack.c.bf16 %v3322, %v3318
        %v3359 = vpack.c.bf16 %v3324, %v3320
        %v3360 = vpack.c.bf16 %v3259, %v3255
        %v3361 = vpack.c.bf16 %v3261, %v3257
        %v3362 = vpack.c.bf16 %v3332, %v3328
        %v3363 = vpack.c.bf16 %v3334, %v3330
        %v3364 = vpack.c.bf16 %v3269, %v3265
        %v3365 = vpack.c.bf16 %v3271, %v3267
        %v3366 = vpack.c.bf16 %v3342, %v3338
        %v3367 = vpack.c.bf16 %v3344, %v3340
        %v3368 = vpack.c.bf16 %v3279, %v3275
        %v3369 = vpack.c.bf16 %v3281, %v3277
        %v3370 = vpack.c.bf16 %v3352, %v3348
        %v3371 = vpack.c.bf16 %v3354, %v3350
        %v3372 = vld [vmem:[#allocation14] sm:$0xff]
        %v3373 = vld [vmem:[#allocation14 + $0x8] sm:$0xff]
        %v3374 = vld [vmem:[#allocation14 + $0x10] sm:$0xff]
        %v3375 = vld [vmem:[#allocation14 + $0x18] sm:$0xff]
        %v3376 = vld [vmem:[#allocation14 + $0x20] sm:$0xff]
        %v3377 = vld [vmem:[#allocation14 + $0x28] sm:$0xff]
        %v3378 = vld [vmem:[#allocation14 + $0x30] sm:$0xff]
        %v3379 = vld [vmem:[#allocation14 + $0x38] sm:$0xff]
        %v3380 = vld [vmem:[#allocation14 + $0x40] sm:$0xff]
        %v3381 = vld [vmem:[#allocation14 + $0x48] sm:$0xff]
        %v3382 = vld [vmem:[#allocation14 + $0x50] sm:$0xff]
        %v3383 = vld [vmem:[#allocation14 + $0x58] sm:$0xff]
        %v3384 = vld [vmem:[#allocation14 + $0x60] sm:$0xff]
        %v3385 = vld [vmem:[#allocation14 + $0x68] sm:$0xff]
        %v3386 = vld [vmem:[#allocation14 + $0x70] sm:$0xff]
        %v3387 = vld [vmem:[#allocation14 + $0x78] sm:$0xff]
        %v3388 = vld [vmem:[#allocation14 + $0x80] sm:$0xff]
        %v3389 = vld [vmem:[#allocation14 + $0x88] sm:$0xff]
        %v3390 = vld [vmem:[#allocation14 + $0x90] sm:$0xff]
        %v3391 = vld [vmem:[#allocation14 + $0x98] sm:$0xff]
        %v3392 = vld [vmem:[#allocation14 + $0xa0] sm:$0xff]
        %v3393 = vld [vmem:[#allocation14 + $0xa8] sm:$0xff]
        %v3394 = vld [vmem:[#allocation14 + $0xb0] sm:$0xff]
        %v3395 = vld [vmem:[#allocation14 + $0xb8] sm:$0xff]
        %v3396 = vld [vmem:[#allocation14 + $0xc0] sm:$0xff]
        %v3397 = vld [vmem:[#allocation14 + $0xc8] sm:$0xff]
        %v3398 = vld [vmem:[#allocation14 + $0xd0] sm:$0xff]
        %v3399 = vld [vmem:[#allocation14 + $0xd8] sm:$0xff]
        %v3400 = vld [vmem:[#allocation14 + $0xe0] sm:$0xff]
        %v3401 = vld [vmem:[#allocation14 + $0xe8] sm:$0xff]
        %v3402 = vld [vmem:[#allocation14 + $0xf0] sm:$0xff]
        %v3403 = vld [vmem:[#allocation14 + $0xf8] sm:$0xff]
        %v3404 = vld [vmem:[#allocation14 + $0x100] sm:$0xff]
        %v3405 = vld [vmem:[#allocation14 + $0x108] sm:$0xff]
        %v3406 = vld [vmem:[#allocation14 + $0x110] sm:$0xff]
        %v3407 = vld [vmem:[#allocation14 + $0x118] sm:$0xff]
        %v3408 = vld [vmem:[#allocation14 + $0x120] sm:$0xff]
        %v3409 = vld [vmem:[#allocation14 + $0x128] sm:$0xff]
        %v3410 = vld [vmem:[#allocation14 + $0x130] sm:$0xff]
        %v3411 = vld [vmem:[#allocation14 + $0x138] sm:$0xff]
        %v3412 = vld [vmem:[#allocation14 + $0x140] sm:$0xff]
        %v3413 = vld [vmem:[#allocation14 + $0x148] sm:$0xff]
        %v3414 = vld [vmem:[#allocation14 + $0x150] sm:$0xff]
        %v3415 = vld [vmem:[#allocation14 + $0x158] sm:$0xff]
        %v3416 = vld [vmem:[#allocation14 + $0x160] sm:$0xff]
        %v3417 = vld [vmem:[#allocation14 + $0x168] sm:$0xff]
        %v3418 = vld [vmem:[#allocation14 + $0x170] sm:$0xff]
        %v3419 = vld [vmem:[#allocation14 + $0x178] sm:$0xff]
        %v3420 = vld [vmem:[#allocation14 + $0x180] sm:$0xff]
        %v3421 = vld [vmem:[#allocation14 + $0x188] sm:$0xff]
        %v3422 = vld [vmem:[#allocation14 + $0x190] sm:$0xff]
        %v3423 = vld [vmem:[#allocation14 + $0x198] sm:$0xff]
        %v3424 = vld [vmem:[#allocation14 + $0x1a0] sm:$0xff]
        %v3425 = vld [vmem:[#allocation14 + $0x1a8] sm:$0xff]
        %v3426 = vld [vmem:[#allocation14 + $0x1b0] sm:$0xff]
        %v3427 = vld [vmem:[#allocation14 + $0x1b8] sm:$0xff]
        %v3428 = vld [vmem:[#allocation14 + $0x1c0] sm:$0xff]
        %v3429 = vld [vmem:[#allocation14 + $0x1c8] sm:$0xff]
        %v3430 = vld [vmem:[#allocation14 + $0x1d0] sm:$0xff]
        %v3431 = vld [vmem:[#allocation14 + $0x1d8] sm:$0xff]
        %v3432 = vld [vmem:[#allocation14 + $0x1e0] sm:$0xff]
        %v3433 = vld [vmem:[#allocation14 + $0x1e8] sm:$0xff]
        %v3434 = vld [vmem:[#allocation14 + $0x1f0] sm:$0xff]
        %v3435 = vld [vmem:[#allocation14 + $0x1f8] sm:$0xff]
        %v3436 = vld [vmem:[#allocation14 + $0x200] sm:$0xff]
        %v3437 = vld [vmem:[#allocation14 + $0x208] sm:$0xff]
        %v3438 = vld [vmem:[#allocation14 + $0x210] sm:$0xff]
        %v3439 = vld [vmem:[#allocation14 + $0x218] sm:$0xff]
        %v3440 = vld [vmem:[#allocation14 + $0x220] sm:$0xff]
        %v3441 = vld [vmem:[#allocation14 + $0x228] sm:$0xff]
        %v3442 = vld [vmem:[#allocation14 + $0x230] sm:$0xff]
        %v3443 = vld [vmem:[#allocation14 + $0x238] sm:$0xff]
        %v3444 = vld [vmem:[#allocation14 + $0x240] sm:$0xff]
        %v3445 = vld [vmem:[#allocation14 + $0x248] sm:$0xff]
        %v3446 = vld [vmem:[#allocation14 + $0x250] sm:$0xff]
        %v3447 = vld [vmem:[#allocation14 + $0x258] sm:$0xff]
        %v3448 = vld [vmem:[#allocation14 + $0x260] sm:$0xff]
        %v3449 = vld [vmem:[#allocation14 + $0x268] sm:$0xff]
        %v3450 = vld [vmem:[#allocation14 + $0x270] sm:$0xff]
        %v3451 = vld [vmem:[#allocation14 + $0x278] sm:$0xff]
        %v3452 = vld [vmem:[#allocation14 + $0x280] sm:$0xff]
        %v3453 = vld [vmem:[#allocation14 + $0x288] sm:$0xff]
        %v3454 = vld [vmem:[#allocation14 + $0x290] sm:$0xff]
        %v3455 = vld [vmem:[#allocation14 + $0x298] sm:$0xff]
        %v3456 = vld [vmem:[#allocation14 + $0x2a0] sm:$0xff]
        %v3457 = vld [vmem:[#allocation14 + $0x2a8] sm:$0xff]
        %v3458 = vld [vmem:[#allocation14 + $0x2b0] sm:$0xff]
        %v3459 = vld [vmem:[#allocation14 + $0x2b8] sm:$0xff]
        %v3460 = vld [vmem:[#allocation14 + $0x2c0] sm:$0xff]
        %v3461 = vld [vmem:[#allocation14 + $0x2c8] sm:$0xff]
        %v3462 = vld [vmem:[#allocation14 + $0x2d0] sm:$0xff]
        %v3463 = vld [vmem:[#allocation14 + $0x2d8] sm:$0xff]
        %v3464 = vld [vmem:[#allocation14 + $0x2e0] sm:$0xff]
        %v3465 = vld [vmem:[#allocation14 + $0x2e8] sm:$0xff]
        %v3466 = vld [vmem:[#allocation14 + $0x2f0] sm:$0xff]
        %v3467 = vld [vmem:[#allocation14 + $0x2f8] sm:$0xff]
        %v3468 = vld [vmem:[#allocation14 + $0x300] sm:$0xff]
        %v3469 = vld [vmem:[#allocation14 + $0x308] sm:$0xff]
        %v3470 = vld [vmem:[#allocation14 + $0x310] sm:$0xff]
        %v3471 = vld [vmem:[#allocation14 + $0x318] sm:$0xff]
        %v3472 = vld [vmem:[#allocation14 + $0x320] sm:$0xff]
        %v3473 = vld [vmem:[#allocation14 + $0x328] sm:$0xff]
        %v3474 = vld [vmem:[#allocation14 + $0x330] sm:$0xff]
        %v3475 = vld [vmem:[#allocation14 + $0x338] sm:$0xff]
        %v3476 = vld [vmem:[#allocation14 + $0x340] sm:$0xff]
        %v3477 = vld [vmem:[#allocation14 + $0x348] sm:$0xff]
        %v3478 = vld [vmem:[#allocation14 + $0x350] sm:$0xff]
        %v3479 = vld [vmem:[#allocation14 + $0x358] sm:$0xff]
        %v3480 = vld [vmem:[#allocation14 + $0x360] sm:$0xff]
        %v3481 = vld [vmem:[#allocation14 + $0x368] sm:$0xff]
        %v3482 = vld [vmem:[#allocation14 + $0x370] sm:$0xff]
        %v3483 = vld [vmem:[#allocation14 + $0x378] sm:$0xff]
        %v3484 = vld [vmem:[#allocation14 + $0x380] sm:$0xff]
        %v3485 = vld [vmem:[#allocation14 + $0x388] sm:$0xff]
        %v3486 = vld [vmem:[#allocation14 + $0x390] sm:$0xff]
        %v3487 = vld [vmem:[#allocation14 + $0x398] sm:$0xff]
        %v3488 = vld [vmem:[#allocation14 + $0x3a0] sm:$0xff]
        %v3489 = vld [vmem:[#allocation14 + $0x3a8] sm:$0xff]
        %v3490 = vld [vmem:[#allocation14 + $0x3b0] sm:$0xff]
        %v3491 = vld [vmem:[#allocation14 + $0x3b8] sm:$0xff]
        %v3492 = vld [vmem:[#allocation14 + $0x3c0] sm:$0xff]
        %v3493 = vld [vmem:[#allocation14 + $0x3c8] sm:$0xff]
        %v3494 = vld [vmem:[#allocation14 + $0x3d0] sm:$0xff]
        %v3495 = vld [vmem:[#allocation14 + $0x3d8] sm:$0xff]
        %v3496 = vld [vmem:[#allocation14 + $0x3e0] sm:$0xff]
        %v3497 = vld [vmem:[#allocation14 + $0x3e8] sm:$0xff]
        %v3498 = vld [vmem:[#allocation14 + $0x3f0] sm:$0xff]
        %v3499 = vld [vmem:[#allocation14 + $0x3f8] sm:$0xff]
        %s3500 = scalar_lea.vmem [#allocation14], 1024
        %v3501 = vld [vmem:[%s3500] sm:$0xff]
        %v3502 = vld [vmem:[%s3500 + $0x8] sm:$0xff]
        %v3503 = vld [vmem:[%s3500 + $0x10] sm:$0xff]
        %v3504 = vld [vmem:[%s3500 + $0x18] sm:$0xff]
        %v3505 = vld [vmem:[%s3500 + $0x20] sm:$0xff]
        %v3506 = vld [vmem:[%s3500 + $0x28] sm:$0xff]
        %v3507 = vld [vmem:[%s3500 + $0x30] sm:$0xff]
        %v3508 = vld [vmem:[%s3500 + $0x38] sm:$0xff]
        %v3509 = vld [vmem:[%s3500 + $0x40] sm:$0xff]
        %v3510 = vld [vmem:[%s3500 + $0x48] sm:$0xff]
        %v3511 = vld [vmem:[%s3500 + $0x50] sm:$0xff]
        %v3512 = vld [vmem:[%s3500 + $0x58] sm:$0xff]
        %v3513 = vld [vmem:[%s3500 + $0x60] sm:$0xff]
        %v3514 = vld [vmem:[%s3500 + $0x68] sm:$0xff]
        %v3515 = vld [vmem:[%s3500 + $0x70] sm:$0xff]
        %v3516 = vld [vmem:[%s3500 + $0x78] sm:$0xff]
        %v3517 = vld [vmem:[%s3500 + $0x80] sm:$0xff]
        %v3518 = vld [vmem:[%s3500 + $0x88] sm:$0xff]
        %v3519 = vld [vmem:[%s3500 + $0x90] sm:$0xff]
        %v3520 = vld [vmem:[%s3500 + $0x98] sm:$0xff]
        %v3521 = vld [vmem:[%s3500 + $0xa0] sm:$0xff]
        %v3522 = vld [vmem:[%s3500 + $0xa8] sm:$0xff]
        %v3523 = vld [vmem:[%s3500 + $0xb0] sm:$0xff]
        %v3524 = vld [vmem:[%s3500 + $0xb8] sm:$0xff]
        %v3525 = vld [vmem:[%s3500 + $0xc0] sm:$0xff]
        %v3526 = vld [vmem:[%s3500 + $0xc8] sm:$0xff]
        %v3527 = vld [vmem:[%s3500 + $0xd0] sm:$0xff]
        %v3528 = vld [vmem:[%s3500 + $0xd8] sm:$0xff]
        %v3529 = vld [vmem:[%s3500 + $0xe0] sm:$0xff]
        %v3530 = vld [vmem:[%s3500 + $0xe8] sm:$0xff]
        %v3531 = vld [vmem:[%s3500 + $0xf0] sm:$0xff]
        %v3532 = vld [vmem:[%s3500 + $0xf8] sm:$0xff]
        %v3533 = vld [vmem:[%s3500 + $0x100] sm:$0xff]
        %v3534 = vld [vmem:[%s3500 + $0x108] sm:$0xff]
        %v3535 = vld [vmem:[%s3500 + $0x110] sm:$0xff]
        %v3536 = vld [vmem:[%s3500 + $0x118] sm:$0xff]
        %v3537 = vld [vmem:[%s3500 + $0x120] sm:$0xff]
        %v3538 = vld [vmem:[%s3500 + $0x128] sm:$0xff]
        %v3539 = vld [vmem:[%s3500 + $0x130] sm:$0xff]
        %v3540 = vld [vmem:[%s3500 + $0x138] sm:$0xff]
        %v3541 = vld [vmem:[%s3500 + $0x140] sm:$0xff]
        %v3542 = vld [vmem:[%s3500 + $0x148] sm:$0xff]
        %v3543 = vld [vmem:[%s3500 + $0x150] sm:$0xff]
        %v3544 = vld [vmem:[%s3500 + $0x158] sm:$0xff]
        %v3545 = vld [vmem:[%s3500 + $0x160] sm:$0xff]
        %v3546 = vld [vmem:[%s3500 + $0x168] sm:$0xff]
        %v3547 = vld [vmem:[%s3500 + $0x170] sm:$0xff]
        %v3548 = vld [vmem:[%s3500 + $0x178] sm:$0xff]
        %v3549 = vld [vmem:[%s3500 + $0x180] sm:$0xff]
        %v3550 = vld [vmem:[%s3500 + $0x188] sm:$0xff]
        %v3551 = vld [vmem:[%s3500 + $0x190] sm:$0xff]
        %v3552 = vld [vmem:[%s3500 + $0x198] sm:$0xff]
        %v3553 = vld [vmem:[%s3500 + $0x1a0] sm:$0xff]
        %v3554 = vld [vmem:[%s3500 + $0x1a8] sm:$0xff]
        %v3555 = vld [vmem:[%s3500 + $0x1b0] sm:$0xff]
        %v3556 = vld [vmem:[%s3500 + $0x1b8] sm:$0xff]
        %v3557 = vld [vmem:[%s3500 + $0x1c0] sm:$0xff]
        %v3558 = vld [vmem:[%s3500 + $0x1c8] sm:$0xff]
        %v3559 = vld [vmem:[%s3500 + $0x1d0] sm:$0xff]
        %v3560 = vld [vmem:[%s3500 + $0x1d8] sm:$0xff]
        %v3561 = vld [vmem:[%s3500 + $0x1e0] sm:$0xff]
        %v3562 = vld [vmem:[%s3500 + $0x1e8] sm:$0xff]
        %v3563 = vld [vmem:[%s3500 + $0x1f0] sm:$0xff]
        %v3564 = vld [vmem:[%s3500 + $0x1f8] sm:$0xff]
        %v3565 = vld [vmem:[%s3500 + $0x200] sm:$0xff]
        %v3566 = vld [vmem:[%s3500 + $0x208] sm:$0xff]
        %v3567 = vld [vmem:[%s3500 + $0x210] sm:$0xff]
        %v3568 = vld [vmem:[%s3500 + $0x218] sm:$0xff]
        %v3569 = vld [vmem:[%s3500 + $0x220] sm:$0xff]
        %v3570 = vld [vmem:[%s3500 + $0x228] sm:$0xff]
        %v3571 = vld [vmem:[%s3500 + $0x230] sm:$0xff]
        %v3572 = vld [vmem:[%s3500 + $0x238] sm:$0xff]
        %v3573 = vld [vmem:[%s3500 + $0x240] sm:$0xff]
        %v3574 = vld [vmem:[%s3500 + $0x248] sm:$0xff]
        %v3575 = vld [vmem:[%s3500 + $0x250] sm:$0xff]
        %v3576 = vld [vmem:[%s3500 + $0x258] sm:$0xff]
        %v3577 = vld [vmem:[%s3500 + $0x260] sm:$0xff]
        %v3578 = vld [vmem:[%s3500 + $0x268] sm:$0xff]
        %v3579 = vld [vmem:[%s3500 + $0x270] sm:$0xff]
        %v3580 = vld [vmem:[%s3500 + $0x278] sm:$0xff]
        %v3581 = vld [vmem:[%s3500 + $0x280] sm:$0xff]
        %v3582 = vld [vmem:[%s3500 + $0x288] sm:$0xff]
        %v3583 = vld [vmem:[%s3500 + $0x290] sm:$0xff]
        %v3584 = vld [vmem:[%s3500 + $0x298] sm:$0xff]
        %v3585 = vld [vmem:[%s3500 + $0x2a0] sm:$0xff]
        %v3586 = vld [vmem:[%s3500 + $0x2a8] sm:$0xff]
        %v3587 = vld [vmem:[%s3500 + $0x2b0] sm:$0xff]
        %v3588 = vld [vmem:[%s3500 + $0x2b8] sm:$0xff]
        %v3589 = vld [vmem:[%s3500 + $0x2c0] sm:$0xff]
        %v3590 = vld [vmem:[%s3500 + $0x2c8] sm:$0xff]
        %v3591 = vld [vmem:[%s3500 + $0x2d0] sm:$0xff]
        %v3592 = vld [vmem:[%s3500 + $0x2d8] sm:$0xff]
        %v3593 = vld [vmem:[%s3500 + $0x2e0] sm:$0xff]
        %v3594 = vld [vmem:[%s3500 + $0x2e8] sm:$0xff]
        %v3595 = vld [vmem:[%s3500 + $0x2f0] sm:$0xff]
        %v3596 = vld [vmem:[%s3500 + $0x2f8] sm:$0xff]
        %v3597 = vld [vmem:[%s3500 + $0x300] sm:$0xff]
        %v3598 = vld [vmem:[%s3500 + $0x308] sm:$0xff]
        %v3599 = vld [vmem:[%s3500 + $0x310] sm:$0xff]
        %v3600 = vld [vmem:[%s3500 + $0x318] sm:$0xff]
        %v3601 = vld [vmem:[%s3500 + $0x320] sm:$0xff]
        %v3602 = vld [vmem:[%s3500 + $0x328] sm:$0xff]
        %v3603 = vld [vmem:[%s3500 + $0x330] sm:$0xff]
        %v3604 = vld [vmem:[%s3500 + $0x338] sm:$0xff]
        %v3605 = vld [vmem:[%s3500 + $0x340] sm:$0xff]
        %v3606 = vld [vmem:[%s3500 + $0x348] sm:$0xff]
        %v3607 = vld [vmem:[%s3500 + $0x350] sm:$0xff]
        %v3608 = vld [vmem:[%s3500 + $0x358] sm:$0xff]
        %v3609 = vld [vmem:[%s3500 + $0x360] sm:$0xff]
        %v3610 = vld [vmem:[%s3500 + $0x368] sm:$0xff]
        %v3611 = vld [vmem:[%s3500 + $0x370] sm:$0xff]
        %v3612 = vld [vmem:[%s3500 + $0x378] sm:$0xff]
        %v3613 = vld [vmem:[%s3500 + $0x380] sm:$0xff]
        %v3614 = vld [vmem:[%s3500 + $0x388] sm:$0xff]
        %v3615 = vld [vmem:[%s3500 + $0x390] sm:$0xff]
        %v3616 = vld [vmem:[%s3500 + $0x398] sm:$0xff]
        %v3617 = vld [vmem:[%s3500 + $0x3a0] sm:$0xff]
        %v3618 = vld [vmem:[%s3500 + $0x3a8] sm:$0xff]
        %v3619 = vld [vmem:[%s3500 + $0x3b0] sm:$0xff]
        %v3620 = vld [vmem:[%s3500 + $0x3b8] sm:$0xff]
        %v3621 = vld [vmem:[%s3500 + $0x3c0] sm:$0xff]
        %v3622 = vld [vmem:[%s3500 + $0x3c8] sm:$0xff]
        %v3623 = vld [vmem:[%s3500 + $0x3d0] sm:$0xff]
        %v3624 = vld [vmem:[%s3500 + $0x3d8] sm:$0xff]
        %v3625 = vld [vmem:[%s3500 + $0x3e0] sm:$0xff]
        %v3626 = vld [vmem:[%s3500 + $0x3e8] sm:$0xff]
        %v3627 = vld [vmem:[%s3500 + $0x3f0] sm:$0xff]
        %v3628 = vld [vmem:[%s3500 + $0x3f8] sm:$0xff]
        %v3757 = vunpack.c.l.b16 %v3501
        %v3758 = vunpack.c.h.b16 %v3501
        %v3759 = vunpack.c.l.b16 %v3502
        %v3760 = vunpack.c.h.b16 %v3502
        %v3761 = vunpack.c.l.b16 %v3503
        %v3762 = vunpack.c.h.b16 %v3503
        %v3763 = vunpack.c.l.b16 %v3504
        %v3764 = vunpack.c.h.b16 %v3504
        %v3765 = vunpack.c.l.b16 %v3505
        %v3766 = vunpack.c.h.b16 %v3505
        %v3767 = vunpack.c.l.b16 %v3506
        %v3768 = vunpack.c.h.b16 %v3506
        %v3769 = vunpack.c.l.b16 %v3507
        %v3770 = vunpack.c.h.b16 %v3507
        %v3771 = vunpack.c.l.b16 %v3508
        %v3772 = vunpack.c.h.b16 %v3508
        %v3773 = vunpack.c.l.b16 %v3509
        %v3774 = vunpack.c.h.b16 %v3509
        %v3775 = vunpack.c.l.b16 %v3510
        %v3776 = vunpack.c.h.b16 %v3510
        %v3777 = vunpack.c.l.b16 %v3511
        %v3778 = vunpack.c.h.b16 %v3511
        %v3779 = vunpack.c.l.b16 %v3512
        %v3780 = vunpack.c.h.b16 %v3512
        %v3781 = vunpack.c.l.b16 %v3513
        %v3782 = vunpack.c.h.b16 %v3513
        %v3783 = vunpack.c.l.b16 %v3514
        %v3784 = vunpack.c.h.b16 %v3514
        %v3785 = vunpack.c.l.b16 %v3515
        %v3786 = vunpack.c.h.b16 %v3515
        %v3787 = vunpack.c.l.b16 %v3516
        %v3788 = vunpack.c.h.b16 %v3516
        %v3789 = vunpack.c.l.b16 %v3517
        %v3790 = vunpack.c.h.b16 %v3517
        %v3791 = vunpack.c.l.b16 %v3518
        %v3792 = vunpack.c.h.b16 %v3518
        %v3793 = vunpack.c.l.b16 %v3519
        %v3794 = vunpack.c.h.b16 %v3519
        %v3795 = vunpack.c.l.b16 %v3520
        %v3796 = vunpack.c.h.b16 %v3520
        %v3797 = vunpack.c.l.b16 %v3521
        %v3798 = vunpack.c.h.b16 %v3521
        %v3799 = vunpack.c.l.b16 %v3522
        %v3800 = vunpack.c.h.b16 %v3522
        %v3801 = vunpack.c.l.b16 %v3523
        %v3802 = vunpack.c.h.b16 %v3523
        %v3803 = vunpack.c.l.b16 %v3524
        %v3804 = vunpack.c.h.b16 %v3524
        %v3805 = vunpack.c.l.b16 %v3525
        %v3806 = vunpack.c.h.b16 %v3525
        %v3807 = vunpack.c.l.b16 %v3526
        %v3808 = vunpack.c.h.b16 %v3526
        %v3809 = vunpack.c.l.b16 %v3527
        %v3810 = vunpack.c.h.b16 %v3527
        %v3811 = vunpack.c.l.b16 %v3528
        %v3812 = vunpack.c.h.b16 %v3528
        %v3813 = vunpack.c.l.b16 %v3529
        %v3814 = vunpack.c.h.b16 %v3529
        %v3815 = vunpack.c.l.b16 %v3530
        %v3816 = vunpack.c.h.b16 %v3530
        %v3817 = vunpack.c.l.b16 %v3531
        %v3818 = vunpack.c.h.b16 %v3531
        %v3819 = vunpack.c.l.b16 %v3532
        %v3820 = vunpack.c.h.b16 %v3532
        %v3821 = vunpack.c.l.b16 %v3533
        %v3822 = vunpack.c.h.b16 %v3533
        %v3823 = vunpack.c.l.b16 %v3534
        %v3824 = vunpack.c.h.b16 %v3534
        %v3825 = vunpack.c.l.b16 %v3535
        %v3826 = vunpack.c.h.b16 %v3535
        %v3827 = vunpack.c.l.b16 %v3536
        %v3828 = vunpack.c.h.b16 %v3536
        %v3829 = vunpack.c.l.b16 %v3537
        %v3830 = vunpack.c.h.b16 %v3537
        %v3831 = vunpack.c.l.b16 %v3538
        %v3832 = vunpack.c.h.b16 %v3538
        %v3833 = vunpack.c.l.b16 %v3539
        %v3834 = vunpack.c.h.b16 %v3539
        %v3835 = vunpack.c.l.b16 %v3540
        %v3836 = vunpack.c.h.b16 %v3540
        %v3837 = vunpack.c.l.b16 %v3541
        %v3838 = vunpack.c.h.b16 %v3541
        %v3839 = vunpack.c.l.b16 %v3542
        %v3840 = vunpack.c.h.b16 %v3542
        %v3841 = vunpack.c.l.b16 %v3543
        %v3842 = vunpack.c.h.b16 %v3543
        %v3843 = vunpack.c.l.b16 %v3544
        %v3844 = vunpack.c.h.b16 %v3544
        %v3845 = vunpack.c.l.b16 %v3545
        %v3846 = vunpack.c.h.b16 %v3545
        %v3847 = vunpack.c.l.b16 %v3546
        %v3848 = vunpack.c.h.b16 %v3546
        %v3849 = vunpack.c.l.b16 %v3547
        %v3850 = vunpack.c.h.b16 %v3547
        %v3851 = vunpack.c.l.b16 %v3548
        %v3852 = vunpack.c.h.b16 %v3548
        %v3853 = vunpack.c.l.b16 %v3549
        %v3854 = vunpack.c.h.b16 %v3549
        %v3855 = vunpack.c.l.b16 %v3550
        %v3856 = vunpack.c.h.b16 %v3550
        %v3857 = vunpack.c.l.b16 %v3551
        %v3858 = vunpack.c.h.b16 %v3551
        %v3859 = vunpack.c.l.b16 %v3552
        %v3860 = vunpack.c.h.b16 %v3552
        %v3861 = vunpack.c.l.b16 %v3553
        %v3862 = vunpack.c.h.b16 %v3553
        %v3863 = vunpack.c.l.b16 %v3554
        %v3864 = vunpack.c.h.b16 %v3554
        %v3865 = vunpack.c.l.b16 %v3555
        %v3866 = vunpack.c.h.b16 %v3555
        %v3867 = vunpack.c.l.b16 %v3556
        %v3868 = vunpack.c.h.b16 %v3556
        %v3869 = vunpack.c.l.b16 %v3557
        %v3870 = vunpack.c.h.b16 %v3557
        %v3871 = vunpack.c.l.b16 %v3558
        %v3872 = vunpack.c.h.b16 %v3558
        %v3873 = vunpack.c.l.b16 %v3559
        %v3874 = vunpack.c.h.b16 %v3559
        %v3875 = vunpack.c.l.b16 %v3560
        %v3876 = vunpack.c.h.b16 %v3560
        %v3877 = vunpack.c.l.b16 %v3561
        %v3878 = vunpack.c.h.b16 %v3561
        %v3879 = vunpack.c.l.b16 %v3562
        %v3880 = vunpack.c.h.b16 %v3562
        %v3881 = vunpack.c.l.b16 %v3563
        %v3882 = vunpack.c.h.b16 %v3563
        %v3883 = vunpack.c.l.b16 %v3564
        %v3884 = vunpack.c.h.b16 %v3564
        %v3885 = vunpack.c.l.b16 %v3565
        %v3886 = vunpack.c.h.b16 %v3565
        %v3887 = vunpack.c.l.b16 %v3566
        %v3888 = vunpack.c.h.b16 %v3566
        %v3889 = vunpack.c.l.b16 %v3567
        %v3890 = vunpack.c.h.b16 %v3567
        %v3891 = vunpack.c.l.b16 %v3568
        %v3892 = vunpack.c.h.b16 %v3568
        %v3893 = vunpack.c.l.b16 %v3569
        %v3894 = vunpack.c.h.b16 %v3569
        %v3895 = vunpack.c.l.b16 %v3570
        %v3896 = vunpack.c.h.b16 %v3570
        %v3897 = vunpack.c.l.b16 %v3571
        %v3898 = vunpack.c.h.b16 %v3571
        %v3899 = vunpack.c.l.b16 %v3572
        %v3900 = vunpack.c.h.b16 %v3572
        %v3901 = vunpack.c.l.b16 %v3573
        %v3902 = vunpack.c.h.b16 %v3573
        %v3903 = vunpack.c.l.b16 %v3574
        %v3904 = vunpack.c.h.b16 %v3574
        %v3905 = vunpack.c.l.b16 %v3575
        %v3906 = vunpack.c.h.b16 %v3575
        %v3907 = vunpack.c.l.b16 %v3576
        %v3908 = vunpack.c.h.b16 %v3576
        %v3909 = vunpack.c.l.b16 %v3577
        %v3910 = vunpack.c.h.b16 %v3577
        %v3911 = vunpack.c.l.b16 %v3578
        %v3912 = vunpack.c.h.b16 %v3578
        %v3913 = vunpack.c.l.b16 %v3579
        %v3914 = vunpack.c.h.b16 %v3579
        %v3915 = vunpack.c.l.b16 %v3580
        %v3916 = vunpack.c.h.b16 %v3580
        %v3917 = vunpack.c.l.b16 %v3581
        %v3918 = vunpack.c.h.b16 %v3581
        %v3919 = vunpack.c.l.b16 %v3582
        %v3920 = vunpack.c.h.b16 %v3582
        %v3921 = vunpack.c.l.b16 %v3583
        %v3922 = vunpack.c.h.b16 %v3583
        %v3923 = vunpack.c.l.b16 %v3584
        %v3924 = vunpack.c.h.b16 %v3584
        %v3925 = vunpack.c.l.b16 %v3585
        %v3926 = vunpack.c.h.b16 %v3585
        %v3927 = vunpack.c.l.b16 %v3586
        %v3928 = vunpack.c.h.b16 %v3586
        %v3929 = vunpack.c.l.b16 %v3587
        %v3930 = vunpack.c.h.b16 %v3587
        %v3931 = vunpack.c.l.b16 %v3588
        %v3932 = vunpack.c.h.b16 %v3588
        %v3933 = vunpack.c.l.b16 %v3589
        %v3934 = vunpack.c.h.b16 %v3589
        %v3935 = vunpack.c.l.b16 %v3590
        %v3936 = vunpack.c.h.b16 %v3590
        %v3937 = vunpack.c.l.b16 %v3591
        %v3938 = vunpack.c.h.b16 %v3591
        %v3939 = vunpack.c.l.b16 %v3592
        %v3940 = vunpack.c.h.b16 %v3592
        %v3941 = vunpack.c.l.b16 %v3593
        %v3942 = vunpack.c.h.b16 %v3593
        %v3943 = vunpack.c.l.b16 %v3594
        %v3944 = vunpack.c.h.b16 %v3594
        %v3945 = vunpack.c.l.b16 %v3595
        %v3946 = vunpack.c.h.b16 %v3595
        %v3947 = vunpack.c.l.b16 %v3596
        %v3948 = vunpack.c.h.b16 %v3596
        %v3949 = vunpack.c.l.b16 %v3597
        %v3950 = vunpack.c.h.b16 %v3597
        %v3951 = vunpack.c.l.b16 %v3598
        %v3952 = vunpack.c.h.b16 %v3598
        %v3953 = vunpack.c.l.b16 %v3599
        %v3954 = vunpack.c.h.b16 %v3599
        %v3955 = vunpack.c.l.b16 %v3600
        %v3956 = vunpack.c.h.b16 %v3600
        %v3957 = vunpack.c.l.b16 %v3601
        %v3958 = vunpack.c.h.b16 %v3601
        %v3959 = vunpack.c.l.b16 %v3602
        %v3960 = vunpack.c.h.b16 %v3602
        %v3961 = vunpack.c.l.b16 %v3603
        %v3962 = vunpack.c.h.b16 %v3603
        %v3963 = vunpack.c.l.b16 %v3604
        %v3964 = vunpack.c.h.b16 %v3604
        %v3965 = vunpack.c.l.b16 %v3605
        %v3966 = vunpack.c.h.b16 %v3605
        %v3967 = vunpack.c.l.b16 %v3606
        %v3968 = vunpack.c.h.b16 %v3606
        %v3969 = vunpack.c.l.b16 %v3607
        %v3970 = vunpack.c.h.b16 %v3607
        %v3971 = vunpack.c.l.b16 %v3608
        %v3972 = vunpack.c.h.b16 %v3608
        %v3973 = vunpack.c.l.b16 %v3609
        %v3974 = vunpack.c.h.b16 %v3609
        %v3975 = vunpack.c.l.b16 %v3610
        %v3976 = vunpack.c.h.b16 %v3610
        %v3977 = vunpack.c.l.b16 %v3611
        %v3978 = vunpack.c.h.b16 %v3611
        %v3979 = vunpack.c.l.b16 %v3612
        %v3980 = vunpack.c.h.b16 %v3612
        %v3981 = vunpack.c.l.b16 %v3613
        %v3982 = vunpack.c.h.b16 %v3613
        %v3983 = vunpack.c.l.b16 %v3614
        %v3984 = vunpack.c.h.b16 %v3614
        %v3985 = vunpack.c.l.b16 %v3615
        %v3986 = vunpack.c.h.b16 %v3615
        %v3987 = vunpack.c.l.b16 %v3616
        %v3988 = vunpack.c.h.b16 %v3616
        %v3989 = vunpack.c.l.b16 %v3617
        %v3990 = vunpack.c.h.b16 %v3617
        %v3991 = vunpack.c.l.b16 %v3618
        %v3992 = vunpack.c.h.b16 %v3618
        %v3993 = vunpack.c.l.b16 %v3619
        %v3994 = vunpack.c.h.b16 %v3619
        %v3995 = vunpack.c.l.b16 %v3620
        %v3996 = vunpack.c.h.b16 %v3620
        %v3997 = vunpack.c.l.b16 %v3621
        %v3998 = vunpack.c.h.b16 %v3621
        %v3999 = vunpack.c.l.b16 %v3622
        %v4000 = vunpack.c.h.b16 %v3622
        %v4001 = vunpack.c.l.b16 %v3623
        %v4002 = vunpack.c.h.b16 %v3623
        %v4003 = vunpack.c.l.b16 %v3624
        %v4004 = vunpack.c.h.b16 %v3624
        %v4005 = vunpack.c.l.b16 %v3625
        %v4006 = vunpack.c.h.b16 %v3625
        %v4007 = vunpack.c.l.b16 %v3626
        %v4008 = vunpack.c.h.b16 %v3626
        %v4009 = vunpack.c.l.b16 %v3627
        %v4010 = vunpack.c.h.b16 %v3627
        %v4011 = vunpack.c.l.b16 %v3628
        %v4012 = vunpack.c.h.b16 %v3628
        %v4013 = vpack.c.b16 %v3761, %v3757
        %v4014 = vpack.c.b16 %v3762, %v3758
        %v4015 = vpack.c.b16 %v3763, %v3759
        %v4016 = vpack.c.b16 %v3764, %v3760
        %v4017 = vpack.c.b16 %v3769, %v3765
        %v4018 = vpack.c.b16 %v3770, %v3766
        %v4019 = vpack.c.b16 %v3771, %v3767
        %v4020 = vpack.c.b16 %v3772, %v3768
        %v4021 = vpack.c.b16 %v3777, %v3773
        %v4022 = vpack.c.b16 %v3778, %v3774
        %v4023 = vpack.c.b16 %v3779, %v3775
        %v4024 = vpack.c.b16 %v3780, %v3776
        %v4025 = vpack.c.b16 %v3785, %v3781
        %v4026 = vpack.c.b16 %v3786, %v3782
        %v4027 = vpack.c.b16 %v3787, %v3783
        %v4028 = vpack.c.b16 %v3788, %v3784
        %v4029 = vpack.c.b16 %v3793, %v3789
        %v4030 = vpack.c.b16 %v3794, %v3790
        %v4031 = vpack.c.b16 %v3795, %v3791
        %v4032 = vpack.c.b16 %v3796, %v3792
        %v4033 = vpack.c.b16 %v3801, %v3797
        %v4034 = vpack.c.b16 %v3802, %v3798
        %v4035 = vpack.c.b16 %v3803, %v3799
        %v4036 = vpack.c.b16 %v3804, %v3800
        %v4037 = vpack.c.b16 %v3809, %v3805
        %v4038 = vpack.c.b16 %v3810, %v3806
        %v4039 = vpack.c.b16 %v3811, %v3807
        %v4040 = vpack.c.b16 %v3812, %v3808
        %v4041 = vpack.c.b16 %v3817, %v3813
        %v4042 = vpack.c.b16 %v3818, %v3814
        %v4043 = vpack.c.b16 %v3819, %v3815
        %v4044 = vpack.c.b16 %v3820, %v3816
        %v4045 = vpack.c.b16 %v3825, %v3821
        %v4046 = vpack.c.b16 %v3826, %v3822
        %v4047 = vpack.c.b16 %v3827, %v3823
        %v4048 = vpack.c.b16 %v3828, %v3824
        %v4049 = vpack.c.b16 %v3833, %v3829
        %v4050 = vpack.c.b16 %v3834, %v3830
        %v4051 = vpack.c.b16 %v3835, %v3831
        %v4052 = vpack.c.b16 %v3836, %v3832
        %v4053 = vpack.c.b16 %v3841, %v3837
        %v4054 = vpack.c.b16 %v3842, %v3838
        %v4055 = vpack.c.b16 %v3843, %v3839
        %v4056 = vpack.c.b16 %v3844, %v3840
        %v4057 = vpack.c.b16 %v3849, %v3845
        %v4058 = vpack.c.b16 %v3850, %v3846
        %v4059 = vpack.c.b16 %v3851, %v3847
        %v4060 = vpack.c.b16 %v3852, %v3848
        %v4061 = vpack.c.b16 %v3857, %v3853
        %v4062 = vpack.c.b16 %v3858, %v3854
        %v4063 = vpack.c.b16 %v3859, %v3855
        %v4064 = vpack.c.b16 %v3860, %v3856
        %v4065 = vpack.c.b16 %v3865, %v3861
        %v4066 = vpack.c.b16 %v3866, %v3862
        %v4067 = vpack.c.b16 %v3867, %v3863
        %v4068 = vpack.c.b16 %v3868, %v3864
        %v4069 = vpack.c.b16 %v3873, %v3869
        %v4070 = vpack.c.b16 %v3874, %v3870
        %v4071 = vpack.c.b16 %v3875, %v3871
        %v4072 = vpack.c.b16 %v3876, %v3872
        %v4073 = vpack.c.b16 %v3881, %v3877
        %v4074 = vpack.c.b16 %v3882, %v3878
        %v4075 = vpack.c.b16 %v3883, %v3879
        %v4076 = vpack.c.b16 %v3884, %v3880
        %v4077 = vpack.c.b16 %v3889, %v3885
        %v4078 = vpack.c.b16 %v3890, %v3886
        %v4079 = vpack.c.b16 %v3891, %v3887
        %v4080 = vpack.c.b16 %v3892, %v3888
        %v4081 = vpack.c.b16 %v3897, %v3893
        %v4082 = vpack.c.b16 %v3898, %v3894
        %v4083 = vpack.c.b16 %v3899, %v3895
        %v4084 = vpack.c.b16 %v3900, %v3896
        %v4085 = vpack.c.b16 %v3905, %v3901
        %v4086 = vpack.c.b16 %v3906, %v3902
        %v4087 = vpack.c.b16 %v3907, %v3903
        %v4088 = vpack.c.b16 %v3908, %v3904
        %v4089 = vpack.c.b16 %v3913, %v3909
        %v4090 = vpack.c.b16 %v3914, %v3910
        %v4091 = vpack.c.b16 %v3915, %v3911
        %v4092 = vpack.c.b16 %v3916, %v3912
        %v4093 = vpack.c.b16 %v3921, %v3917
        %v4094 = vpack.c.b16 %v3922, %v3918
        %v4095 = vpack.c.b16 %v3923, %v3919
        %v4096 = vpack.c.b16 %v3924, %v3920
        %v4097 = vpack.c.b16 %v3929, %v3925
        %v4098 = vpack.c.b16 %v3930, %v3926
        %v4099 = vpack.c.b16 %v3931, %v3927
        %v4100 = vpack.c.b16 %v3932, %v3928
        %v4101 = vpack.c.b16 %v3937, %v3933
        %v4102 = vpack.c.b16 %v3938, %v3934
        %v4103 = vpack.c.b16 %v3939, %v3935
        %v4104 = vpack.c.b16 %v3940, %v3936
        %v4105 = vpack.c.b16 %v3945, %v3941
        %v4106 = vpack.c.b16 %v3946, %v3942
        %v4107 = vpack.c.b16 %v3947, %v3943
        %v4108 = vpack.c.b16 %v3948, %v3944
        %v4109 = vpack.c.b16 %v3953, %v3949
        %v4110 = vpack.c.b16 %v3954, %v3950
        %v4111 = vpack.c.b16 %v3955, %v3951
        %v4112 = vpack.c.b16 %v3956, %v3952
        %v4113 = vpack.c.b16 %v3961, %v3957
        %v4114 = vpack.c.b16 %v3962, %v3958
        %v4115 = vpack.c.b16 %v3963, %v3959
        %v4116 = vpack.c.b16 %v3964, %v3960
        %v4117 = vpack.c.b16 %v3969, %v3965
        %v4118 = vpack.c.b16 %v3970, %v3966
        %v4119 = vpack.c.b16 %v3971, %v3967
        %v4120 = vpack.c.b16 %v3972, %v3968
        %v4121 = vpack.c.b16 %v3977, %v3973
        %v4122 = vpack.c.b16 %v3978, %v3974
        %v4123 = vpack.c.b16 %v3979, %v3975
        %v4124 = vpack.c.b16 %v3980, %v3976
        %v4125 = vpack.c.b16 %v3985, %v3981
        %v4126 = vpack.c.b16 %v3986, %v3982
        %v4127 = vpack.c.b16 %v3987, %v3983
        %v4128 = vpack.c.b16 %v3988, %v3984
        %v4129 = vpack.c.b16 %v3993, %v3989
        %v4130 = vpack.c.b16 %v3994, %v3990
        %v4131 = vpack.c.b16 %v3995, %v3991
        %v4132 = vpack.c.b16 %v3996, %v3992
        %v4133 = vpack.c.b16 %v4001, %v3997
        %v4134 = vpack.c.b16 %v4002, %v3998
        %v4135 = vpack.c.b16 %v4003, %v3999
        %v4136 = vpack.c.b16 %v4004, %v4000
        %v4137 = vpack.c.b16 %v4009, %v4005
        %v4138 = vpack.c.b16 %v4010, %v4006
        %v4139 = vpack.c.b16 %v4011, %v4007
        %v4140 = vpack.c.b16 %v4012, %v4008
        %4269 = vmatprep.subr.bf16.mxu0 %v4014
        %4270 = vmatpush1.bf16.msra.mxu0 %v4013
        %4271 = vmatprep.subr.bf16.mxu0 %v4018
        %4272 = vmatpush1.bf16.msra.mxu0 %v4017
        %4273 = vmatprep.subr.bf16.mxu0 %v4022
        %4274 = vmatpush1.bf16.msra.mxu0 %v4021
        %4275 = vmatprep.subr.bf16.mxu0 %v4026
        %4276 = vmatpush1.bf16.msra.mxu0 %v4025
        %4277 = vmatprep.subr.bf16.mxu0 %v4030
        %4278 = vmatpush1.bf16.msra.mxu0 %v4029
        %4279 = vmatprep.subr.bf16.mxu0 %v4034
        %4280 = vmatpush1.bf16.msra.mxu0 %v4033
        %4281 = vmatprep.subr.bf16.mxu0 %v4038
        %4282 = vmatpush1.bf16.msra.mxu0 %v4037
        %4283 = vmatprep.subr.bf16.mxu0 %v4042
        %4284 = vmatpush1.bf16.msra.mxu0 %v4041
        %4285 = vmatprep.subr.bf16.mxu0 %v4046
        %4286 = vmatpush1.bf16.msra.mxu0 %v4045
        %4287 = vmatprep.subr.bf16.mxu0 %v4050
        %4288 = vmatpush1.bf16.msra.mxu0 %v4049
        %4289 = vmatprep.subr.bf16.mxu0 %v4054
        %4290 = vmatpush1.bf16.msra.mxu0 %v4053
        %4291 = vmatprep.subr.bf16.mxu0 %v4058
        %4292 = vmatpush1.bf16.msra.mxu0 %v4057
        %4293 = vmatprep.subr.bf16.mxu0 %v4062
        %4294 = vmatpush1.bf16.msra.mxu0 %v4061
        %4295 = vmatprep.subr.bf16.mxu0 %v4066
        %4296 = vmatpush1.bf16.msra.mxu0 %v4065
        %4297 = vmatprep.subr.bf16.mxu0 %v4070
        %4298 = vmatpush1.bf16.msra.mxu0 %v4069
        %4299 = vmatprep.subr.bf16.mxu0 %v4074
        %4300 = vmatpush1.bf16.msra.mxu0 %v4073
        %4301 = vmatprep.mubr.bf16.mxu0 %v3033
        %4302 = vmatmul.mubr.bf16.gmra.mrb[0].mxu0 %v3032
        %v4303 = vpop.f32.mrb[0].mxu0
        %v4304 = vadd.f32 0.0, %v4303
        %v4305 = vpop.f32.mrb[0].mxu0
        %v4306 = vadd.f32 0.0, %v4305
        %v4307 = vpop.f32.mrb[0].mxu0
        %v4308 = vadd.f32 0.0, %v4307
        %v4309 = vpop.f32.mrb[0].mxu0
        %v4310 = vadd.f32 0.0, %v4309
        %4311 = vmatprep.mubr.bf16.mxu0 %v3037
        %4312 = vmatmul.mubr.bf16.gmra.mrb[0].mxu0 %v3036
        %v4313 = vpop.f32.mrb[0].mxu0
        %v4314 = vadd.f32 0.0, %v4313
        %v4315 = vpop.f32.mrb[0].mxu0
        %v4316 = vadd.f32 0.0, %v4315
        %v4317 = vpop.f32.mrb[0].mxu0
        %v4318 = vadd.f32 0.0, %v4317
        %v4319 = vpop.f32.mrb[0].mxu0
        %v4320 = vadd.f32 0.0, %v4319
        %4321 = vmatprep.mubr.bf16.mxu0 %v3041
        %4322 = vmatmul.mubr.bf16.gmra.mrb[0].mxu0 %v3040
        %v4323 = vpop.f32.mrb[0].mxu0
        %v4324 = vadd.f32 0.0, %v4323
        %v4325 = vpop.f32.mrb[0].mxu0
        %v4326 = vadd.f32 0.0, %v4325
        %v4327 = vpop.f32.mrb[0].mxu0
        %v4328 = vadd.f32 0.0, %v4327
        %v4329 = vpop.f32.mrb[0].mxu0
        %v4330 = vadd.f32 0.0, %v4329
        %4331 = vmatprep.mubr.bf16.mxu0 %v3045
        %4332 = vmatmul.mubr.bf16.gmra.mrb[0].mxu0 %v3044
        %v4333 = vpop.f32.mrb[0].mxu0
        %v4334 = vadd.f32 0.0, %v4333
        %v4335 = vpop.f32.mrb[0].mxu0
        %v4336 = vadd.f32 0.0, %v4335
        %v4337 = vpop.f32.mrb[0].mxu0
        %v4338 = vadd.f32 0.0, %v4337
        %v4339 = vpop.f32.mrb[0].mxu0
        %v4340 = vadd.f32 0.0, %v4339
        %4341 = vdwg.mxu0
        %4342 = vmatprep.subr.bf16.mxu0 %v4078
        %4343 = vmatpush1.bf16.msra.mxu0 %v4077
        %4344 = vmatprep.subr.bf16.mxu0 %v4082
        %4345 = vmatpush1.bf16.msra.mxu0 %v4081
        %4346 = vmatprep.subr.bf16.mxu0 %v4086
        %4347 = vmatpush1.bf16.msra.mxu0 %v4085
        %4348 = vmatprep.subr.bf16.mxu0 %v4090
        %4349 = vmatpush1.bf16.msra.mxu0 %v4089
        %4350 = vmatprep.subr.bf16.mxu0 %v4094
        %4351 = vmatpush1.bf16.msra.mxu0 %v4093
        %4352 = vmatprep.subr.bf16.mxu0 %v4098
        %4353 = vmatpush1.bf16.msra.mxu0 %v4097
        %4354 = vmatprep.subr.bf16.mxu0 %v4102
        %4355 = vmatpush1.bf16.msra.mxu0 %v4101
        %4356 = vmatprep.subr.bf16.mxu0 %v4106
        %4357 = vmatpush1.bf16.msra.mxu0 %v4105
        %4358 = vmatprep.subr.bf16.mxu0 %v4110
        %4359 = vmatpush1.bf16.msra.mxu0 %v4109
        %4360 = vmatprep.subr.bf16.mxu0 %v4114
        %4361 = vmatpush1.bf16.msra.mxu0 %v4113
        %4362 = vmatprep.subr.bf16.mxu0 %v4118
        %4363 = vmatpush1.bf16.msra.mxu0 %v4117
        %4364 = vmatprep.subr.bf16.mxu0 %v4122
        %4365 = vmatpush1.bf16.msra.mxu0 %v4121
        %4366 = vmatprep.subr.bf16.mxu0 %v4126
        %4367 = vmatpush1.bf16.msra.mxu0 %v4125
        %4368 = vmatprep.subr.bf16.mxu0 %v4130
        %4369 = vmatpush1.bf16.msra.mxu0 %v4129
        %4370 = vmatprep.subr.bf16.mxu0 %v4134
        %4371 = vmatpush1.bf16.msra.mxu0 %v4133
        %4372 = vmatprep.subr.bf16.mxu0 %v4138
        %4373 = vmatpush1.bf16.msra.mxu0 %v4137
        %4374 = vmatprep.mubr.bf16.mxu0 %v3035
        %4375 = vmatmul.mubr.bf16.gmra.mrb[0].mxu0 %v3034
        %v4376 = vpop.f32.mrb[0].mxu0
        %v4377 = vadd.f32 %v4304, %v4376
        %v4378 = vpop.f32.mrb[0].mxu0
        %v4379 = vadd.f32 %v4306, %v4378
        %v4380 = vpop.f32.mrb[0].mxu0
        %v4381 = vadd.f32 %v4308, %v4380
        %v4382 = vpop.f32.mrb[0].mxu0
        %v4383 = vadd.f32 %v4310, %v4382
        %4384 = vmatprep.mubr.bf16.mxu0 %v3039
        %4385 = vmatmul.mubr.bf16.gmra.mrb[0].mxu0 %v3038
        %v4386 = vpop.f32.mrb[0].mxu0
        %v4387 = vadd.f32 %v4314, %v4386
        %v4388 = vpop.f32.mrb[0].mxu0
        %v4389 = vadd.f32 %v4316, %v4388
        %v4390 = vpop.f32.mrb[0].mxu0
        %v4391 = vadd.f32 %v4318, %v4390
        %v4392 = vpop.f32.mrb[0].mxu0
        %v4393 = vadd.f32 %v4320, %v4392
        %4394 = vmatprep.mubr.bf16.mxu0 %v3043
        %4395 = vmatmul.mubr.bf16.gmra.mrb[0].mxu0 %v3042
        %v4396 = vpop.f32.mrb[0].mxu0
        %v4397 = vadd.f32 %v4324, %v4396
        %v4398 = vpop.f32.mrb[0].mxu0
        %v4399 = vadd.f32 %v4326, %v4398
        %v4400 = vpop.f32.mrb[0].mxu0
        %v4401 = vadd.f32 %v4328, %v4400
        %v4402 = vpop.f32.mrb[0].mxu0
        %v4403 = vadd.f32 %v4330, %v4402
        %4404 = vmatprep.mubr.bf16.mxu0 %v3047
        %4405 = vmatmul.mubr.bf16.gmra.mrb[0].mxu0 %v3046
        %v4406 = vpop.f32.mrb[0].mxu0
        %v4407 = vadd.f32 %v4334, %v4406
        %v4408 = vpop.f32.mrb[0].mxu0
        %v4409 = vadd.f32 %v4336, %v4408
        %v4410 = vpop.f32.mrb[0].mxu0
        %v4411 = vadd.f32 %v4338, %v4410
        %v4412 = vpop.f32.mrb[0].mxu0
        %v4413 = vadd.f32 %v4340, %v4412
        %4414 = vdwg.mxu0
        %4415 = vmatprep.subr.bf16.mxu0 %v4016
        %4416 = vmatpush1.bf16.msra.mxu0 %v4015
        %4417 = vmatprep.subr.bf16.mxu0 %v4020
        %4418 = vmatpush1.bf16.msra.mxu0 %v4019
        %4419 = vmatprep.subr.bf16.mxu0 %v4024
        %4420 = vmatpush1.bf16.msra.mxu0 %v4023
        %4421 = vmatprep.subr.bf16.mxu0 %v4028
        %4422 = vmatpush1.bf16.msra.mxu0 %v4027
        %4423 = vmatprep.subr.bf16.mxu0 %v4032
        %4424 = vmatpush1.bf16.msra.mxu0 %v4031
        %4425 = vmatprep.subr.bf16.mxu0 %v4036
        %4426 = vmatpush1.bf16.msra.mxu0 %v4035
        %4427 = vmatprep.subr.bf16.mxu0 %v4040
        %4428 = vmatpush1.bf16.msra.mxu0 %v4039
        %4429 = vmatprep.subr.bf16.mxu0 %v4044
        %4430 = vmatpush1.bf16.msra.mxu0 %v4043
        %4431 = vmatprep.subr.bf16.mxu0 %v4048
        %4432 = vmatpush1.bf16.msra.mxu0 %v4047
        %4433 = vmatprep.subr.bf16.mxu0 %v4052
        %4434 = vmatpush1.bf16.msra.mxu0 %v4051
        %4435 = vmatprep.subr.bf16.mxu0 %v4056
        %4436 = vmatpush1.bf16.msra.mxu0 %v4055
        %4437 = vmatprep.subr.bf16.mxu0 %v4060
        %4438 = vmatpush1.bf16.msra.mxu0 %v4059
        %4439 = vmatprep.subr.bf16.mxu0 %v4064
        %4440 = vmatpush1.bf16.msra.mxu0 %v4063
        %4441 = vmatprep.subr.bf16.mxu0 %v4068
        %4442 = vmatpush1.bf16.msra.mxu0 %v4067
        %4443 = vmatprep.subr.bf16.mxu0 %v4072
        %4444 = vmatpush1.bf16.msra.mxu0 %v4071
        %4445 = vmatprep.subr.bf16.mxu0 %v4076
        %4446 = vmatpush1.bf16.msra.mxu0 %v4075
        %4447 = vmatprep.mubr.bf16.mxu0 %v3033
        %4448 = vmatmul.mubr.bf16.gmra.mrb[0].mxu0 %v3032
        %v4449 = vpop.f32.mrb[0].mxu0
        %v4450 = vadd.f32 0.0, %v4449
        %v4451 = vpop.f32.mrb[0].mxu0
        %v4452 = vadd.f32 0.0, %v4451
        %v4453 = vpop.f32.mrb[0].mxu0
        %v4454 = vadd.f32 0.0, %v4453
        %v4455 = vpop.f32.mrb[0].mxu0
        %v4456 = vadd.f32 0.0, %v4455
        %4457 = vmatprep.mubr.bf16.mxu0 %v3037
        %4458 = vmatmul.mubr.bf16.gmra.mrb[0].mxu0 %v3036
        %v4459 = vpop.f32.mrb[0].mxu0
        %v4460 = vadd.f32 0.0, %v4459
        %v4461 = vpop.f32.mrb[0].mxu0
        %v4462 = vadd.f32 0.0, %v4461
        %v4463 = vpop.f32.mrb[0].mxu0
        %v4464 = vadd.f32 0.0, %v4463
        %v4465 = vpop.f32.mrb[0].mxu0
        %v4466 = vadd.f32 0.0, %v4465
        %4467 = vmatprep.mubr.bf16.mxu0 %v3041
        %4468 = vmatmul.mubr.bf16.gmra.mrb[0].mxu0 %v3040
        %v4469 = vpop.f32.mrb[0].mxu0
        %v4470 = vadd.f32 0.0, %v4469
        %v4471 = vpop.f32.mrb[0].mxu0
        %v4472 = vadd.f32 0.0, %v4471
        %v4473 = vpop.f32.mrb[0].mxu0
        %v4474 = vadd.f32 0.0, %v4473
        %v4475 = vpop.f32.mrb[0].mxu0
        %v4476 = vadd.f32 0.0, %v4475
        %4477 = vmatprep.mubr.bf16.mxu0 %v3045
        %4478 = vmatmul.mubr.bf16.gmra.mrb[0].mxu0 %v3044
        %v4479 = vpop.f32.mrb[0].mxu0
        %v4480 = vadd.f32 0.0, %v4479
        %v4481 = vpop.f32.mrb[0].mxu0
        %v4482 = vadd.f32 0.0, %v4481
        %v4483 = vpop.f32.mrb[0].mxu0
        %v4484 = vadd.f32 0.0, %v4483
        %v4485 = vpop.f32.mrb[0].mxu0
        %v4486 = vadd.f32 0.0, %v4485
        %4487 = vdwg.mxu0
        %4488 = vmatprep.subr.bf16.mxu0 %v4080
        %4489 = vmatpush1.bf16.msra.mxu0 %v4079
        %4490 = vmatprep.subr.bf16.mxu0 %v4084
        %4491 = vmatpush1.bf16.msra.mxu0 %v4083
        %4492 = vmatprep.subr.bf16.mxu0 %v4088
        %4493 = vmatpush1.bf16.msra.mxu0 %v4087
        %4494 = vmatprep.subr.bf16.mxu0 %v4092
        %4495 = vmatpush1.bf16.msra.mxu0 %v4091
        %4496 = vmatprep.subr.bf16.mxu0 %v4096
        %4497 = vmatpush1.bf16.msra.mxu0 %v4095
        %4498 = vmatprep.subr.bf16.mxu0 %v4100
        %4499 = vmatpush1.bf16.msra.mxu0 %v4099
        %4500 = vmatprep.subr.bf16.mxu0 %v4104
        %4501 = vmatpush1.bf16.msra.mxu0 %v4103
        %4502 = vmatprep.subr.bf16.mxu0 %v4108
        %4503 = vmatpush1.bf16.msra.mxu0 %v4107
        %4504 = vmatprep.subr.bf16.mxu0 %v4112
        %4505 = vmatpush1.bf16.msra.mxu0 %v4111
        %4506 = vmatprep.subr.bf16.mxu0 %v4116
        %4507 = vmatpush1.bf16.msra.mxu0 %v4115
        %4508 = vmatprep.subr.bf16.mxu0 %v4120
        %4509 = vmatpush1.bf16.msra.mxu0 %v4119
        %4510 = vmatprep.subr.bf16.mxu0 %v4124
        %4511 = vmatpush1.bf16.msra.mxu0 %v4123
        %4512 = vmatprep.subr.bf16.mxu0 %v4128
        %4513 = vmatpush1.bf16.msra.mxu0 %v4127
        %4514 = vmatprep.subr.bf16.mxu0 %v4132
        %4515 = vmatpush1.bf16.msra.mxu0 %v4131
        %4516 = vmatprep.subr.bf16.mxu0 %v4136
        %4517 = vmatpush1.bf16.msra.mxu0 %v4135
        %4518 = vmatprep.subr.bf16.mxu0 %v4140
        %4519 = vmatpush1.bf16.msra.mxu0 %v4139
        %4520 = vmatprep.mubr.bf16.mxu0 %v3035
        %4521 = vmatmul.mubr.bf16.gmra.mrb[0].mxu0 %v3034
        %v4522 = vpop.f32.mrb[0].mxu0
        %v4523 = vadd.f32 %v4450, %v4522
        %v4524 = vpop.f32.mrb[0].mxu0
        %v4525 = vadd.f32 %v4452, %v4524
        %v4526 = vpop.f32.mrb[0].mxu0
        %v4527 = vadd.f32 %v4454, %v4526
        %v4528 = vpop.f32.mrb[0].mxu0
        %v4529 = vadd.f32 %v4456, %v4528
        %4530 = vmatprep.mubr.bf16.mxu0 %v3039
        %4531 = vmatmul.mubr.bf16.gmra.mrb[0].mxu0 %v3038
        %v4532 = vpop.f32.mrb[0].mxu0
        %v4533 = vadd.f32 %v4460, %v4532
        %v4534 = vpop.f32.mrb[0].mxu0
        %v4535 = vadd.f32 %v4462, %v4534
        %v4536 = vpop.f32.mrb[0].mxu0
        %v4537 = vadd.f32 %v4464, %v4536
        %v4538 = vpop.f32.mrb[0].mxu0
        %v4539 = vadd.f32 %v4466, %v4538
        %4540 = vmatprep.mubr.bf16.mxu0 %v3043
        %4541 = vmatmul.mubr.bf16.gmra.mrb[0].mxu0 %v3042
        %v4542 = vpop.f32.mrb[0].mxu0
        %v4543 = vadd.f32 %v4470, %v4542
        %v4544 = vpop.f32.mrb[0].mxu0
        %v4545 = vadd.f32 %v4472, %v4544
        %v4546 = vpop.f32.mrb[0].mxu0
        %v4547 = vadd.f32 %v4474, %v4546
        %v4548 = vpop.f32.mrb[0].mxu0
        %v4549 = vadd.f32 %v4476, %v4548
        %4550 = vmatprep.mubr.bf16.mxu0 %v3047
        %4551 = vmatmul.mubr.bf16.gmra.mrb[0].mxu0 %v3046
        %v4552 = vpop.f32.mrb[0].mxu0
        %v4553 = vadd.f32 %v4480, %v4552
        %v4554 = vpop.f32.mrb[0].mxu0
        %v4555 = vadd.f32 %v4482, %v4554
        %v4556 = vpop.f32.mrb[0].mxu0
        %v4557 = vadd.f32 %v4484, %v4556
        %v4558 = vpop.f32.mrb[0].mxu0
        %v4559 = vadd.f32 %v4486, %v4558
        %4560 = vdwg.mxu0
        %v4689 = vunpack.c.l.b16 %v3372
        %v4690 = vunpack.c.h.b16 %v3372
        %v4691 = vunpack.c.l.b16 %v3373
        %v4692 = vunpack.c.h.b16 %v3373
        %v4693 = vunpack.c.l.b16 %v3374
        %v4694 = vunpack.c.h.b16 %v3374
        %v4695 = vunpack.c.l.b16 %v3375
        %v4696 = vunpack.c.h.b16 %v3375
        %v4697 = vunpack.c.l.b16 %v3376
        %v4698 = vunpack.c.h.b16 %v3376
        %v4699 = vunpack.c.l.b16 %v3377
        %v4700 = vunpack.c.h.b16 %v3377
        %v4701 = vunpack.c.l.b16 %v3378
        %v4702 = vunpack.c.h.b16 %v3378
        %v4703 = vunpack.c.l.b16 %v3379
        %v4704 = vunpack.c.h.b16 %v3379
        %v4705 = vunpack.c.l.b16 %v3380
        %v4706 = vunpack.c.h.b16 %v3380
        %v4707 = vunpack.c.l.b16 %v3381
        %v4708 = vunpack.c.h.b16 %v3381
        %v4709 = vunpack.c.l.b16 %v3382
        %v4710 = vunpack.c.h.b16 %v3382
        %v4711 = vunpack.c.l.b16 %v3383
        %v4712 = vunpack.c.h.b16 %v3383
        %v4713 = vunpack.c.l.b16 %v3384
        %v4714 = vunpack.c.h.b16 %v3384
        %v4715 = vunpack.c.l.b16 %v3385
        %v4716 = vunpack.c.h.b16 %v3385
        %v4717 = vunpack.c.l.b16 %v3386
        %v4718 = vunpack.c.h.b16 %v3386
        %v4719 = vunpack.c.l.b16 %v3387
        %v4720 = vunpack.c.h.b16 %v3387
        %v4721 = vunpack.c.l.b16 %v3388
        %v4722 = vunpack.c.h.b16 %v3388
        %v4723 = vunpack.c.l.b16 %v3389
        %v4724 = vunpack.c.h.b16 %v3389
        %v4725 = vunpack.c.l.b16 %v3390
        %v4726 = vunpack.c.h.b16 %v3390
        %v4727 = vunpack.c.l.b16 %v3391
        %v4728 = vunpack.c.h.b16 %v3391
        %v4729 = vunpack.c.l.b16 %v3392
        %v4730 = vunpack.c.h.b16 %v3392
        %v4731 = vunpack.c.l.b16 %v3393
        %v4732 = vunpack.c.h.b16 %v3393
        %v4733 = vunpack.c.l.b16 %v3394
        %v4734 = vunpack.c.h.b16 %v3394
        %v4735 = vunpack.c.l.b16 %v3395
        %v4736 = vunpack.c.h.b16 %v3395
        %v4737 = vunpack.c.l.b16 %v3396
        %v4738 = vunpack.c.h.b16 %v3396
        %v4739 = vunpack.c.l.b16 %v3397
        %v4740 = vunpack.c.h.b16 %v3397
        %v4741 = vunpack.c.l.b16 %v3398
        %v4742 = vunpack.c.h.b16 %v3398
        %v4743 = vunpack.c.l.b16 %v3399
        %v4744 = vunpack.c.h.b16 %v3399
        %v4745 = vunpack.c.l.b16 %v3400
        %v4746 = vunpack.c.h.b16 %v3400
        %v4747 = vunpack.c.l.b16 %v3401
        %v4748 = vunpack.c.h.b16 %v3401
        %v4749 = vunpack.c.l.b16 %v3402
        %v4750 = vunpack.c.h.b16 %v3402
        %v4751 = vunpack.c.l.b16 %v3403
        %v4752 = vunpack.c.h.b16 %v3403
        %v4753 = vunpack.c.l.b16 %v3404
        %v4754 = vunpack.c.h.b16 %v3404
        %v4755 = vunpack.c.l.b16 %v3405
        %v4756 = vunpack.c.h.b16 %v3405
        %v4757 = vunpack.c.l.b16 %v3406
        %v4758 = vunpack.c.h.b16 %v3406
        %v4759 = vunpack.c.l.b16 %v3407
        %v4760 = vunpack.c.h.b16 %v3407
        %v4761 = vunpack.c.l.b16 %v3408
        %v4762 = vunpack.c.h.b16 %v3408
        %v4763 = vunpack.c.l.b16 %v3409
        %v4764 = vunpack.c.h.b16 %v3409
        %v4765 = vunpack.c.l.b16 %v3410
        %v4766 = vunpack.c.h.b16 %v3410
        %v4767 = vunpack.c.l.b16 %v3411
        %v4768 = vunpack.c.h.b16 %v3411
        %v4769 = vunpack.c.l.b16 %v3412
        %v4770 = vunpack.c.h.b16 %v3412
        %v4771 = vunpack.c.l.b16 %v3413
        %v4772 = vunpack.c.h.b16 %v3413
        %v4773 = vunpack.c.l.b16 %v3414
        %v4774 = vunpack.c.h.b16 %v3414
        %v4775 = vunpack.c.l.b16 %v3415
        %v4776 = vunpack.c.h.b16 %v3415
        %v4777 = vunpack.c.l.b16 %v3416
        %v4778 = vunpack.c.h.b16 %v3416
        %v4779 = vunpack.c.l.b16 %v3417
        %v4780 = vunpack.c.h.b16 %v3417
        %v4781 = vunpack.c.l.b16 %v3418
        %v4782 = vunpack.c.h.b16 %v3418
        %v4783 = vunpack.c.l.b16 %v3419
        %v4784 = vunpack.c.h.b16 %v3419
        %v4785 = vunpack.c.l.b16 %v3420
        %v4786 = vunpack.c.h.b16 %v3420
        %v4787 = vunpack.c.l.b16 %v3421
        %v4788 = vunpack.c.h.b16 %v3421
        %v4789 = vunpack.c.l.b16 %v3422
        %v4790 = vunpack.c.h.b16 %v3422
        %v4791 = vunpack.c.l.b16 %v3423
        %v4792 = vunpack.c.h.b16 %v3423
        %v4793 = vunpack.c.l.b16 %v3424
        %v4794 = vunpack.c.h.b16 %v3424
        %v4795 = vunpack.c.l.b16 %v3425
        %v4796 = vunpack.c.h.b16 %v3425
        %v4797 = vunpack.c.l.b16 %v3426
        %v4798 = vunpack.c.h.b16 %v3426
        %v4799 = vunpack.c.l.b16 %v3427
        %v4800 = vunpack.c.h.b16 %v3427
        %v4801 = vunpack.c.l.b16 %v3428
        %v4802 = vunpack.c.h.b16 %v3428
        %v4803 = vunpack.c.l.b16 %v3429
        %v4804 = vunpack.c.h.b16 %v3429
        %v4805 = vunpack.c.l.b16 %v3430
        %v4806 = vunpack.c.h.b16 %v3430
        %v4807 = vunpack.c.l.b16 %v3431
        %v4808 = vunpack.c.h.b16 %v3431
        %v4809 = vunpack.c.l.b16 %v3432
        %v4810 = vunpack.c.h.b16 %v3432
        %v4811 = vunpack.c.l.b16 %v3433
        %v4812 = vunpack.c.h.b16 %v3433
        %v4813 = vunpack.c.l.b16 %v3434
        %v4814 = vunpack.c.h.b16 %v3434
        %v4815 = vunpack.c.l.b16 %v3435
        %v4816 = vunpack.c.h.b16 %v3435
        %v4817 = vunpack.c.l.b16 %v3436
        %v4818 = vunpack.c.h.b16 %v3436
        %v4819 = vunpack.c.l.b16 %v3437
        %v4820 = vunpack.c.h.b16 %v3437
        %v4821 = vunpack.c.l.b16 %v3438
        %v4822 = vunpack.c.h.b16 %v3438
        %v4823 = vunpack.c.l.b16 %v3439
        %v4824 = vunpack.c.h.b16 %v3439
        %v4825 = vunpack.c.l.b16 %v3440
        %v4826 = vunpack.c.h.b16 %v3440
        %v4827 = vunpack.c.l.b16 %v3441
        %v4828 = vunpack.c.h.b16 %v3441
        %v4829 = vunpack.c.l.b16 %v3442
        %v4830 = vunpack.c.h.b16 %v3442
        %v4831 = vunpack.c.l.b16 %v3443
        %v4832 = vunpack.c.h.b16 %v3443
        %v4833 = vunpack.c.l.b16 %v3444
        %v4834 = vunpack.c.h.b16 %v3444
        %v4835 = vunpack.c.l.b16 %v3445
        %v4836 = vunpack.c.h.b16 %v3445
        %v4837 = vunpack.c.l.b16 %v3446
        %v4838 = vunpack.c.h.b16 %v3446
        %v4839 = vunpack.c.l.b16 %v3447
        %v4840 = vunpack.c.h.b16 %v3447
        %v4841 = vunpack.c.l.b16 %v3448
        %v4842 = vunpack.c.h.b16 %v3448
        %v4843 = vunpack.c.l.b16 %v3449
        %v4844 = vunpack.c.h.b16 %v3449
        %v4845 = vunpack.c.l.b16 %v3450
        %v4846 = vunpack.c.h.b16 %v3450
        %v4847 = vunpack.c.l.b16 %v3451
        %v4848 = vunpack.c.h.b16 %v3451
        %v4849 = vunpack.c.l.b16 %v3452
        %v4850 = vunpack.c.h.b16 %v3452
        %v4851 = vunpack.c.l.b16 %v3453
        %v4852 = vunpack.c.h.b16 %v3453
        %v4853 = vunpack.c.l.b16 %v3454
        %v4854 = vunpack.c.h.b16 %v3454
        %v4855 = vunpack.c.l.b16 %v3455
        %v4856 = vunpack.c.h.b16 %v3455
        %v4857 = vunpack.c.l.b16 %v3456
        %v4858 = vunpack.c.h.b16 %v3456
        %v4859 = vunpack.c.l.b16 %v3457
        %v4860 = vunpack.c.h.b16 %v3457
        %v4861 = vunpack.c.l.b16 %v3458
        %v4862 = vunpack.c.h.b16 %v3458
        %v4863 = vunpack.c.l.b16 %v3459
        %v4864 = vunpack.c.h.b16 %v3459
        %v4865 = vunpack.c.l.b16 %v3460
        %v4866 = vunpack.c.h.b16 %v3460
        %v4867 = vunpack.c.l.b16 %v3461
        %v4868 = vunpack.c.h.b16 %v3461
        %v4869 = vunpack.c.l.b16 %v3462
        %v4870 = vunpack.c.h.b16 %v3462
        %v4871 = vunpack.c.l.b16 %v3463
        %v4872 = vunpack.c.h.b16 %v3463
        %v4873 = vunpack.c.l.b16 %v3464
        %v4874 = vunpack.c.h.b16 %v3464
        %v4875 = vunpack.c.l.b16 %v3465
        %v4876 = vunpack.c.h.b16 %v3465
        %v4877 = vunpack.c.l.b16 %v3466
        %v4878 = vunpack.c.h.b16 %v3466
        %v4879 = vunpack.c.l.b16 %v3467
        %v4880 = vunpack.c.h.b16 %v3467
        %v4881 = vunpack.c.l.b16 %v3468
        %v4882 = vunpack.c.h.b16 %v3468
        %v4883 = vunpack.c.l.b16 %v3469
        %v4884 = vunpack.c.h.b16 %v3469
        %v4885 = vunpack.c.l.b16 %v3470
        %v4886 = vunpack.c.h.b16 %v3470
        %v4887 = vunpack.c.l.b16 %v3471
        %v4888 = vunpack.c.h.b16 %v3471
        %v4889 = vunpack.c.l.b16 %v3472
        %v4890 = vunpack.c.h.b16 %v3472
        %v4891 = vunpack.c.l.b16 %v3473
        %v4892 = vunpack.c.h.b16 %v3473
        %v4893 = vunpack.c.l.b16 %v3474
        %v4894 = vunpack.c.h.b16 %v3474
        %v4895 = vunpack.c.l.b16 %v3475
        %v4896 = vunpack.c.h.b16 %v3475
        %v4897 = vunpack.c.l.b16 %v3476
        %v4898 = vunpack.c.h.b16 %v3476
        %v4899 = vunpack.c.l.b16 %v3477
        %v4900 = vunpack.c.h.b16 %v3477
        %v4901 = vunpack.c.l.b16 %v3478
        %v4902 = vunpack.c.h.b16 %v3478
        %v4903 = vunpack.c.l.b16 %v3479
        %v4904 = vunpack.c.h.b16 %v3479
        %v4905 = vunpack.c.l.b16 %v3480
        %v4906 = vunpack.c.h.b16 %v3480
        %v4907 = vunpack.c.l.b16 %v3481
        %v4908 = vunpack.c.h.b16 %v3481
        %v4909 = vunpack.c.l.b16 %v3482
        %v4910 = vunpack.c.h.b16 %v3482
        %v4911 = vunpack.c.l.b16 %v3483
        %v4912 = vunpack.c.h.b16 %v3483
        %v4913 = vunpack.c.l.b16 %v3484
        %v4914 = vunpack.c.h.b16 %v3484
        %v4915 = vunpack.c.l.b16 %v3485
        %v4916 = vunpack.c.h.b16 %v3485
        %v4917 = vunpack.c.l.b16 %v3486
        %v4918 = vunpack.c.h.b16 %v3486
        %v4919 = vunpack.c.l.b16 %v3487
        %v4920 = vunpack.c.h.b16 %v3487
        %v4921 = vunpack.c.l.b16 %v3488
        %v4922 = vunpack.c.h.b16 %v3488
        %v4923 = vunpack.c.l.b16 %v3489
        %v4924 = vunpack.c.h.b16 %v3489
        %v4925 = vunpack.c.l.b16 %v3490
        %v4926 = vunpack.c.h.b16 %v3490
        %v4927 = vunpack.c.l.b16 %v3491
        %v4928 = vunpack.c.h.b16 %v3491
        %v4929 = vunpack.c.l.b16 %v3492
        %v4930 = vunpack.c.h.b16 %v3492
        %v4931 = vunpack.c.l.b16 %v3493
        %v4932 = vunpack.c.h.b16 %v3493
        %v4933 = vunpack.c.l.b16 %v3494
        %v4934 = vunpack.c.h.b16 %v3494
        %v4935 = vunpack.c.l.b16 %v3495
        %v4936 = vunpack.c.h.b16 %v3495
        %v4937 = vunpack.c.l.b16 %v3496
        %v4938 = vunpack.c.h.b16 %v3496
        %v4939 = vunpack.c.l.b16 %v3497
        %v4940 = vunpack.c.h.b16 %v3497
        %v4941 = vunpack.c.l.b16 %v3498
        %v4942 = vunpack.c.h.b16 %v3498
        %v4943 = vunpack.c.l.b16 %v3499
        %v4944 = vunpack.c.h.b16 %v3499
        %v4945 = vpack.c.b16 %v4693, %v4689
        %v4946 = vpack.c.b16 %v4694, %v4690
        %v4947 = vpack.c.b16 %v4695, %v4691
        %v4948 = vpack.c.b16 %v4696, %v4692
        %v4949 = vpack.c.b16 %v4701, %v4697
        %v4950 = vpack.c.b16 %v4702, %v4698
        %v4951 = vpack.c.b16 %v4703, %v4699
        %v4952 = vpack.c.b16 %v4704, %v4700
        %v4953 = vpack.c.b16 %v4709, %v4705
        %v4954 = vpack.c.b16 %v4710, %v4706
        %v4955 = vpack.c.b16 %v4711, %v4707
        %v4956 = vpack.c.b16 %v4712, %v4708
        %v4957 = vpack.c.b16 %v4717, %v4713
        %v4958 = vpack.c.b16 %v4718, %v4714
        %v4959 = vpack.c.b16 %v4719, %v4715
        %v4960 = vpack.c.b16 %v4720, %v4716
        %v4961 = vpack.c.b16 %v4725, %v4721
        %v4962 = vpack.c.b16 %v4726, %v4722
        %v4963 = vpack.c.b16 %v4727, %v4723
        %v4964 = vpack.c.b16 %v4728, %v4724
        %v4965 = vpack.c.b16 %v4733, %v4729
        %v4966 = vpack.c.b16 %v4734, %v4730
        %v4967 = vpack.c.b16 %v4735, %v4731
        %v4968 = vpack.c.b16 %v4736, %v4732
        %v4969 = vpack.c.b16 %v4741, %v4737
        %v4970 = vpack.c.b16 %v4742, %v4738
        %v4971 = vpack.c.b16 %v4743, %v4739
        %v4972 = vpack.c.b16 %v4744, %v4740
        %v4973 = vpack.c.b16 %v4749, %v4745
        %v4974 = vpack.c.b16 %v4750, %v4746
        %v4975 = vpack.c.b16 %v4751, %v4747
        %v4976 = vpack.c.b16 %v4752, %v4748
        %v4977 = vpack.c.b16 %v4757, %v4753
        %v4978 = vpack.c.b16 %v4758, %v4754
        %v4979 = vpack.c.b16 %v4759, %v4755
        %v4980 = vpack.c.b16 %v4760, %v4756
        %v4981 = vpack.c.b16 %v4765, %v4761
        %v4982 = vpack.c.b16 %v4766, %v4762
        %v4983 = vpack.c.b16 %v4767, %v4763
        %v4984 = vpack.c.b16 %v4768, %v4764
        %v4985 = vpack.c.b16 %v4773, %v4769
        %v4986 = vpack.c.b16 %v4774, %v4770
        %v4987 = vpack.c.b16 %v4775, %v4771
        %v4988 = vpack.c.b16 %v4776, %v4772
        %v4989 = vpack.c.b16 %v4781, %v4777
        %v4990 = vpack.c.b16 %v4782, %v4778
        %v4991 = vpack.c.b16 %v4783, %v4779
        %v4992 = vpack.c.b16 %v4784, %v4780
        %v4993 = vpack.c.b16 %v4789, %v4785
        %v4994 = vpack.c.b16 %v4790, %v4786
        %v4995 = vpack.c.b16 %v4791, %v4787
        %v4996 = vpack.c.b16 %v4792, %v4788
        %v4997 = vpack.c.b16 %v4797, %v4793
        %v4998 = vpack.c.b16 %v4798, %v4794
        %v4999 = vpack.c.b16 %v4799, %v4795
        %v5000 = vpack.c.b16 %v4800, %v4796
        %v5001 = vpack.c.b16 %v4805, %v4801
        %v5002 = vpack.c.b16 %v4806, %v4802
        %v5003 = vpack.c.b16 %v4807, %v4803
        %v5004 = vpack.c.b16 %v4808, %v4804
        %v5005 = vpack.c.b16 %v4813, %v4809
        %v5006 = vpack.c.b16 %v4814, %v4810
        %v5007 = vpack.c.b16 %v4815, %v4811
        %v5008 = vpack.c.b16 %v4816, %v4812
        %v5009 = vpack.c.b16 %v4821, %v4817
        %v5010 = vpack.c.b16 %v4822, %v4818
        %v5011 = vpack.c.b16 %v4823, %v4819
        %v5012 = vpack.c.b16 %v4824, %v4820
        %v5013 = vpack.c.b16 %v4829, %v4825
        %v5014 = vpack.c.b16 %v4830, %v4826
        %v5015 = vpack.c.b16 %v4831, %v4827
        %v5016 = vpack.c.b16 %v4832, %v4828
        %v5017 = vpack.c.b16 %v4837, %v4833
        %v5018 = vpack.c.b16 %v4838, %v4834
        %v5019 = vpack.c.b16 %v4839, %v4835
        %v5020 = vpack.c.b16 %v4840, %v4836
        %v5021 = vpack.c.b16 %v4845, %v4841
        %v5022 = vpack.c.b16 %v4846, %v4842
        %v5023 = vpack.c.b16 %v4847, %v4843
        %v5024 = vpack.c.b16 %v4848, %v4844
        %v5025 = vpack.c.b16 %v4853, %v4849
        %v5026 = vpack.c.b16 %v4854, %v4850
        %v5027 = vpack.c.b16 %v4855, %v4851
        %v5028 = vpack.c.b16 %v4856, %v4852
        %v5029 = vpack.c.b16 %v4861, %v4857
        %v5030 = vpack.c.b16 %v4862, %v4858
        %v5031 = vpack.c.b16 %v4863, %v4859
        %v5032 = vpack.c.b16 %v4864, %v4860
        %v5033 = vpack.c.b16 %v4869, %v4865
        %v5034 = vpack.c.b16 %v4870, %v4866
        %v5035 = vpack.c.b16 %v4871, %v4867
        %v5036 = vpack.c.b16 %v4872, %v4868
        %v5037 = vpack.c.b16 %v4877, %v4873
        %v5038 = vpack.c.b16 %v4878, %v4874
        %v5039 = vpack.c.b16 %v4879, %v4875
        %v5040 = vpack.c.b16 %v4880, %v4876
        %v5041 = vpack.c.b16 %v4885, %v4881
        %v5042 = vpack.c.b16 %v4886, %v4882
        %v5043 = vpack.c.b16 %v4887, %v4883
        %v5044 = vpack.c.b16 %v4888, %v4884
        %v5045 = vpack.c.b16 %v4893, %v4889
        %v5046 = vpack.c.b16 %v4894, %v4890
        %v5047 = vpack.c.b16 %v4895, %v4891
        %v5048 = vpack.c.b16 %v4896, %v4892
        %v5049 = vpack.c.b16 %v4901, %v4897
        %v5050 = vpack.c.b16 %v4902, %v4898
        %v5051 = vpack.c.b16 %v4903, %v4899
        %v5052 = vpack.c.b16 %v4904, %v4900
        %v5053 = vpack.c.b16 %v4909, %v4905
        %v5054 = vpack.c.b16 %v4910, %v4906
        %v5055 = vpack.c.b16 %v4911, %v4907
        %v5056 = vpack.c.b16 %v4912, %v4908
        %v5057 = vpack.c.b16 %v4917, %v4913
        %v5058 = vpack.c.b16 %v4918, %v4914
        %v5059 = vpack.c.b16 %v4919, %v4915
        %v5060 = vpack.c.b16 %v4920, %v4916
        %v5061 = vpack.c.b16 %v4925, %v4921
        %v5062 = vpack.c.b16 %v4926, %v4922
        %v5063 = vpack.c.b16 %v4927, %v4923
        %v5064 = vpack.c.b16 %v4928, %v4924
        %v5065 = vpack.c.b16 %v4933, %v4929
        %v5066 = vpack.c.b16 %v4934, %v4930
        %v5067 = vpack.c.b16 %v4935, %v4931
        %v5068 = vpack.c.b16 %v4936, %v4932
        %v5069 = vpack.c.b16 %v4941, %v4937
        %v5070 = vpack.c.b16 %v4942, %v4938
        %v5071 = vpack.c.b16 %v4943, %v4939
        %v5072 = vpack.c.b16 %v4944, %v4940
        %5201 = vmatprep.subr.bf16.mxu0 %v4946
        %5202 = vmatpush1.bf16.msra.mxu0 %v4945
        %5203 = vmatprep.subr.bf16.mxu0 %v4950
        %5204 = vmatpush1.bf16.msra.mxu0 %v4949
        %5205 = vmatprep.subr.bf16.mxu0 %v4954
        %5206 = vmatpush1.bf16.msra.mxu0 %v4953
        %5207 = vmatprep.subr.bf16.mxu0 %v4958
        %5208 = vmatpush1.bf16.msra.mxu0 %v4957
        %5209 = vmatprep.subr.bf16.mxu0 %v4962
        %5210 = vmatpush1.bf16.msra.mxu0 %v4961
        %5211 = vmatprep.subr.bf16.mxu0 %v4966
        %5212 = vmatpush1.bf16.msra.mxu0 %v4965
        %5213 = vmatprep.subr.bf16.mxu0 %v4970
        %5214 = vmatpush1.bf16.msra.mxu0 %v4969
        %5215 = vmatprep.subr.bf16.mxu0 %v4974
        %5216 = vmatpush1.bf16.msra.mxu0 %v4973
        %5217 = vmatprep.subr.bf16.mxu0 %v4978
        %5218 = vmatpush1.bf16.msra.mxu0 %v4977
        %5219 = vmatprep.subr.bf16.mxu0 %v4982
        %5220 = vmatpush1.bf16.msra.mxu0 %v4981
        %5221 = vmatprep.subr.bf16.mxu0 %v4986
        %5222 = vmatpush1.bf16.msra.mxu0 %v4985
        %5223 = vmatprep.subr.bf16.mxu0 %v4990
        %5224 = vmatpush1.bf16.msra.mxu0 %v4989
        %5225 = vmatprep.subr.bf16.mxu0 %v4994
        %5226 = vmatpush1.bf16.msra.mxu0 %v4993
        %5227 = vmatprep.subr.bf16.mxu0 %v4998
        %5228 = vmatpush1.bf16.msra.mxu0 %v4997
        %5229 = vmatprep.subr.bf16.mxu0 %v5002
        %5230 = vmatpush1.bf16.msra.mxu0 %v5001
        %5231 = vmatprep.subr.bf16.mxu0 %v5006
        %5232 = vmatpush1.bf16.msra.mxu0 %v5005
        %5233 = vmatprep.mubr.bf16.mxu0 %v3195
        %5234 = vmatmul.mubr.bf16.gmra.mrb[0].mxu0 %v3194
        %v5235 = vpop.f32.mrb[0].mxu0
        %v5236 = vadd.f32 %v4377, %v5235
        %v5237 = vpop.f32.mrb[0].mxu0
        %v5238 = vadd.f32 %v4379, %v5237
        %v5239 = vpop.f32.mrb[0].mxu0
        %v5240 = vadd.f32 %v4381, %v5239
        %v5241 = vpop.f32.mrb[0].mxu0
        %v5242 = vadd.f32 %v4383, %v5241
        %5243 = vmatprep.mubr.bf16.mxu0 %v3199
        %5244 = vmatmul.mubr.bf16.gmra.mrb[0].mxu0 %v3198
        %v5245 = vpop.f32.mrb[0].mxu0
        %v5246 = vadd.f32 %v4387, %v5245
        %v5247 = vpop.f32.mrb[0].mxu0
        %v5248 = vadd.f32 %v4389, %v5247
        %v5249 = vpop.f32.mrb[0].mxu0
        %v5250 = vadd.f32 %v4391, %v5249
        %v5251 = vpop.f32.mrb[0].mxu0
        %v5252 = vadd.f32 %v4393, %v5251
        %5253 = vmatprep.mubr.bf16.mxu0 %v3203
        %5254 = vmatmul.mubr.bf16.gmra.mrb[0].mxu0 %v3202
        %v5255 = vpop.f32.mrb[0].mxu0
        %v5256 = vadd.f32 %v4397, %v5255
        %v5257 = vpop.f32.mrb[0].mxu0
        %v5258 = vadd.f32 %v4399, %v5257
        %v5259 = vpop.f32.mrb[0].mxu0
        %v5260 = vadd.f32 %v4401, %v5259
        %v5261 = vpop.f32.mrb[0].mxu0
        %v5262 = vadd.f32 %v4403, %v5261
        %5263 = vmatprep.mubr.bf16.mxu0 %v3207
        %5264 = vmatmul.mubr.bf16.gmra.mrb[0].mxu0 %v3206
        %v5265 = vpop.f32.mrb[0].mxu0
        %v5266 = vadd.f32 %v4407, %v5265
        %v5267 = vpop.f32.mrb[0].mxu0
        %v5268 = vadd.f32 %v4409, %v5267
        %v5269 = vpop.f32.mrb[0].mxu0
        %v5270 = vadd.f32 %v4411, %v5269
        %v5271 = vpop.f32.mrb[0].mxu0
        %v5272 = vadd.f32 %v4413, %v5271
        %5273 = vdwg.mxu0
        %5274 = vmatprep.subr.bf16.mxu0 %v5010
        %5275 = vmatpush1.bf16.msra.mxu0 %v5009
        %5276 = vmatprep.subr.bf16.mxu0 %v5014
        %5277 = vmatpush1.bf16.msra.mxu0 %v5013
        %5278 = vmatprep.subr.bf16.mxu0 %v5018
        %5279 = vmatpush1.bf16.msra.mxu0 %v5017
        %5280 = vmatprep.subr.bf16.mxu0 %v5022
        %5281 = vmatpush1.bf16.msra.mxu0 %v5021
        %5282 = vmatprep.subr.bf16.mxu0 %v5026
        %5283 = vmatpush1.bf16.msra.mxu0 %v5025
        %5284 = vmatprep.subr.bf16.mxu0 %v5030
        %5285 = vmatpush1.bf16.msra.mxu0 %v5029
        %5286 = vmatprep.subr.bf16.mxu0 %v5034
        %5287 = vmatpush1.bf16.msra.mxu0 %v5033
        %5288 = vmatprep.subr.bf16.mxu0 %v5038
        %5289 = vmatpush1.bf16.msra.mxu0 %v5037
        %5290 = vmatprep.subr.bf16.mxu0 %v5042
        %5291 = vmatpush1.bf16.msra.mxu0 %v5041
        %5292 = vmatprep.subr.bf16.mxu0 %v5046
        %5293 = vmatpush1.bf16.msra.mxu0 %v5045
        %5294 = vmatprep.subr.bf16.mxu0 %v5050
        %5295 = vmatpush1.bf16.msra.mxu0 %v5049
        %5296 = vmatprep.subr.bf16.mxu0 %v5054
        %5297 = vmatpush1.bf16.msra.mxu0 %v5053
        %5298 = vmatprep.subr.bf16.mxu0 %v5058
        %5299 = vmatpush1.bf16.msra.mxu0 %v5057
        %5300 = vmatprep.subr.bf16.mxu0 %v5062
        %5301 = vmatpush1.bf16.msra.mxu0 %v5061
        %5302 = vmatprep.subr.bf16.mxu0 %v5066
        %5303 = vmatpush1.bf16.msra.mxu0 %v5065
        %5304 = vmatprep.subr.bf16.mxu0 %v5070
        %5305 = vmatpush1.bf16.msra.mxu0 %v5069
        %5306 = vmatprep.mubr.bf16.mxu0 %v3197
        %5307 = vmatmul.mubr.bf16.gmra.mrb[0].mxu0 %v3196
        %v5308 = vpop.f32.mrb[0].mxu0
        %v5309 = vadd.f32 %v5236, %v5308
        %v5310 = vpop.f32.mrb[0].mxu0
        %v5311 = vadd.f32 %v5238, %v5310
        %v5312 = vpop.f32.mrb[0].mxu0
        %v5313 = vadd.f32 %v5240, %v5312
        %v5314 = vpop.f32.mrb[0].mxu0
        %v5315 = vadd.f32 %v5242, %v5314
        %5316 = vmatprep.mubr.bf16.mxu0 %v3201
        %5317 = vmatmul.mubr.bf16.gmra.mrb[0].mxu0 %v3200
        %v5318 = vpop.f32.mrb[0].mxu0
        %v5319 = vadd.f32 %v5246, %v5318
        %v5320 = vpop.f32.mrb[0].mxu0
        %v5321 = vadd.f32 %v5248, %v5320
        %v5322 = vpop.f32.mrb[0].mxu0
        %v5323 = vadd.f32 %v5250, %v5322
        %v5324 = vpop.f32.mrb[0].mxu0
        %v5325 = vadd.f32 %v5252, %v5324
        %5326 = vmatprep.mubr.bf16.mxu0 %v3205
        %5327 = vmatmul.mubr.bf16.gmra.mrb[0].mxu0 %v3204
        %v5328 = vpop.f32.mrb[0].mxu0
        %v5329 = vadd.f32 %v5256, %v5328
        %v5330 = vpop.f32.mrb[0].mxu0
        %v5331 = vadd.f32 %v5258, %v5330
        %v5332 = vpop.f32.mrb[0].mxu0
        %v5333 = vadd.f32 %v5260, %v5332
        %v5334 = vpop.f32.mrb[0].mxu0
        %v5335 = vadd.f32 %v5262, %v5334
        %5336 = vmatprep.mubr.bf16.mxu0 %v3209
        %5337 = vmatmul.mubr.bf16.gmra.mrb[0].mxu0 %v3208
        %v5338 = vpop.f32.mrb[0].mxu0
        %v5339 = vadd.f32 %v5266, %v5338
        %v5340 = vpop.f32.mrb[0].mxu0
        %v5341 = vadd.f32 %v5268, %v5340
        %v5342 = vpop.f32.mrb[0].mxu0
        %v5343 = vadd.f32 %v5270, %v5342
        %v5344 = vpop.f32.mrb[0].mxu0
        %v5345 = vadd.f32 %v5272, %v5344
        %5346 = vdwg.mxu0
        %5347 = vmatprep.subr.bf16.mxu0 %v4948
        %5348 = vmatpush1.bf16.msra.mxu0 %v4947
        %5349 = vmatprep.subr.bf16.mxu0 %v4952
        %5350 = vmatpush1.bf16.msra.mxu0 %v4951
        %5351 = vmatprep.subr.bf16.mxu0 %v4956
        %5352 = vmatpush1.bf16.msra.mxu0 %v4955
        %5353 = vmatprep.subr.bf16.mxu0 %v4960
        %5354 = vmatpush1.bf16.msra.mxu0 %v4959
        %5355 = vmatprep.subr.bf16.mxu0 %v4964
        %5356 = vmatpush1.bf16.msra.mxu0 %v4963
        %5357 = vmatprep.subr.bf16.mxu0 %v4968
        %5358 = vmatpush1.bf16.msra.mxu0 %v4967
        %5359 = vmatprep.subr.bf16.mxu0 %v4972
        %5360 = vmatpush1.bf16.msra.mxu0 %v4971
        %5361 = vmatprep.subr.bf16.mxu0 %v4976
        %5362 = vmatpush1.bf16.msra.mxu0 %v4975
        %5363 = vmatprep.subr.bf16.mxu0 %v4980
        %5364 = vmatpush1.bf16.msra.mxu0 %v4979
        %5365 = vmatprep.subr.bf16.mxu0 %v4984
        %5366 = vmatpush1.bf16.msra.mxu0 %v4983
        %5367 = vmatprep.subr.bf16.mxu0 %v4988
        %5368 = vmatpush1.bf16.msra.mxu0 %v4987
        %5369 = vmatprep.subr.bf16.mxu0 %v4992
        %5370 = vmatpush1.bf16.msra.mxu0 %v4991
        %5371 = vmatprep.subr.bf16.mxu0 %v4996
        %5372 = vmatpush1.bf16.msra.mxu0 %v4995
        %5373 = vmatprep.subr.bf16.mxu0 %v5000
        %5374 = vmatpush1.bf16.msra.mxu0 %v4999
        %5375 = vmatprep.subr.bf16.mxu0 %v5004
        %5376 = vmatpush1.bf16.msra.mxu0 %v5003
        %5377 = vmatprep.subr.bf16.mxu0 %v5008
        %5378 = vmatpush1.bf16.msra.mxu0 %v5007
        %5379 = vmatprep.mubr.bf16.mxu0 %v3195
        %5380 = vmatmul.mubr.bf16.gmra.mrb[0].mxu0 %v3194
        %v5381 = vpop.f32.mrb[0].mxu0
        %v5382 = vadd.f32 %v4523, %v5381
        %v5383 = vpop.f32.mrb[0].mxu0
        %v5384 = vadd.f32 %v4525, %v5383
        %v5385 = vpop.f32.mrb[0].mxu0
        %v5386 = vadd.f32 %v4527, %v5385
        %v5387 = vpop.f32.mrb[0].mxu0
        %v5388 = vadd.f32 %v4529, %v5387
        %5389 = vmatprep.mubr.bf16.mxu0 %v3199
        %5390 = vmatmul.mubr.bf16.gmra.mrb[0].mxu0 %v3198
        %v5391 = vpop.f32.mrb[0].mxu0
        %v5392 = vadd.f32 %v4533, %v5391
        %v5393 = vpop.f32.mrb[0].mxu0
        %v5394 = vadd.f32 %v4535, %v5393
        %v5395 = vpop.f32.mrb[0].mxu0
        %v5396 = vadd.f32 %v4537, %v5395
        %v5397 = vpop.f32.mrb[0].mxu0
        %v5398 = vadd.f32 %v4539, %v5397
        %5399 = vmatprep.mubr.bf16.mxu0 %v3203
        %5400 = vmatmul.mubr.bf16.gmra.mrb[0].mxu0 %v3202
        %v5401 = vpop.f32.mrb[0].mxu0
        %v5402 = vadd.f32 %v4543, %v5401
        %v5403 = vpop.f32.mrb[0].mxu0
        %v5404 = vadd.f32 %v4545, %v5403
        %v5405 = vpop.f32.mrb[0].mxu0
        %v5406 = vadd.f32 %v4547, %v5405
        %v5407 = vpop.f32.mrb[0].mxu0
        %v5408 = vadd.f32 %v4549, %v5407
        %5409 = vmatprep.mubr.bf16.mxu0 %v3207
        %5410 = vmatmul.mubr.bf16.gmra.mrb[0].mxu0 %v3206
        %v5411 = vpop.f32.mrb[0].mxu0
        %v5412 = vadd.f32 %v4553, %v5411
        %v5413 = vpop.f32.mrb[0].mxu0
        %v5414 = vadd.f32 %v4555, %v5413
        %v5415 = vpop.f32.mrb[0].mxu0
        %v5416 = vadd.f32 %v4557, %v5415
        %v5417 = vpop.f32.mrb[0].mxu0
        %v5418 = vadd.f32 %v4559, %v5417
        %5419 = vdwg.mxu0
        %5420 = vmatprep.subr.bf16.mxu0 %v5012
        %5421 = vmatpush1.bf16.msra.mxu0 %v5011
        %5422 = vmatprep.subr.bf16.mxu0 %v5016
        %5423 = vmatpush1.bf16.msra.mxu0 %v5015
        %5424 = vmatprep.subr.bf16.mxu0 %v5020
        %5425 = vmatpush1.bf16.msra.mxu0 %v5019
        %5426 = vmatprep.subr.bf16.mxu0 %v5024
        %5427 = vmatpush1.bf16.msra.mxu0 %v5023
        %5428 = vmatprep.subr.bf16.mxu0 %v5028
        %5429 = vmatpush1.bf16.msra.mxu0 %v5027
        %5430 = vmatprep.subr.bf16.mxu0 %v5032
        %5431 = vmatpush1.bf16.msra.mxu0 %v5031
        %5432 = vmatprep.subr.bf16.mxu0 %v5036
        %5433 = vmatpush1.bf16.msra.mxu0 %v5035
        %5434 = vmatprep.subr.bf16.mxu0 %v5040
        %5435 = vmatpush1.bf16.msra.mxu0 %v5039
        %5436 = vmatprep.subr.bf16.mxu0 %v5044
        %5437 = vmatpush1.bf16.msra.mxu0 %v5043
        %5438 = vmatprep.subr.bf16.mxu0 %v5048
        %5439 = vmatpush1.bf16.msra.mxu0 %v5047
        %5440 = vmatprep.subr.bf16.mxu0 %v5052
        %5441 = vmatpush1.bf16.msra.mxu0 %v5051
        %5442 = vmatprep.subr.bf16.mxu0 %v5056
        %5443 = vmatpush1.bf16.msra.mxu0 %v5055
        %5444 = vmatprep.subr.bf16.mxu0 %v5060
        %5445 = vmatpush1.bf16.msra.mxu0 %v5059
        %5446 = vmatprep.subr.bf16.mxu0 %v5064
        %5447 = vmatpush1.bf16.msra.mxu0 %v5063
        %5448 = vmatprep.subr.bf16.mxu0 %v5068
        %5449 = vmatpush1.bf16.msra.mxu0 %v5067
        %5450 = vmatprep.subr.bf16.mxu0 %v5072
        %5451 = vmatpush1.bf16.msra.mxu0 %v5071
        %5452 = vmatprep.mubr.bf16.mxu0 %v3197
        %5453 = vmatmul.mubr.bf16.gmra.mrb[0].mxu0 %v3196
        %v5454 = vpop.f32.mrb[0].mxu0
        %v5455 = vadd.f32 %v5382, %v5454
        %v5456 = vpop.f32.mrb[0].mxu0
        %v5457 = vadd.f32 %v5384, %v5456
        %v5458 = vpop.f32.mrb[0].mxu0
        %v5459 = vadd.f32 %v5386, %v5458
        %v5460 = vpop.f32.mrb[0].mxu0
        %v5461 = vadd.f32 %v5388, %v5460
        %5462 = vmatprep.mubr.bf16.mxu0 %v3201
        %5463 = vmatmul.mubr.bf16.gmra.mrb[0].mxu0 %v3200
        %v5464 = vpop.f32.mrb[0].mxu0
        %v5465 = vadd.f32 %v5392, %v5464
        %v5466 = vpop.f32.mrb[0].mxu0
        %v5467 = vadd.f32 %v5394, %v5466
        %v5468 = vpop.f32.mrb[0].mxu0
        %v5469 = vadd.f32 %v5396, %v5468
        %v5470 = vpop.f32.mrb[0].mxu0
        %v5471 = vadd.f32 %v5398, %v5470
        %5472 = vmatprep.mubr.bf16.mxu0 %v3205
        %5473 = vmatmul.mubr.bf16.gmra.mrb[0].mxu0 %v3204
        %v5474 = vpop.f32.mrb[0].mxu0
        %v5475 = vadd.f32 %v5402, %v5474
        %v5476 = vpop.f32.mrb[0].mxu0
        %v5477 = vadd.f32 %v5404, %v5476
        %v5478 = vpop.f32.mrb[0].mxu0
        %v5479 = vadd.f32 %v5406, %v5478
        %v5480 = vpop.f32.mrb[0].mxu0
        %v5481 = vadd.f32 %v5408, %v5480
        %5482 = vmatprep.mubr.bf16.mxu0 %v3209
        %5483 = vmatmul.mubr.bf16.gmra.mrb[0].mxu0 %v3208
        %v5484 = vpop.f32.mrb[0].mxu0
        %v5485 = vadd.f32 %v5412, %v5484
        %v5486 = vpop.f32.mrb[0].mxu0
        %v5487 = vadd.f32 %v5414, %v5486
        %v5488 = vpop.f32.mrb[0].mxu0
        %v5489 = vadd.f32 %v5416, %v5488
        %v5490 = vpop.f32.mrb[0].mxu0
        %v5491 = vadd.f32 %v5418, %v5490
        %5492 = vdwg.mxu0
        %s5493 = scalar_lea.vmem [#allocation14], 2048
        %v5494 = vld [vmem:[%s5493] sm:$0xff]
        %v5495 = vld [vmem:[%s5493 + $0x8] sm:$0xff]
        %v5496 = vld [vmem:[%s5493 + $0x10] sm:$0xff]
        %v5497 = vld [vmem:[%s5493 + $0x18] sm:$0xff]
        %v5498 = vld [vmem:[%s5493 + $0x20] sm:$0xff]
        %v5499 = vld [vmem:[%s5493 + $0x28] sm:$0xff]
        %v5500 = vld [vmem:[%s5493 + $0x30] sm:$0xff]
        %v5501 = vld [vmem:[%s5493 + $0x38] sm:$0xff]
        %v5502 = vld [vmem:[%s5493 + $0x40] sm:$0xff]
        %v5503 = vld [vmem:[%s5493 + $0x48] sm:$0xff]
        %v5504 = vld [vmem:[%s5493 + $0x50] sm:$0xff]
        %v5505 = vld [vmem:[%s5493 + $0x58] sm:$0xff]
        %v5506 = vld [vmem:[%s5493 + $0x60] sm:$0xff]
        %v5507 = vld [vmem:[%s5493 + $0x68] sm:$0xff]
        %v5508 = vld [vmem:[%s5493 + $0x70] sm:$0xff]
        %v5509 = vld [vmem:[%s5493 + $0x78] sm:$0xff]
        %v5510 = vld [vmem:[%s5493 + $0x80] sm:$0xff]
        %v5511 = vld [vmem:[%s5493 + $0x88] sm:$0xff]
        %v5512 = vld [vmem:[%s5493 + $0x90] sm:$0xff]
        %v5513 = vld [vmem:[%s5493 + $0x98] sm:$0xff]
        %v5514 = vld [vmem:[%s5493 + $0xa0] sm:$0xff]
        %v5515 = vld [vmem:[%s5493 + $0xa8] sm:$0xff]
        %v5516 = vld [vmem:[%s5493 + $0xb0] sm:$0xff]
        %v5517 = vld [vmem:[%s5493 + $0xb8] sm:$0xff]
        %v5518 = vld [vmem:[%s5493 + $0xc0] sm:$0xff]
        %v5519 = vld [vmem:[%s5493 + $0xc8] sm:$0xff]
        %v5520 = vld [vmem:[%s5493 + $0xd0] sm:$0xff]
        %v5521 = vld [vmem:[%s5493 + $0xd8] sm:$0xff]
        %v5522 = vld [vmem:[%s5493 + $0xe0] sm:$0xff]
        %v5523 = vld [vmem:[%s5493 + $0xe8] sm:$0xff]
        %v5524 = vld [vmem:[%s5493 + $0xf0] sm:$0xff]
        %v5525 = vld [vmem:[%s5493 + $0xf8] sm:$0xff]
        %v5526 = vld [vmem:[%s5493 + $0x100] sm:$0xff]
        %v5527 = vld [vmem:[%s5493 + $0x108] sm:$0xff]
        %v5528 = vld [vmem:[%s5493 + $0x110] sm:$0xff]
        %v5529 = vld [vmem:[%s5493 + $0x118] sm:$0xff]
        %v5530 = vld [vmem:[%s5493 + $0x120] sm:$0xff]
        %v5531 = vld [vmem:[%s5493 + $0x128] sm:$0xff]
        %v5532 = vld [vmem:[%s5493 + $0x130] sm:$0xff]
        %v5533 = vld [vmem:[%s5493 + $0x138] sm:$0xff]
        %v5534 = vld [vmem:[%s5493 + $0x140] sm:$0xff]
        %v5535 = vld [vmem:[%s5493 + $0x148] sm:$0xff]
        %v5536 = vld [vmem:[%s5493 + $0x150] sm:$0xff]
        %v5537 = vld [vmem:[%s5493 + $0x158] sm:$0xff]
        %v5538 = vld [vmem:[%s5493 + $0x160] sm:$0xff]
        %v5539 = vld [vmem:[%s5493 + $0x168] sm:$0xff]
        %v5540 = vld [vmem:[%s5493 + $0x170] sm:$0xff]
        %v5541 = vld [vmem:[%s5493 + $0x178] sm:$0xff]
        %v5542 = vld [vmem:[%s5493 + $0x180] sm:$0xff]
        %v5543 = vld [vmem:[%s5493 + $0x188] sm:$0xff]
        %v5544 = vld [vmem:[%s5493 + $0x190] sm:$0xff]
        %v5545 = vld [vmem:[%s5493 + $0x198] sm:$0xff]
        %v5546 = vld [vmem:[%s5493 + $0x1a0] sm:$0xff]
        %v5547 = vld [vmem:[%s5493 + $0x1a8] sm:$0xff]
        %v5548 = vld [vmem:[%s5493 + $0x1b0] sm:$0xff]
        %v5549 = vld [vmem:[%s5493 + $0x1b8] sm:$0xff]
        %v5550 = vld [vmem:[%s5493 + $0x1c0] sm:$0xff]
        %v5551 = vld [vmem:[%s5493 + $0x1c8] sm:$0xff]
        %v5552 = vld [vmem:[%s5493 + $0x1d0] sm:$0xff]
        %v5553 = vld [vmem:[%s5493 + $0x1d8] sm:$0xff]
        %v5554 = vld [vmem:[%s5493 + $0x1e0] sm:$0xff]
        %v5555 = vld [vmem:[%s5493 + $0x1e8] sm:$0xff]
        %v5556 = vld [vmem:[%s5493 + $0x1f0] sm:$0xff]
        %v5557 = vld [vmem:[%s5493 + $0x1f8] sm:$0xff]
        %v5558 = vld [vmem:[%s5493 + $0x200] sm:$0xff]
        %v5559 = vld [vmem:[%s5493 + $0x208] sm:$0xff]
        %v5560 = vld [vmem:[%s5493 + $0x210] sm:$0xff]
        %v5561 = vld [vmem:[%s5493 + $0x218] sm:$0xff]
        %v5562 = vld [vmem:[%s5493 + $0x220] sm:$0xff]
        %v5563 = vld [vmem:[%s5493 + $0x228] sm:$0xff]
        %v5564 = vld [vmem:[%s5493 + $0x230] sm:$0xff]
        %v5565 = vld [vmem:[%s5493 + $0x238] sm:$0xff]
        %v5566 = vld [vmem:[%s5493 + $0x240] sm:$0xff]
        %v5567 = vld [vmem:[%s5493 + $0x248] sm:$0xff]
        %v5568 = vld [vmem:[%s5493 + $0x250] sm:$0xff]
        %v5569 = vld [vmem:[%s5493 + $0x258] sm:$0xff]
        %v5570 = vld [vmem:[%s5493 + $0x260] sm:$0xff]
        %v5571 = vld [vmem:[%s5493 + $0x268] sm:$0xff]
        %v5572 = vld [vmem:[%s5493 + $0x270] sm:$0xff]
        %v5573 = vld [vmem:[%s5493 + $0x278] sm:$0xff]
        %v5574 = vld [vmem:[%s5493 + $0x280] sm:$0xff]
        %v5575 = vld [vmem:[%s5493 + $0x288] sm:$0xff]
        %v5576 = vld [vmem:[%s5493 + $0x290] sm:$0xff]
        %v5577 = vld [vmem:[%s5493 + $0x298] sm:$0xff]
        %v5578 = vld [vmem:[%s5493 + $0x2a0] sm:$0xff]
        %v5579 = vld [vmem:[%s5493 + $0x2a8] sm:$0xff]
        %v5580 = vld [vmem:[%s5493 + $0x2b0] sm:$0xff]
        %v5581 = vld [vmem:[%s5493 + $0x2b8] sm:$0xff]
        %v5582 = vld [vmem:[%s5493 + $0x2c0] sm:$0xff]
        %v5583 = vld [vmem:[%s5493 + $0x2c8] sm:$0xff]
        %v5584 = vld [vmem:[%s5493 + $0x2d0] sm:$0xff]
        %v5585 = vld [vmem:[%s5493 + $0x2d8] sm:$0xff]
        %v5586 = vld [vmem:[%s5493 + $0x2e0] sm:$0xff]
        %v5587 = vld [vmem:[%s5493 + $0x2e8] sm:$0xff]
        %v5588 = vld [vmem:[%s5493 + $0x2f0] sm:$0xff]
        %v5589 = vld [vmem:[%s5493 + $0x2f8] sm:$0xff]
        %v5590 = vld [vmem:[%s5493 + $0x300] sm:$0xff]
        %v5591 = vld [vmem:[%s5493 + $0x308] sm:$0xff]
        %v5592 = vld [vmem:[%s5493 + $0x310] sm:$0xff]
        %v5593 = vld [vmem:[%s5493 + $0x318] sm:$0xff]
        %v5594 = vld [vmem:[%s5493 + $0x320] sm:$0xff]
        %v5595 = vld [vmem:[%s5493 + $0x328] sm:$0xff]
        %v5596 = vld [vmem:[%s5493 + $0x330] sm:$0xff]
        %v5597 = vld [vmem:[%s5493 + $0x338] sm:$0xff]
        %v5598 = vld [vmem:[%s5493 + $0x340] sm:$0xff]
        %v5599 = vld [vmem:[%s5493 + $0x348] sm:$0xff]
        %v5600 = vld [vmem:[%s5493 + $0x350] sm:$0xff]
        %v5601 = vld [vmem:[%s5493 + $0x358] sm:$0xff]
        %v5602 = vld [vmem:[%s5493 + $0x360] sm:$0xff]
        %v5603 = vld [vmem:[%s5493 + $0x368] sm:$0xff]
        %v5604 = vld [vmem:[%s5493 + $0x370] sm:$0xff]
        %v5605 = vld [vmem:[%s5493 + $0x378] sm:$0xff]
        %v5606 = vld [vmem:[%s5493 + $0x380] sm:$0xff]
        %v5607 = vld [vmem:[%s5493 + $0x388] sm:$0xff]
        %v5608 = vld [vmem:[%s5493 + $0x390] sm:$0xff]
        %v5609 = vld [vmem:[%s5493 + $0x398] sm:$0xff]
        %v5610 = vld [vmem:[%s5493 + $0x3a0] sm:$0xff]
        %v5611 = vld [vmem:[%s5493 + $0x3a8] sm:$0xff]
        %v5612 = vld [vmem:[%s5493 + $0x3b0] sm:$0xff]
        %v5613 = vld [vmem:[%s5493 + $0x3b8] sm:$0xff]
        %v5614 = vld [vmem:[%s5493 + $0x3c0] sm:$0xff]
        %v5615 = vld [vmem:[%s5493 + $0x3c8] sm:$0xff]
        %v5616 = vld [vmem:[%s5493 + $0x3d0] sm:$0xff]
        %v5617 = vld [vmem:[%s5493 + $0x3d8] sm:$0xff]
        %v5618 = vld [vmem:[%s5493 + $0x3e0] sm:$0xff]
        %v5619 = vld [vmem:[%s5493 + $0x3e8] sm:$0xff]
        %v5620 = vld [vmem:[%s5493 + $0x3f0] sm:$0xff]
        %v5621 = vld [vmem:[%s5493 + $0x3f8] sm:$0xff]
        %v5750 = vunpack.c.l.b16 %v5494
        %v5751 = vunpack.c.h.b16 %v5494
        %v5752 = vunpack.c.l.b16 %v5495
        %v5753 = vunpack.c.h.b16 %v5495
        %v5754 = vunpack.c.l.b16 %v5496
        %v5755 = vunpack.c.h.b16 %v5496
        %v5756 = vunpack.c.l.b16 %v5497
        %v5757 = vunpack.c.h.b16 %v5497
        %v5758 = vunpack.c.l.b16 %v5498
        %v5759 = vunpack.c.h.b16 %v5498
        %v5760 = vunpack.c.l.b16 %v5499
        %v5761 = vunpack.c.h.b16 %v5499
        %v5762 = vunpack.c.l.b16 %v5500
        %v5763 = vunpack.c.h.b16 %v5500
        %v5764 = vunpack.c.l.b16 %v5501
        %v5765 = vunpack.c.h.b16 %v5501
        %v5766 = vunpack.c.l.b16 %v5502
        %v5767 = vunpack.c.h.b16 %v5502
        %v5768 = vunpack.c.l.b16 %v5503
        %v5769 = vunpack.c.h.b16 %v5503
        %v5770 = vunpack.c.l.b16 %v5504
        %v5771 = vunpack.c.h.b16 %v5504
        %v5772 = vunpack.c.l.b16 %v5505
        %v5773 = vunpack.c.h.b16 %v5505
        %v5774 = vunpack.c.l.b16 %v5506
        %v5775 = vunpack.c.h.b16 %v5506
        %v5776 = vunpack.c.l.b16 %v5507
        %v5777 = vunpack.c.h.b16 %v5507
        %v5778 = vunpack.c.l.b16 %v5508
        %v5779 = vunpack.c.h.b16 %v5508
        %v5780 = vunpack.c.l.b16 %v5509
        %v5781 = vunpack.c.h.b16 %v5509
        %v5782 = vunpack.c.l.b16 %v5510
        %v5783 = vunpack.c.h.b16 %v5510
        %v5784 = vunpack.c.l.b16 %v5511
        %v5785 = vunpack.c.h.b16 %v5511
        %v5786 = vunpack.c.l.b16 %v5512
        %v5787 = vunpack.c.h.b16 %v5512
        %v5788 = vunpack.c.l.b16 %v5513
        %v5789 = vunpack.c.h.b16 %v5513
        %v5790 = vunpack.c.l.b16 %v5514
        %v5791 = vunpack.c.h.b16 %v5514
        %v5792 = vunpack.c.l.b16 %v5515
        %v5793 = vunpack.c.h.b16 %v5515
        %v5794 = vunpack.c.l.b16 %v5516
        %v5795 = vunpack.c.h.b16 %v5516
        %v5796 = vunpack.c.l.b16 %v5517
        %v5797 = vunpack.c.h.b16 %v5517
        %v5798 = vunpack.c.l.b16 %v5518
        %v5799 = vunpack.c.h.b16 %v5518
        %v5800 = vunpack.c.l.b16 %v5519
        %v5801 = vunpack.c.h.b16 %v5519
        %v5802 = vunpack.c.l.b16 %v5520
        %v5803 = vunpack.c.h.b16 %v5520
        %v5804 = vunpack.c.l.b16 %v5521
        %v5805 = vunpack.c.h.b16 %v5521
        %v5806 = vunpack.c.l.b16 %v5522
        %v5807 = vunpack.c.h.b16 %v5522
        %v5808 = vunpack.c.l.b16 %v5523
        %v5809 = vunpack.c.h.b16 %v5523
        %v5810 = vunpack.c.l.b16 %v5524
        %v5811 = vunpack.c.h.b16 %v5524
        %v5812 = vunpack.c.l.b16 %v5525
        %v5813 = vunpack.c.h.b16 %v5525
        %v5814 = vunpack.c.l.b16 %v5526
        %v5815 = vunpack.c.h.b16 %v5526
        %v5816 = vunpack.c.l.b16 %v5527
        %v5817 = vunpack.c.h.b16 %v5527
        %v5818 = vunpack.c.l.b16 %v5528
        %v5819 = vunpack.c.h.b16 %v5528
        %v5820 = vunpack.c.l.b16 %v5529
        %v5821 = vunpack.c.h.b16 %v5529
        %v5822 = vunpack.c.l.b16 %v5530
        %v5823 = vunpack.c.h.b16 %v5530
        %v5824 = vunpack.c.l.b16 %v5531
        %v5825 = vunpack.c.h.b16 %v5531
        %v5826 = vunpack.c.l.b16 %v5532
        %v5827 = vunpack.c.h.b16 %v5532
        %v5828 = vunpack.c.l.b16 %v5533
        %v5829 = vunpack.c.h.b16 %v5533
        %v5830 = vunpack.c.l.b16 %v5534
        %v5831 = vunpack.c.h.b16 %v5534
        %v5832 = vunpack.c.l.b16 %v5535
        %v5833 = vunpack.c.h.b16 %v5535
        %v5834 = vunpack.c.l.b16 %v5536
        %v5835 = vunpack.c.h.b16 %v5536
        %v5836 = vunpack.c.l.b16 %v5537
        %v5837 = vunpack.c.h.b16 %v5537
        %v5838 = vunpack.c.l.b16 %v5538
        %v5839 = vunpack.c.h.b16 %v5538
        %v5840 = vunpack.c.l.b16 %v5539
        %v5841 = vunpack.c.h.b16 %v5539
        %v5842 = vunpack.c.l.b16 %v5540
        %v5843 = vunpack.c.h.b16 %v5540
        %v5844 = vunpack.c.l.b16 %v5541
        %v5845 = vunpack.c.h.b16 %v5541
        %v5846 = vunpack.c.l.b16 %v5542
        %v5847 = vunpack.c.h.b16 %v5542
        %v5848 = vunpack.c.l.b16 %v5543
        %v5849 = vunpack.c.h.b16 %v5543
        %v5850 = vunpack.c.l.b16 %v5544
        %v5851 = vunpack.c.h.b16 %v5544
        %v5852 = vunpack.c.l.b16 %v5545
        %v5853 = vunpack.c.h.b16 %v5545
        %v5854 = vunpack.c.l.b16 %v5546
        %v5855 = vunpack.c.h.b16 %v5546
        %v5856 = vunpack.c.l.b16 %v5547
        %v5857 = vunpack.c.h.b16 %v5547
        %v5858 = vunpack.c.l.b16 %v5548
        %v5859 = vunpack.c.h.b16 %v5548
        %v5860 = vunpack.c.l.b16 %v5549
        %v5861 = vunpack.c.h.b16 %v5549
        %v5862 = vunpack.c.l.b16 %v5550
        %v5863 = vunpack.c.h.b16 %v5550
        %v5864 = vunpack.c.l.b16 %v5551
        %v5865 = vunpack.c.h.b16 %v5551
        %v5866 = vunpack.c.l.b16 %v5552
        %v5867 = vunpack.c.h.b16 %v5552
        %v5868 = vunpack.c.l.b16 %v5553
        %v5869 = vunpack.c.h.b16 %v5553
        %v5870 = vunpack.c.l.b16 %v5554
        %v5871 = vunpack.c.h.b16 %v5554
        %v5872 = vunpack.c.l.b16 %v5555
        %v5873 = vunpack.c.h.b16 %v5555
        %v5874 = vunpack.c.l.b16 %v5556
        %v5875 = vunpack.c.h.b16 %v5556
        %v5876 = vunpack.c.l.b16 %v5557
        %v5877 = vunpack.c.h.b16 %v5557
        %v5878 = vunpack.c.l.b16 %v5558
        %v5879 = vunpack.c.h.b16 %v5558
        %v5880 = vunpack.c.l.b16 %v5559
        %v5881 = vunpack.c.h.b16 %v5559
        %v5882 = vunpack.c.l.b16 %v5560
        %v5883 = vunpack.c.h.b16 %v5560
        %v5884 = vunpack.c.l.b16 %v5561
        %v5885 = vunpack.c.h.b16 %v5561
        %v5886 = vunpack.c.l.b16 %v5562
        %v5887 = vunpack.c.h.b16 %v5562
        %v5888 = vunpack.c.l.b16 %v5563
        %v5889 = vunpack.c.h.b16 %v5563
        %v5890 = vunpack.c.l.b16 %v5564
        %v5891 = vunpack.c.h.b16 %v5564
        %v5892 = vunpack.c.l.b16 %v5565
        %v5893 = vunpack.c.h.b16 %v5565
        %v5894 = vunpack.c.l.b16 %v5566
        %v5895 = vunpack.c.h.b16 %v5566
        %v5896 = vunpack.c.l.b16 %v5567
        %v5897 = vunpack.c.h.b16 %v5567
        %v5898 = vunpack.c.l.b16 %v5568
        %v5899 = vunpack.c.h.b16 %v5568
        %v5900 = vunpack.c.l.b16 %v5569
        %v5901 = vunpack.c.h.b16 %v5569
        %v5902 = vunpack.c.l.b16 %v5570
        %v5903 = vunpack.c.h.b16 %v5570
        %v5904 = vunpack.c.l.b16 %v5571
        %v5905 = vunpack.c.h.b16 %v5571
        %v5906 = vunpack.c.l.b16 %v5572
        %v5907 = vunpack.c.h.b16 %v5572
        %v5908 = vunpack.c.l.b16 %v5573
        %v5909 = vunpack.c.h.b16 %v5573
        %v5910 = vunpack.c.l.b16 %v5574
        %v5911 = vunpack.c.h.b16 %v5574
        %v5912 = vunpack.c.l.b16 %v5575
        %v5913 = vunpack.c.h.b16 %v5575
        %v5914 = vunpack.c.l.b16 %v5576
        %v5915 = vunpack.c.h.b16 %v5576
        %v5916 = vunpack.c.l.b16 %v5577
        %v5917 = vunpack.c.h.b16 %v5577
        %v5918 = vunpack.c.l.b16 %v5578
        %v5919 = vunpack.c.h.b16 %v5578
        %v5920 = vunpack.c.l.b16 %v5579
        %v5921 = vunpack.c.h.b16 %v5579
        %v5922 = vunpack.c.l.b16 %v5580
        %v5923 = vunpack.c.h.b16 %v5580
        %v5924 = vunpack.c.l.b16 %v5581
        %v5925 = vunpack.c.h.b16 %v5581
        %v5926 = vunpack.c.l.b16 %v5582
        %v5927 = vunpack.c.h.b16 %v5582
        %v5928 = vunpack.c.l.b16 %v5583
        %v5929 = vunpack.c.h.b16 %v5583
        %v5930 = vunpack.c.l.b16 %v5584
        %v5931 = vunpack.c.h.b16 %v5584
        %v5932 = vunpack.c.l.b16 %v5585
        %v5933 = vunpack.c.h.b16 %v5585
        %v5934 = vunpack.c.l.b16 %v5586
        %v5935 = vunpack.c.h.b16 %v5586
        %v5936 = vunpack.c.l.b16 %v5587
        %v5937 = vunpack.c.h.b16 %v5587
        %v5938 = vunpack.c.l.b16 %v5588
        %v5939 = vunpack.c.h.b16 %v5588
        %v5940 = vunpack.c.l.b16 %v5589
        %v5941 = vunpack.c.h.b16 %v5589
        %v5942 = vunpack.c.l.b16 %v5590
        %v5943 = vunpack.c.h.b16 %v5590
        %v5944 = vunpack.c.l.b16 %v5591
        %v5945 = vunpack.c.h.b16 %v5591
        %v5946 = vunpack.c.l.b16 %v5592
        %v5947 = vunpack.c.h.b16 %v5592
        %v5948 = vunpack.c.l.b16 %v5593
        %v5949 = vunpack.c.h.b16 %v5593
        %v5950 = vunpack.c.l.b16 %v5594
        %v5951 = vunpack.c.h.b16 %v5594
        %v5952 = vunpack.c.l.b16 %v5595
        %v5953 = vunpack.c.h.b16 %v5595
        %v5954 = vunpack.c.l.b16 %v5596
        %v5955 = vunpack.c.h.b16 %v5596
        %v5956 = vunpack.c.l.b16 %v5597
        %v5957 = vunpack.c.h.b16 %v5597
        %v5958 = vunpack.c.l.b16 %v5598
        %v5959 = vunpack.c.h.b16 %v5598
        %v5960 = vunpack.c.l.b16 %v5599
        %v5961 = vunpack.c.h.b16 %v5599
        %v5962 = vunpack.c.l.b16 %v5600
        %v5963 = vunpack.c.h.b16 %v5600
        %v5964 = vunpack.c.l.b16 %v5601
        %v5965 = vunpack.c.h.b16 %v5601
        %v5966 = vunpack.c.l.b16 %v5602
        %v5967 = vunpack.c.h.b16 %v5602
        %v5968 = vunpack.c.l.b16 %v5603
        %v5969 = vunpack.c.h.b16 %v5603
        %v5970 = vunpack.c.l.b16 %v5604
        %v5971 = vunpack.c.h.b16 %v5604
        %v5972 = vunpack.c.l.b16 %v5605
        %v5973 = vunpack.c.h.b16 %v5605
        %v5974 = vunpack.c.l.b16 %v5606
        %v5975 = vunpack.c.h.b16 %v5606
        %v5976 = vunpack.c.l.b16 %v5607
        %v5977 = vunpack.c.h.b16 %v5607
        %v5978 = vunpack.c.l.b16 %v5608
        %v5979 = vunpack.c.h.b16 %v5608
        %v5980 = vunpack.c.l.b16 %v5609
        %v5981 = vunpack.c.h.b16 %v5609
        %v5982 = vunpack.c.l.b16 %v5610
        %v5983 = vunpack.c.h.b16 %v5610
        %v5984 = vunpack.c.l.b16 %v5611
        %v5985 = vunpack.c.h.b16 %v5611
        %v5986 = vunpack.c.l.b16 %v5612
        %v5987 = vunpack.c.h.b16 %v5612
        %v5988 = vunpack.c.l.b16 %v5613
        %v5989 = vunpack.c.h.b16 %v5613
        %v5990 = vunpack.c.l.b16 %v5614
        %v5991 = vunpack.c.h.b16 %v5614
        %v5992 = vunpack.c.l.b16 %v5615
        %v5993 = vunpack.c.h.b16 %v5615
        %v5994 = vunpack.c.l.b16 %v5616
        %v5995 = vunpack.c.h.b16 %v5616
        %v5996 = vunpack.c.l.b16 %v5617
        %v5997 = vunpack.c.h.b16 %v5617
        %v5998 = vunpack.c.l.b16 %v5618
        %v5999 = vunpack.c.h.b16 %v5618
        %v6000 = vunpack.c.l.b16 %v5619
        %v6001 = vunpack.c.h.b16 %v5619
        %v6002 = vunpack.c.l.b16 %v5620
        %v6003 = vunpack.c.h.b16 %v5620
        %v6004 = vunpack.c.l.b16 %v5621
        %v6005 = vunpack.c.h.b16 %v5621
        %v6006 = vpack.c.b16 %v5754, %v5750
        %v6007 = vpack.c.b16 %v5755, %v5751
        %v6008 = vpack.c.b16 %v5756, %v5752
        %v6009 = vpack.c.b16 %v5757, %v5753
        %v6010 = vpack.c.b16 %v5762, %v5758
        %v6011 = vpack.c.b16 %v5763, %v5759
        %v6012 = vpack.c.b16 %v5764, %v5760
        %v6013 = vpack.c.b16 %v5765, %v5761
        %v6014 = vpack.c.b16 %v5770, %v5766
        %v6015 = vpack.c.b16 %v5771, %v5767
        %v6016 = vpack.c.b16 %v5772, %v5768
        %v6017 = vpack.c.b16 %v5773, %v5769
        %v6018 = vpack.c.b16 %v5778, %v5774
        %v6019 = vpack.c.b16 %v5779, %v5775
        %v6020 = vpack.c.b16 %v5780, %v5776
        %v6021 = vpack.c.b16 %v5781, %v5777
        %v6022 = vpack.c.b16 %v5786, %v5782
        %v6023 = vpack.c.b16 %v5787, %v5783
        %v6024 = vpack.c.b16 %v5788, %v5784
        %v6025 = vpack.c.b16 %v5789, %v5785
        %v6026 = vpack.c.b16 %v5794, %v5790
        %v6027 = vpack.c.b16 %v5795, %v5791
        %v6028 = vpack.c.b16 %v5796, %v5792
        %v6029 = vpack.c.b16 %v5797, %v5793
        %v6030 = vpack.c.b16 %v5802, %v5798
        %v6031 = vpack.c.b16 %v5803, %v5799
        %v6032 = vpack.c.b16 %v5804, %v5800
        %v6033 = vpack.c.b16 %v5805, %v5801
        %v6034 = vpack.c.b16 %v5810, %v5806
        %v6035 = vpack.c.b16 %v5811, %v5807
        %v6036 = vpack.c.b16 %v5812, %v5808
        %v6037 = vpack.c.b16 %v5813, %v5809
        %v6038 = vpack.c.b16 %v5818, %v5814
        %v6039 = vpack.c.b16 %v5819, %v5815
        %v6040 = vpack.c.b16 %v5820, %v5816
        %v6041 = vpack.c.b16 %v5821, %v5817
        %v6042 = vpack.c.b16 %v5826, %v5822
        %v6043 = vpack.c.b16 %v5827, %v5823
        %v6044 = vpack.c.b16 %v5828, %v5824
        %v6045 = vpack.c.b16 %v5829, %v5825
        %v6046 = vpack.c.b16 %v5834, %v5830
        %v6047 = vpack.c.b16 %v5835, %v5831
        %v6048 = vpack.c.b16 %v5836, %v5832
        %v6049 = vpack.c.b16 %v5837, %v5833
        %v6050 = vpack.c.b16 %v5842, %v5838
        %v6051 = vpack.c.b16 %v5843, %v5839
        %v6052 = vpack.c.b16 %v5844, %v5840
        %v6053 = vpack.c.b16 %v5845, %v5841
        %v6054 = vpack.c.b16 %v5850, %v5846
        %v6055 = vpack.c.b16 %v5851, %v5847
        %v6056 = vpack.c.b16 %v5852, %v5848
        %v6057 = vpack.c.b16 %v5853, %v5849
        %v6058 = vpack.c.b16 %v5858, %v5854
        %v6059 = vpack.c.b16 %v5859, %v5855
        %v6060 = vpack.c.b16 %v5860, %v5856
        %v6061 = vpack.c.b16 %v5861, %v5857
        %v6062 = vpack.c.b16 %v5866, %v5862
        %v6063 = vpack.c.b16 %v5867, %v5863
        %v6064 = vpack.c.b16 %v5868, %v5864
        %v6065 = vpack.c.b16 %v5869, %v5865
        %v6066 = vpack.c.b16 %v5874, %v5870
        %v6067 = vpack.c.b16 %v5875, %v5871
        %v6068 = vpack.c.b16 %v5876, %v5872
        %v6069 = vpack.c.b16 %v5877, %v5873
        %v6070 = vpack.c.b16 %v5882, %v5878
        %v6071 = vpack.c.b16 %v5883, %v5879
        %v6072 = vpack.c.b16 %v5884, %v5880
        %v6073 = vpack.c.b16 %v5885, %v5881
        %v6074 = vpack.c.b16 %v5890, %v5886
        %v6075 = vpack.c.b16 %v5891, %v5887
        %v6076 = vpack.c.b16 %v5892, %v5888
        %v6077 = vpack.c.b16 %v5893, %v5889
        %v6078 = vpack.c.b16 %v5898, %v5894
        %v6079 = vpack.c.b16 %v5899, %v5895
        %v6080 = vpack.c.b16 %v5900, %v5896
        %v6081 = vpack.c.b16 %v5901, %v5897
        %v6082 = vpack.c.b16 %v5906, %v5902
        %v6083 = vpack.c.b16 %v5907, %v5903
        %v6084 = vpack.c.b16 %v5908, %v5904
        %v6085 = vpack.c.b16 %v5909, %v5905
        %v6086 = vpack.c.b16 %v5914, %v5910
        %v6087 = vpack.c.b16 %v5915, %v5911
        %v6088 = vpack.c.b16 %v5916, %v5912
        %v6089 = vpack.c.b16 %v5917, %v5913
        %v6090 = vpack.c.b16 %v5922, %v5918
        %v6091 = vpack.c.b16 %v5923, %v5919
        %v6092 = vpack.c.b16 %v5924, %v5920
        %v6093 = vpack.c.b16 %v5925, %v5921
        %v6094 = vpack.c.b16 %v5930, %v5926
        %v6095 = vpack.c.b16 %v5931, %v5927
        %v6096 = vpack.c.b16 %v5932, %v5928
        %v6097 = vpack.c.b16 %v5933, %v5929
        %v6098 = vpack.c.b16 %v5938, %v5934
        %v6099 = vpack.c.b16 %v5939, %v5935
        %v6100 = vpack.c.b16 %v5940, %v5936
        %v6101 = vpack.c.b16 %v5941, %v5937
        %v6102 = vpack.c.b16 %v5946, %v5942
        %v6103 = vpack.c.b16 %v5947, %v5943
        %v6104 = vpack.c.b16 %v5948, %v5944
        %v6105 = vpack.c.b16 %v5949, %v5945
        %v6106 = vpack.c.b16 %v5954, %v5950
        %v6107 = vpack.c.b16 %v5955, %v5951
        %v6108 = vpack.c.b16 %v5956, %v5952
        %v6109 = vpack.c.b16 %v5957, %v5953
        %v6110 = vpack.c.b16 %v5962, %v5958
        %v6111 = vpack.c.b16 %v5963, %v5959
        %v6112 = vpack.c.b16 %v5964, %v5960
        %v6113 = vpack.c.b16 %v5965, %v5961
        %v6114 = vpack.c.b16 %v5970, %v5966
        %v6115 = vpack.c.b16 %v5971, %v5967
        %v6116 = vpack.c.b16 %v5972, %v5968
        %v6117 = vpack.c.b16 %v5973, %v5969
        %v6118 = vpack.c.b16 %v5978, %v5974
        %v6119 = vpack.c.b16 %v5979, %v5975
        %v6120 = vpack.c.b16 %v5980, %v5976
        %v6121 = vpack.c.b16 %v5981, %v5977
        %v6122 = vpack.c.b16 %v5986, %v5982
        %v6123 = vpack.c.b16 %v5987, %v5983
        %v6124 = vpack.c.b16 %v5988, %v5984
        %v6125 = vpack.c.b16 %v5989, %v5985
        %v6126 = vpack.c.b16 %v5994, %v5990
        %v6127 = vpack.c.b16 %v5995, %v5991
        %v6128 = vpack.c.b16 %v5996, %v5992
        %v6129 = vpack.c.b16 %v5997, %v5993
        %v6130 = vpack.c.b16 %v6002, %v5998
        %v6131 = vpack.c.b16 %v6003, %v5999
        %v6132 = vpack.c.b16 %v6004, %v6000
        %v6133 = vpack.c.b16 %v6005, %v6001
        %6262 = vmatprep.subr.bf16.mxu0 %v6007
        %6263 = vmatpush1.bf16.msra.mxu0 %v6006
        %6264 = vmatprep.subr.bf16.mxu0 %v6011
        %6265 = vmatpush1.bf16.msra.mxu0 %v6010
        %6266 = vmatprep.subr.bf16.mxu0 %v6015
        %6267 = vmatpush1.bf16.msra.mxu0 %v6014
        %6268 = vmatprep.subr.bf16.mxu0 %v6019
        %6269 = vmatpush1.bf16.msra.mxu0 %v6018
        %6270 = vmatprep.subr.bf16.mxu0 %v6023
        %6271 = vmatpush1.bf16.msra.mxu0 %v6022
        %6272 = vmatprep.subr.bf16.mxu0 %v6027
        %6273 = vmatpush1.bf16.msra.mxu0 %v6026
        %6274 = vmatprep.subr.bf16.mxu0 %v6031
        %6275 = vmatpush1.bf16.msra.mxu0 %v6030
        %6276 = vmatprep.subr.bf16.mxu0 %v6035
        %6277 = vmatpush1.bf16.msra.mxu0 %v6034
        %6278 = vmatprep.subr.bf16.mxu0 %v6039
        %6279 = vmatpush1.bf16.msra.mxu0 %v6038
        %6280 = vmatprep.subr.bf16.mxu0 %v6043
        %6281 = vmatpush1.bf16.msra.mxu0 %v6042
        %6282 = vmatprep.subr.bf16.mxu0 %v6047
        %6283 = vmatpush1.bf16.msra.mxu0 %v6046
        %6284 = vmatprep.subr.bf16.mxu0 %v6051
        %6285 = vmatpush1.bf16.msra.mxu0 %v6050
        %6286 = vmatprep.subr.bf16.mxu0 %v6055
        %6287 = vmatpush1.bf16.msra.mxu0 %v6054
        %6288 = vmatprep.subr.bf16.mxu0 %v6059
        %6289 = vmatpush1.bf16.msra.mxu0 %v6058
        %6290 = vmatprep.subr.bf16.mxu0 %v6063
        %6291 = vmatpush1.bf16.msra.mxu0 %v6062
        %6292 = vmatprep.subr.bf16.mxu0 %v6067
        %6293 = vmatpush1.bf16.msra.mxu0 %v6066
        %6294 = vmatprep.mubr.bf16.mxu0 %v3357
        %6295 = vmatmul.mubr.bf16.gmra.mrb[0].mxu0 %v3356
        %v6296 = vpop.f32.mrb[0].mxu0
        %v6297 = vadd.f32 0.0, %v6296
        %v6298 = vpop.f32.mrb[0].mxu0
        %v6299 = vadd.f32 0.0, %v6298
        %v6300 = vpop.f32.mrb[0].mxu0
        %v6301 = vadd.f32 0.0, %v6300
        %v6302 = vpop.f32.mrb[0].mxu0
        %v6303 = vadd.f32 0.0, %v6302
        %6304 = vmatprep.mubr.bf16.mxu0 %v3361
        %6305 = vmatmul.mubr.bf16.gmra.mrb[0].mxu0 %v3360
        %v6306 = vpop.f32.mrb[0].mxu0
        %v6307 = vadd.f32 0.0, %v6306
        %v6308 = vpop.f32.mrb[0].mxu0
        %v6309 = vadd.f32 0.0, %v6308
        %v6310 = vpop.f32.mrb[0].mxu0
        %v6311 = vadd.f32 0.0, %v6310
        %v6312 = vpop.f32.mrb[0].mxu0
        %v6313 = vadd.f32 0.0, %v6312
        %6314 = vmatprep.mubr.bf16.mxu0 %v3365
        %6315 = vmatmul.mubr.bf16.gmra.mrb[0].mxu0 %v3364
        %v6316 = vpop.f32.mrb[0].mxu0
        %v6317 = vadd.f32 0.0, %v6316
        %v6318 = vpop.f32.mrb[0].mxu0
        %v6319 = vadd.f32 0.0, %v6318
        %v6320 = vpop.f32.mrb[0].mxu0
        %v6321 = vadd.f32 0.0, %v6320
        %v6322 = vpop.f32.mrb[0].mxu0
        %v6323 = vadd.f32 0.0, %v6322
        %6324 = vmatprep.mubr.bf16.mxu0 %v3369
        %6325 = vmatmul.mubr.bf16.gmra.mrb[0].mxu0 %v3368
        %v6326 = vpop.f32.mrb[0].mxu0
        %v6327 = vadd.f32 0.0, %v6326
        %v6328 = vpop.f32.mrb[0].mxu0
        %v6329 = vadd.f32 0.0, %v6328
        %v6330 = vpop.f32.mrb[0].mxu0
        %v6331 = vadd.f32 0.0, %v6330
        %v6332 = vpop.f32.mrb[0].mxu0
        %v6333 = vadd.f32 0.0, %v6332
        %6334 = vdwg.mxu0
        %6335 = vmatprep.subr.bf16.mxu0 %v6071
        %6336 = vmatpush1.bf16.msra.mxu0 %v6070
        %6337 = vmatprep.subr.bf16.mxu0 %v6075
        %6338 = vmatpush1.bf16.msra.mxu0 %v6074
        %6339 = vmatprep.subr.bf16.mxu0 %v6079
        %6340 = vmatpush1.bf16.msra.mxu0 %v6078
        %6341 = vmatprep.subr.bf16.mxu0 %v6083
        %6342 = vmatpush1.bf16.msra.mxu0 %v6082
        %6343 = vmatprep.subr.bf16.mxu0 %v6087
        %6344 = vmatpush1.bf16.msra.mxu0 %v6086
        %6345 = vmatprep.subr.bf16.mxu0 %v6091
        %6346 = vmatpush1.bf16.msra.mxu0 %v6090
        %6347 = vmatprep.subr.bf16.mxu0 %v6095
        %6348 = vmatpush1.bf16.msra.mxu0 %v6094
        %6349 = vmatprep.subr.bf16.mxu0 %v6099
        %6350 = vmatpush1.bf16.msra.mxu0 %v6098
        %6351 = vmatprep.subr.bf16.mxu0 %v6103
        %6352 = vmatpush1.bf16.msra.mxu0 %v6102
        %6353 = vmatprep.subr.bf16.mxu0 %v6107
        %6354 = vmatpush1.bf16.msra.mxu0 %v6106
        %6355 = vmatprep.subr.bf16.mxu0 %v6111
        %6356 = vmatpush1.bf16.msra.mxu0 %v6110
        %6357 = vmatprep.subr.bf16.mxu0 %v6115
        %6358 = vmatpush1.bf16.msra.mxu0 %v6114
        %6359 = vmatprep.subr.bf16.mxu0 %v6119
        %6360 = vmatpush1.bf16.msra.mxu0 %v6118
        %6361 = vmatprep.subr.bf16.mxu0 %v6123
        %6362 = vmatpush1.bf16.msra.mxu0 %v6122
        %6363 = vmatprep.subr.bf16.mxu0 %v6127
        %6364 = vmatpush1.bf16.msra.mxu0 %v6126
        %6365 = vmatprep.subr.bf16.mxu0 %v6131
        %6366 = vmatpush1.bf16.msra.mxu0 %v6130
        %6367 = vmatprep.mubr.bf16.mxu0 %v3359
        %6368 = vmatmul.mubr.bf16.gmra.mrb[0].mxu0 %v3358
        %v6369 = vpop.f32.mrb[0].mxu0
        %v6370 = vadd.f32 %v6297, %v6369
        %v6371 = vpop.f32.mrb[0].mxu0
        %v6372 = vadd.f32 %v6299, %v6371
        %v6373 = vpop.f32.mrb[0].mxu0
        %v6374 = vadd.f32 %v6301, %v6373
        %v6375 = vpop.f32.mrb[0].mxu0
        %v6376 = vadd.f32 %v6303, %v6375
        %6377 = vmatprep.mubr.bf16.mxu0 %v3363
        %6378 = vmatmul.mubr.bf16.gmra.mrb[0].mxu0 %v3362
        %v6379 = vpop.f32.mrb[0].mxu0
        %v6380 = vadd.f32 %v6307, %v6379
        %v6381 = vpop.f32.mrb[0].mxu0
        %v6382 = vadd.f32 %v6309, %v6381
        %v6383 = vpop.f32.mrb[0].mxu0
        %v6384 = vadd.f32 %v6311, %v6383
        %v6385 = vpop.f32.mrb[0].mxu0
        %v6386 = vadd.f32 %v6313, %v6385
        %6387 = vmatprep.mubr.bf16.mxu0 %v3367
        %6388 = vmatmul.mubr.bf16.gmra.mrb[0].mxu0 %v3366
        %v6389 = vpop.f32.mrb[0].mxu0
        %v6390 = vadd.f32 %v6317, %v6389
        %v6391 = vpop.f32.mrb[0].mxu0
        %v6392 = vadd.f32 %v6319, %v6391
        %v6393 = vpop.f32.mrb[0].mxu0
        %v6394 = vadd.f32 %v6321, %v6393
        %v6395 = vpop.f32.mrb[0].mxu0
        %v6396 = vadd.f32 %v6323, %v6395
        %6397 = vmatprep.mubr.bf16.mxu0 %v3371
        %6398 = vmatmul.mubr.bf16.gmra.mrb[0].mxu0 %v3370
        %v6399 = vpop.f32.mrb[0].mxu0
        %v6400 = vadd.f32 %v6327, %v6399
        %v6401 = vpop.f32.mrb[0].mxu0
        %v6402 = vadd.f32 %v6329, %v6401
        %v6403 = vpop.f32.mrb[0].mxu0
        %v6404 = vadd.f32 %v6331, %v6403
        %v6405 = vpop.f32.mrb[0].mxu0
        %v6406 = vadd.f32 %v6333, %v6405
        %6407 = vdwg.mxu0
        %6408 = vmatprep.subr.bf16.mxu0 %v6009
        %6409 = vmatpush1.bf16.msra.mxu0 %v6008
        %6410 = vmatprep.subr.bf16.mxu0 %v6013
        %6411 = vmatpush1.bf16.msra.mxu0 %v6012
        %6412 = vmatprep.subr.bf16.mxu0 %v6017
        %6413 = vmatpush1.bf16.msra.mxu0 %v6016
        %6414 = vmatprep.subr.bf16.mxu0 %v6021
        %6415 = vmatpush1.bf16.msra.mxu0 %v6020
        %6416 = vmatprep.subr.bf16.mxu0 %v6025
        %6417 = vmatpush1.bf16.msra.mxu0 %v6024
        %6418 = vmatprep.subr.bf16.mxu0 %v6029
        %6419 = vmatpush1.bf16.msra.mxu0 %v6028
        %6420 = vmatprep.subr.bf16.mxu0 %v6033
        %6421 = vmatpush1.bf16.msra.mxu0 %v6032
        %6422 = vmatprep.subr.bf16.mxu0 %v6037
        %6423 = vmatpush1.bf16.msra.mxu0 %v6036
        %6424 = vmatprep.subr.bf16.mxu0 %v6041
        %6425 = vmatpush1.bf16.msra.mxu0 %v6040
        %6426 = vmatprep.subr.bf16.mxu0 %v6045
        %6427 = vmatpush1.bf16.msra.mxu0 %v6044
        %6428 = vmatprep.subr.bf16.mxu0 %v6049
        %6429 = vmatpush1.bf16.msra.mxu0 %v6048
        %6430 = vmatprep.subr.bf16.mxu0 %v6053
        %6431 = vmatpush1.bf16.msra.mxu0 %v6052
        %6432 = vmatprep.subr.bf16.mxu0 %v6057
        %6433 = vmatpush1.bf16.msra.mxu0 %v6056
        %6434 = vmatprep.subr.bf16.mxu0 %v6061
        %6435 = vmatpush1.bf16.msra.mxu0 %v6060
        %6436 = vmatprep.subr.bf16.mxu0 %v6065
        %6437 = vmatpush1.bf16.msra.mxu0 %v6064
        %6438 = vmatprep.subr.bf16.mxu0 %v6069
        %6439 = vmatpush1.bf16.msra.mxu0 %v6068
        %6440 = vmatprep.mubr.bf16.mxu0 %v3357
        %6441 = vmatmul.mubr.bf16.gmra.mrb[0].mxu0 %v3356
        %v6442 = vpop.f32.mrb[0].mxu0
        %v6443 = vadd.f32 0.0, %v6442
        %v6444 = vpop.f32.mrb[0].mxu0
        %v6445 = vadd.f32 0.0, %v6444
        %v6446 = vpop.f32.mrb[0].mxu0
        %v6447 = vadd.f32 0.0, %v6446
        %v6448 = vpop.f32.mrb[0].mxu0
        %v6449 = vadd.f32 0.0, %v6448
        %6450 = vmatprep.mubr.bf16.mxu0 %v3361
        %6451 = vmatmul.mubr.bf16.gmra.mrb[0].mxu0 %v3360
        %v6452 = vpop.f32.mrb[0].mxu0
        %v6453 = vadd.f32 0.0, %v6452
        %v6454 = vpop.f32.mrb[0].mxu0
        %v6455 = vadd.f32 0.0, %v6454
        %v6456 = vpop.f32.mrb[0].mxu0
        %v6457 = vadd.f32 0.0, %v6456
        %v6458 = vpop.f32.mrb[0].mxu0
        %v6459 = vadd.f32 0.0, %v6458
        %6460 = vmatprep.mubr.bf16.mxu0 %v3365
        %6461 = vmatmul.mubr.bf16.gmra.mrb[0].mxu0 %v3364
        %v6462 = vpop.f32.mrb[0].mxu0
        %v6463 = vadd.f32 0.0, %v6462
        %v6464 = vpop.f32.mrb[0].mxu0
        %v6465 = vadd.f32 0.0, %v6464
        %v6466 = vpop.f32.mrb[0].mxu0
        %v6467 = vadd.f32 0.0, %v6466
        %v6468 = vpop.f32.mrb[0].mxu0
        %v6469 = vadd.f32 0.0, %v6468
        %6470 = vmatprep.mubr.bf16.mxu0 %v3369
        %6471 = vmatmul.mubr.bf16.gmra.mrb[0].mxu0 %v3368
        %v6472 = vpop.f32.mrb[0].mxu0
        %v6473 = vadd.f32 0.0, %v6472
        %v6474 = vpop.f32.mrb[0].mxu0
        %v6475 = vadd.f32 0.0, %v6474
        %v6476 = vpop.f32.mrb[0].mxu0
        %v6477 = vadd.f32 0.0, %v6476
        %v6478 = vpop.f32.mrb[0].mxu0
        %v6479 = vadd.f32 0.0, %v6478
        %6480 = vdwg.mxu0
        %6481 = vmatprep.subr.bf16.mxu0 %v6073
        %6482 = vmatpush1.bf16.msra.mxu0 %v6072
        %6483 = vmatprep.subr.bf16.mxu0 %v6077
        %6484 = vmatpush1.bf16.msra.mxu0 %v6076
        %6485 = vmatprep.subr.bf16.mxu0 %v6081
        %6486 = vmatpush1.bf16.msra.mxu0 %v6080
        %6487 = vmatprep.subr.bf16.mxu0 %v6085
        %6488 = vmatpush1.bf16.msra.mxu0 %v6084
        %6489 = vmatprep.subr.bf16.mxu0 %v6089
        %6490 = vmatpush1.bf16.msra.mxu0 %v6088
        %6491 = vmatprep.subr.bf16.mxu0 %v6093
        %6492 = vmatpush1.bf16.msra.mxu0 %v6092
        %6493 = vmatprep.subr.bf16.mxu0 %v6097
        %6494 = vmatpush1.bf16.msra.mxu0 %v6096
        %6495 = vmatprep.subr.bf16.mxu0 %v6101
        %6496 = vmatpush1.bf16.msra.mxu0 %v6100
        %6497 = vmatprep.subr.bf16.mxu0 %v6105
        %6498 = vmatpush1.bf16.msra.mxu0 %v6104
        %6499 = vmatprep.subr.bf16.mxu0 %v6109
        %6500 = vmatpush1.bf16.msra.mxu0 %v6108
        %6501 = vmatprep.subr.bf16.mxu0 %v6113
        %6502 = vmatpush1.bf16.msra.mxu0 %v6112
        %6503 = vmatprep.subr.bf16.mxu0 %v6117
        %6504 = vmatpush1.bf16.msra.mxu0 %v6116
        %6505 = vmatprep.subr.bf16.mxu0 %v6121
        %6506 = vmatpush1.bf16.msra.mxu0 %v6120
        %6507 = vmatprep.subr.bf16.mxu0 %v6125
        %6508 = vmatpush1.bf16.msra.mxu0 %v6124
        %6509 = vmatprep.subr.bf16.mxu0 %v6129
        %6510 = vmatpush1.bf16.msra.mxu0 %v6128
        %6511 = vmatprep.subr.bf16.mxu0 %v6133
        %6512 = vmatpush1.bf16.msra.mxu0 %v6132
        %6513 = vmatprep.mubr.bf16.mxu0 %v3359
        %6514 = vmatmul.mubr.bf16.gmra.mrb[0].mxu0 %v3358
        %v6515 = vpop.f32.mrb[0].mxu0
        %v6516 = vadd.f32 %v6443, %v6515
        %v6517 = vpop.f32.mrb[0].mxu0
        %v6518 = vadd.f32 %v6445, %v6517
        %v6519 = vpop.f32.mrb[0].mxu0
        %v6520 = vadd.f32 %v6447, %v6519
        %v6521 = vpop.f32.mrb[0].mxu0
        %v6522 = vadd.f32 %v6449, %v6521
        %6523 = vmatprep.mubr.bf16.mxu0 %v3363
        %6524 = vmatmul.mubr.bf16.gmra.mrb[0].mxu0 %v3362
        %v6525 = vpop.f32.mrb[0].mxu0
        %v6526 = vadd.f32 %v6453, %v6525
        %v6527 = vpop.f32.mrb[0].mxu0
        %v6528 = vadd.f32 %v6455, %v6527
        %v6529 = vpop.f32.mrb[0].mxu0
        %v6530 = vadd.f32 %v6457, %v6529
        %v6531 = vpop.f32.mrb[0].mxu0
        %v6532 = vadd.f32 %v6459, %v6531
        %6533 = vmatprep.mubr.bf16.mxu0 %v3367
        %6534 = vmatmul.mubr.bf16.gmra.mrb[0].mxu0 %v3366
        %v6535 = vpop.f32.mrb[0].mxu0
        %v6536 = vadd.f32 %v6463, %v6535
        %v6537 = vpop.f32.mrb[0].mxu0
        %v6538 = vadd.f32 %v6465, %v6537
        %v6539 = vpop.f32.mrb[0].mxu0
        %v6540 = vadd.f32 %v6467, %v6539
        %v6541 = vpop.f32.mrb[0].mxu0
        %v6542 = vadd.f32 %v6469, %v6541
        %6543 = vmatprep.mubr.bf16.mxu0 %v3371
        %6544 = vmatmul.mubr.bf16.gmra.mrb[0].mxu0 %v3370
        %v6545 = vpop.f32.mrb[0].mxu0
        %v6546 = vadd.f32 %v6473, %v6545
        %v6547 = vpop.f32.mrb[0].mxu0
        %v6548 = vadd.f32 %v6475, %v6547
        %v6549 = vpop.f32.mrb[0].mxu0
        %v6550 = vadd.f32 %v6477, %v6549
        %v6551 = vpop.f32.mrb[0].mxu0
        %v6552 = vadd.f32 %v6479, %v6551
        %6553 = vdwg.mxu0
        %v6554 = vadd.f32 %v5309, %v6370
        %v6555 = vadd.f32 %v5311, %v6372
        %v6556 = vadd.f32 %v5455, %v6516
        %v6557 = vadd.f32 %v5457, %v6518
        %v6558 = vadd.f32 %v5313, %v6374
        %v6559 = vadd.f32 %v5315, %v6376
        %v6560 = vadd.f32 %v5459, %v6520
        %v6561 = vadd.f32 %v5461, %v6522
        %v6562 = vadd.f32 %v5319, %v6380
        %v6563 = vadd.f32 %v5321, %v6382
        %v6564 = vadd.f32 %v5465, %v6526
        %v6565 = vadd.f32 %v5467, %v6528
        %v6566 = vadd.f32 %v5323, %v6384
        %v6567 = vadd.f32 %v5325, %v6386
        %v6568 = vadd.f32 %v5469, %v6530
        %v6569 = vadd.f32 %v5471, %v6532
        %v6570 = vadd.f32 %v5329, %v6390
        %v6571 = vadd.f32 %v5331, %v6392
        %v6572 = vadd.f32 %v5475, %v6536
        %v6573 = vadd.f32 %v5477, %v6538
        %v6574 = vadd.f32 %v5333, %v6394
        %v6575 = vadd.f32 %v5335, %v6396
        %v6576 = vadd.f32 %v5479, %v6540
        %v6577 = vadd.f32 %v5481, %v6542
        %v6578 = vadd.f32 %v5339, %v6400
        %v6579 = vadd.f32 %v5341, %v6402
        %v6580 = vadd.f32 %v5485, %v6546
        %v6581 = vadd.f32 %v5487, %v6548
        %v6582 = vadd.f32 %v5343, %v6404
        %v6583 = vadd.f32 %v5345, %v6406
        %v6584 = vadd.f32 %v5489, %v6550
        %v6585 = vadd.f32 %v5491, %v6552
        %v6586 = vld [vmem:[#allocation16] sm:$0xf]
        %v6588 = vlaneseq
        %v6589 = vshrl.u32 %v6588, 7
        %v6590 = vsub.s32 0, %v6589
        %v6591 = vrot.slane %v6586, %v6590
        %v6592 = vlaneseq
        %v6593 = vshrl.u32 %v6592, 7
        %v6594 = vsub.s32 1, %v6593
        %v6595 = vrot.slane %v6586, %v6594
        %v6596 = vlaneseq
        %v6597 = vshrl.u32 %v6596, 7
        %v6598 = vsub.s32 2, %v6597
        %v6599 = vrot.slane %v6586, %v6598
        %v6600 = vlaneseq
        %v6601 = vshrl.u32 %v6600, 7
        %v6602 = vsub.s32 3, %v6601
        %v6603 = vrot.slane %v6586, %v6602
        %v6608 = vadd.f32 %v6554, %v6591
        %v6609 = vadd.f32 %v6555, %v6595
        %v6610 = vadd.f32 %v6556, %v6599
        %v6611 = vadd.f32 %v6557, %v6603
        %v6612 = vadd.f32 %v6558, %v6591
        %v6613 = vadd.f32 %v6559, %v6595
        %v6614 = vadd.f32 %v6560, %v6599
        %v6615 = vadd.f32 %v6561, %v6603
        %v6616 = vadd.f32 %v6562, %v6591
        %v6617 = vadd.f32 %v6563, %v6595
        %v6618 = vadd.f32 %v6564, %v6599
        %v6619 = vadd.f32 %v6565, %v6603
        %v6620 = vadd.f32 %v6566, %v6591
        %v6621 = vadd.f32 %v6567, %v6595
        %v6622 = vadd.f32 %v6568, %v6599
        %v6623 = vadd.f32 %v6569, %v6603
        %v6624 = vadd.f32 %v6570, %v6591
        %v6625 = vadd.f32 %v6571, %v6595
        %v6626 = vadd.f32 %v6572, %v6599
        %v6627 = vadd.f32 %v6573, %v6603
        %v6628 = vadd.f32 %v6574, %v6591
        %v6629 = vadd.f32 %v6575, %v6595
        %v6630 = vadd.f32 %v6576, %v6599
        %v6631 = vadd.f32 %v6577, %v6603
        %v6632 = vadd.f32 %v6578, %v6591
        %v6633 = vadd.f32 %v6579, %v6595
        %v6634 = vadd.f32 %v6580, %v6599
        %v6635 = vadd.f32 %v6581, %v6603
        %v6636 = vadd.f32 %v6582, %v6591
        %v6637 = vadd.f32 %v6583, %v6595
        %v6638 = vadd.f32 %v6584, %v6599
        %v6639 = vadd.f32 %v6585, %v6603
        %v6640 = vmax.f32 %v6608, 0.0
        %v6641 = vmax.f32 %v6609, 0.0
        %v6642 = vmax.f32 %v6610, 0.0
        %v6643 = vmax.f32 %v6611, 0.0
        %v6644 = vmax.f32 %v6612, 0.0
        %v6645 = vmax.f32 %v6613, 0.0
        %v6646 = vmax.f32 %v6614, 0.0
        %v6647 = vmax.f32 %v6615, 0.0
        %v6648 = vmax.f32 %v6616, 0.0
        %v6649 = vmax.f32 %v6617, 0.0
        %v6650 = vmax.f32 %v6618, 0.0
        %v6651 = vmax.f32 %v6619, 0.0
        %v6652 = vmax.f32 %v6620, 0.0
        %v6653 = vmax.f32 %v6621, 0.0
        %v6654 = vmax.f32 %v6622, 0.0
        %v6655 = vmax.f32 %v6623, 0.0
        %v6656 = vmax.f32 %v6624, 0.0
        %v6657 = vmax.f32 %v6625, 0.0
        %v6658 = vmax.f32 %v6626, 0.0
        %v6659 = vmax.f32 %v6627, 0.0
        %v6660 = vmax.f32 %v6628, 0.0
        %v6661 = vmax.f32 %v6629, 0.0
        %v6662 = vmax.f32 %v6630, 0.0
        %v6663 = vmax.f32 %v6631, 0.0
        %v6664 = vmax.f32 %v6632, 0.0
        %v6665 = vmax.f32 %v6633, 0.0
        %v6666 = vmax.f32 %v6634, 0.0
        %v6667 = vmax.f32 %v6635, 0.0
        %v6668 = vmax.f32 %v6636, 0.0
        %v6669 = vmax.f32 %v6637, 0.0
        %v6670 = vmax.f32 %v6638, 0.0
        %v6671 = vmax.f32 %v6639, 0.0
        %v6672 = vpack.c.bf16 %v6644, %v6640
        %v6673 = vpack.c.bf16 %v6645, %v6641
        %v6674 = vpack.c.bf16 %v6646, %v6642
        %v6675 = vpack.c.bf16 %v6647, %v6643
        %v6676 = vpack.c.bf16 %v6652, %v6648
        %v6677 = vpack.c.bf16 %v6653, %v6649
        %v6678 = vpack.c.bf16 %v6654, %v6650
        %v6679 = vpack.c.bf16 %v6655, %v6651
        %v6680 = vpack.c.bf16 %v6660, %v6656
        %v6681 = vpack.c.bf16 %v6661, %v6657
        %v6682 = vpack.c.bf16 %v6662, %v6658
        %v6683 = vpack.c.bf16 %v6663, %v6659
        %v6684 = vpack.c.bf16 %v6668, %v6664
        %v6685 = vpack.c.bf16 %v6669, %v6665
        %v6686 = vpack.c.bf16 %v6670, %v6666
        %v6687 = vpack.c.bf16 %v6671, %v6667
        %v6688 = vld [vmem:[#allocation17] sm:$0xff]
        %v6689 = vld [vmem:[#allocation17 + $0x8] sm:$0xf]
        %v6690 = vld [vmem:[#allocation17 + $0xc] sm:$0xff]
        %v6691 = vld [vmem:[#allocation17 + $0x14] sm:$0xf]
        %v6692 = vld [vmem:[#allocation17 + $0x18] sm:$0xff]
        %v6693 = vld [vmem:[#allocation17 + $0x20] sm:$0xf]
        %v6694 = vld [vmem:[#allocation17 + $0x24] sm:$0xff]
        %v6695 = vld [vmem:[#allocation17 + $0x2c] sm:$0xf]
        %v6696 = vld [vmem:[#allocation17 + $0x30] sm:$0xff]
        %v6697 = vld [vmem:[#allocation17 + $0x38] sm:$0xf]
        %v6698 = vld [vmem:[#allocation17 + $0x3c] sm:$0xff]
        %v6699 = vld [vmem:[#allocation17 + $0x44] sm:$0xf]
        %v6700 = vld [vmem:[#allocation17 + $0x48] sm:$0xff]
        %v6701 = vld [vmem:[#allocation17 + $0x50] sm:$0xf]
        %v6702 = vld [vmem:[#allocation17 + $0x54] sm:$0xff]
        %v6703 = vld [vmem:[#allocation17 + $0x5c] sm:$0xf]
        %v6704 = vld [vmem:[#allocation17 + $0x60] sm:$0xff]
        %v6705 = vld [vmem:[#allocation17 + $0x68] sm:$0xf]
        %v6706 = vld [vmem:[#allocation17 + $0x6c] sm:$0xff]
        %v6707 = vld [vmem:[#allocation17 + $0x74] sm:$0xf]
        %v6708 = vld [vmem:[#allocation17 + $0x78] sm:$0xff]
        %v6709 = vld [vmem:[#allocation17 + $0x80] sm:$0xf]
        %v6710 = vld [vmem:[#allocation17 + $0x84] sm:$0xff]
        %v6711 = vld [vmem:[#allocation17 + $0x8c] sm:$0xf]
        %v6712 = vld [vmem:[#allocation17 + $0x90] sm:$0xff]
        %v6713 = vld [vmem:[#allocation17 + $0x98] sm:$0xf]
        %v6714 = vld [vmem:[#allocation17 + $0x9c] sm:$0xff]
        %v6715 = vld [vmem:[#allocation17 + $0xa4] sm:$0xf]
        %v6716 = vld [vmem:[#allocation17 + $0xa8] sm:$0xff]
        %v6717 = vld [vmem:[#allocation17 + $0xb0] sm:$0xf]
        %v6718 = vld [vmem:[#allocation17 + $0xb4] sm:$0xff]
        %v6719 = vld [vmem:[#allocation17 + $0xbc] sm:$0xf]
        %v6720 = vld [vmem:[#allocation17 + $0xc0] sm:$0xff]
        %v6721 = vld [vmem:[#allocation17 + $0xc8] sm:$0xf]
        %v6722 = vld [vmem:[#allocation17 + $0xcc] sm:$0xff]
        %v6723 = vld [vmem:[#allocation17 + $0xd4] sm:$0xf]
        %v6724 = vld [vmem:[#allocation17 + $0xd8] sm:$0xff]
        %v6725 = vld [vmem:[#allocation17 + $0xe0] sm:$0xf]
        %v6726 = vld [vmem:[#allocation17 + $0xe4] sm:$0xff]
        %v6727 = vld [vmem:[#allocation17 + $0xec] sm:$0xf]
        %v6728 = vld [vmem:[#allocation17 + $0xf0] sm:$0xff]
        %v6729 = vld [vmem:[#allocation17 + $0xf8] sm:$0xf]
        %v6730 = vld [vmem:[#allocation17 + $0xfc] sm:$0xff]
        %v6731 = vld [vmem:[#allocation17 + $0x104] sm:$0xf]
        %v6732 = vld [vmem:[#allocation17 + $0x108] sm:$0xff]
        %v6733 = vld [vmem:[#allocation17 + $0x110] sm:$0xf]
        %v6734 = vld [vmem:[#allocation17 + $0x114] sm:$0xff]
        %v6735 = vld [vmem:[#allocation17 + $0x11c] sm:$0xf]
        %v6736 = vld [vmem:[#allocation17 + $0x120] sm:$0xff]
        %v6737 = vld [vmem:[#allocation17 + $0x128] sm:$0xf]
        %v6738 = vld [vmem:[#allocation17 + $0x12c] sm:$0xff]
        %v6739 = vld [vmem:[#allocation17 + $0x134] sm:$0xf]
        %v6740 = vld [vmem:[#allocation17 + $0x138] sm:$0xff]
        %v6741 = vld [vmem:[#allocation17 + $0x140] sm:$0xf]
        %v6742 = vld [vmem:[#allocation17 + $0x144] sm:$0xff]
        %v6743 = vld [vmem:[#allocation17 + $0x14c] sm:$0xf]
        %v6744 = vld [vmem:[#allocation17 + $0x150] sm:$0xff]
        %v6745 = vld [vmem:[#allocation17 + $0x158] sm:$0xf]
        %v6746 = vld [vmem:[#allocation17 + $0x15c] sm:$0xff]
        %v6747 = vld [vmem:[#allocation17 + $0x164] sm:$0xf]
        %v6748 = vld [vmem:[#allocation17 + $0x168] sm:$0xff]
        %v6749 = vld [vmem:[#allocation17 + $0x170] sm:$0xf]
        %v6750 = vld [vmem:[#allocation17 + $0x174] sm:$0xff]
        %v6751 = vld [vmem:[#allocation17 + $0x17c] sm:$0xf]
        %v6752 = vld [vmem:[#allocation17 + $0x180] sm:$0xff]
        %v6753 = vld [vmem:[#allocation17 + $0x188] sm:$0xf]
        %v6754 = vld [vmem:[#allocation17 + $0x18c] sm:$0xff]
        %v6755 = vld [vmem:[#allocation17 + $0x194] sm:$0xf]
        %v6756 = vld [vmem:[#allocation17 + $0x198] sm:$0xff]
        %v6757 = vld [vmem:[#allocation17 + $0x1a0] sm:$0xf]
        %v6758 = vld [vmem:[#allocation17 + $0x1a4] sm:$0xff]
        %v6759 = vld [vmem:[#allocation17 + $0x1ac] sm:$0xf]
        %v6760 = vld [vmem:[#allocation17 + $0x1b0] sm:$0xff]
        %v6761 = vld [vmem:[#allocation17 + $0x1b8] sm:$0xf]
        %v6762 = vld [vmem:[#allocation17 + $0x1bc] sm:$0xff]
        %v6763 = vld [vmem:[#allocation17 + $0x1c4] sm:$0xf]
        %v6764 = vld [vmem:[#allocation17 + $0x1c8] sm:$0xff]
        %v6765 = vld [vmem:[#allocation17 + $0x1d0] sm:$0xf]
        %v6766 = vld [vmem:[#allocation17 + $0x1d4] sm:$0xff]
        %v6767 = vld [vmem:[#allocation17 + $0x1dc] sm:$0xf]
        %v6768 = vld [vmem:[#allocation17 + $0x1e0] sm:$0xff]
        %v6769 = vld [vmem:[#allocation17 + $0x1e8] sm:$0xf]
        %v6770 = vld [vmem:[#allocation17 + $0x1ec] sm:$0xff]
        %v6771 = vld [vmem:[#allocation17 + $0x1f4] sm:$0xf]
        %v6772 = vld [vmem:[#allocation17 + $0x1f8] sm:$0xff]
        %v6773 = vld [vmem:[#allocation17 + $0x200] sm:$0xf]
        %v6774 = vld [vmem:[#allocation17 + $0x204] sm:$0xff]
        %v6775 = vld [vmem:[#allocation17 + $0x20c] sm:$0xf]
        %v6776 = vld [vmem:[#allocation17 + $0x210] sm:$0xff]
        %v6777 = vld [vmem:[#allocation17 + $0x218] sm:$0xf]
        %v6778 = vld [vmem:[#allocation17 + $0x21c] sm:$0xff]
        %v6779 = vld [vmem:[#allocation17 + $0x224] sm:$0xf]
        %v6780 = vld [vmem:[#allocation17 + $0x228] sm:$0xff]
        %v6781 = vld [vmem:[#allocation17 + $0x230] sm:$0xf]
        %v6782 = vld [vmem:[#allocation17 + $0x234] sm:$0xff]
        %v6783 = vld [vmem:[#allocation17 + $0x23c] sm:$0xf]
        %v6784 = vld [vmem:[#allocation17 + $0x240] sm:$0xff]
        %v6785 = vld [vmem:[#allocation17 + $0x248] sm:$0xf]
        %v6786 = vld [vmem:[#allocation17 + $0x24c] sm:$0xff]
        %v6787 = vld [vmem:[#allocation17 + $0x254] sm:$0xf]
        %v6788 = vld [vmem:[#allocation17 + $0x258] sm:$0xff]
        %v6789 = vld [vmem:[#allocation17 + $0x260] sm:$0xf]
        %v6790 = vld [vmem:[#allocation17 + $0x264] sm:$0xff]
        %v6791 = vld [vmem:[#allocation17 + $0x26c] sm:$0xf]
        %v6792 = vld [vmem:[#allocation17 + $0x270] sm:$0xff]
        %v6793 = vld [vmem:[#allocation17 + $0x278] sm:$0xf]
        %v6794 = vld [vmem:[#allocation17 + $0x27c] sm:$0xff]
        %v6795 = vld [vmem:[#allocation17 + $0x284] sm:$0xf]
        %v6796 = vld [vmem:[#allocation17 + $0x288] sm:$0xff]
        %v6797 = vld [vmem:[#allocation17 + $0x290] sm:$0xf]
        %v6798 = vld [vmem:[#allocation17 + $0x294] sm:$0xff]
        %v6799 = vld [vmem:[#allocation17 + $0x29c] sm:$0xf]
        %v6800 = vld [vmem:[#allocation17 + $0x2a0] sm:$0xff]
        %v6801 = vld [vmem:[#allocation17 + $0x2a8] sm:$0xf]
        %v6802 = vld [vmem:[#allocation17 + $0x2ac] sm:$0xff]
        %v6803 = vld [vmem:[#allocation17 + $0x2b4] sm:$0xf]
        %v6804 = vld [vmem:[#allocation17 + $0x2b8] sm:$0xff]
        %v6805 = vld [vmem:[#allocation17 + $0x2c0] sm:$0xf]
        %v6806 = vld [vmem:[#allocation17 + $0x2c4] sm:$0xff]
        %v6807 = vld [vmem:[#allocation17 + $0x2cc] sm:$0xf]
        %v6808 = vld [vmem:[#allocation17 + $0x2d0] sm:$0xff]
        %v6809 = vld [vmem:[#allocation17 + $0x2d8] sm:$0xf]
        %v6810 = vld [vmem:[#allocation17 + $0x2dc] sm:$0xff]
        %v6811 = vld [vmem:[#allocation17 + $0x2e4] sm:$0xf]
        %v6812 = vld [vmem:[#allocation17 + $0x2e8] sm:$0xff]
        %v6813 = vld [vmem:[#allocation17 + $0x2f0] sm:$0xf]
        %v6814 = vld [vmem:[#allocation17 + $0x2f4] sm:$0xff]
        %v6815 = vld [vmem:[#allocation17 + $0x2fc] sm:$0xf]
        %v6944 = vunpack.c.l.b16 %v6688
        %v6945 = vunpack.c.h.b16 %v6688
        %v6946 = vunpack.c.l.b16 %v6689
        %v6947 = vunpack.c.l.b16 %v6690
        %v6948 = vunpack.c.h.b16 %v6690
        %v6949 = vunpack.c.l.b16 %v6691
        %v6950 = vunpack.c.l.b16 %v6692
        %v6951 = vunpack.c.h.b16 %v6692
        %v6952 = vunpack.c.l.b16 %v6693
        %v6953 = vunpack.c.l.b16 %v6694
        %v6954 = vunpack.c.h.b16 %v6694
        %v6955 = vunpack.c.l.b16 %v6695
        %v6956 = vunpack.c.l.b16 %v6696
        %v6957 = vunpack.c.h.b16 %v6696
        %v6958 = vunpack.c.l.b16 %v6697
        %v6959 = vunpack.c.l.b16 %v6698
        %v6960 = vunpack.c.h.b16 %v6698
        %v6961 = vunpack.c.l.b16 %v6699
        %v6962 = vunpack.c.l.b16 %v6700
        %v6963 = vunpack.c.h.b16 %v6700
        %v6964 = vunpack.c.l.b16 %v6701
        %v6965 = vunpack.c.l.b16 %v6702
        %v6966 = vunpack.c.h.b16 %v6702
        %v6967 = vunpack.c.l.b16 %v6703
        %v6968 = vunpack.c.l.b16 %v6704
        %v6969 = vunpack.c.h.b16 %v6704
        %v6970 = vunpack.c.l.b16 %v6705
        %v6971 = vunpack.c.l.b16 %v6706
        %v6972 = vunpack.c.h.b16 %v6706
        %v6973 = vunpack.c.l.b16 %v6707
        %v6974 = vunpack.c.l.b16 %v6708
        %v6975 = vunpack.c.h.b16 %v6708
        %v6976 = vunpack.c.l.b16 %v6709
        %v6977 = vunpack.c.l.b16 %v6710
        %v6978 = vunpack.c.h.b16 %v6710
        %v6979 = vunpack.c.l.b16 %v6711
        %v6980 = vunpack.c.l.b16 %v6712
        %v6981 = vunpack.c.h.b16 %v6712
        %v6982 = vunpack.c.l.b16 %v6713
        %v6983 = vunpack.c.l.b16 %v6714
        %v6984 = vunpack.c.h.b16 %v6714
        %v6985 = vunpack.c.l.b16 %v6715
        %v6986 = vunpack.c.l.b16 %v6716
        %v6987 = vunpack.c.h.b16 %v6716
        %v6988 = vunpack.c.l.b16 %v6717
        %v6989 = vunpack.c.l.b16 %v6718
        %v6990 = vunpack.c.h.b16 %v6718
        %v6991 = vunpack.c.l.b16 %v6719
        %v6992 = vunpack.c.l.b16 %v6720
        %v6993 = vunpack.c.h.b16 %v6720
        %v6994 = vunpack.c.l.b16 %v6721
        %v6995 = vunpack.c.l.b16 %v6722
        %v6996 = vunpack.c.h.b16 %v6722
        %v6997 = vunpack.c.l.b16 %v6723
        %v6998 = vunpack.c.l.b16 %v6724
        %v6999 = vunpack.c.h.b16 %v6724
        %v7000 = vunpack.c.l.b16 %v6725
        %v7001 = vunpack.c.l.b16 %v6726
        %v7002 = vunpack.c.h.b16 %v6726
        %v7003 = vunpack.c.l.b16 %v6727
        %v7004 = vunpack.c.l.b16 %v6728
        %v7005 = vunpack.c.h.b16 %v6728
        %v7006 = vunpack.c.l.b16 %v6729
        %v7007 = vunpack.c.l.b16 %v6730
        %v7008 = vunpack.c.h.b16 %v6730
        %v7009 = vunpack.c.l.b16 %v6731
        %v7010 = vunpack.c.l.b16 %v6732
        %v7011 = vunpack.c.h.b16 %v6732
        %v7012 = vunpack.c.l.b16 %v6733
        %v7013 = vunpack.c.l.b16 %v6734
        %v7014 = vunpack.c.h.b16 %v6734
        %v7015 = vunpack.c.l.b16 %v6735
        %v7016 = vunpack.c.l.b16 %v6736
        %v7017 = vunpack.c.h.b16 %v6736
        %v7018 = vunpack.c.l.b16 %v6737
        %v7019 = vunpack.c.l.b16 %v6738
        %v7020 = vunpack.c.h.b16 %v6738
        %v7021 = vunpack.c.l.b16 %v6739
        %v7022 = vunpack.c.l.b16 %v6740
        %v7023 = vunpack.c.h.b16 %v6740
        %v7024 = vunpack.c.l.b16 %v6741
        %v7025 = vunpack.c.l.b16 %v6742
        %v7026 = vunpack.c.h.b16 %v6742
        %v7027 = vunpack.c.l.b16 %v6743
        %v7028 = vunpack.c.l.b16 %v6744
        %v7029 = vunpack.c.h.b16 %v6744
        %v7030 = vunpack.c.l.b16 %v6745
        %v7031 = vunpack.c.l.b16 %v6746
        %v7032 = vunpack.c.h.b16 %v6746
        %v7033 = vunpack.c.l.b16 %v6747
        %v7034 = vunpack.c.l.b16 %v6748
        %v7035 = vunpack.c.h.b16 %v6748
        %v7036 = vunpack.c.l.b16 %v6749
        %v7037 = vunpack.c.l.b16 %v6750
        %v7038 = vunpack.c.h.b16 %v6750
        %v7039 = vunpack.c.l.b16 %v6751
        %v7040 = vunpack.c.l.b16 %v6752
        %v7041 = vunpack.c.h.b16 %v6752
        %v7042 = vunpack.c.l.b16 %v6753
        %v7043 = vunpack.c.l.b16 %v6754
        %v7044 = vunpack.c.h.b16 %v6754
        %v7045 = vunpack.c.l.b16 %v6755
        %v7046 = vunpack.c.l.b16 %v6756
        %v7047 = vunpack.c.h.b16 %v6756
        %v7048 = vunpack.c.l.b16 %v6757
        %v7049 = vunpack.c.l.b16 %v6758
        %v7050 = vunpack.c.h.b16 %v6758
        %v7051 = vunpack.c.l.b16 %v6759
        %v7052 = vunpack.c.l.b16 %v6760
        %v7053 = vunpack.c.h.b16 %v6760
        %v7054 = vunpack.c.l.b16 %v6761
        %v7055 = vunpack.c.l.b16 %v6762
        %v7056 = vunpack.c.h.b16 %v6762
        %v7057 = vunpack.c.l.b16 %v6763
        %v7058 = vunpack.c.l.b16 %v6764
        %v7059 = vunpack.c.h.b16 %v6764
        %v7060 = vunpack.c.l.b16 %v6765
        %v7061 = vunpack.c.l.b16 %v6766
        %v7062 = vunpack.c.h.b16 %v6766
        %v7063 = vunpack.c.l.b16 %v6767
        %v7064 = vunpack.c.l.b16 %v6768
        %v7065 = vunpack.c.h.b16 %v6768
        %v7066 = vunpack.c.l.b16 %v6769
        %v7067 = vunpack.c.l.b16 %v6770
        %v7068 = vunpack.c.h.b16 %v6770
        %v7069 = vunpack.c.l.b16 %v6771
        %v7070 = vunpack.c.l.b16 %v6772
        %v7071 = vunpack.c.h.b16 %v6772
        %v7072 = vunpack.c.l.b16 %v6773
        %v7073 = vunpack.c.l.b16 %v6774
        %v7074 = vunpack.c.h.b16 %v6774
        %v7075 = vunpack.c.l.b16 %v6775
        %v7076 = vunpack.c.l.b16 %v6776
        %v7077 = vunpack.c.h.b16 %v6776
        %v7078 = vunpack.c.l.b16 %v6777
        %v7079 = vunpack.c.l.b16 %v6778
        %v7080 = vunpack.c.h.b16 %v6778
        %v7081 = vunpack.c.l.b16 %v6779
        %v7082 = vunpack.c.l.b16 %v6780
        %v7083 = vunpack.c.h.b16 %v6780
        %v7084 = vunpack.c.l.b16 %v6781
        %v7085 = vunpack.c.l.b16 %v6782
        %v7086 = vunpack.c.h.b16 %v6782
        %v7087 = vunpack.c.l.b16 %v6783
        %v7088 = vunpack.c.l.b16 %v6784
        %v7089 = vunpack.c.h.b16 %v6784
        %v7090 = vunpack.c.l.b16 %v6785
        %v7091 = vunpack.c.l.b16 %v6786
        %v7092 = vunpack.c.h.b16 %v6786
        %v7093 = vunpack.c.l.b16 %v6787
        %v7094 = vunpack.c.l.b16 %v6788
        %v7095 = vunpack.c.h.b16 %v6788
        %v7096 = vunpack.c.l.b16 %v6789
        %v7097 = vunpack.c.l.b16 %v6790
        %v7098 = vunpack.c.h.b16 %v6790
        %v7099 = vunpack.c.l.b16 %v6791
        %v7100 = vunpack.c.l.b16 %v6792
        %v7101 = vunpack.c.h.b16 %v6792
        %v7102 = vunpack.c.l.b16 %v6793
        %v7103 = vunpack.c.l.b16 %v6794
        %v7104 = vunpack.c.h.b16 %v6794
        %v7105 = vunpack.c.l.b16 %v6795
        %v7106 = vunpack.c.l.b16 %v6796
        %v7107 = vunpack.c.h.b16 %v6796
        %v7108 = vunpack.c.l.b16 %v6797
        %v7109 = vunpack.c.l.b16 %v6798
        %v7110 = vunpack.c.h.b16 %v6798
        %v7111 = vunpack.c.l.b16 %v6799
        %v7112 = vunpack.c.l.b16 %v6800
        %v7113 = vunpack.c.h.b16 %v6800
        %v7114 = vunpack.c.l.b16 %v6801
        %v7115 = vunpack.c.l.b16 %v6802
        %v7116 = vunpack.c.h.b16 %v6802
        %v7117 = vunpack.c.l.b16 %v6803
        %v7118 = vunpack.c.l.b16 %v6804
        %v7119 = vunpack.c.h.b16 %v6804
        %v7120 = vunpack.c.l.b16 %v6805
        %v7121 = vunpack.c.l.b16 %v6806
        %v7122 = vunpack.c.h.b16 %v6806
        %v7123 = vunpack.c.l.b16 %v6807
        %v7124 = vunpack.c.l.b16 %v6808
        %v7125 = vunpack.c.h.b16 %v6808
        %v7126 = vunpack.c.l.b16 %v6809
        %v7127 = vunpack.c.l.b16 %v6810
        %v7128 = vunpack.c.h.b16 %v6810
        %v7129 = vunpack.c.l.b16 %v6811
        %v7130 = vunpack.c.l.b16 %v6812
        %v7131 = vunpack.c.h.b16 %v6812
        %v7132 = vunpack.c.l.b16 %v6813
        %v7133 = vunpack.c.l.b16 %v6814
        %v7134 = vunpack.c.h.b16 %v6814
        %v7135 = vunpack.c.l.b16 %v6815
        %v7136 = vpack.c.b16 %v6947, %v6944
        %v7137 = vpack.c.b16 %v6948, %v6945
        %v7138 = vpack.c.b16 %v6949, %v6946
        %v7139 = vpack.c.b16 %v6953, %v6950
        %v7140 = vpack.c.b16 %v6954, %v6951
        %v7141 = vpack.c.b16 %v6955, %v6952
        %v7142 = vpack.c.b16 %v6959, %v6956
        %v7143 = vpack.c.b16 %v6960, %v6957
        %v7144 = vpack.c.b16 %v6961, %v6958
        %v7145 = vpack.c.b16 %v6965, %v6962
        %v7146 = vpack.c.b16 %v6966, %v6963
        %v7147 = vpack.c.b16 %v6967, %v6964
        %v7148 = vpack.c.b16 %v6971, %v6968
        %v7149 = vpack.c.b16 %v6972, %v6969
        %v7150 = vpack.c.b16 %v6973, %v6970
        %v7151 = vpack.c.b16 %v6977, %v6974
        %v7152 = vpack.c.b16 %v6978, %v6975
        %v7153 = vpack.c.b16 %v6979, %v6976
        %v7154 = vpack.c.b16 %v6983, %v6980
        %v7155 = vpack.c.b16 %v6984, %v6981
        %v7156 = vpack.c.b16 %v6985, %v6982
        %v7157 = vpack.c.b16 %v6989, %v6986
        %v7158 = vpack.c.b16 %v6990, %v6987
        %v7159 = vpack.c.b16 %v6991, %v6988
        %v7160 = vpack.c.b16 %v6995, %v6992
        %v7161 = vpack.c.b16 %v6996, %v6993
        %v7162 = vpack.c.b16 %v6997, %v6994
        %v7163 = vpack.c.b16 %v7001, %v6998
        %v7164 = vpack.c.b16 %v7002, %v6999
        %v7165 = vpack.c.b16 %v7003, %v7000
        %v7166 = vpack.c.b16 %v7007, %v7004
        %v7167 = vpack.c.b16 %v7008, %v7005
        %v7168 = vpack.c.b16 %v7009, %v7006
        %v7169 = vpack.c.b16 %v7013, %v7010
        %v7170 = vpack.c.b16 %v7014, %v7011
        %v7171 = vpack.c.b16 %v7015, %v7012
        %v7172 = vpack.c.b16 %v7019, %v7016
        %v7173 = vpack.c.b16 %v7020, %v7017
        %v7174 = vpack.c.b16 %v7021, %v7018
        %v7175 = vpack.c.b16 %v7025, %v7022
        %v7176 = vpack.c.b16 %v7026, %v7023
        %v7177 = vpack.c.b16 %v7027, %v7024
        %v7178 = vpack.c.b16 %v7031, %v7028
        %v7179 = vpack.c.b16 %v7032, %v7029
        %v7180 = vpack.c.b16 %v7033, %v7030
        %v7181 = vpack.c.b16 %v7037, %v7034
        %v7182 = vpack.c.b16 %v7038, %v7035
        %v7183 = vpack.c.b16 %v7039, %v7036
        %v7184 = vpack.c.b16 %v7043, %v7040
        %v7185 = vpack.c.b16 %v7044, %v7041
        %v7186 = vpack.c.b16 %v7045, %v7042
        %v7187 = vpack.c.b16 %v7049, %v7046
        %v7188 = vpack.c.b16 %v7050, %v7047
        %v7189 = vpack.c.b16 %v7051, %v7048
        %v7190 = vpack.c.b16 %v7055, %v7052
        %v7191 = vpack.c.b16 %v7056, %v7053
        %v7192 = vpack.c.b16 %v7057, %v7054
        %v7193 = vpack.c.b16 %v7061, %v7058
        %v7194 = vpack.c.b16 %v7062, %v7059
        %v7195 = vpack.c.b16 %v7063, %v7060
        %v7196 = vpack.c.b16 %v7067, %v7064
        %v7197 = vpack.c.b16 %v7068, %v7065
        %v7198 = vpack.c.b16 %v7069, %v7066
        %v7199 = vpack.c.b16 %v7073, %v7070
        %v7200 = vpack.c.b16 %v7074, %v7071
        %v7201 = vpack.c.b16 %v7075, %v7072
        %v7202 = vpack.c.b16 %v7079, %v7076
        %v7203 = vpack.c.b16 %v7080, %v7077
        %v7204 = vpack.c.b16 %v7081, %v7078
        %v7205 = vpack.c.b16 %v7085, %v7082
        %v7206 = vpack.c.b16 %v7086, %v7083
        %v7207 = vpack.c.b16 %v7087, %v7084
        %v7208 = vpack.c.b16 %v7091, %v7088
        %v7209 = vpack.c.b16 %v7092, %v7089
        %v7210 = vpack.c.b16 %v7093, %v7090
        %v7211 = vpack.c.b16 %v7097, %v7094
        %v7212 = vpack.c.b16 %v7098, %v7095
        %v7213 = vpack.c.b16 %v7099, %v7096
        %v7214 = vpack.c.b16 %v7103, %v7100
        %v7215 = vpack.c.b16 %v7104, %v7101
        %v7216 = vpack.c.b16 %v7105, %v7102
        %v7217 = vpack.c.b16 %v7109, %v7106
        %v7218 = vpack.c.b16 %v7110, %v7107
        %v7219 = vpack.c.b16 %v7111, %v7108
        %v7220 = vpack.c.b16 %v7115, %v7112
        %v7221 = vpack.c.b16 %v7116, %v7113
        %v7222 = vpack.c.b16 %v7117, %v7114
        %v7223 = vpack.c.b16 %v7121, %v7118
        %v7224 = vpack.c.b16 %v7122, %v7119
        %v7225 = vpack.c.b16 %v7123, %v7120
        %v7226 = vpack.c.b16 %v7127, %v7124
        %v7227 = vpack.c.b16 %v7128, %v7125
        %v7228 = vpack.c.b16 %v7129, %v7126
        %v7229 = vpack.c.b16 %v7133, %v7130
        %v7230 = vpack.c.b16 %v7134, %v7131
        %v7231 = vpack.c.b16 %v7135, %v7132
        %7328 = vmatprep.subr.bf16.mxu0 %v7137
        %7329 = vmatpush1.bf16.msra.mxu0 %v7136
        %7330 = vmatprep.subr.bf16.mxu0 %v7140
        %7331 = vmatpush1.bf16.msra.mxu0 %v7139
        %7332 = vmatprep.subr.bf16.mxu0 %v7143
        %7333 = vmatpush1.bf16.msra.mxu0 %v7142
        %7334 = vmatprep.subr.bf16.mxu0 %v7146
        %7335 = vmatpush1.bf16.msra.mxu0 %v7145
        %7336 = vmatprep.subr.bf16.mxu0 %v7149
        %7337 = vmatpush1.bf16.msra.mxu0 %v7148
        %7338 = vmatprep.subr.bf16.mxu0 %v7152
        %7339 = vmatpush1.bf16.msra.mxu0 %v7151
        %7340 = vmatprep.subr.bf16.mxu0 %v7155
        %7341 = vmatpush1.bf16.msra.mxu0 %v7154
        %7342 = vmatprep.subr.bf16.mxu0 %v7158
        %7343 = vmatpush1.bf16.msra.mxu0 %v7157
        %7344 = vmatprep.subr.bf16.mxu0 %v7161
        %7345 = vmatpush1.bf16.msra.mxu0 %v7160
        %7346 = vmatprep.subr.bf16.mxu0 %v7164
        %7347 = vmatpush1.bf16.msra.mxu0 %v7163
        %7348 = vmatprep.subr.bf16.mxu0 %v7167
        %7349 = vmatpush1.bf16.msra.mxu0 %v7166
        %7350 = vmatprep.subr.bf16.mxu0 %v7170
        %7351 = vmatpush1.bf16.msra.mxu0 %v7169
        %7352 = vmatprep.subr.bf16.mxu0 %v7173
        %7353 = vmatpush1.bf16.msra.mxu0 %v7172
        %7354 = vmatprep.subr.bf16.mxu0 %v7176
        %7355 = vmatpush1.bf16.msra.mxu0 %v7175
        %7356 = vmatprep.subr.bf16.mxu0 %v7179
        %7357 = vmatpush1.bf16.msra.mxu0 %v7178
        %7358 = vmatprep.subr.bf16.mxu0 %v7182
        %7359 = vmatpush1.bf16.msra.mxu0 %v7181
        %7360 = vmatprep.mubr.bf16.mxu0 %v6673
        %7361 = vmatmul.mubr.bf16.gmra.mrb[0].mxu0 %v6672
        %v7362 = vpop.f32.mrb[0].mxu0
        %v7363 = vadd.f32 0.0, %v7362
        %v7364 = vpop.f32.mrb[0].mxu0
        %v7365 = vadd.f32 0.0, %v7364
        %v7366 = vpop.f32.mrb[0].mxu0
        %v7367 = vadd.f32 0.0, %v7366
        %v7368 = vpop.f32.mrb[0].mxu0
        %v7369 = vadd.f32 0.0, %v7368
        %7370 = vmatprep.mubr.bf16.mxu0 %v6677
        %7371 = vmatmul.mubr.bf16.gmra.mrb[0].mxu0 %v6676
        %v7372 = vpop.f32.mrb[0].mxu0
        %v7373 = vadd.f32 0.0, %v7372
        %v7374 = vpop.f32.mrb[0].mxu0
        %v7375 = vadd.f32 0.0, %v7374
        %v7376 = vpop.f32.mrb[0].mxu0
        %v7377 = vadd.f32 0.0, %v7376
        %v7378 = vpop.f32.mrb[0].mxu0
        %v7379 = vadd.f32 0.0, %v7378
        %7380 = vmatprep.mubr.bf16.mxu0 %v6681
        %7381 = vmatmul.mubr.bf16.gmra.mrb[0].mxu0 %v6680
        %v7382 = vpop.f32.mrb[0].mxu0
        %v7383 = vadd.f32 0.0, %v7382
        %v7384 = vpop.f32.mrb[0].mxu0
        %v7385 = vadd.f32 0.0, %v7384
        %v7386 = vpop.f32.mrb[0].mxu0
        %v7387 = vadd.f32 0.0, %v7386
        %v7388 = vpop.f32.mrb[0].mxu0
        %v7389 = vadd.f32 0.0, %v7388
        %7390 = vmatprep.mubr.bf16.mxu0 %v6685
        %7391 = vmatmul.mubr.bf16.gmra.mrb[0].mxu0 %v6684
        %v7392 = vpop.f32.mrb[0].mxu0
        %v7393 = vadd.f32 0.0, %v7392
        %v7394 = vpop.f32.mrb[0].mxu0
        %v7395 = vadd.f32 0.0, %v7394
        %v7396 = vpop.f32.mrb[0].mxu0
        %v7397 = vadd.f32 0.0, %v7396
        %v7398 = vpop.f32.mrb[0].mxu0
        %v7399 = vadd.f32 0.0, %v7398
        %7400 = vdwg.mxu0
        %7401 = vmatprep.subr.bf16.mxu0 %v7185
        %7402 = vmatpush1.bf16.msra.mxu0 %v7184
        %7403 = vmatprep.subr.bf16.mxu0 %v7188
        %7404 = vmatpush1.bf16.msra.mxu0 %v7187
        %7405 = vmatprep.subr.bf16.mxu0 %v7191
        %7406 = vmatpush1.bf16.msra.mxu0 %v7190
        %7407 = vmatprep.subr.bf16.mxu0 %v7194
        %7408 = vmatpush1.bf16.msra.mxu0 %v7193
        %7409 = vmatprep.subr.bf16.mxu0 %v7197
        %7410 = vmatpush1.bf16.msra.mxu0 %v7196
        %7411 = vmatprep.subr.bf16.mxu0 %v7200
        %7412 = vmatpush1.bf16.msra.mxu0 %v7199
        %7413 = vmatprep.subr.bf16.mxu0 %v7203
        %7414 = vmatpush1.bf16.msra.mxu0 %v7202
        %7415 = vmatprep.subr.bf16.mxu0 %v7206
        %7416 = vmatpush1.bf16.msra.mxu0 %v7205
        %7417 = vmatprep.subr.bf16.mxu0 %v7209
        %7418 = vmatpush1.bf16.msra.mxu0 %v7208
        %7419 = vmatprep.subr.bf16.mxu0 %v7212
        %7420 = vmatpush1.bf16.msra.mxu0 %v7211
        %7421 = vmatprep.subr.bf16.mxu0 %v7215
        %7422 = vmatpush1.bf16.msra.mxu0 %v7214
        %7423 = vmatprep.subr.bf16.mxu0 %v7218
        %7424 = vmatpush1.bf16.msra.mxu0 %v7217
        %7425 = vmatprep.subr.bf16.mxu0 %v7221
        %7426 = vmatpush1.bf16.msra.mxu0 %v7220
        %7427 = vmatprep.subr.bf16.mxu0 %v7224
        %7428 = vmatpush1.bf16.msra.mxu0 %v7223
        %7429 = vmatprep.subr.bf16.mxu0 %v7227
        %7430 = vmatpush1.bf16.msra.mxu0 %v7226
        %7431 = vmatprep.subr.bf16.mxu0 %v7230
        %7432 = vmatpush1.bf16.msra.mxu0 %v7229
        %7433 = vmatprep.mubr.bf16.mxu0 %v6675
        %7434 = vmatmul.mubr.bf16.gmra.mrb[0].mxu0 %v6674
        %v7435 = vpop.f32.mrb[0].mxu0
        %v7436 = vadd.f32 %v7363, %v7435
        %v7437 = vpop.f32.mrb[0].mxu0
        %v7438 = vadd.f32 %v7365, %v7437
        %v7439 = vpop.f32.mrb[0].mxu0
        %v7440 = vadd.f32 %v7367, %v7439
        %v7441 = vpop.f32.mrb[0].mxu0
        %v7442 = vadd.f32 %v7369, %v7441
        %7443 = vmatprep.mubr.bf16.mxu0 %v6679
        %7444 = vmatmul.mubr.bf16.gmra.mrb[0].mxu0 %v6678
        %v7445 = vpop.f32.mrb[0].mxu0
        %v7446 = vadd.f32 %v7373, %v7445
        %v7447 = vpop.f32.mrb[0].mxu0
        %v7448 = vadd.f32 %v7375, %v7447
        %v7449 = vpop.f32.mrb[0].mxu0
        %v7450 = vadd.f32 %v7377, %v7449
        %v7451 = vpop.f32.mrb[0].mxu0
        %v7452 = vadd.f32 %v7379, %v7451
        %7453 = vmatprep.mubr.bf16.mxu0 %v6683
        %7454 = vmatmul.mubr.bf16.gmra.mrb[0].mxu0 %v6682
        %v7455 = vpop.f32.mrb[0].mxu0
        %v7456 = vadd.f32 %v7383, %v7455
        %v7457 = vpop.f32.mrb[0].mxu0
        %v7458 = vadd.f32 %v7385, %v7457
        %v7459 = vpop.f32.mrb[0].mxu0
        %v7460 = vadd.f32 %v7387, %v7459
        %v7461 = vpop.f32.mrb[0].mxu0
        %v7462 = vadd.f32 %v7389, %v7461
        %7463 = vmatprep.mubr.bf16.mxu0 %v6687
        %7464 = vmatmul.mubr.bf16.gmra.mrb[0].mxu0 %v6686
        %v7465 = vpop.f32.mrb[0].mxu0
        %v7466 = vadd.f32 %v7393, %v7465
        %v7467 = vpop.f32.mrb[0].mxu0
        %v7468 = vadd.f32 %v7395, %v7467
        %v7469 = vpop.f32.mrb[0].mxu0
        %v7470 = vadd.f32 %v7397, %v7469
        %v7471 = vpop.f32.mrb[0].mxu0
        %v7472 = vadd.f32 %v7399, %v7471
        %7473 = vdwg.mxu0
        %7474 = vmatprep.subr.bf16.mxu0 0
        %7475 = vmatpush1.bf16.msra.mxu0 %v7138
        %7476 = vmatprep.subr.bf16.mxu0 0
        %7477 = vmatpush1.bf16.msra.mxu0 %v7141
        %7478 = vmatprep.subr.bf16.mxu0 0
        %7479 = vmatpush1.bf16.msra.mxu0 %v7144
        %7480 = vmatprep.subr.bf16.mxu0 0
        %7481 = vmatpush1.bf16.msra.mxu0 %v7147
        %7482 = vmatprep.subr.bf16.mxu0 0
        %7483 = vmatpush1.bf16.msra.mxu0 %v7150
        %7484 = vmatprep.subr.bf16.mxu0 0
        %7485 = vmatpush1.bf16.msra.mxu0 %v7153
        %7486 = vmatprep.subr.bf16.mxu0 0
        %7487 = vmatpush1.bf16.msra.mxu0 %v7156
        %7488 = vmatprep.subr.bf16.mxu0 0
        %7489 = vmatpush1.bf16.msra.mxu0 %v7159
        %7490 = vmatprep.subr.bf16.mxu0 0
        %7491 = vmatpush1.bf16.msra.mxu0 %v7162
        %7492 = vmatprep.subr.bf16.mxu0 0
        %7493 = vmatpush1.bf16.msra.mxu0 %v7165
        %7494 = vmatprep.subr.bf16.mxu0 0
        %7495 = vmatpush1.bf16.msra.mxu0 %v7168
        %7496 = vmatprep.subr.bf16.mxu0 0
        %7497 = vmatpush1.bf16.msra.mxu0 %v7171
        %7498 = vmatprep.subr.bf16.mxu0 0
        %7499 = vmatpush1.bf16.msra.mxu0 %v7174
        %7500 = vmatprep.subr.bf16.mxu0 0
        %7501 = vmatpush1.bf16.msra.mxu0 %v7177
        %7502 = vmatprep.subr.bf16.mxu0 0
        %7503 = vmatpush1.bf16.msra.mxu0 %v7180
        %7504 = vmatprep.subr.bf16.mxu0 0
        %7505 = vmatpush1.bf16.msra.mxu0 %v7183
        %7506 = vmatprep.mubr.bf16.mxu0 %v6673
        %7507 = vmatmul.mubr.bf16.gmra.mrb[0].mxu0 %v6672
        %v7508 = vpop.f32.mrb[0].mxu0
        %v7509 = vadd.f32 0.0, %v7508
        %v7510 = vpop.f32.mrb[0].mxu0
        %v7511 = vpop.f32.mrb[0].mxu0
        %v7512 = vadd.f32 0.0, %v7511
        %v7513 = vpop.f32.mrb[0].mxu0
        %7514 = vmatprep.mubr.bf16.mxu0 %v6677
        %7515 = vmatmul.mubr.bf16.gmra.mrb[0].mxu0 %v6676
        %v7516 = vpop.f32.mrb[0].mxu0
        %v7517 = vadd.f32 0.0, %v7516
        %v7518 = vpop.f32.mrb[0].mxu0
        %v7519 = vpop.f32.mrb[0].mxu0
        %v7520 = vadd.f32 0.0, %v7519
        %v7521 = vpop.f32.mrb[0].mxu0
        %7522 = vmatprep.mubr.bf16.mxu0 %v6681
        %7523 = vmatmul.mubr.bf16.gmra.mrb[0].mxu0 %v6680
        %v7524 = vpop.f32.mrb[0].mxu0
        %v7525 = vadd.f32 0.0, %v7524
        %v7526 = vpop.f32.mrb[0].mxu0
        %v7527 = vpop.f32.mrb[0].mxu0
        %v7528 = vadd.f32 0.0, %v7527
        %v7529 = vpop.f32.mrb[0].mxu0
        %7530 = vmatprep.mubr.bf16.mxu0 %v6685
        %7531 = vmatmul.mubr.bf16.gmra.mrb[0].mxu0 %v6684
        %v7532 = vpop.f32.mrb[0].mxu0
        %v7533 = vadd.f32 0.0, %v7532
        %v7534 = vpop.f32.mrb[0].mxu0
        %v7535 = vpop.f32.mrb[0].mxu0
        %v7536 = vadd.f32 0.0, %v7535
        %v7537 = vpop.f32.mrb[0].mxu0
        %7538 = vdwg.mxu0
        %7539 = vmatprep.subr.bf16.mxu0 0
        %7540 = vmatpush1.bf16.msra.mxu0 %v7186
        %7541 = vmatprep.subr.bf16.mxu0 0
        %7542 = vmatpush1.bf16.msra.mxu0 %v7189
        %7543 = vmatprep.subr.bf16.mxu0 0
        %7544 = vmatpush1.bf16.msra.mxu0 %v7192
        %7545 = vmatprep.subr.bf16.mxu0 0
        %7546 = vmatpush1.bf16.msra.mxu0 %v7195
        %7547 = vmatprep.subr.bf16.mxu0 0
        %7548 = vmatpush1.bf16.msra.mxu0 %v7198
        %7549 = vmatprep.subr.bf16.mxu0 0
        %7550 = vmatpush1.bf16.msra.mxu0 %v7201
        %7551 = vmatprep.subr.bf16.mxu0 0
        %7552 = vmatpush1.bf16.msra.mxu0 %v7204
        %7553 = vmatprep.subr.bf16.mxu0 0
        %7554 = vmatpush1.bf16.msra.mxu0 %v7207
        %7555 = vmatprep.subr.bf16.mxu0 0
        %7556 = vmatpush1.bf16.msra.mxu0 %v7210
        %7557 = vmatprep.subr.bf16.mxu0 0
        %7558 = vmatpush1.bf16.msra.mxu0 %v7213
        %7559 = vmatprep.subr.bf16.mxu0 0
        %7560 = vmatpush1.bf16.msra.mxu0 %v7216
        %7561 = vmatprep.subr.bf16.mxu0 0
        %7562 = vmatpush1.bf16.msra.mxu0 %v7219
        %7563 = vmatprep.subr.bf16.mxu0 0
        %7564 = vmatpush1.bf16.msra.mxu0 %v7222
        %7565 = vmatprep.subr.bf16.mxu0 0
        %7566 = vmatpush1.bf16.msra.mxu0 %v7225
        %7567 = vmatprep.subr.bf16.mxu0 0
        %7568 = vmatpush1.bf16.msra.mxu0 %v7228
        %7569 = vmatprep.subr.bf16.mxu0 0
        %7570 = vmatpush1.bf16.msra.mxu0 %v7231
        %7571 = vmatprep.mubr.bf16.mxu0 %v6675
        %7572 = vmatmul.mubr.bf16.gmra.mrb[0].mxu0 %v6674
        %v7573 = vpop.f32.mrb[0].mxu0
        %v7574 = vadd.f32 %v7509, %v7573
        %v7575 = vpop.f32.mrb[0].mxu0
        %v7576 = vpop.f32.mrb[0].mxu0
        %v7577 = vadd.f32 %v7512, %v7576
        %v7578 = vpop.f32.mrb[0].mxu0
        %7579 = vmatprep.mubr.bf16.mxu0 %v6679
        %7580 = vmatmul.mubr.bf16.gmra.mrb[0].mxu0 %v6678
        %v7581 = vpop.f32.mrb[0].mxu0
        %v7582 = vadd.f32 %v7517, %v7581
        %v7583 = vpop.f32.mrb[0].mxu0
        %v7584 = vpop.f32.mrb[0].mxu0
        %v7585 = vadd.f32 %v7520, %v7584
        %v7586 = vpop.f32.mrb[0].mxu0
        %7587 = vmatprep.mubr.bf16.mxu0 %v6683
        %7588 = vmatmul.mubr.bf16.gmra.mrb[0].mxu0 %v6682
        %v7589 = vpop.f32.mrb[0].mxu0
        %v7590 = vadd.f32 %v7525, %v7589
        %v7591 = vpop.f32.mrb[0].mxu0
        %v7592 = vpop.f32.mrb[0].mxu0
        %v7593 = vadd.f32 %v7528, %v7592
        %v7594 = vpop.f32.mrb[0].mxu0
        %7595 = vmatprep.mubr.bf16.mxu0 %v6687
        %7596 = vmatmul.mubr.bf16.gmra.mrb[0].mxu0 %v6686
        %v7597 = vpop.f32.mrb[0].mxu0
        %v7598 = vadd.f32 %v7533, %v7597
        %v7599 = vpop.f32.mrb[0].mxu0
        %v7600 = vpop.f32.mrb[0].mxu0
        %v7601 = vadd.f32 %v7536, %v7600
        %v7602 = vpop.f32.mrb[0].mxu0
        %7603 = vdwg.mxu0
        %v7604 = vpack.c.bf16 %v7440, %v7436
        %v7605 = vpack.c.bf16 %v7450, %v7446
        %v7606 = vpack.c.bf16 %v7460, %v7456
        %v7607 = vpack.c.bf16 %v7470, %v7466
        %v7608 = vpack.c.bf16 %v7442, %v7438
        %v7609 = vpack.c.bf16 %v7452, %v7448
        %v7610 = vpack.c.bf16 %v7462, %v7458
        %v7611 = vpack.c.bf16 %v7472, %v7468
        %v7612 = vpack.c.bf16 %v7577, %v7574
        %v7613 = vpack.c.bf16 %v7585, %v7582
        %v7614 = vpack.c.bf16 %v7593, %v7590
        %v7615 = vpack.c.bf16 %v7601, %v7598
        %v7616 = vld [vmem:[%s10] sm:$0xf]
        %v7617 = vld [vmem:[%s10 + $0x4] sm:$0xf]
        %v7618 = vld [vmem:[%s10 + $0x8] sm:$0xf]
        %v7619 = vld [vmem:[%s10 + $0xc] sm:$0xf]
        %v7620 = vld [vmem:[%s10 + $0x10] sm:$0xf]
        %v7621 = vld [vmem:[%s10 + $0x14] sm:$0xf]
        %v7622 = vld [vmem:[%s10 + $0x18] sm:$0xf]
        %v7623 = vld [vmem:[%s10 + $0x1c] sm:$0xf]
        %v7624 = vld [vmem:[%s10 + $0x20] sm:$0xf]
        %v7625 = vld [vmem:[%s10 + $0x24] sm:$0xf]
        %v7626 = vld [vmem:[#allocation2] sm:$0x1]
        %v7628 = vlaneseq
        %v7629 = vshrl.u32 %v7628, 7
        %v7630 = vsub.s32 0, %v7629
        %v7631 = vrot.slane %v7626, %v7630
        %7632 = vset.pattern.permute.xlu0 0
        %7633 = vperm.xlu0 %7632, %v7631
        %v7634 = vpop.permute.xlu0 %7633
        %v7646 = vunpack.c.l.b16 %v7616
        %v7647 = vunpack.c.l.b16 %v7617
        %v7648 = vunpack.c.l.b16 %v7618
        %v7649 = vunpack.c.l.b16 %v7619
        %v7650 = vunpack.c.l.b16 %v7620
        %v7651 = vunpack.c.l.b16 %v7621
        %v7652 = vunpack.c.l.b16 %v7622
        %v7653 = vunpack.c.l.b16 %v7623
        %v7654 = vunpack.c.l.b16 %v7624
        %v7655 = vunpack.c.l.b16 %v7625
        %v7656 = vpack.c.b16 %v7647, %v7646
        %v7657 = vpack.c.b16 %v7649, %v7648
        %v7658 = vpack.c.b16 %v7651, %v7650
        %v7659 = vpack.c.b16 %v7653, %v7652
        %v7660 = vpack.c.b16 %v7655, %v7654
        %vm7661 = vcmask 392192
        %v7663 = vsel %vm7661, %v7656, 0
        %v7666 = vsel %vm7661, %v7657, 0
        %v7669 = vsel %vm7661, %v7658, 0
        %v7672 = vsel %vm7661, %v7659, 0
        %v7675 = vsel %vm7661, %v7660, 0
        %7677 = vmatprep.subr.bf16.mxu0 %v7605
        %7678 = vmatpush1.bf16.msra.mxu0 %v7604
        %7679 = vmatprep.subr.bf16.mxu0 %v7609
        %7680 = vmatpush1.bf16.msra.mxu0 %v7608
        %7681 = vmatprep.subr.bf16.mxu0 %v7613
        %7682 = vmatpush1.bf16.msra.mxu0 %v7612
        %7683 = vmatprep.subr.bf16.mxu0 0
        %7684 = vmatpush1.bf16.msra.mxu0 0
        %7685 = vmatprep.subr.bf16.mxu0 0
        %7686 = vmatpush1.bf16.msra.mxu0 0
        %7687 = vmatprep.subr.bf16.mxu0 0
        %7688 = vmatpush1.bf16.msra.mxu0 0
        %7689 = vmatprep.subr.bf16.mxu0 0
        %7690 = vmatpush1.bf16.msra.mxu0 0
        %7691 = vmatprep.subr.bf16.mxu0 0
        %7692 = vmatpush1.bf16.msra.mxu0 0
        %7693 = vmatprep.subr.bf16.mxu0 0
        %7694 = vmatpush1.bf16.msra.mxu0 0
        %7695 = vmatprep.subr.bf16.mxu0 0
        %7696 = vmatpush1.bf16.msra.mxu0 0
        %7697 = vmatprep.subr.bf16.mxu0 0
        %7698 = vmatpush1.bf16.msra.mxu0 0
        %7699 = vmatprep.subr.bf16.mxu0 0
        %7700 = vmatpush1.bf16.msra.mxu0 0
        %7701 = vmatprep.subr.bf16.mxu0 0
        %7702 = vmatpush1.bf16.msra.mxu0 0
        %7703 = vmatprep.subr.bf16.mxu0 0
        %7704 = vmatpush1.bf16.msra.mxu0 0
        %7705 = vmatprep.subr.bf16.mxu0 0
        %7706 = vmatpush1.bf16.msra.mxu0 0
        %7707 = vmatprep.subr.bf16.mxu0 0
        %7708 = vmatpush1.bf16.msra.mxu0 0
        %7709 = vmatprep.mubr.bf16.mxu0 0
        %7710 = vmatmul.mubr.bf16.gmra.mrb[0].mxu0 %v7663
        %v7711 = vpop.f32.mrb[0].mxu0
        %v7712 = vadd.f32 %v7634, %v7711
        %v7713 = vpop.f32.mrb[0].mxu0
        %v7714 = vadd.f32 %v7634, %v7713
        %v7715 = vpop.f32.mrb[0].mxu0
        %v7716 = vadd.f32 %v7634, %v7715
        %v7717 = vpop.f32.mrb[0].mxu0
        %v7718 = vadd.f32 %v7634, %v7717
        %7719 = vmatprep.mubr.bf16.mxu0 0
        %7720 = vmatmul.mubr.bf16.gmra.mrb[0].mxu0 %v7666
        %v7721 = vpop.f32.mrb[0].mxu0
        %v7722 = vadd.f32 %v7634, %v7721
        %v7723 = vpop.f32.mrb[0].mxu0
        %v7724 = vadd.f32 %v7634, %v7723
        %v7725 = vpop.f32.mrb[0].mxu0
        %v7726 = vadd.f32 %v7634, %v7725
        %v7727 = vpop.f32.mrb[0].mxu0
        %v7728 = vadd.f32 %v7634, %v7727
        %7729 = vmatprep.mubr.bf16.mxu0 0
        %7730 = vmatmul.mubr.bf16.gmra.mrb[0].mxu0 %v7669
        %v7731 = vpop.f32.mrb[0].mxu0
        %v7732 = vadd.f32 %v7634, %v7731
        %v7733 = vpop.f32.mrb[0].mxu0
        %v7734 = vadd.f32 %v7634, %v7733
        %v7735 = vpop.f32.mrb[0].mxu0
        %v7736 = vadd.f32 %v7634, %v7735
        %v7737 = vpop.f32.mrb[0].mxu0
        %v7738 = vadd.f32 %v7634, %v7737
        %7739 = vmatprep.mubr.bf16.mxu0 0
        %7740 = vmatmul.mubr.bf16.gmra.mrb[0].mxu0 %v7672
        %v7741 = vpop.f32.mrb[0].mxu0
        %v7742 = vadd.f32 %v7634, %v7741
        %v7743 = vpop.f32.mrb[0].mxu0
        %v7744 = vadd.f32 %v7634, %v7743
        %v7745 = vpop.f32.mrb[0].mxu0
        %v7746 = vadd.f32 %v7634, %v7745
        %v7747 = vpop.f32.mrb[0].mxu0
        %v7748 = vadd.f32 %v7634, %v7747
        %7749 = vmatprep.mubr.bf16.mxu0 0
        %7750 = vmatmul.mubr.bf16.gmra.mrb[0].mxu0 %v7675
        %v7751 = vpop.f32.mrb[0].mxu0
        %v7752 = vadd.f32 %v7634, %v7751
        %v7753 = vpop.f32.mrb[0].mxu0
        %v7754 = vadd.f32 %v7634, %v7753
        %v7755 = vpop.f32.mrb[0].mxu0
        %v7756 = vadd.f32 %v7634, %v7755
        %v7757 = vpop.f32.mrb[0].mxu0
        %v7758 = vadd.f32 %v7634, %v7757
        %7759 = vdwg.mxu0
        %7760 = vmatprep.subr.bf16.mxu0 %v7607
        %7761 = vmatpush1.bf16.msra.mxu0 %v7606
        %7762 = vmatprep.subr.bf16.mxu0 %v7611
        %7763 = vmatpush1.bf16.msra.mxu0 %v7610
        %7764 = vmatprep.subr.bf16.mxu0 %v7615
        %7765 = vmatpush1.bf16.msra.mxu0 %v7614
        %7766 = vmatprep.subr.bf16.mxu0 0
        %7767 = vmatpush1.bf16.msra.mxu0 0
        %7768 = vmatprep.subr.bf16.mxu0 0
        %7769 = vmatpush1.bf16.msra.mxu0 0
        %7770 = vmatprep.subr.bf16.mxu0 0
        %7771 = vmatpush1.bf16.msra.mxu0 0
        %7772 = vmatprep.subr.bf16.mxu0 0
        %7773 = vmatpush1.bf16.msra.mxu0 0
        %7774 = vmatprep.subr.bf16.mxu0 0
        %7775 = vmatpush1.bf16.msra.mxu0 0
        %7776 = vmatprep.subr.bf16.mxu0 0
        %7777 = vmatpush1.bf16.msra.mxu0 0
        %7778 = vmatprep.subr.bf16.mxu0 0
        %7779 = vmatpush1.bf16.msra.mxu0 0
        %7780 = vmatprep.subr.bf16.mxu0 0
        %7781 = vmatpush1.bf16.msra.mxu0 0
        %7782 = vmatprep.subr.bf16.mxu0 0
        %7783 = vmatpush1.bf16.msra.mxu0 0
        %7784 = vmatprep.subr.bf16.mxu0 0
        %7785 = vmatpush1.bf16.msra.mxu0 0
        %7786 = vmatprep.subr.bf16.mxu0 0
        %7787 = vmatpush1.bf16.msra.mxu0 0
        %7788 = vmatprep.subr.bf16.mxu0 0
        %7789 = vmatpush1.bf16.msra.mxu0 0
        %7790 = vmatprep.subr.bf16.mxu0 0
        %7791 = vmatpush1.bf16.msra.mxu0 0
        %7792 = vmatprep.mubr.bf16.mxu0 0
        %7793 = vmatmul.mubr.bf16.gmra.mrb[0].mxu0 %v7663
        %v7794 = vpop.f32.mrb[0].mxu0
        %v7795 = vadd.f32 %v7634, %v7794
        %v7796 = vpop.f32.mrb[0].mxu0
        %v7797 = vadd.f32 %v7634, %v7796
        %v7798 = vpop.f32.mrb[0].mxu0
        %v7799 = vadd.f32 %v7634, %v7798
        %v7800 = vpop.f32.mrb[0].mxu0
        %v7801 = vadd.f32 %v7634, %v7800
        %7802 = vmatprep.mubr.bf16.mxu0 0
        %7803 = vmatmul.mubr.bf16.gmra.mrb[0].mxu0 %v7666
        %v7804 = vpop.f32.mrb[0].mxu0
        %v7805 = vadd.f32 %v7634, %v7804
        %v7806 = vpop.f32.mrb[0].mxu0
        %v7807 = vadd.f32 %v7634, %v7806
        %v7808 = vpop.f32.mrb[0].mxu0
        %v7809 = vadd.f32 %v7634, %v7808
        %v7810 = vpop.f32.mrb[0].mxu0
        %v7811 = vadd.f32 %v7634, %v7810
        %7812 = vmatprep.mubr.bf16.mxu0 0
        %7813 = vmatmul.mubr.bf16.gmra.mrb[0].mxu0 %v7669
        %v7814 = vpop.f32.mrb[0].mxu0
        %v7815 = vadd.f32 %v7634, %v7814
        %v7816 = vpop.f32.mrb[0].mxu0
        %v7817 = vadd.f32 %v7634, %v7816
        %v7818 = vpop.f32.mrb[0].mxu0
        %v7819 = vadd.f32 %v7634, %v7818
        %v7820 = vpop.f32.mrb[0].mxu0
        %v7821 = vadd.f32 %v7634, %v7820
        %7822 = vmatprep.mubr.bf16.mxu0 0
        %7823 = vmatmul.mubr.bf16.gmra.mrb[0].mxu0 %v7672
        %v7824 = vpop.f32.mrb[0].mxu0
        %v7825 = vadd.f32 %v7634, %v7824
        %v7826 = vpop.f32.mrb[0].mxu0
        %v7827 = vadd.f32 %v7634, %v7826
        %v7828 = vpop.f32.mrb[0].mxu0
        %v7829 = vadd.f32 %v7634, %v7828
        %v7830 = vpop.f32.mrb[0].mxu0
        %v7831 = vadd.f32 %v7634, %v7830
        %7832 = vmatprep.mubr.bf16.mxu0 0
        %7833 = vmatmul.mubr.bf16.gmra.mrb[0].mxu0 %v7675
        %v7834 = vpop.f32.mrb[0].mxu0
        %v7835 = vadd.f32 %v7634, %v7834
        %v7836 = vpop.f32.mrb[0].mxu0
        %v7837 = vadd.f32 %v7634, %v7836
        %v7838 = vpop.f32.mrb[0].mxu0
        %v7839 = vadd.f32 %v7634, %v7838
        %v7840 = vpop.f32.mrb[0].mxu0
        %v7841 = vadd.f32 %v7634, %v7840
        %7842 = vdwg.mxu0
        %7843 = vst [vmem:[%s564] sm:$0xff] %v7712
        %7844 = vst [vmem:[%s564 + $0x8] sm:$0xff] %v7716
        %7845 = vst [vmem:[%s564 + $0x10] sm:$0xff] %v7722
        %7846 = vst [vmem:[%s564 + $0x18] sm:$0xff] %v7726
        %7847 = vst [vmem:[%s564 + $0x20] sm:$0xff] %v7732
        %7848 = vst [vmem:[%s564 + $0x28] sm:$0xff] %v7736
        %7849 = vst [vmem:[%s564 + $0x30] sm:$0xff] %v7742
        %7850 = vst [vmem:[%s564 + $0x38] sm:$0xff] %v7746
        %7851 = vst [vmem:[%s564 + $0x40] sm:$0xff] %v7752
        %7852 = vst [vmem:[%s564 + $0x48] sm:$0xff] %v7756
        %s7853 = scalar_lea.vmem %s564, 80
        %7854 = vst [vmem:[%s7853] sm:$0xff] %v7714
        %7855 = vst [vmem:[%s7853 + $0x8] sm:$0xff] %v7718
        %7856 = vst [vmem:[%s7853 + $0x10] sm:$0xff] %v7724
        %7857 = vst [vmem:[%s7853 + $0x18] sm:$0xff] %v7728
        %7858 = vst [vmem:[%s7853 + $0x20] sm:$0xff] %v7734
        %7859 = vst [vmem:[%s7853 + $0x28] sm:$0xff] %v7738
        %7860 = vst [vmem:[%s7853 + $0x30] sm:$0xff] %v7744
        %7861 = vst [vmem:[%s7853 + $0x38] sm:$0xff] %v7748
        %7862 = vst [vmem:[%s7853 + $0x40] sm:$0xff] %v7754
        %7863 = vst [vmem:[%s7853 + $0x48] sm:$0xff] %v7758
        %s7864 = scalar_lea.vmem %s564, 160
        %7865 = vst [vmem:[%s7864] sm:$0xff] %v7795
        %7866 = vst [vmem:[%s7864 + $0x8] sm:$0xff] %v7799
        %7867 = vst [vmem:[%s7864 + $0x10] sm:$0xff] %v7805
        %7868 = vst [vmem:[%s7864 + $0x18] sm:$0xff] %v7809
        %7869 = vst [vmem:[%s7864 + $0x20] sm:$0xff] %v7815
        %7870 = vst [vmem:[%s7864 + $0x28] sm:$0xff] %v7819
        %7871 = vst [vmem:[%s7864 + $0x30] sm:$0xff] %v7825
        %7872 = vst [vmem:[%s7864 + $0x38] sm:$0xff] %v7829
        %7873 = vst [vmem:[%s7864 + $0x40] sm:$0xff] %v7835
        %7874 = vst [vmem:[%s7864 + $0x48] sm:$0xff] %v7839
        %s7875 = scalar_lea.vmem %s564, 240
        %7876 = vst [vmem:[%s7875] sm:$0xff] %v7797
        %7877 = vst [vmem:[%s7875 + $0x8] sm:$0xff] %v7801
        %7878 = vst [vmem:[%s7875 + $0x10] sm:$0xff] %v7807
        %7879 = vst [vmem:[%s7875 + $0x18] sm:$0xff] %v7811
        %7880 = vst [vmem:[%s7875 + $0x20] sm:$0xff] %v7817
        %7881 = vst [vmem:[%s7875 + $0x28] sm:$0xff] %v7821
        %7882 = vst [vmem:[%s7875 + $0x30] sm:$0xff] %v7827
        %7883 = vst [vmem:[%s7875 + $0x38] sm:$0xff] %v7831
        %7884 = vst [vmem:[%s7875 + $0x40] sm:$0xff] %v7837
        %7885 = vst [vmem:[%s7875 + $0x48] sm:$0xff] %v7841
        %s7886 = smul.u32 4, %s33
        %p7887 = scmp.lt.s32.totalorder %s7886, 7
        %s7888 = scalar_select %p7887, %s7886, 7
        %s7889 = smul.addr %s7888, 10
        %s7890 = smul.addr %s7889, 8
        %s7891 = scalar_lea.vmem %s12, %s7890
        // Predicated region
        $region109: #{cnn_model_forward.1} parent=67 // pred_check
          %p7892 = pneg %p308
        $region110: #{cnn_model_forward.1} parent=67 // pred_check_branch
          %7894 = sbr.rel (%p7892) target = $region112
        $region111: #{cnn_model_forward.1} parent=67 // pred_region
          %s7895 = smul.u32 4, %s33
        $region112: #{cnn_model_forward.1} parent=67 // pred_fallthru
          _
      $region68: #{cnn_model_forward.1} parent=5 // pred_fallthru
        _
      %p7896 = scmp.le.s32.totalorder 2, %s28
      // Predicated region
      $region113: #{cnn_model_forward.1} parent=5 // pred_check
        %p7897 = pneg %p7896
      $region114: #{cnn_model_forward.1} parent=5 // pred_check_branch
        %7899 = sbr.rel (%p7897) target = $region116
      $region115: #{cnn_model_forward.1} parent=5 // pred_region
        %s7900 = ssub.s32 %s28, 2
        // Predicated region
        $region117: #{cnn_model_forward.1} parent=115 // pred_check
          %p7901 = pneg %p314
        $region118: #{cnn_model_forward.1} parent=115 // pred_check_branch
          %7903 = sbr.rel (%p7901) target = $region120
        $region119: #{cnn_model_forward.1} parent=115 // pred_region
          %s7904 = smul.u32 4, %s34
          %p7905 = scmp.lt.s32.totalorder %s7904, 7
          %s7906 = scalar_select %p7905, %s7904, 7
          %s7907 = smul.addr %s7906, 10
          %s7908 = smul.addr %s7907, 8
          %s7909 = scalar_lea.vmem %s12, %s7908
        $region120: #{cnn_model_forward.1} parent=115 // pred_fallthru
          _
      $region116: #{cnn_model_forward.1} parent=5 // pred_fallthru
        _
    $region6: #{cnn_model_forward.1} parent=1 // loop_footer
      %s32 = sadd.s32 1, %s28
    $region7: #{cnn_model_forward.1} parent=1 // loop_footer_branch
      %27 = sbr.rel target = $region3
    $region8: #{cnn_model_forward.1} parent=1 // loop_exit
      _
    %7910 = vsyncpa [#allocation4], 1
    %s7911 = scalar_lea.sflag [#allocation4], 1
    %7912 = vsyncpa %s7911, 1
    %7913 = vsyncpa [#allocation6], 1
    %7914 = vsyncpa [#allocation9], 1
    %7915 = vsyncpa [#allocation12], 1
    %7916 = vsyncpa [#allocation15], 1
    %7917 = vsyncpa [#allocation18], 1

</llo_original>
